<compile_context>
chip_gen: v7x
topology: tpu7x:2x2x1
jax: 0.10.0
libtpu: 0.0.40
codegen_flags: <defaults>
</compile_context>

<pallas_src>
import jax
import jax.numpy as jnp
from jax.experimental import pallas as pl
from jax.experimental.pallas import tpu as pltpu

LEAKY_SLOPE = 0.1   # GolfMLP constructs nn.LeakyReLU(0.1)
LN_EPS = 1e-5       # PyTorch nn.LayerNorm default eps
IN_PAD = 128        # pad input features 56 -> 128 (lane-dense first matmul)
OUT_PAD = 128       # pad Q-value output 9 -> 128 (lane-dense writeback; sliced off)

# TODO(synk): training-mode Dropout (p=0.2 / 0.15) is not implemented -- this kernel
# matches the eval/inference forward only.


def _layer_norm(x, gamma, beta):
    # Two-pass (centered) variance: robust and same cost as one-pass, since
    # (x - mean) is needed for the normalization anyway. Biased var (PyTorch LN).
    mean = jnp.mean(x, axis=-1, keepdims=True)
    c = x - mean
    var = jnp.mean(c * c, axis=-1, keepdims=True)
    inv = jax.lax.rsqrt(var + LN_EPS)
    return c * inv * gamma + beta


def _leaky_relu_bf16(x_f32):
    # For slope < 1: leaky_relu(x) == max(x, slope*x). Done in bf16 so the result
    # feeds the next MXU dot directly (the dot input would be bf16 regardless).
    xb = x_f32.astype(jnp.bfloat16)
    return jnp.maximum(xb, LEAKY_SLOPE * xb)


def golf_mlp_kernel(x_ref, *refs):
    """Whole-MLP forward for one batch tile; all bf16 weights resident in VMEM.

    refs layout: (w1, vec1, ..., w6, vec6, out_ref) where vec_i for hidden layers
    is (3, N) = [bias; gamma; beta] (f32) and vec6 is the (1, OUT_PAD) final bias.
    """
    out_ref = refs[-1]
    prm = refs[:-1]
    n_layers = len(prm) // 2

    h = x_ref[...]                                      # bf16 (block_b, IN_PAD)
    # Hidden blocks: Linear -> LayerNorm -> LeakyReLU (Dropout = identity in eval).
    for li in range(n_layers - 1):
        w, vec = prm[2 * li], prm[2 * li + 1]
        z = jnp.dot(h, w[...], preferred_element_type=jnp.float32) + vec[0:1, :]
        z = _layer_norm(z, vec[1:2, :], vec[2:3, :])
        h = _leaky_relu_bf16(z)
    # Final projection to (padded) Q-values: no norm / activation.
    w, b = prm[-2], prm[-1]
    out_ref[...] = jnp.dot(h, w[...], preferred_element_type=jnp.float32) + b[...]


def init_params(key, input_size=56, hidden_size=512, output_size=9):
    """Deterministic init mirroring GolfMLP._initialize_weights.

    kaiming_normal_(nonlinearity='leaky_relu', a=0) -> std = sqrt(2)/sqrt(fan_in);
    bias = 0.01; LayerNorm gamma = 1, beta = 0. Weights stored (fan_in, fan_out).
    """
    dims = [(input_size, hidden_size),
            (hidden_size, hidden_size),
            (hidden_size, hidden_size),
            (hidden_size, hidden_size // 2),
            (hidden_size // 2, hidden_size // 2),
            (hidden_size // 2, output_size)]
    linears = []
    for fan_in, fan_out in dims:
        key, wk = jax.random.split(key)
        std = (2.0 ** 0.5) / (fan_in ** 0.5)
        w = std * jax.random.normal(wk, (fan_in, fan_out), jnp.float32)
        b = jnp.full((1, fan_out), 0.01, jnp.float32)
        linears.append((w, b))
    ln = []
    for d in (hidden_size, hidden_size, hidden_size,
              hidden_size // 2, hidden_size // 2):
        ln.append((jnp.ones((1, d), jnp.float32), jnp.zeros((1, d), jnp.float32)))
    return linears, ln


def prepare_params(linears, ln):
    """One-time preprocessing (hoisted out of the per-call wrapper):
      * pad first-layer fan-in 56 -> IN_PAD and last-layer fan-out 9 -> OUT_PAD,
      * cast all weights to bf16 (MXU inputs; accumulation stays f32 in-kernel),
      * pack each hidden layer's (bias, gamma, beta) into one (3, N) f32 array.
    Returns a dict reusable across golf_mlp() calls.
    """
    # TODO(synk): optional fp8 (e4m3) weights for the 512x512 layers on v7x,
    # pending an accuracy validation pass.
    in_dim = linears[0][0].shape[0]
    out_dim = linears[-1][0].shape[1]
    n = len(linears)
    layers = []
    for idx, (w, b) in enumerate(linears):
        w = jnp.asarray(w, jnp.float32)
        b = jnp.asarray(b, jnp.float32).reshape(1, -1)
        if idx == 0:
            # Zero-pad fan-in rows 56 -> IN_PAD (padded x columns contribute 0).
            w = jnp.zeros((IN_PAD, w.shape[1]), jnp.float32).at[:in_dim, :].set(w)
        if idx == n - 1:
            # Zero-pad fan-out cols 9 -> OUT_PAD (extra lanes sliced off afterwards).
            w = jnp.zeros((w.shape[0], OUT_PAD), jnp.float32).at[:, :out_dim].set(w)
            b = jnp.zeros((1, OUT_PAD), jnp.float32).at[:, :out_dim].set(b)
            vec = b                                          # (1, OUT_PAD)
        else:
            g, be = ln[idx]
            vec = jnp.concatenate(
                [b,
                 jnp.asarray(g, jnp.float32).reshape(1, -1),
                 jnp.asarray(be, jnp.float32).reshape(1, -1)], axis=0)  # (3, N)
        layers.append((w.astype(jnp.bfloat16), vec))
    return {"layers": layers, "in_dim": in_dim, "out_dim": out_dim}


def _choose_block_b(batch, target_grid=2, max_block=1024):
    """Batch tile selection: balanced across `target_grid` grid steps (>=2 keeps
    both v7x TensorCores busy; use 1 on single-TC v5e/v6e to minimize per-step
    overhead), rounded to a multiple of 16 (bf16 sublane packing) so typical
    batches incur no dead zero-padded rows."""
    per_step = pl.cdiv(batch, target_grid)
    blk = ((per_step + 15) // 16) * 16
    return int(max(16, min(blk, max_block)))


def golf_mlp(x, prepared, *, block_b=None, target_grid=2):
    """Pallas wrapper. `prepared` comes from prepare_params() (padded bf16 weights,
    packed vectors); only the input padding/cast happens per call."""
    B, in_dim = x.shape
    assert in_dim == prepared["in_dim"] and in_dim <= IN_PAD
    out_dim = prepared["out_dim"]

    if block_b is None:
        block_b = _choose_block_b(B, target_grid)
    b_pad = pl.cdiv(B, block_b) * block_b

    # Pad batch (no dead rows for typical B with auto block_b) and features
    # 56 -> IN_PAD; cast once to bf16 so the per-tile input DMA is halved vs f32.
    x_p = jnp.zeros((b_pad, IN_PAD), jnp.bfloat16)
    x_p = x_p.at[:B, :in_dim].set(x.astype(jnp.bfloat16))

    flat_args = []
    in_specs = [pl.BlockSpec((block_b, IN_PAD), lambda i: (i, 0))]
    for w, vec in prepared["layers"]:
        flat_args += [w, vec]
        # Constant block index -> params stay resident in VMEM, never re-DMA'd.
        in_specs += [pl.BlockSpec(w.shape, lambda i: (0, 0)),
                     pl.BlockSpec(vec.shape, lambda i: (0, 0))]

    y_pad = pl.pallas_call(
        golf_mlp_kernel,
        out_shape=jax.ShapeDtypeStruct((b_pad, OUT_PAD), jnp.float32),
        grid_spec=pltpu.PrefetchScalarGridSpec(
            num_scalar_prefetch=0,
            grid=(b_pad // block_b,),
            in_specs=in_specs,
            out_specs=pl.BlockSpec((block_b, OUT_PAD), lambda i: (i, 0)),
        ),
        compiler_params=pltpu.CompilerParams(
            dimension_semantics=("parallel",),
            vmem_limit_bytes=32 << 20,    # few-MiB footprint; safe on v7x (64 MiB)
        ),
    )(x_p, *flat_args)

    return y_pad[:B, :out_dim].astype(x.dtype)


def golf_mlp_reference(x, linears, ln):
    """Plain-JAX reference mirroring the kernel numerics exactly
    (bf16 MXU inputs, f32 accumulation + LayerNorm, bf16 LeakyReLU)."""
    h = x.astype(jnp.bfloat16)
    for idx, (w, b) in enumerate(linears[:-1]):
        z = jnp.dot(h, w.astype(jnp.bfloat16),
                    preferred_element_type=jnp.float32) + b
        g, be = ln[idx]
        z = _layer_norm(z, g, be)
        h = _leaky_relu_bf16(z)
    w, b = linears[-1]
    return jnp.dot(h, w.astype(jnp.bfloat16),
                   preferred_element_type=jnp.float32) + b


if __name__ == "__main__":
    key = jax.random.PRNGKey(0)
    kx, kp = jax.random.split(key)

    B, IN, HID, OUT = 384, 56, 512, 9
    x = jax.random.normal(kx, (B, IN), jnp.float32)
    linears, ln = init_params(kp, IN, HID, OUT)

    # One-time param preprocessing (padding / bf16 cast / vector packing).
    prepared = prepare_params(linears, ln)
    jax.block_until_ready(jax.tree_util.tree_leaves(prepared["layers"]))

    # Auto block_b: B=384, target_grid=2 -> block_b=192, grid=2, zero dead rows.
    y = golf_mlp(x, prepared, target_grid=2)
    jax.block_until_ready(y)

    y_ref = golf_mlp_reference(x, linears, ln)
    assert y.shape == (B, OUT), y.shape
    assert jnp.allclose(y, y_ref, atol=2e-2, rtol=2e-2), "mismatch vs reference"

    print("KERNEL_OK")
</pallas_src>

<mosaic_0001>
module attributes {stable_mosaic.version = 11 : i64} {
  func.func @golf_mlp_kernel(%arg0: i32, %arg1: memref<192x128xbf16, #tpu.memory_space<vmem>>, %arg2: memref<128x512xbf16, #tpu.memory_space<vmem>>, %arg3: memref<3x512xf32, #tpu.memory_space<vmem>>, %arg4: memref<512x512xbf16, #tpu.memory_space<vmem>>, %arg5: memref<3x512xf32, #tpu.memory_space<vmem>>, %arg6: memref<512x512xbf16, #tpu.memory_space<vmem>>, %arg7: memref<3x512xf32, #tpu.memory_space<vmem>>, %arg8: memref<512x256xbf16, #tpu.memory_space<vmem>>, %arg9: memref<3x256xf32, #tpu.memory_space<vmem>>, %arg10: memref<256x256xbf16, #tpu.memory_space<vmem>>, %arg11: memref<3x256xf32, #tpu.memory_space<vmem>>, %arg12: memref<256x128xbf16, #tpu.memory_space<vmem>>, %arg13: memref<1x128xf32, #tpu.memory_space<vmem>>, %arg14: memref<192x128xf32, #tpu.memory_space<vmem>>) attributes {dimension_semantics = [#tpu.dimension_semantics<parallel>], iteration_bounds = array<i64: 2>, scalar_prefetch = 0 : i64, scratch_operands = 0 : i64, tpu.core_type = #tpu.core_type<tc>, window_params = [{transform_indices = @transform_0, window_bounds = array<i64: 192, 128>}, {pipeline_mode = #tpu.pipeline_mode<synchronous>, transform_indices = @transform_1, window_bounds = array<i64: 128, 512>}, {pipeline_mode = #tpu.pipeline_mode<synchronous>, transform_indices = @transform_2, window_bounds = array<i64: 3, 512>}, {pipeline_mode = #tpu.pipeline_mode<synchronous>, transform_indices = @transform_3, window_bounds = array<i64: 512, 512>}, {pipeline_mode = #tpu.pipeline_mode<synchronous>, transform_indices = @transform_4, window_bounds = array<i64: 3, 512>}, {pipeline_mode = #tpu.pipeline_mode<synchronous>, transform_indices = @transform_5, window_bounds = array<i64: 512, 512>}, {pipeline_mode = #tpu.pipeline_mode<synchronous>, transform_indices = @transform_6, window_bounds = array<i64: 3, 512>}, {pipeline_mode = #tpu.pipeline_mode<synchronous>, transform_indices = @transform_7, window_bounds = array<i64: 512, 256>}, {pipeline_mode = #tpu.pipeline_mode<synchronous>, transform_indices = @transform_8, window_bounds = array<i64: 3, 256>}, {pipeline_mode = #tpu.pipeline_mode<synchronous>, transform_indices = @transform_9, window_bounds = array<i64: 256, 256>}, {pipeline_mode = #tpu.pipeline_mode<synchronous>, transform_indices = @transform_10, window_bounds = array<i64: 3, 256>}, {pipeline_mode = #tpu.pipeline_mode<synchronous>, transform_indices = @transform_11, window_bounds = array<i64: 256, 128>}, {pipeline_mode = #tpu.pipeline_mode<synchronous>, transform_indices = @transform_12, window_bounds = array<i64: 1, 128>}, {transform_indices = @transform_13, window_bounds = array<i64: 192, 128>}]} {
    %c0 = arith.constant 0 : index
    %c0_0 = arith.constant 0 : index
    %0 = vector.load %arg1[%c0, %c0_0] : memref<192x128xbf16, #tpu.memory_space<vmem>>, vector<192x128xbf16>
    %c0_1 = arith.constant 0 : index
    %c0_2 = arith.constant 0 : index
    %1 = vector.load %arg2[%c0_1, %c0_2] : memref<128x512xbf16, #tpu.memory_space<vmem>>, vector<128x512xbf16>
    %cst = arith.constant dense<0.000000e+00> : vector<192x512xf32>
    %2 = tpu.matmul %0, %1, %cst {dimension_numbers = #tpu.dot_dimension_numbers<[1], [0], [0], [1], [0, 0, 1, 1], [], []>} : vector<192x128xbf16>, vector<128x512xbf16>, vector<192x512xf32> -> vector<192x512xf32>
    %c0_3 = arith.constant 0 : index
    %c0_4 = arith.constant 0 : index
    %3 = vector.load %arg3[%c0_3, %c0_4] : memref<3x512xf32, #tpu.memory_space<vmem>>, vector<1x512xf32>
    %4 = vector.broadcast %3 : vector<1x512xf32> to vector<192x512xf32>
    %5 = arith.addf %2, %4 : vector<192x512xf32>
    %c1 = arith.constant 1 : index
    %c0_5 = arith.constant 0 : index
    %6 = vector.load %arg3[%c1, %c0_5] : memref<3x512xf32, #tpu.memory_space<vmem>>, vector<1x512xf32>
    %c2 = arith.constant 2 : index
    %c0_6 = arith.constant 0 : index
    %7 = vector.load %arg3[%c2, %c0_6] : memref<3x512xf32, #tpu.memory_space<vmem>>, vector<1x512xf32>
    %cst_7 = arith.constant dense<0.000000e+00> : vector<192xf32>
    %8 = vector.multi_reduction <add>, %5, %cst_7 [1] : vector<192x512xf32> to vector<192xf32>
    %9 = vector.shape_cast %8 : vector<192xf32> to vector<192x1xf32>
    %cst_8 = arith.constant 5.120000e+02 : f32
    %10 = vector.broadcast %cst_8 : f32 to vector<192x1xf32>
    %11 = arith.divf %9, %10 : vector<192x1xf32>
    %12 = vector.broadcast %11 : vector<192x1xf32> to vector<192x512xf32>
    %13 = arith.subf %5, %12 : vector<192x512xf32>
    %14 = arith.mulf %13, %13 : vector<192x512xf32>
    %cst_9 = arith.constant dense<0.000000e+00> : vector<192xf32>
    %15 = vector.multi_reduction <add>, %14, %cst_9 [1] : vector<192x512xf32> to vector<192xf32>
    %16 = vector.shape_cast %15 : vector<192xf32> to vector<192x1xf32>
    %cst_10 = arith.constant 5.120000e+02 : f32
    %17 = vector.broadcast %cst_10 : f32 to vector<192x1xf32>
    %18 = arith.divf %16, %17 : vector<192x1xf32>
    %cst_11 = arith.constant 9.99999974E-6 : f32
    %19 = vector.broadcast %cst_11 : f32 to vector<192x1xf32>
    %20 = arith.addf %18, %19 : vector<192x1xf32>
    %21 = math.rsqrt %20 : vector<192x1xf32>
    %22 = vector.broadcast %21 : vector<192x1xf32> to vector<192x512xf32>
    %23 = arith.mulf %13, %22 : vector<192x512xf32>
    %24 = vector.broadcast %6 : vector<1x512xf32> to vector<192x512xf32>
    %25 = arith.mulf %23, %24 : vector<192x512xf32>
    %26 = vector.broadcast %7 : vector<1x512xf32> to vector<192x512xf32>
    %27 = arith.addf %25, %26 : vector<192x512xf32>
    %28 = arith.truncf %27 : vector<192x512xf32> to vector<192x512xbf16>
    %cst_12 = arith.constant 1.000980e-01 : bf16
    %29 = vector.broadcast %cst_12 : bf16 to vector<192x512xbf16>
    %30 = arith.mulf %29, %28 : vector<192x512xbf16>
    %31 = arith.maximumf %28, %30 : vector<192x512xbf16>
    %c0_13 = arith.constant 0 : index
    %c0_14 = arith.constant 0 : index
    %32 = vector.load %arg4[%c0_13, %c0_14] : memref<512x512xbf16, #tpu.memory_space<vmem>>, vector<512x512xbf16>
    %cst_15 = arith.constant dense<0.000000e+00> : vector<192x512xf32>
    %33 = tpu.matmul %31, %32, %cst_15 {dimension_numbers = #tpu.dot_dimension_numbers<[1], [0], [0], [1], [0, 0, 1, 1], [], []>} : vector<192x512xbf16>, vector<512x512xbf16>, vector<192x512xf32> -> vector<192x512xf32>
    %c0_16 = arith.constant 0 : index
    %c0_17 = arith.constant 0 : index
    %34 = vector.load %arg5[%c0_16, %c0_17] : memref<3x512xf32, #tpu.memory_space<vmem>>, vector<1x512xf32>
    %35 = vector.broadcast %34 : vector<1x512xf32> to vector<192x512xf32>
    %36 = arith.addf %33, %35 : vector<192x512xf32>
    %c1_18 = arith.constant 1 : index
    %c0_19 = arith.constant 0 : index
    %37 = vector.load %arg5[%c1_18, %c0_19] : memref<3x512xf32, #tpu.memory_space<vmem>>, vector<1x512xf32>
    %c2_20 = arith.constant 2 : index
    %c0_21 = arith.constant 0 : index
    %38 = vector.load %arg5[%c2_20, %c0_21] : memref<3x512xf32, #tpu.memory_space<vmem>>, vector<1x512xf32>
    %cst_22 = arith.constant dense<0.000000e+00> : vector<192xf32>
    %39 = vector.multi_reduction <add>, %36, %cst_22 [1] : vector<192x512xf32> to vector<192xf32>
    %40 = vector.shape_cast %39 : vector<192xf32> to vector<192x1xf32>
    %cst_23 = arith.constant 5.120000e+02 : f32
    %41 = vector.broadcast %cst_23 : f32 to vector<192x1xf32>
    %42 = arith.divf %40, %41 : vector<192x1xf32>
    %43 = vector.broadcast %42 : vector<192x1xf32> to vector<192x512xf32>
    %44 = arith.subf %36, %43 : vector<192x512xf32>
    %45 = arith.mulf %44, %44 : vector<192x512xf32>
    %cst_24 = arith.constant dense<0.000000e+00> : vector<192xf32>
    %46 = vector.multi_reduction <add>, %45, %cst_24 [1] : vector<192x512xf32> to vector<192xf32>
    %47 = vector.shape_cast %46 : vector<192xf32> to vector<192x1xf32>
    %cst_25 = arith.constant 5.120000e+02 : f32
    %48 = vector.broadcast %cst_25 : f32 to vector<192x1xf32>
    %49 = arith.divf %47, %48 : vector<192x1xf32>
    %cst_26 = arith.constant 9.99999974E-6 : f32
    %50 = vector.broadcast %cst_26 : f32 to vector<192x1xf32>
    %51 = arith.addf %49, %50 : vector<192x1xf32>
    %52 = math.rsqrt %51 : vector<192x1xf32>
    %53 = vector.broadcast %52 : vector<192x1xf32> to vector<192x512xf32>
    %54 = arith.mulf %44, %53 : vector<192x512xf32>
    %55 = vector.broadcast %37 : vector<1x512xf32> to vector<192x512xf32>
    %56 = arith.mulf %54, %55 : vector<192x512xf32>
    %57 = vector.broadcast %38 : vector<1x512xf32> to vector<192x512xf32>
    %58 = arith.addf %56, %57 : vector<192x512xf32>
    %59 = arith.truncf %58 : vector<192x512xf32> to vector<192x512xbf16>
    %cst_27 = arith.constant 1.000980e-01 : bf16
    %60 = vector.broadcast %cst_27 : bf16 to vector<192x512xbf16>
    %61 = arith.mulf %60, %59 : vector<192x512xbf16>
    %62 = arith.maximumf %59, %61 : vector<192x512xbf16>
    %c0_28 = arith.constant 0 : index
    %c0_29 = arith.constant 0 : index
    %63 = vector.load %arg6[%c0_28, %c0_29] : memref<512x512xbf16, #tpu.memory_space<vmem>>, vector<512x512xbf16>
    %cst_30 = arith.constant dense<0.000000e+00> : vector<192x512xf32>
    %64 = tpu.matmul %62, %63, %cst_30 {dimension_numbers = #tpu.dot_dimension_numbers<[1], [0], [0], [1], [0, 0, 1, 1], [], []>} : vector<192x512xbf16>, vector<512x512xbf16>, vector<192x512xf32> -> vector<192x512xf32>
    %c0_31 = arith.constant 0 : index
    %c0_32 = arith.constant 0 : index
    %65 = vector.load %arg7[%c0_31, %c0_32] : memref<3x512xf32, #tpu.memory_space<vmem>>, vector<1x512xf32>
    %66 = vector.broadcast %65 : vector<1x512xf32> to vector<192x512xf32>
    %67 = arith.addf %64, %66 : vector<192x512xf32>
    %c1_33 = arith.constant 1 : index
    %c0_34 = arith.constant 0 : index
    %68 = vector.load %arg7[%c1_33, %c0_34] : memref<3x512xf32, #tpu.memory_space<vmem>>, vector<1x512xf32>
    %c2_35 = arith.constant 2 : index
    %c0_36 = arith.constant 0 : index
    %69 = vector.load %arg7[%c2_35, %c0_36] : memref<3x512xf32, #tpu.memory_space<vmem>>, vector<1x512xf32>
    %cst_37 = arith.constant dense<0.000000e+00> : vector<192xf32>
    %70 = vector.multi_reduction <add>, %67, %cst_37 [1] : vector<192x512xf32> to vector<192xf32>
    %71 = vector.shape_cast %70 : vector<192xf32> to vector<192x1xf32>
    %cst_38 = arith.constant 5.120000e+02 : f32
    %72 = vector.broadcast %cst_38 : f32 to vector<192x1xf32>
    %73 = arith.divf %71, %72 : vector<192x1xf32>
    %74 = vector.broadcast %73 : vector<192x1xf32> to vector<192x512xf32>
    %75 = arith.subf %67, %74 : vector<192x512xf32>
    %76 = arith.mulf %75, %75 : vector<192x512xf32>
    %cst_39 = arith.constant dense<0.000000e+00> : vector<192xf32>
    %77 = vector.multi_reduction <add>, %76, %cst_39 [1] : vector<192x512xf32> to vector<192xf32>
    %78 = vector.shape_cast %77 : vector<192xf32> to vector<192x1xf32>
    %cst_40 = arith.constant 5.120000e+02 : f32
    %79 = vector.broadcast %cst_40 : f32 to vector<192x1xf32>
    %80 = arith.divf %78, %79 : vector<192x1xf32>
    %cst_41 = arith.constant 9.99999974E-6 : f32
    %81 = vector.broadcast %cst_41 : f32 to vector<192x1xf32>
    %82 = arith.addf %80, %81 : vector<192x1xf32>
    %83 = math.rsqrt %82 : vector<192x1xf32>
    %84 = vector.broadcast %83 : vector<192x1xf32> to vector<192x512xf32>
    %85 = arith.mulf %75, %84 : vector<192x512xf32>
    %86 = vector.broadcast %68 : vector<1x512xf32> to vector<192x512xf32>
    %87 = arith.mulf %85, %86 : vector<192x512xf32>
    %88 = vector.broadcast %69 : vector<1x512xf32> to vector<192x512xf32>
    %89 = arith.addf %87, %88 : vector<192x512xf32>
    %90 = arith.truncf %89 : vector<192x512xf32> to vector<192x512xbf16>
    %cst_42 = arith.constant 1.000980e-01 : bf16
    %91 = vector.broadcast %cst_42 : bf16 to vector<192x512xbf16>
    %92 = arith.mulf %91, %90 : vector<192x512xbf16>
    %93 = arith.maximumf %90, %92 : vector<192x512xbf16>
    %c0_43 = arith.constant 0 : index
    %c0_44 = arith.constant 0 : index
    %94 = vector.load %arg8[%c0_43, %c0_44] : memref<512x256xbf16, #tpu.memory_space<vmem>>, vector<512x256xbf16>
    %cst_45 = arith.constant dense<0.000000e+00> : vector<192x256xf32>
    %95 = tpu.matmul %93, %94, %cst_45 {dimension_numbers = #tpu.dot_dimension_numbers<[1], [0], [0], [1], [0, 0, 1, 1], [], []>} : vector<192x512xbf16>, vector<512x256xbf16>, vector<192x256xf32> -> vector<192x256xf32>
    %c0_46 = arith.constant 0 : index
    %c0_47 = arith.constant 0 : index
    %96 = vector.load %arg9[%c0_46, %c0_47] : memref<3x256xf32, #tpu.memory_space<vmem>>, vector<1x256xf32>
    %97 = vector.broadcast %96 : vector<1x256xf32> to vector<192x256xf32>
    %98 = arith.addf %95, %97 : vector<192x256xf32>
    %c1_48 = arith.constant 1 : index
    %c0_49 = arith.constant 0 : index
    %99 = vector.load %arg9[%c1_48, %c0_49] : memref<3x256xf32, #tpu.memory_space<vmem>>, vector<1x256xf32>
    %c2_50 = arith.constant 2 : index
    %c0_51 = arith.constant 0 : index
    %100 = vector.load %arg9[%c2_50, %c0_51] : memref<3x256xf32, #tpu.memory_space<vmem>>, vector<1x256xf32>
    %cst_52 = arith.constant dense<0.000000e+00> : vector<192xf32>
    %101 = vector.multi_reduction <add>, %98, %cst_52 [1] : vector<192x256xf32> to vector<192xf32>
    %102 = vector.shape_cast %101 : vector<192xf32> to vector<192x1xf32>
    %cst_53 = arith.constant 2.560000e+02 : f32
    %103 = vector.broadcast %cst_53 : f32 to vector<192x1xf32>
    %104 = arith.divf %102, %103 : vector<192x1xf32>
    %105 = vector.broadcast %104 : vector<192x1xf32> to vector<192x256xf32>
    %106 = arith.subf %98, %105 : vector<192x256xf32>
    %107 = arith.mulf %106, %106 : vector<192x256xf32>
    %cst_54 = arith.constant dense<0.000000e+00> : vector<192xf32>
    %108 = vector.multi_reduction <add>, %107, %cst_54 [1] : vector<192x256xf32> to vector<192xf32>
    %109 = vector.shape_cast %108 : vector<192xf32> to vector<192x1xf32>
    %cst_55 = arith.constant 2.560000e+02 : f32
    %110 = vector.broadcast %cst_55 : f32 to vector<192x1xf32>
    %111 = arith.divf %109, %110 : vector<192x1xf32>
    %cst_56 = arith.constant 9.99999974E-6 : f32
    %112 = vector.broadcast %cst_56 : f32 to vector<192x1xf32>
    %113 = arith.addf %111, %112 : vector<192x1xf32>
    %114 = math.rsqrt %113 : vector<192x1xf32>
    %115 = vector.broadcast %114 : vector<192x1xf32> to vector<192x256xf32>
    %116 = arith.mulf %106, %115 : vector<192x256xf32>
    %117 = vector.broadcast %99 : vector<1x256xf32> to vector<192x256xf32>
    %118 = arith.mulf %116, %117 : vector<192x256xf32>
    %119 = vector.broadcast %100 : vector<1x256xf32> to vector<192x256xf32>
    %120 = arith.addf %118, %119 : vector<192x256xf32>
    %121 = arith.truncf %120 : vector<192x256xf32> to vector<192x256xbf16>
    %cst_57 = arith.constant 1.000980e-01 : bf16
    %122 = vector.broadcast %cst_57 : bf16 to vector<192x256xbf16>
    %123 = arith.mulf %122, %121 : vector<192x256xbf16>
    %124 = arith.maximumf %121, %123 : vector<192x256xbf16>
    %c0_58 = arith.constant 0 : index
    %c0_59 = arith.constant 0 : index
    %125 = vector.load %arg10[%c0_58, %c0_59] : memref<256x256xbf16, #tpu.memory_space<vmem>>, vector<256x256xbf16>
    %cst_60 = arith.constant dense<0.000000e+00> : vector<192x256xf32>
    %126 = tpu.matmul %124, %125, %cst_60 {dimension_numbers = #tpu.dot_dimension_numbers<[1], [0], [0], [1], [0, 0, 1, 1], [], []>} : vector<192x256xbf16>, vector<256x256xbf16>, vector<192x256xf32> -> vector<192x256xf32>
    %c0_61 = arith.constant 0 : index
    %c0_62 = arith.constant 0 : index
    %127 = vector.load %arg11[%c0_61, %c0_62] : memref<3x256xf32, #tpu.memory_space<vmem>>, vector<1x256xf32>
    %128 = vector.broadcast %127 : vector<1x256xf32> to vector<192x256xf32>
    %129 = arith.addf %126, %128 : vector<192x256xf32>
    %c1_63 = arith.constant 1 : index
    %c0_64 = arith.constant 0 : index
    %130 = vector.load %arg11[%c1_63, %c0_64] : memref<3x256xf32, #tpu.memory_space<vmem>>, vector<1x256xf32>
    %c2_65 = arith.constant 2 : index
    %c0_66 = arith.constant 0 : index
    %131 = vector.load %arg11[%c2_65, %c0_66] : memref<3x256xf32, #tpu.memory_space<vmem>>, vector<1x256xf32>
    %cst_67 = arith.constant dense<0.000000e+00> : vector<192xf32>
    %132 = vector.multi_reduction <add>, %129, %cst_67 [1] : vector<192x256xf32> to vector<192xf32>
    %133 = vector.shape_cast %132 : vector<192xf32> to vector<192x1xf32>
    %cst_68 = arith.constant 2.560000e+02 : f32
    %134 = vector.broadcast %cst_68 : f32 to vector<192x1xf32>
    %135 = arith.divf %133, %134 : vector<192x1xf32>
    %136 = vector.broadcast %135 : vector<192x1xf32> to vector<192x256xf32>
    %137 = arith.subf %129, %136 : vector<192x256xf32>
    %138 = arith.mulf %137, %137 : vector<192x256xf32>
    %cst_69 = arith.constant dense<0.000000e+00> : vector<192xf32>
    %139 = vector.multi_reduction <add>, %138, %cst_69 [1] : vector<192x256xf32> to vector<192xf32>
    %140 = vector.shape_cast %139 : vector<192xf32> to vector<192x1xf32>
    %cst_70 = arith.constant 2.560000e+02 : f32
    %141 = vector.broadcast %cst_70 : f32 to vector<192x1xf32>
    %142 = arith.divf %140, %141 : vector<192x1xf32>
    %cst_71 = arith.constant 9.99999974E-6 : f32
    %143 = vector.broadcast %cst_71 : f32 to vector<192x1xf32>
    %144 = arith.addf %142, %143 : vector<192x1xf32>
    %145 = math.rsqrt %144 : vector<192x1xf32>
    %146 = vector.broadcast %145 : vector<192x1xf32> to vector<192x256xf32>
    %147 = arith.mulf %137, %146 : vector<192x256xf32>
    %148 = vector.broadcast %130 : vector<1x256xf32> to vector<192x256xf32>
    %149 = arith.mulf %147, %148 : vector<192x256xf32>
    %150 = vector.broadcast %131 : vector<1x256xf32> to vector<192x256xf32>
    %151 = arith.addf %149, %150 : vector<192x256xf32>
    %152 = arith.truncf %151 : vector<192x256xf32> to vector<192x256xbf16>
    %cst_72 = arith.constant 1.000980e-01 : bf16
    %153 = vector.broadcast %cst_72 : bf16 to vector<192x256xbf16>
    %154 = arith.mulf %153, %152 : vector<192x256xbf16>
    %155 = arith.maximumf %152, %154 : vector<192x256xbf16>
    %c0_73 = arith.constant 0 : index
    %c0_74 = arith.constant 0 : index
    %156 = vector.load %arg12[%c0_73, %c0_74] : memref<256x128xbf16, #tpu.memory_space<vmem>>, vector<256x128xbf16>
    %cst_75 = arith.constant dense<0.000000e+00> : vector<192x128xf32>
    %157 = tpu.matmul %155, %156, %cst_75 {dimension_numbers = #tpu.dot_dimension_numbers<[1], [0], [0], [1], [0, 0, 1, 1], [], []>} : vector<192x256xbf16>, vector<256x128xbf16>, vector<192x128xf32> -> vector<192x128xf32>
    %c0_76 = arith.constant 0 : index
    %c0_77 = arith.constant 0 : index
    %158 = vector.load %arg13[%c0_76, %c0_77] : memref<1x128xf32, #tpu.memory_space<vmem>>, vector<1x128xf32>
    %159 = vector.broadcast %158 : vector<1x128xf32> to vector<192x128xf32>
    %160 = arith.addf %157, %159 : vector<192x128xf32>
    %c0_78 = arith.constant 0 : index
    %c0_79 = arith.constant 0 : index
    %161 = vector.load %arg14[%c0_78, %c0_79] : memref<192x128xf32, #tpu.memory_space<vmem>>, vector<192x128xf32>
    tpu.vector_store %arg14[%c0_78, %c0_79], %160 {strides = array<i32>} : memref<192x128xf32, #tpu.memory_space<vmem>>, vector<192x128xf32>,
    return
  }
  func.func @transform_0(%arg0: i32) -> (i32, i32) {
    %c0_i32 = arith.constant 0 : i32
    %c0_i32_0 = arith.constant 0 : i32
    return %arg0, %c0_i32 : i32, i32
  }
  func.func @transform_1(%arg0: i32) -> (i32, i32) {
    %c0_i32 = arith.constant 0 : i32
    %c0_i32_0 = arith.constant 0 : i32
    %c0_i32_1 = arith.constant 0 : i32
    return %c0_i32, %c0_i32_0 : i32, i32
  }
  func.func @transform_2(%arg0: i32) -> (i32, i32) {
    %c0_i32 = arith.constant 0 : i32
    %c0_i32_0 = arith.constant 0 : i32
    %c0_i32_1 = arith.constant 0 : i32
    return %c0_i32, %c0_i32_0 : i32, i32
  }
  func.func @transform_3(%arg0: i32) -> (i32, i32) {
    %c0_i32 = arith.constant 0 : i32
    %c0_i32_0 = arith.constant 0 : i32
    %c0_i32_1 = arith.constant 0 : i32
    return %c0_i32, %c0_i32_0 : i32, i32
  }
  func.func @transform_4(%arg0: i32) -> (i32, i32) {
    %c0_i32 = arith.constant 0 : i32
    %c0_i32_0 = arith.constant 0 : i32
    %c0_i32_1 = arith.constant 0 : i32
    return %c0_i32, %c0_i32_0 : i32, i32
  }
  func.func @transform_5(%arg0: i32) -> (i32, i32) {
    %c0_i32 = arith.constant 0 : i32
    %c0_i32_0 = arith.constant 0 : i32
    %c0_i32_1 = arith.constant 0 : i32
    return %c0_i32, %c0_i32_0 : i32, i32
  }
  func.func @transform_6(%arg0: i32) -> (i32, i32) {
    %c0_i32 = arith.constant 0 : i32
    %c0_i32_0 = arith.constant 0 : i32
    %c0_i32_1 = arith.constant 0 : i32
    return %c0_i32, %c0_i32_0 : i32, i32
  }
  func.func @transform_7(%arg0: i32) -> (i32, i32) {
    %c0_i32 = arith.constant 0 : i32
    %c0_i32_0 = arith.constant 0 : i32
    %c0_i32_1 = arith.constant 0 : i32
    return %c0_i32, %c0_i32_0 : i32, i32
  }
  func.func @transform_8(%arg0: i32) -> (i32, i32) {
    %c0_i32 = arith.constant 0 : i32
    %c0_i32_0 = arith.constant 0 : i32
    %c0_i32_1 = arith.constant 0 : i32
    return %c0_i32, %c0_i32_0 : i32, i32
  }
  func.func @transform_9(%arg0: i32) -> (i32, i32) {
    %c0_i32 = arith.constant 0 : i32
    %c0_i32_0 = arith.constant 0 : i32
    %c0_i32_1 = arith.constant 0 : i32
    return %c0_i32, %c0_i32_0 : i32, i32
  }
  func.func @transform_10(%arg0: i32) -> (i32, i32) {
    %c0_i32 = arith.constant 0 : i32
    %c0_i32_0 = arith.constant 0 : i32
    %c0_i32_1 = arith.constant 0 : i32
    return %c0_i32, %c0_i32_0 : i32, i32
  }
  func.func @transform_11(%arg0: i32) -> (i32, i32) {
    %c0_i32 = arith.constant 0 : i32
    %c0_i32_0 = arith.constant 0 : i32
    %c0_i32_1 = arith.constant 0 : i32
    return %c0_i32, %c0_i32_0 : i32, i32
  }
  func.func @transform_12(%arg0: i32) -> (i32, i32) {
    %c0_i32 = arith.constant 0 : i32
    %c0_i32_0 = arith.constant 0 : i32
    %c0_i32_1 = arith.constant 0 : i32
    return %c0_i32, %c0_i32_0 : i32, i32
  }
  func.func @transform_13(%arg0: i32) -> (i32, i32) {
    %c0_i32 = arith.constant 0 : i32
    %c0_i32_0 = arith.constant 0 : i32
    return %arg0, %c0_i32 : i32, i32
  }
}

</mosaic_0001>

<llo_original>
// kernel: tpu_custom_call.1
$region0: #{tpu_custom_call.1}
  #allocation0 [shape = 'u32[]', space=smem, size = 0x4, offset = 0x4, fixed_abs, tag = 'smem constant byte address 0x4 - core index']
  #allocation1 [shape = 'u32[144,128]{1,0:T(1,128)}', space=vmem, size = 0x12000, scoped, tag = 'internal scratch']
  %s0 = inlined_call_operand.hbm [shape: bf16[384,128], index: 0, kind: input, shape index: {}]
  %s1 = inlined_call_operand.hbm [shape: bf16[128,512], index: 1, kind: input, shape index: {}]
  %s2 = inlined_call_operand.hbm [shape: f32[3,512], index: 2, kind: input, shape index: {}]
  %s3 = inlined_call_operand.hbm [shape: bf16[512,512], index: 3, kind: input, shape index: {}]
  %s4 = inlined_call_operand.hbm [shape: f32[3,512], index: 4, kind: input, shape index: {}]
  %s5 = inlined_call_operand.hbm [shape: bf16[512,512], index: 5, kind: input, shape index: {}]
  %s6 = inlined_call_operand.vmem [shape: f32[3,512], index: 6, kind: input, shape index: {}]
  %s7 = inlined_call_operand.hbm [shape: bf16[512,256], index: 7, kind: input, shape index: {}]
  %s8 = inlined_call_operand.vmem [shape: f32[3,256], index: 8, kind: input, shape index: {}]
  %s9 = inlined_call_operand.hbm [shape: bf16[256,256], index: 9, kind: input, shape index: {}]
  %s10 = inlined_call_operand.vmem [shape: f32[3,256], index: 10, kind: input, shape index: {}]
  %s11 = inlined_call_operand.hbm [shape: bf16[256,128], index: 11, kind: input, shape index: {}]
  %s12 = inlined_call_operand.vmem [shape: f32[1,128], index: 12, kind: input, shape index: {}]
  %s13 = inlined_call_operand.hbm [shape: f32[384,128], index: 13, kind: output, shape index: {}]
  %s14 = sld [smem:[#allocation0]]
  $region121: #{tpu_custom_call.1} parent=0
    _
  %s16 = ssub.s32 1, %s14
  %s17 = scalar_select 0, %s16, %s14
  $region1: #{tpu_custom_call.1} parent=0
    #allocation2 [shape = 'u8[98304]{0}', space=vmem, size = 0x18000, scoped, tag = 'input window, operand 0']
    #allocation3 [shape = 's32[2]{0}', space=sflag, size = 0x8, scoped, tag = 'scoped memory for tpu_custom_call.1']
    #allocation4 [shape = 's32[2]{0}', space=sflag, size = 0x8, scoped, tag = 'scoped memory for tpu_custom_call.1']
    #allocation5 [shape = 'u8[131072]{0}', space=vmem, size = 0x20000, scoped, tag = 'input window, operand 1, single buffered']
    #allocation6 [shape = 's32[1]{0}', space=sflag, size = 0x4, scoped, tag = 'scoped memory for tpu_custom_call.1']
    #allocation7 [shape = 'u8[8192]{0}', space=vmem, size = 0x2000, scoped, tag = 'input window, operand 2, single buffered']
    #allocation8 [shape = 'u8[524288]{0}', space=vmem, size = 0x80000, scoped, tag = 'input window, operand 3, single buffered']
    #allocation9 [shape = 's32[1]{0}', space=sflag, size = 0x4, scoped, tag = 'scoped memory for tpu_custom_call.1']
    #allocation10 [shape = 'u8[8192]{0}', space=vmem, size = 0x2000, scoped, tag = 'input window, operand 4, single buffered']
    #allocation11 [shape = 'u8[524288]{0}', space=vmem, size = 0x80000, scoped, tag = 'input window, operand 5, single buffered']
    #allocation12 [shape = 's32[1]{0}', space=sflag, size = 0x4, scoped, tag = 'scoped memory for tpu_custom_call.1']
    #allocation13 [shape = 'u8[262144]{0}', space=vmem, size = 0x40000, scoped, tag = 'input window, operand 7, single buffered']
    #allocation14 [shape = 'u8[131072]{0}', space=vmem, size = 0x20000, scoped, tag = 'input window, operand 9, single buffered']
    #allocation15 [shape = 's32[1]{0}', space=sflag, size = 0x4, scoped, tag = 'scoped memory for tpu_custom_call.1']
    #allocation16 [shape = 'u8[65536]{0}', space=vmem, size = 0x10000, scoped, tag = 'input window, operand 11, single buffered']
    #allocation17 [shape = 'u8[196608]{0}', space=vmem, size = 0x30000, scoped, tag = 'output window, operand 0']
    %18 = vsyncpa [#allocation3], 0
    %s19 = scalar_lea.sflag [#allocation3], 1
    %20 = vsyncpa %s19, 0
    %21 = vsyncpa [#allocation6], 0
    %22 = vsyncpa [#allocation9], 0
    %23 = vsyncpa [#allocation12], 0
    %24 = vsyncpa [#allocation15], 0
    %25 = vsyncpa [#allocation4], 0
    %s26 = scalar_lea.sflag [#allocation4], 1
    %27 = vsyncpa %s26, 0
    loop: start=0, step=1, limit=4
    $region2: #{tpu_custom_call.1} parent=1 // loop_pre_header
      _
    $region3: #{tpu_custom_call.1} parent=1 // loop_header
      %s29 = sphi 0, %s33
      %p30 = scmp.ge.s32.totalorder %s29, 4
      %s39 = sphi 0, %s41
      %s42 = sphi 0, %s39
      %s43 = sphi 0, %s42
      %s59 = sphi 0, %s43
      %s63 = sphi 0, %s63
      %s65 = sphi 0, %s63
      %s66 = sphi 0, %s65
      %s80 = sphi 0, %s66
      %s84 = sphi 0, %s84
      %s86 = sphi 0, %s84
      %s87 = sphi 0, %s86
      %s101 = sphi 0, %s87
      %s105 = sphi 0, %s105
      %s107 = sphi 0, %s105
      %s108 = sphi 0, %s107
      %s122 = sphi 0, %s108
      %s126 = sphi 0, %s126
      %s128 = sphi 0, %s126
      %s129 = sphi 0, %s128
      %s143 = sphi 0, %s129
      %s147 = sphi 0, %s147
      %s149 = sphi 0, %s147
      %s150 = sphi 0, %s149
      %s164 = sphi 0, %s150
      %s168 = sphi 0, %s168
      %s170 = sphi 0, %s168
      %s171 = sphi 0, %s170
      %s185 = sphi 0, %s171
      %s189 = sphi 0, %s189
      %s191 = sphi 0, %s189
      %s192 = sphi 0, %s191
      %s206 = sphi 0, %s192
      %s210 = sphi 0, %s210
      %s212 = sphi 0, %s210
      %s213 = sphi 0, %s212
      %s227 = sphi 0, %s213
      %s231 = sphi 0, %s231
      %s233 = sphi 0, %s231
      %s234 = sphi 0, %s233
      %s248 = sphi 0, %s234
      %s252 = sphi 0, %s252
      %s254 = sphi 0, %s252
      %s255 = sphi 0, %s254
      %s269 = sphi 0, %s255
      %s273 = sphi 0, %s273
      %s275 = sphi 0, %s273
      %s276 = sphi 0, %s275
      %s290 = sphi 0, %s276
      %s294 = sphi 0, %s294
      %s296 = sphi 0, %s294
      %s297 = sphi 0, %s296
      %s311 = sphi 0, %s297
      %s317 = sphi 0, %s319
      %s320 = sphi 0, %s317
      %s321 = sphi 0, %s320
      %s337 = sphi 0, %s321
    $region4: #{tpu_custom_call.1} parent=1 // loop_header_branch
      %32 = sbr.rel (%p30) target = $region8
    $region5: #{tpu_custom_call.1} parent=1 // loop_body
      %s34 = ssub.s32 %s29, 1
      %s35 = ssub.s32 %s29, 2
      %s36 = sadd.s32 %s29, 1
      %s37 = ssub.s32 %s29, %s36
      %p38 = scmp.eq.s32.totalorder %s37, 0
      %s40 = sadd.s32 %s39, 1
      %s41 = scalar_select %p38, %s39, %s40
      %p44 = pneg %p38
      %p45 = scmp.eq.s32.totalorder %s29, 1
      %p46 = por %p44, %p45
      %p47 = scmp.ne.s32.totalorder %s39, %s42
      %p48 = scmp.eq.s32.totalorder %s29, 0
      %p49 = por %p47, %p48
      %p50 = scmp.ne.s32.totalorder %s39, %s42
      %p51 = scmp.eq.s32.totalorder %s34, 1
      %p52 = por %p50, %p51
      %p53 = scmp.ne.s32.totalorder %s42, %s43
      %p54 = scmp.eq.s32.totalorder %s34, 0
      %p55 = por %p53, %p54
      %p56 = scmp.ne.s32.totalorder %s42, %s43
      %p57 = scmp.eq.s32.totalorder %s35, 1
      %p58 = por %p56, %p57
      %p60 = scmp.ne.s32.totalorder %s43, %s59
      %p61 = scmp.eq.s32.totalorder %s35, 0
      %p62 = por %p60, %p61
      %s64 = sadd.s32 %s63, 1
      %p67 = scmp.eq.s32.totalorder %s29, 1
      %p68 = scmp.ne.s32.totalorder %s63, %s65
      %p69 = scmp.eq.s32.totalorder %s29, 0
      %p70 = por %p68, %p69
      %p71 = scmp.ne.s32.totalorder %s63, %s65
      %p72 = scmp.eq.s32.totalorder %s34, 1
      %p73 = por %p71, %p72
      %p74 = scmp.ne.s32.totalorder %s65, %s66
      %p75 = scmp.eq.s32.totalorder %s34, 0
      %p76 = por %p74, %p75
      %p77 = scmp.ne.s32.totalorder %s65, %s66
      %p78 = scmp.eq.s32.totalorder %s35, 1
      %p79 = por %p77, %p78
      %p81 = scmp.ne.s32.totalorder %s66, %s80
      %p82 = scmp.eq.s32.totalorder %s35, 0
      %p83 = por %p81, %p82
      %s85 = sadd.s32 %s84, 1
      %p88 = scmp.eq.s32.totalorder %s29, 1
      %p89 = scmp.ne.s32.totalorder %s84, %s86
      %p90 = scmp.eq.s32.totalorder %s29, 0
      %p91 = por %p89, %p90
      %p92 = scmp.ne.s32.totalorder %s84, %s86
      %p93 = scmp.eq.s32.totalorder %s34, 1
      %p94 = por %p92, %p93
      %p95 = scmp.ne.s32.totalorder %s86, %s87
      %p96 = scmp.eq.s32.totalorder %s34, 0
      %p97 = por %p95, %p96
      %p98 = scmp.ne.s32.totalorder %s86, %s87
      %p99 = scmp.eq.s32.totalorder %s35, 1
      %p100 = por %p98, %p99
      %p102 = scmp.ne.s32.totalorder %s87, %s101
      %p103 = scmp.eq.s32.totalorder %s35, 0
      %p104 = por %p102, %p103
      %s106 = sadd.s32 %s105, 1
      %p109 = scmp.eq.s32.totalorder %s29, 1
      %p110 = scmp.ne.s32.totalorder %s105, %s107
      %p111 = scmp.eq.s32.totalorder %s29, 0
      %p112 = por %p110, %p111
      %p113 = scmp.ne.s32.totalorder %s105, %s107
      %p114 = scmp.eq.s32.totalorder %s34, 1
      %p115 = por %p113, %p114
      %p116 = scmp.ne.s32.totalorder %s107, %s108
      %p117 = scmp.eq.s32.totalorder %s34, 0
      %p118 = por %p116, %p117
      %p119 = scmp.ne.s32.totalorder %s107, %s108
      %p120 = scmp.eq.s32.totalorder %s35, 1
      %p121 = por %p119, %p120
      %p123 = scmp.ne.s32.totalorder %s108, %s122
      %p124 = scmp.eq.s32.totalorder %s35, 0
      %p125 = por %p123, %p124
      %s127 = sadd.s32 %s126, 1
      %p130 = scmp.eq.s32.totalorder %s29, 1
      %p131 = scmp.ne.s32.totalorder %s126, %s128
      %p132 = scmp.eq.s32.totalorder %s29, 0
      %p133 = por %p131, %p132
      %p134 = scmp.ne.s32.totalorder %s126, %s128
      %p135 = scmp.eq.s32.totalorder %s34, 1
      %p136 = por %p134, %p135
      %p137 = scmp.ne.s32.totalorder %s128, %s129
      %p138 = scmp.eq.s32.totalorder %s34, 0
      %p139 = por %p137, %p138
      %p140 = scmp.ne.s32.totalorder %s128, %s129
      %p141 = scmp.eq.s32.totalorder %s35, 1
      %p142 = por %p140, %p141
      %p144 = scmp.ne.s32.totalorder %s129, %s143
      %p145 = scmp.eq.s32.totalorder %s35, 0
      %p146 = por %p144, %p145
      %s148 = sadd.s32 %s147, 1
      %p151 = scmp.eq.s32.totalorder %s29, 1
      %p152 = scmp.ne.s32.totalorder %s147, %s149
      %p153 = scmp.eq.s32.totalorder %s29, 0
      %p154 = por %p152, %p153
      %p155 = scmp.ne.s32.totalorder %s147, %s149
      %p156 = scmp.eq.s32.totalorder %s34, 1
      %p157 = por %p155, %p156
      %p158 = scmp.ne.s32.totalorder %s149, %s150
      %p159 = scmp.eq.s32.totalorder %s34, 0
      %p160 = por %p158, %p159
      %p161 = scmp.ne.s32.totalorder %s149, %s150
      %p162 = scmp.eq.s32.totalorder %s35, 1
      %p163 = por %p161, %p162
      %p165 = scmp.ne.s32.totalorder %s150, %s164
      %p166 = scmp.eq.s32.totalorder %s35, 0
      %p167 = por %p165, %p166
      %s169 = sadd.s32 %s168, 1
      %p172 = scmp.eq.s32.totalorder %s29, 1
      %p173 = scmp.ne.s32.totalorder %s168, %s170
      %p174 = scmp.eq.s32.totalorder %s29, 0
      %p175 = por %p173, %p174
      %p176 = scmp.ne.s32.totalorder %s168, %s170
      %p177 = scmp.eq.s32.totalorder %s34, 1
      %p178 = por %p176, %p177
      %p179 = scmp.ne.s32.totalorder %s170, %s171
      %p180 = scmp.eq.s32.totalorder %s34, 0
      %p181 = por %p179, %p180
      %p182 = scmp.ne.s32.totalorder %s170, %s171
      %p183 = scmp.eq.s32.totalorder %s35, 1
      %p184 = por %p182, %p183
      %p186 = scmp.ne.s32.totalorder %s171, %s185
      %p187 = scmp.eq.s32.totalorder %s35, 0
      %p188 = por %p186, %p187
      %s190 = sadd.s32 %s189, 1
      %p193 = scmp.eq.s32.totalorder %s29, 1
      %p194 = scmp.ne.s32.totalorder %s189, %s191
      %p195 = scmp.eq.s32.totalorder %s29, 0
      %p196 = por %p194, %p195
      %p197 = scmp.ne.s32.totalorder %s189, %s191
      %p198 = scmp.eq.s32.totalorder %s34, 1
      %p199 = por %p197, %p198
      %p200 = scmp.ne.s32.totalorder %s191, %s192
      %p201 = scmp.eq.s32.totalorder %s34, 0
      %p202 = por %p200, %p201
      %p203 = scmp.ne.s32.totalorder %s191, %s192
      %p204 = scmp.eq.s32.totalorder %s35, 1
      %p205 = por %p203, %p204
      %p207 = scmp.ne.s32.totalorder %s192, %s206
      %p208 = scmp.eq.s32.totalorder %s35, 0
      %p209 = por %p207, %p208
      %s211 = sadd.s32 %s210, 1
      %p214 = scmp.eq.s32.totalorder %s29, 1
      %p215 = scmp.ne.s32.totalorder %s210, %s212
      %p216 = scmp.eq.s32.totalorder %s29, 0
      %p217 = por %p215, %p216
      %p218 = scmp.ne.s32.totalorder %s210, %s212
      %p219 = scmp.eq.s32.totalorder %s34, 1
      %p220 = por %p218, %p219
      %p221 = scmp.ne.s32.totalorder %s212, %s213
      %p222 = scmp.eq.s32.totalorder %s34, 0
      %p223 = por %p221, %p222
      %p224 = scmp.ne.s32.totalorder %s212, %s213
      %p225 = scmp.eq.s32.totalorder %s35, 1
      %p226 = por %p224, %p225
      %p228 = scmp.ne.s32.totalorder %s213, %s227
      %p229 = scmp.eq.s32.totalorder %s35, 0
      %p230 = por %p228, %p229
      %s232 = sadd.s32 %s231, 1
      %p235 = scmp.eq.s32.totalorder %s29, 1
      %p236 = scmp.ne.s32.totalorder %s231, %s233
      %p237 = scmp.eq.s32.totalorder %s29, 0
      %p238 = por %p236, %p237
      %p239 = scmp.ne.s32.totalorder %s231, %s233
      %p240 = scmp.eq.s32.totalorder %s34, 1
      %p241 = por %p239, %p240
      %p242 = scmp.ne.s32.totalorder %s233, %s234
      %p243 = scmp.eq.s32.totalorder %s34, 0
      %p244 = por %p242, %p243
      %p245 = scmp.ne.s32.totalorder %s233, %s234
      %p246 = scmp.eq.s32.totalorder %s35, 1
      %p247 = por %p245, %p246
      %p249 = scmp.ne.s32.totalorder %s234, %s248
      %p250 = scmp.eq.s32.totalorder %s35, 0
      %p251 = por %p249, %p250
      %s253 = sadd.s32 %s252, 1
      %p256 = scmp.eq.s32.totalorder %s29, 1
      %p257 = scmp.ne.s32.totalorder %s252, %s254
      %p258 = scmp.eq.s32.totalorder %s29, 0
      %p259 = por %p257, %p258
      %p260 = scmp.ne.s32.totalorder %s252, %s254
      %p261 = scmp.eq.s32.totalorder %s34, 1
      %p262 = por %p260, %p261
      %p263 = scmp.ne.s32.totalorder %s254, %s255
      %p264 = scmp.eq.s32.totalorder %s34, 0
      %p265 = por %p263, %p264
      %p266 = scmp.ne.s32.totalorder %s254, %s255
      %p267 = scmp.eq.s32.totalorder %s35, 1
      %p268 = por %p266, %p267
      %p270 = scmp.ne.s32.totalorder %s255, %s269
      %p271 = scmp.eq.s32.totalorder %s35, 0
      %p272 = por %p270, %p271
      %s274 = sadd.s32 %s273, 1
      %p277 = scmp.eq.s32.totalorder %s29, 1
      %p278 = scmp.ne.s32.totalorder %s273, %s275
      %p279 = scmp.eq.s32.totalorder %s29, 0
      %p280 = por %p278, %p279
      %p281 = scmp.ne.s32.totalorder %s273, %s275
      %p282 = scmp.eq.s32.totalorder %s34, 1
      %p283 = por %p281, %p282
      %p284 = scmp.ne.s32.totalorder %s275, %s276
      %p285 = scmp.eq.s32.totalorder %s34, 0
      %p286 = por %p284, %p285
      %p287 = scmp.ne.s32.totalorder %s275, %s276
      %p288 = scmp.eq.s32.totalorder %s35, 1
      %p289 = por %p287, %p288
      %p291 = scmp.ne.s32.totalorder %s276, %s290
      %p292 = scmp.eq.s32.totalorder %s35, 0
      %p293 = por %p291, %p292
      %s295 = sadd.s32 %s294, 1
      %p298 = scmp.eq.s32.totalorder %s29, 1
      %p299 = scmp.ne.s32.totalorder %s294, %s296
      %p300 = scmp.eq.s32.totalorder %s29, 0
      %p301 = por %p299, %p300
      %p302 = scmp.ne.s32.totalorder %s294, %s296
      %p303 = scmp.eq.s32.totalorder %s34, 1
      %p304 = por %p302, %p303
      %p305 = scmp.ne.s32.totalorder %s296, %s297
      %p306 = scmp.eq.s32.totalorder %s34, 0
      %p307 = por %p305, %p306
      %p308 = scmp.ne.s32.totalorder %s296, %s297
      %p309 = scmp.eq.s32.totalorder %s35, 1
      %p310 = por %p308, %p309
      %p312 = scmp.ne.s32.totalorder %s297, %s311
      %p313 = scmp.eq.s32.totalorder %s35, 0
      %p314 = por %p312, %p313
      %s315 = ssub.s32 %s29, %s36
      %p316 = scmp.eq.s32.totalorder %s315, 0
      %s318 = sadd.s32 %s317, 1
      %s319 = scalar_select %p316, %s317, %s318
      %p322 = pneg %p316
      %p323 = scmp.eq.s32.totalorder %s29, 1
      %p324 = por %p322, %p323
      %p325 = scmp.ne.s32.totalorder %s317, %s320
      %p326 = scmp.eq.s32.totalorder %s29, 0
      %p327 = por %p325, %p326
      %p328 = scmp.ne.s32.totalorder %s317, %s320
      %p329 = scmp.eq.s32.totalorder %s34, 1
      %p330 = por %p328, %p329
      %p331 = scmp.ne.s32.totalorder %s320, %s321
      %p332 = scmp.eq.s32.totalorder %s34, 0
      %p333 = por %p331, %p332
      %p334 = scmp.ne.s32.totalorder %s320, %s321
      %p335 = scmp.eq.s32.totalorder %s35, 1
      %p336 = por %p334, %p335
      %p338 = scmp.ne.s32.totalorder %s321, %s337
      %p339 = scmp.eq.s32.totalorder %s35, 0
      %p340 = por %p338, %p339
      %p341 = scmp.le.s32.totalorder 1, %s29
      %p342 = scmp.lt.s32.totalorder %s29, 3
      %p343 = pnand %p341, %p342
      %p344 = pneg %p343
      // Predicated region
      $region9: #{tpu_custom_call.1} parent=5 // pred_check
        _
      $region10: #{tpu_custom_call.1} parent=5 // pred_check_branch
        %346 = sbr.rel (%p343) target = $region12
      $region11: #{tpu_custom_call.1} parent=5 // pred_region
        %s347 = ssub.s32 %s29, 1
        // Predicated region
        $region13: #{tpu_custom_call.1} parent=11 // pred_check
          %p348 = pneg %p76
        $region14: #{tpu_custom_call.1} parent=11 // pred_check_branch
          %350 = sbr.rel (%p348) target = $region16
        $region15: #{tpu_custom_call.1} parent=11 // pred_region
          %s352 = ssub.s32 4096, 4096
          %353 = vsyncadd [#allocation6], %s352
          %s354 = sshll.u32 [#allocation5], 4
          %s355 = int_to_ptr.vmem [resolvable:$true] %s354
          %360 = dma.hbm_to_vmem [thread:$0]  %s1, 4096, %s355, [#allocation6], 256, 256, 16
        $region16: #{tpu_custom_call.1} parent=11 // pred_fallthru
          _
        // Predicated region
        $region17: #{tpu_custom_call.1} parent=11 // pred_check
          %p361 = pneg %p97
        $region18: #{tpu_custom_call.1} parent=11 // pred_check_branch
          %363 = sbr.rel (%p361) target = $region20
        $region19: #{tpu_custom_call.1} parent=11 // pred_region
          %s365 = ssub.s32 256, 256
          %366 = vsyncadd [#allocation6], %s365
          %s368 = sshll.u32 [#allocation7], 4
          %s369 = int_to_ptr.vmem [resolvable:$true] %s368
          %371 = dma.hbm_to_vmem [thread:$0]  %s2, 256, %s369, [#allocation6]
        $region20: #{tpu_custom_call.1} parent=11 // pred_fallthru
          _
        // Predicated region
        $region21: #{tpu_custom_call.1} parent=11 // pred_check
          %p372 = pneg %p118
        $region22: #{tpu_custom_call.1} parent=11 // pred_check_branch
          %374 = sbr.rel (%p372) target = $region24
        $region23: #{tpu_custom_call.1} parent=11 // pred_region
          %s376 = ssub.s32 16384, 16384
          %377 = vsyncadd [#allocation9], %s376
          %s378 = sshll.u32 [#allocation8], 4
          %s379 = int_to_ptr.vmem [resolvable:$true] %s378
          %384 = dma.hbm_to_vmem [thread:$0]  %s3, 16384, %s379, [#allocation9], 256, 256, 16
        $region24: #{tpu_custom_call.1} parent=11 // pred_fallthru
          _
        // Predicated region
        $region25: #{tpu_custom_call.1} parent=11 // pred_check
          %p385 = pneg %p139
        $region26: #{tpu_custom_call.1} parent=11 // pred_check_branch
          %387 = sbr.rel (%p385) target = $region28
        $region27: #{tpu_custom_call.1} parent=11 // pred_region
          %s389 = ssub.s32 256, 256
          %390 = vsyncadd [#allocation9], %s389
          %s392 = sshll.u32 [#allocation10], 4
          %s393 = int_to_ptr.vmem [resolvable:$true] %s392
          %395 = dma.hbm_to_vmem [thread:$0]  %s4, 256, %s393, [#allocation9]
        $region28: #{tpu_custom_call.1} parent=11 // pred_fallthru
          _
        // Predicated region
        $region29: #{tpu_custom_call.1} parent=11 // pred_check
          %p396 = pneg %p160
        $region30: #{tpu_custom_call.1} parent=11 // pred_check_branch
          %398 = sbr.rel (%p396) target = $region32
        $region31: #{tpu_custom_call.1} parent=11 // pred_region
          %s400 = ssub.s32 16384, 16384
          %401 = vsyncadd [#allocation12], %s400
          %s402 = sshll.u32 [#allocation11], 4
          %s403 = int_to_ptr.vmem [resolvable:$true] %s402
          %408 = dma.hbm_to_vmem [thread:$0]  %s5, 16384, %s403, [#allocation12], 256, 256, 16
        $region32: #{tpu_custom_call.1} parent=11 // pred_fallthru
          _
        // Predicated region
        $region33: #{tpu_custom_call.1} parent=11 // pred_check
          %p409 = pneg %p181
        $region34: #{tpu_custom_call.1} parent=11 // pred_check_branch
          %411 = sbr.rel (%p409) target = $region36
        $region35: #{tpu_custom_call.1} parent=11 // pred_region
          _
        $region36: #{tpu_custom_call.1} parent=11 // pred_fallthru
          _
        // Predicated region
        $region37: #{tpu_custom_call.1} parent=11 // pred_check
          %p412 = pneg %p202
        $region38: #{tpu_custom_call.1} parent=11 // pred_check_branch
          %414 = sbr.rel (%p412) target = $region40
        $region39: #{tpu_custom_call.1} parent=11 // pred_region
          %s416 = ssub.s32 8192, 8192
          %417 = vsyncadd [#allocation12], %s416
          %s418 = sshll.u32 [#allocation13], 4
          %s419 = int_to_ptr.vmem [resolvable:$true] %s418
          %424 = dma.hbm_to_vmem [thread:$0]  %s7, 8192, %s419, [#allocation12], 128, 128, 8
        $region40: #{tpu_custom_call.1} parent=11 // pred_fallthru
          _
        // Predicated region
        $region41: #{tpu_custom_call.1} parent=11 // pred_check
          %p425 = pneg %p223
        $region42: #{tpu_custom_call.1} parent=11 // pred_check_branch
          %427 = sbr.rel (%p425) target = $region44
        $region43: #{tpu_custom_call.1} parent=11 // pred_region
          _
        $region44: #{tpu_custom_call.1} parent=11 // pred_fallthru
          _
        // Predicated region
        $region45: #{tpu_custom_call.1} parent=11 // pred_check
          %p428 = pneg %p244
        $region46: #{tpu_custom_call.1} parent=11 // pred_check_branch
          %430 = sbr.rel (%p428) target = $region48
        $region47: #{tpu_custom_call.1} parent=11 // pred_region
          %s432 = ssub.s32 4096, 4096
          %433 = vsyncadd [#allocation15], %s432
          %s434 = sshll.u32 [#allocation14], 4
          %s435 = int_to_ptr.vmem [resolvable:$true] %s434
          %440 = dma.hbm_to_vmem [thread:$0]  %s9, 4096, %s435, [#allocation15], 128, 128, 8
        $region48: #{tpu_custom_call.1} parent=11 // pred_fallthru
          _
        // Predicated region
        $region49: #{tpu_custom_call.1} parent=11 // pred_check
          %p441 = pneg %p265
        $region50: #{tpu_custom_call.1} parent=11 // pred_check_branch
          %443 = sbr.rel (%p441) target = $region52
        $region51: #{tpu_custom_call.1} parent=11 // pred_region
          _
        $region52: #{tpu_custom_call.1} parent=11 // pred_fallthru
          _
        // Predicated region
        $region53: #{tpu_custom_call.1} parent=11 // pred_check
          %p444 = pneg %p286
        $region54: #{tpu_custom_call.1} parent=11 // pred_check_branch
          %446 = sbr.rel (%p444) target = $region56
        $region55: #{tpu_custom_call.1} parent=11 // pred_region
          %s448 = ssub.s32 2048, 2048
          %449 = vsyncadd [#allocation15], %s448
          %s450 = sshll.u32 [#allocation16], 4
          %s451 = int_to_ptr.vmem [resolvable:$true] %s450
          %456 = dma.hbm_to_vmem [thread:$0]  %s11, 2048, %s451, [#allocation15], 64, 64, 4
        $region56: #{tpu_custom_call.1} parent=11 // pred_fallthru
          _
        // Predicated region
        $region57: #{tpu_custom_call.1} parent=11 // pred_check
          %p457 = pneg %p307
        $region58: #{tpu_custom_call.1} parent=11 // pred_check_branch
          %459 = sbr.rel (%p457) target = $region60
        $region59: #{tpu_custom_call.1} parent=11 // pred_region
          _
        $region60: #{tpu_custom_call.1} parent=11 // pred_fallthru
          _
      $region12: #{tpu_custom_call.1} parent=5 // pred_fallthru
        _
      %p460 = scmp.lt.s32.totalorder %s29, 2
      // Predicated region
      $region61: #{tpu_custom_call.1} parent=5 // pred_check
        %p461 = pneg %p460
      $region62: #{tpu_custom_call.1} parent=5 // pred_check_branch
        %463 = sbr.rel (%p461) target = $region64
      $region63: #{tpu_custom_call.1} parent=5 // pred_region
        // Predicated region
        $region65: #{tpu_custom_call.1} parent=63 // pred_check
          %p464 = pneg %p49
        $region66: #{tpu_custom_call.1} parent=63 // pred_check_branch
          %466 = sbr.rel (%p464) target = $region68
        $region67: #{tpu_custom_call.1} parent=63 // pred_region
          %s467 = sand.u32 %s39, 1
          %s468 = scalar_lea.sflag [#allocation3], %s467
          %s469 = sand.u32 %s39, 1
          %s470 = smul.addr %s469, 96
          %s471 = scalar_lea.vmem [#allocation2], %s470
          %s472 = smul.u32 24, %s29
          %s474 = ssub.s32 1536, 1536
          %475 = vsyncadd %s468, %s474
          %s476 = smul.addr %s472, 64
          %s477 = scalar_lea.hbm %s0, %s476
          %s478 = sshll.u32 %s471, 4
          %s479 = int_to_ptr.vmem [resolvable:$true] %s478
          %484 = dma.hbm_to_vmem [thread:$0]  %s477, 1536, %s479, %s468, 64, 64, 4
        $region68: #{tpu_custom_call.1} parent=63 // pred_fallthru
          _
      $region64: #{tpu_custom_call.1} parent=5 // pred_fallthru
        _
      %p485 = scmp.le.s32.totalorder 1, %s29
      %p486 = scmp.lt.s32.totalorder %s29, 3
      %p487 = pnand %p485, %p486
      %p488 = pneg %p487
      // Predicated region
      $region69: #{tpu_custom_call.1} parent=5 // pred_check
        _
      $region70: #{tpu_custom_call.1} parent=5 // pred_check_branch
        %490 = sbr.rel (%p487) target = $region72
      $region71: #{tpu_custom_call.1} parent=5 // pred_region
        %s491 = ssub.s32 %s29, 1
        %s492 = sand.u32 %s42, 1
        %s493 = scalar_lea.sflag [#allocation3], %s492
        %s494 = sand.u32 %s42, 1
        %s495 = smul.addr %s494, 96
        %s496 = scalar_lea.vmem [#allocation2], %s495
        // Predicated region
        $region73: #{tpu_custom_call.1} parent=71 // pred_check
          %p497 = pneg %p55
        $region74: #{tpu_custom_call.1} parent=71 // pred_check_branch
          %499 = sbr.rel (%p497) target = $region76
        $region75: #{tpu_custom_call.1} parent=71 // pred_region
          %500 = dma.done %s493, 1536
        $region76: #{tpu_custom_call.1} parent=71 // pred_fallthru
          _
        // Predicated region
        $region77: #{tpu_custom_call.1} parent=71 // pred_check
          %p501 = pneg %p76
        $region78: #{tpu_custom_call.1} parent=71 // pred_check_branch
          %503 = sbr.rel (%p501) target = $region80
        $region79: #{tpu_custom_call.1} parent=71 // pred_region
          %504 = dma.done [#allocation6], 4096
        $region80: #{tpu_custom_call.1} parent=71 // pred_fallthru
          _
        // Predicated region
        $region81: #{tpu_custom_call.1} parent=71 // pred_check
          %p505 = pneg %p97
        $region82: #{tpu_custom_call.1} parent=71 // pred_check_branch
          %507 = sbr.rel (%p505) target = $region84
        $region83: #{tpu_custom_call.1} parent=71 // pred_region
          %508 = dma.done [#allocation6], 256
        $region84: #{tpu_custom_call.1} parent=71 // pred_fallthru
          _
        // Predicated region
        $region85: #{tpu_custom_call.1} parent=71 // pred_check
          %p509 = pneg %p118
        $region86: #{tpu_custom_call.1} parent=71 // pred_check_branch
          %511 = sbr.rel (%p509) target = $region88
        $region87: #{tpu_custom_call.1} parent=71 // pred_region
          %512 = dma.done [#allocation9], 16384
        $region88: #{tpu_custom_call.1} parent=71 // pred_fallthru
          _
        // Predicated region
        $region89: #{tpu_custom_call.1} parent=71 // pred_check
          %p513 = pneg %p139
        $region90: #{tpu_custom_call.1} parent=71 // pred_check_branch
          %515 = sbr.rel (%p513) target = $region92
        $region91: #{tpu_custom_call.1} parent=71 // pred_region
          %516 = dma.done [#allocation9], 256
        $region92: #{tpu_custom_call.1} parent=71 // pred_fallthru
          _
        // Predicated region
        $region93: #{tpu_custom_call.1} parent=71 // pred_check
          %p517 = pneg %p160
        $region94: #{tpu_custom_call.1} parent=71 // pred_check_branch
          %519 = sbr.rel (%p517) target = $region96
        $region95: #{tpu_custom_call.1} parent=71 // pred_region
          %520 = dma.done [#allocation12], 16384
        $region96: #{tpu_custom_call.1} parent=71 // pred_fallthru
          _
        // Predicated region
        $region97: #{tpu_custom_call.1} parent=71 // pred_check
          %p521 = pneg %p202
        $region98: #{tpu_custom_call.1} parent=71 // pred_check_branch
          %523 = sbr.rel (%p521) target = $region100
        $region99: #{tpu_custom_call.1} parent=71 // pred_region
          %524 = dma.done [#allocation12], 8192
        $region100: #{tpu_custom_call.1} parent=71 // pred_fallthru
          _
        // Predicated region
        $region101: #{tpu_custom_call.1} parent=71 // pred_check
          %p525 = pneg %p244
        $region102: #{tpu_custom_call.1} parent=71 // pred_check_branch
          %527 = sbr.rel (%p525) target = $region104
        $region103: #{tpu_custom_call.1} parent=71 // pred_region
          %528 = dma.done [#allocation15], 4096
        $region104: #{tpu_custom_call.1} parent=71 // pred_fallthru
          _
        // Predicated region
        $region105: #{tpu_custom_call.1} parent=71 // pred_check
          %p529 = pneg %p286
        $region106: #{tpu_custom_call.1} parent=71 // pred_check_branch
          %531 = sbr.rel (%p529) target = $region108
        $region107: #{tpu_custom_call.1} parent=71 // pred_region
          %532 = dma.done [#allocation15], 2048
        $region108: #{tpu_custom_call.1} parent=71 // pred_fallthru
          _
        %s533 = sand.u32 %s42, 1
        %s534 = scalar_lea.sflag [#allocation3], %s533
        %s535 = sand.u32 %s42, 1
        %s536 = smul.addr %s535, 96
        %s537 = scalar_lea.vmem [#allocation2], %s536
        %p538 = pneg %p55
        %p539 = pneg %p52
        %p540 = pneg %p76
        %p541 = pneg %p73
        %p542 = pneg %p97
        %p543 = pneg %p94
        %p544 = pneg %p118
        %p545 = pneg %p115
        %p546 = pneg %p139
        %p547 = pneg %p136
        %p548 = pneg %p160
        %p549 = pneg %p157
        %p550 = pneg %p181
        %p551 = pneg %p178
        %p552 = pneg %p202
        %p553 = pneg %p199
        %p554 = pneg %p223
        %p555 = pneg %p220
        %p556 = pneg %p244
        %p557 = pneg %p241
        %p558 = pneg %p265
        %p559 = pneg %p262
        %p560 = pneg %p286
        %p561 = pneg %p283
        %p562 = pneg %p307
        %p563 = pneg %p304
        %p564 = pneg %p333
        %p565 = pneg %p330
        %s566 = sand.u32 %s320, 1
        %s567 = scalar_lea.sflag [#allocation4], %s566
        %s568 = sand.u32 %s320, 1
        %s569 = smul.addr %s568, 192
        %s570 = scalar_lea.vmem [#allocation17], %s569
        %s571 = smul.u32 24, %s34
        %s572 = smul.u32 24, %s34
        %v575 = vld [vmem:[%s496] sm:$0xf]
        %v576 = vld [vmem:[%s496 + $0x4] sm:$0xf]
        %v577 = vld [vmem:[%s496 + $0x8] sm:$0xf]
        %v578 = vld [vmem:[%s496 + $0xc] sm:$0xf]
        %v579 = vld [vmem:[%s496 + $0x10] sm:$0xf]
        %v580 = vld [vmem:[%s496 + $0x14] sm:$0xf]
        %v581 = vld [vmem:[%s496 + $0x18] sm:$0xf]
        %v582 = vld [vmem:[%s496 + $0x1c] sm:$0xf]
        %v583 = vld [vmem:[%s496 + $0x20] sm:$0xf]
        %v584 = vld [vmem:[%s496 + $0x24] sm:$0xf]
        %v585 = vld [vmem:[%s496 + $0x28] sm:$0xf]
        %v586 = vld [vmem:[%s496 + $0x2c] sm:$0xf]
        %v587 = vld [vmem:[%s496 + $0x30] sm:$0xf]
        %v588 = vld [vmem:[%s496 + $0x34] sm:$0xf]
        %v589 = vld [vmem:[%s496 + $0x38] sm:$0xf]
        %v590 = vld [vmem:[%s496 + $0x3c] sm:$0xf]
        %v591 = vld [vmem:[%s496 + $0x40] sm:$0xf]
        %v592 = vld [vmem:[%s496 + $0x44] sm:$0xf]
        %v593 = vld [vmem:[%s496 + $0x48] sm:$0xf]
        %v594 = vld [vmem:[%s496 + $0x4c] sm:$0xf]
        %v595 = vld [vmem:[%s496 + $0x50] sm:$0xf]
        %v596 = vld [vmem:[%s496 + $0x54] sm:$0xf]
        %v597 = vld [vmem:[%s496 + $0x58] sm:$0xf]
        %v598 = vld [vmem:[%s496 + $0x5c] sm:$0xf]
        %v599 = vld [vmem:[#allocation5] sm:$0xff]
        %v600 = vld [vmem:[#allocation5 + $0x8] sm:$0xff]
        %v601 = vld [vmem:[#allocation5 + $0x10] sm:$0xff]
        %v602 = vld [vmem:[#allocation5 + $0x18] sm:$0xff]
        %v603 = vld [vmem:[#allocation5 + $0x20] sm:$0xff]
        %v604 = vld [vmem:[#allocation5 + $0x28] sm:$0xff]
        %v605 = vld [vmem:[#allocation5 + $0x30] sm:$0xff]
        %v606 = vld [vmem:[#allocation5 + $0x38] sm:$0xff]
        %v607 = vld [vmem:[#allocation5 + $0x40] sm:$0xff]
        %v608 = vld [vmem:[#allocation5 + $0x48] sm:$0xff]
        %v609 = vld [vmem:[#allocation5 + $0x50] sm:$0xff]
        %v610 = vld [vmem:[#allocation5 + $0x58] sm:$0xff]
        %v611 = vld [vmem:[#allocation5 + $0x60] sm:$0xff]
        %v612 = vld [vmem:[#allocation5 + $0x68] sm:$0xff]
        %v613 = vld [vmem:[#allocation5 + $0x70] sm:$0xff]
        %v614 = vld [vmem:[#allocation5 + $0x78] sm:$0xff]
        %v615 = vld [vmem:[#allocation5 + $0x80] sm:$0xff]
        %v616 = vld [vmem:[#allocation5 + $0x88] sm:$0xff]
        %v617 = vld [vmem:[#allocation5 + $0x90] sm:$0xff]
        %v618 = vld [vmem:[#allocation5 + $0x98] sm:$0xff]
        %v619 = vld [vmem:[#allocation5 + $0xa0] sm:$0xff]
        %v620 = vld [vmem:[#allocation5 + $0xa8] sm:$0xff]
        %v621 = vld [vmem:[#allocation5 + $0xb0] sm:$0xff]
        %v622 = vld [vmem:[#allocation5 + $0xb8] sm:$0xff]
        %v623 = vld [vmem:[#allocation5 + $0xc0] sm:$0xff]
        %v624 = vld [vmem:[#allocation5 + $0xc8] sm:$0xff]
        %v625 = vld [vmem:[#allocation5 + $0xd0] sm:$0xff]
        %v626 = vld [vmem:[#allocation5 + $0xd8] sm:$0xff]
        %v627 = vld [vmem:[#allocation5 + $0xe0] sm:$0xff]
        %v628 = vld [vmem:[#allocation5 + $0xe8] sm:$0xff]
        %v629 = vld [vmem:[#allocation5 + $0xf0] sm:$0xff]
        %v630 = vld [vmem:[#allocation5 + $0xf8] sm:$0xff]
        %v631 = vld [vmem:[#allocation7] ss:$4 sm:$0xf]
        %v633 = vlaneseq
        %v634 = vshrl.u32 %v633, 7
        %v635 = vsub.s32 0, %v634
        %v636 = vrot.slane %v631, %v635
        %v637 = vlaneseq
        %v638 = vshrl.u32 %v637, 7
        %v639 = vsub.s32 1, %v638
        %v640 = vrot.slane %v631, %v639
        %v641 = vlaneseq
        %v642 = vshrl.u32 %v641, 7
        %v643 = vsub.s32 2, %v642
        %v644 = vrot.slane %v631, %v643
        %v645 = vlaneseq
        %v646 = vshrl.u32 %v645, 7
        %v647 = vsub.s32 3, %v646
        %v648 = vrot.slane %v631, %v647
        %v677 = vunpack.c.l.b16 %v575
        %v678 = vunpack.c.l.b16 %v576
        %v679 = vunpack.c.l.b16 %v577
        %v680 = vunpack.c.l.b16 %v578
        %v681 = vunpack.c.l.b16 %v579
        %v682 = vunpack.c.l.b16 %v580
        %v683 = vunpack.c.l.b16 %v581
        %v684 = vunpack.c.l.b16 %v582
        %v685 = vunpack.c.l.b16 %v583
        %v686 = vunpack.c.l.b16 %v584
        %v687 = vunpack.c.l.b16 %v585
        %v688 = vunpack.c.l.b16 %v586
        %v689 = vunpack.c.l.b16 %v587
        %v690 = vunpack.c.l.b16 %v588
        %v691 = vunpack.c.l.b16 %v589
        %v692 = vunpack.c.l.b16 %v590
        %v693 = vunpack.c.l.b16 %v591
        %v694 = vunpack.c.l.b16 %v592
        %v695 = vunpack.c.l.b16 %v593
        %v696 = vunpack.c.l.b16 %v594
        %v697 = vunpack.c.l.b16 %v595
        %v698 = vunpack.c.l.b16 %v596
        %v699 = vunpack.c.l.b16 %v597
        %v700 = vunpack.c.l.b16 %v598
        %v701 = vpack.c.b16 %v678, %v677
        %v702 = vpack.c.b16 %v680, %v679
        %v703 = vpack.c.b16 %v682, %v681
        %v704 = vpack.c.b16 %v684, %v683
        %v705 = vpack.c.b16 %v686, %v685
        %v706 = vpack.c.b16 %v688, %v687
        %v707 = vpack.c.b16 %v690, %v689
        %v708 = vpack.c.b16 %v692, %v691
        %v709 = vpack.c.b16 %v694, %v693
        %v710 = vpack.c.b16 %v696, %v695
        %v711 = vpack.c.b16 %v698, %v697
        %v712 = vpack.c.b16 %v700, %v699
        %v757 = vunpack.c.l.b16 %v599
        %v758 = vunpack.c.h.b16 %v599
        %v759 = vunpack.c.l.b16 %v600
        %v760 = vunpack.c.h.b16 %v600
        %v761 = vunpack.c.l.b16 %v601
        %v762 = vunpack.c.h.b16 %v601
        %v763 = vunpack.c.l.b16 %v602
        %v764 = vunpack.c.h.b16 %v602
        %v765 = vunpack.c.l.b16 %v603
        %v766 = vunpack.c.h.b16 %v603
        %v767 = vunpack.c.l.b16 %v604
        %v768 = vunpack.c.h.b16 %v604
        %v769 = vunpack.c.l.b16 %v605
        %v770 = vunpack.c.h.b16 %v605
        %v771 = vunpack.c.l.b16 %v606
        %v772 = vunpack.c.h.b16 %v606
        %v773 = vunpack.c.l.b16 %v607
        %v774 = vunpack.c.h.b16 %v607
        %v775 = vunpack.c.l.b16 %v608
        %v776 = vunpack.c.h.b16 %v608
        %v777 = vunpack.c.l.b16 %v609
        %v778 = vunpack.c.h.b16 %v609
        %v779 = vunpack.c.l.b16 %v610
        %v780 = vunpack.c.h.b16 %v610
        %v781 = vunpack.c.l.b16 %v611
        %v782 = vunpack.c.h.b16 %v611
        %v783 = vunpack.c.l.b16 %v612
        %v784 = vunpack.c.h.b16 %v612
        %v785 = vunpack.c.l.b16 %v613
        %v786 = vunpack.c.h.b16 %v613
        %v787 = vunpack.c.l.b16 %v614
        %v788 = vunpack.c.h.b16 %v614
        %v789 = vunpack.c.l.b16 %v615
        %v790 = vunpack.c.h.b16 %v615
        %v791 = vunpack.c.l.b16 %v616
        %v792 = vunpack.c.h.b16 %v616
        %v793 = vunpack.c.l.b16 %v617
        %v794 = vunpack.c.h.b16 %v617
        %v795 = vunpack.c.l.b16 %v618
        %v796 = vunpack.c.h.b16 %v618
        %v797 = vunpack.c.l.b16 %v619
        %v798 = vunpack.c.h.b16 %v619
        %v799 = vunpack.c.l.b16 %v620
        %v800 = vunpack.c.h.b16 %v620
        %v801 = vunpack.c.l.b16 %v621
        %v802 = vunpack.c.h.b16 %v621
        %v803 = vunpack.c.l.b16 %v622
        %v804 = vunpack.c.h.b16 %v622
        %v805 = vunpack.c.l.b16 %v623
        %v806 = vunpack.c.h.b16 %v623
        %v807 = vunpack.c.l.b16 %v624
        %v808 = vunpack.c.h.b16 %v624
        %v809 = vunpack.c.l.b16 %v625
        %v810 = vunpack.c.h.b16 %v625
        %v811 = vunpack.c.l.b16 %v626
        %v812 = vunpack.c.h.b16 %v626
        %v813 = vunpack.c.l.b16 %v627
        %v814 = vunpack.c.h.b16 %v627
        %v815 = vunpack.c.l.b16 %v628
        %v816 = vunpack.c.h.b16 %v628
        %v817 = vunpack.c.l.b16 %v629
        %v818 = vunpack.c.h.b16 %v629
        %v819 = vunpack.c.l.b16 %v630
        %v820 = vunpack.c.h.b16 %v630
        %v821 = vpack.c.b16 %v761, %v757
        %v822 = vpack.c.b16 %v762, %v758
        %v823 = vpack.c.b16 %v763, %v759
        %v824 = vpack.c.b16 %v764, %v760
        %v825 = vpack.c.b16 %v769, %v765
        %v826 = vpack.c.b16 %v770, %v766
        %v827 = vpack.c.b16 %v771, %v767
        %v828 = vpack.c.b16 %v772, %v768
        %v829 = vpack.c.b16 %v777, %v773
        %v830 = vpack.c.b16 %v778, %v774
        %v831 = vpack.c.b16 %v779, %v775
        %v832 = vpack.c.b16 %v780, %v776
        %v833 = vpack.c.b16 %v785, %v781
        %v834 = vpack.c.b16 %v786, %v782
        %v835 = vpack.c.b16 %v787, %v783
        %v836 = vpack.c.b16 %v788, %v784
        %v837 = vpack.c.b16 %v793, %v789
        %v838 = vpack.c.b16 %v794, %v790
        %v839 = vpack.c.b16 %v795, %v791
        %v840 = vpack.c.b16 %v796, %v792
        %v841 = vpack.c.b16 %v801, %v797
        %v842 = vpack.c.b16 %v802, %v798
        %v843 = vpack.c.b16 %v803, %v799
        %v844 = vpack.c.b16 %v804, %v800
        %v845 = vpack.c.b16 %v809, %v805
        %v846 = vpack.c.b16 %v810, %v806
        %v847 = vpack.c.b16 %v811, %v807
        %v848 = vpack.c.b16 %v812, %v808
        %v849 = vpack.c.b16 %v817, %v813
        %v850 = vpack.c.b16 %v818, %v814
        %v851 = vpack.c.b16 %v819, %v815
        %v852 = vpack.c.b16 %v820, %v816
        %885 = vmatprep.subr.bf16.mxu0 %v822
        %886 = vmatpush1.bf16.msra.mxu0 %v821
        %887 = vmatprep.subr.bf16.mxu0 %v826
        %888 = vmatpush1.bf16.msra.mxu0 %v825
        %889 = vmatprep.subr.bf16.mxu0 %v830
        %890 = vmatpush1.bf16.msra.mxu0 %v829
        %891 = vmatprep.subr.bf16.mxu0 %v834
        %892 = vmatpush1.bf16.msra.mxu0 %v833
        %893 = vmatprep.subr.bf16.mxu0 %v838
        %894 = vmatpush1.bf16.msra.mxu0 %v837
        %895 = vmatprep.subr.bf16.mxu0 %v842
        %896 = vmatpush1.bf16.msra.mxu0 %v841
        %897 = vmatprep.subr.bf16.mxu0 %v846
        %898 = vmatpush1.bf16.msra.mxu0 %v845
        %899 = vmatprep.subr.bf16.mxu0 %v850
        %900 = vmatpush1.bf16.msra.mxu0 %v849
        %901 = vmatprep.subr.bf16.mxu0 0
        %902 = vmatpush1.bf16.msra.mxu0 0
        %903 = vmatprep.subr.bf16.mxu0 0
        %904 = vmatpush1.bf16.msra.mxu0 0
        %905 = vmatprep.subr.bf16.mxu0 0
        %906 = vmatpush1.bf16.msra.mxu0 0
        %907 = vmatprep.subr.bf16.mxu0 0
        %908 = vmatpush1.bf16.msra.mxu0 0
        %909 = vmatprep.subr.bf16.mxu0 0
        %910 = vmatpush1.bf16.msra.mxu0 0
        %911 = vmatprep.subr.bf16.mxu0 0
        %912 = vmatpush1.bf16.msra.mxu0 0
        %913 = vmatprep.subr.bf16.mxu0 0
        %914 = vmatpush1.bf16.msra.mxu0 0
        %915 = vmatprep.subr.bf16.mxu0 0
        %916 = vmatpush1.bf16.msra.mxu0 0
        %917 = vmatprep.mubr.bf16.mxu0 0
        %918 = vmatmul.mubr.bf16.gmra.mrb[0].mxu0 %v701
        %v919 = vpop.f32.mrb[0].mxu0
        %v920 = vadd.f32 %v636, %v919
        %v921 = vpop.f32.mrb[0].mxu0
        %v922 = vadd.f32 %v640, %v921
        %v923 = vpop.f32.mrb[0].mxu0
        %v924 = vadd.f32 %v636, %v923
        %v925 = vpop.f32.mrb[0].mxu0
        %v926 = vadd.f32 %v640, %v925
        %927 = vmatprep.mubr.bf16.mxu0 0
        %928 = vmatmul.mubr.bf16.gmra.mrb[0].mxu0 %v702
        %v929 = vpop.f32.mrb[0].mxu0
        %v930 = vadd.f32 %v636, %v929
        %v931 = vpop.f32.mrb[0].mxu0
        %v932 = vadd.f32 %v640, %v931
        %v933 = vpop.f32.mrb[0].mxu0
        %v934 = vadd.f32 %v636, %v933
        %v935 = vpop.f32.mrb[0].mxu0
        %v936 = vadd.f32 %v640, %v935
        %937 = vmatprep.mubr.bf16.mxu0 0
        %938 = vmatmul.mubr.bf16.gmra.mrb[0].mxu0 %v703
        %v939 = vpop.f32.mrb[0].mxu0
        %v940 = vadd.f32 %v636, %v939
        %v941 = vpop.f32.mrb[0].mxu0
        %v942 = vadd.f32 %v640, %v941
        %v943 = vpop.f32.mrb[0].mxu0
        %v944 = vadd.f32 %v636, %v943
        %v945 = vpop.f32.mrb[0].mxu0
        %v946 = vadd.f32 %v640, %v945
        %947 = vmatprep.mubr.bf16.mxu0 0
        %948 = vmatmul.mubr.bf16.gmra.mrb[0].mxu0 %v704
        %v949 = vpop.f32.mrb[0].mxu0
        %v950 = vadd.f32 %v636, %v949
        %v951 = vpop.f32.mrb[0].mxu0
        %v952 = vadd.f32 %v640, %v951
        %v953 = vpop.f32.mrb[0].mxu0
        %v954 = vadd.f32 %v636, %v953
        %v955 = vpop.f32.mrb[0].mxu0
        %v956 = vadd.f32 %v640, %v955
        %957 = vmatprep.mubr.bf16.mxu0 0
        %958 = vmatmul.mubr.bf16.gmra.mrb[0].mxu0 %v705
        %v959 = vpop.f32.mrb[0].mxu0
        %v960 = vadd.f32 %v636, %v959
        %v961 = vpop.f32.mrb[0].mxu0
        %v962 = vadd.f32 %v640, %v961
        %v963 = vpop.f32.mrb[0].mxu0
        %v964 = vadd.f32 %v636, %v963
        %v965 = vpop.f32.mrb[0].mxu0
        %v966 = vadd.f32 %v640, %v965
        %967 = vmatprep.mubr.bf16.mxu0 0
        %968 = vmatmul.mubr.bf16.gmra.mrb[0].mxu0 %v706
        %v969 = vpop.f32.mrb[0].mxu0
        %v970 = vadd.f32 %v636, %v969
        %v971 = vpop.f32.mrb[0].mxu0
        %v972 = vadd.f32 %v640, %v971
        %v973 = vpop.f32.mrb[0].mxu0
        %v974 = vadd.f32 %v636, %v973
        %v975 = vpop.f32.mrb[0].mxu0
        %v976 = vadd.f32 %v640, %v975
        %977 = vmatprep.mubr.bf16.mxu0 0
        %978 = vmatmul.mubr.bf16.gmra.mrb[0].mxu0 %v707
        %v979 = vpop.f32.mrb[0].mxu0
        %v980 = vadd.f32 %v636, %v979
        %v981 = vpop.f32.mrb[0].mxu0
        %v982 = vadd.f32 %v640, %v981
        %v983 = vpop.f32.mrb[0].mxu0
        %v984 = vadd.f32 %v636, %v983
        %v985 = vpop.f32.mrb[0].mxu0
        %v986 = vadd.f32 %v640, %v985
        %987 = vmatprep.mubr.bf16.mxu0 0
        %988 = vmatmul.mubr.bf16.gmra.mrb[0].mxu0 %v708
        %v989 = vpop.f32.mrb[0].mxu0
        %v990 = vadd.f32 %v636, %v989
        %v991 = vpop.f32.mrb[0].mxu0
        %v992 = vadd.f32 %v640, %v991
        %v993 = vpop.f32.mrb[0].mxu0
        %v994 = vadd.f32 %v636, %v993
        %v995 = vpop.f32.mrb[0].mxu0
        %v996 = vadd.f32 %v640, %v995
        %997 = vmatprep.mubr.bf16.mxu0 0
        %998 = vmatmul.mubr.bf16.gmra.mrb[0].mxu0 %v709
        %v999 = vpop.f32.mrb[0].mxu0
        %v1000 = vadd.f32 %v636, %v999
        %v1001 = vpop.f32.mrb[0].mxu0
        %v1002 = vadd.f32 %v640, %v1001
        %v1003 = vpop.f32.mrb[0].mxu0
        %v1004 = vadd.f32 %v636, %v1003
        %v1005 = vpop.f32.mrb[0].mxu0
        %v1006 = vadd.f32 %v640, %v1005
        %1007 = vmatprep.mubr.bf16.mxu0 0
        %1008 = vmatmul.mubr.bf16.gmra.mrb[0].mxu0 %v710
        %v1009 = vpop.f32.mrb[0].mxu0
        %v1010 = vadd.f32 %v636, %v1009
        %v1011 = vpop.f32.mrb[0].mxu0
        %v1012 = vadd.f32 %v640, %v1011
        %v1013 = vpop.f32.mrb[0].mxu0
        %v1014 = vadd.f32 %v636, %v1013
        %v1015 = vpop.f32.mrb[0].mxu0
        %v1016 = vadd.f32 %v640, %v1015
        %1017 = vmatprep.mubr.bf16.mxu0 0
        %1018 = vmatmul.mubr.bf16.gmra.mrb[0].mxu0 %v711
        %v1019 = vpop.f32.mrb[0].mxu0
        %v1020 = vadd.f32 %v636, %v1019
        %v1021 = vpop.f32.mrb[0].mxu0
        %v1022 = vadd.f32 %v640, %v1021
        %v1023 = vpop.f32.mrb[0].mxu0
        %v1024 = vadd.f32 %v636, %v1023
        %v1025 = vpop.f32.mrb[0].mxu0
        %v1026 = vadd.f32 %v640, %v1025
        %1027 = vmatprep.mubr.bf16.mxu0 0
        %1028 = vmatmul.mubr.bf16.gmra.mrb[0].mxu0 %v712
        %v1029 = vpop.f32.mrb[0].mxu0
        %v1030 = vadd.f32 %v636, %v1029
        %v1031 = vpop.f32.mrb[0].mxu0
        %v1032 = vadd.f32 %v640, %v1031
        %v1033 = vpop.f32.mrb[0].mxu0
        %v1034 = vadd.f32 %v636, %v1033
        %v1035 = vpop.f32.mrb[0].mxu0
        %v1036 = vadd.f32 %v640, %v1035
        %1037 = vdwg.mxu0
        %1038 = vmatprep.subr.bf16.mxu0 %v824
        %1039 = vmatpush1.bf16.msra.mxu0 %v823
        %1040 = vmatprep.subr.bf16.mxu0 %v828
        %1041 = vmatpush1.bf16.msra.mxu0 %v827
        %1042 = vmatprep.subr.bf16.mxu0 %v832
        %1043 = vmatpush1.bf16.msra.mxu0 %v831
        %1044 = vmatprep.subr.bf16.mxu0 %v836
        %1045 = vmatpush1.bf16.msra.mxu0 %v835
        %1046 = vmatprep.subr.bf16.mxu0 %v840
        %1047 = vmatpush1.bf16.msra.mxu0 %v839
        %1048 = vmatprep.subr.bf16.mxu0 %v844
        %1049 = vmatpush1.bf16.msra.mxu0 %v843
        %1050 = vmatprep.subr.bf16.mxu0 %v848
        %1051 = vmatpush1.bf16.msra.mxu0 %v847
        %1052 = vmatprep.subr.bf16.mxu0 %v852
        %1053 = vmatpush1.bf16.msra.mxu0 %v851
        %1054 = vmatprep.subr.bf16.mxu0 0
        %1055 = vmatpush1.bf16.msra.mxu0 0
        %1056 = vmatprep.subr.bf16.mxu0 0
        %1057 = vmatpush1.bf16.msra.mxu0 0
        %1058 = vmatprep.subr.bf16.mxu0 0
        %1059 = vmatpush1.bf16.msra.mxu0 0
        %1060 = vmatprep.subr.bf16.mxu0 0
        %1061 = vmatpush1.bf16.msra.mxu0 0
        %1062 = vmatprep.subr.bf16.mxu0 0
        %1063 = vmatpush1.bf16.msra.mxu0 0
        %1064 = vmatprep.subr.bf16.mxu0 0
        %1065 = vmatpush1.bf16.msra.mxu0 0
        %1066 = vmatprep.subr.bf16.mxu0 0
        %1067 = vmatpush1.bf16.msra.mxu0 0
        %1068 = vmatprep.subr.bf16.mxu0 0
        %1069 = vmatpush1.bf16.msra.mxu0 0
        %1070 = vmatprep.mubr.bf16.mxu0 0
        %1071 = vmatmul.mubr.bf16.gmra.mrb[0].mxu0 %v701
        %v1072 = vpop.f32.mrb[0].mxu0
        %v1073 = vadd.f32 %v644, %v1072
        %v1074 = vpop.f32.mrb[0].mxu0
        %v1075 = vadd.f32 %v648, %v1074
        %v1076 = vpop.f32.mrb[0].mxu0
        %v1077 = vadd.f32 %v644, %v1076
        %v1078 = vpop.f32.mrb[0].mxu0
        %v1079 = vadd.f32 %v648, %v1078
        %1080 = vmatprep.mubr.bf16.mxu0 0
        %1081 = vmatmul.mubr.bf16.gmra.mrb[0].mxu0 %v702
        %v1082 = vpop.f32.mrb[0].mxu0
        %v1083 = vadd.f32 %v644, %v1082
        %v1084 = vpop.f32.mrb[0].mxu0
        %v1085 = vadd.f32 %v648, %v1084
        %v1086 = vpop.f32.mrb[0].mxu0
        %v1087 = vadd.f32 %v644, %v1086
        %v1088 = vpop.f32.mrb[0].mxu0
        %v1089 = vadd.f32 %v648, %v1088
        %1090 = vmatprep.mubr.bf16.mxu0 0
        %1091 = vmatmul.mubr.bf16.gmra.mrb[0].mxu0 %v703
        %v1092 = vpop.f32.mrb[0].mxu0
        %v1093 = vadd.f32 %v644, %v1092
        %v1094 = vpop.f32.mrb[0].mxu0
        %v1095 = vadd.f32 %v648, %v1094
        %v1096 = vpop.f32.mrb[0].mxu0
        %v1097 = vadd.f32 %v644, %v1096
        %v1098 = vpop.f32.mrb[0].mxu0
        %v1099 = vadd.f32 %v648, %v1098
        %1100 = vmatprep.mubr.bf16.mxu0 0
        %1101 = vmatmul.mubr.bf16.gmra.mrb[0].mxu0 %v704
        %v1102 = vpop.f32.mrb[0].mxu0
        %v1103 = vadd.f32 %v644, %v1102
        %v1104 = vpop.f32.mrb[0].mxu0
        %v1105 = vadd.f32 %v648, %v1104
        %v1106 = vpop.f32.mrb[0].mxu0
        %v1107 = vadd.f32 %v644, %v1106
        %v1108 = vpop.f32.mrb[0].mxu0
        %v1109 = vadd.f32 %v648, %v1108
        %1110 = vmatprep.mubr.bf16.mxu0 0
        %1111 = vmatmul.mubr.bf16.gmra.mrb[0].mxu0 %v705
        %v1112 = vpop.f32.mrb[0].mxu0
        %v1113 = vadd.f32 %v644, %v1112
        %v1114 = vpop.f32.mrb[0].mxu0
        %v1115 = vadd.f32 %v648, %v1114
        %v1116 = vpop.f32.mrb[0].mxu0
        %v1117 = vadd.f32 %v644, %v1116
        %v1118 = vpop.f32.mrb[0].mxu0
        %v1119 = vadd.f32 %v648, %v1118
        %1120 = vmatprep.mubr.bf16.mxu0 0
        %1121 = vmatmul.mubr.bf16.gmra.mrb[0].mxu0 %v706
        %v1122 = vpop.f32.mrb[0].mxu0
        %v1123 = vadd.f32 %v644, %v1122
        %v1124 = vpop.f32.mrb[0].mxu0
        %v1125 = vadd.f32 %v648, %v1124
        %v1126 = vpop.f32.mrb[0].mxu0
        %v1127 = vadd.f32 %v644, %v1126
        %v1128 = vpop.f32.mrb[0].mxu0
        %v1129 = vadd.f32 %v648, %v1128
        %1130 = vmatprep.mubr.bf16.mxu0 0
        %1131 = vmatmul.mubr.bf16.gmra.mrb[0].mxu0 %v707
        %v1132 = vpop.f32.mrb[0].mxu0
        %v1133 = vadd.f32 %v644, %v1132
        %v1134 = vpop.f32.mrb[0].mxu0
        %v1135 = vadd.f32 %v648, %v1134
        %v1136 = vpop.f32.mrb[0].mxu0
        %v1137 = vadd.f32 %v644, %v1136
        %v1138 = vpop.f32.mrb[0].mxu0
        %v1139 = vadd.f32 %v648, %v1138
        %1140 = vmatprep.mubr.bf16.mxu0 0
        %1141 = vmatmul.mubr.bf16.gmra.mrb[0].mxu0 %v708
        %v1142 = vpop.f32.mrb[0].mxu0
        %v1143 = vadd.f32 %v644, %v1142
        %v1144 = vpop.f32.mrb[0].mxu0
        %v1145 = vadd.f32 %v648, %v1144
        %v1146 = vpop.f32.mrb[0].mxu0
        %v1147 = vadd.f32 %v644, %v1146
        %v1148 = vpop.f32.mrb[0].mxu0
        %v1149 = vadd.f32 %v648, %v1148
        %1150 = vmatprep.mubr.bf16.mxu0 0
        %1151 = vmatmul.mubr.bf16.gmra.mrb[0].mxu0 %v709
        %v1152 = vpop.f32.mrb[0].mxu0
        %v1153 = vadd.f32 %v644, %v1152
        %v1154 = vpop.f32.mrb[0].mxu0
        %v1155 = vadd.f32 %v648, %v1154
        %v1156 = vpop.f32.mrb[0].mxu0
        %v1157 = vadd.f32 %v644, %v1156
        %v1158 = vpop.f32.mrb[0].mxu0
        %v1159 = vadd.f32 %v648, %v1158
        %1160 = vmatprep.mubr.bf16.mxu0 0
        %1161 = vmatmul.mubr.bf16.gmra.mrb[0].mxu0 %v710
        %v1162 = vpop.f32.mrb[0].mxu0
        %v1163 = vadd.f32 %v644, %v1162
        %v1164 = vpop.f32.mrb[0].mxu0
        %v1165 = vadd.f32 %v648, %v1164
        %v1166 = vpop.f32.mrb[0].mxu0
        %v1167 = vadd.f32 %v644, %v1166
        %v1168 = vpop.f32.mrb[0].mxu0
        %v1169 = vadd.f32 %v648, %v1168
        %1170 = vmatprep.mubr.bf16.mxu0 0
        %1171 = vmatmul.mubr.bf16.gmra.mrb[0].mxu0 %v711
        %v1172 = vpop.f32.mrb[0].mxu0
        %v1173 = vadd.f32 %v644, %v1172
        %v1174 = vpop.f32.mrb[0].mxu0
        %v1175 = vadd.f32 %v648, %v1174
        %v1176 = vpop.f32.mrb[0].mxu0
        %v1177 = vadd.f32 %v644, %v1176
        %v1178 = vpop.f32.mrb[0].mxu0
        %v1179 = vadd.f32 %v648, %v1178
        %1180 = vmatprep.mubr.bf16.mxu0 0
        %1181 = vmatmul.mubr.bf16.gmra.mrb[0].mxu0 %v712
        %v1182 = vpop.f32.mrb[0].mxu0
        %v1183 = vadd.f32 %v644, %v1182
        %v1184 = vpop.f32.mrb[0].mxu0
        %v1185 = vadd.f32 %v648, %v1184
        %v1186 = vpop.f32.mrb[0].mxu0
        %v1187 = vadd.f32 %v644, %v1186
        %v1188 = vpop.f32.mrb[0].mxu0
        %v1189 = vadd.f32 %v648, %v1188
        %1190 = vdwg.mxu0
        %s1191 = scalar_lea.vmem [#allocation7], 1
        %v1192 = vld [vmem:[%s1191] ss:$4 sm:$0xf]
        %s1193 = scalar_lea.vmem [#allocation7], 2
        %v1194 = vld [vmem:[%s1193] ss:$4 sm:$0xf]
        %v1195 = vadd.f32 %v920, %v922
        %v1196 = vadd.f32 %v1195, %v1073
        %v1197 = vadd.f32 %v1196, %v1075
        %1198 = vadd.xlane.f32.xlu0 %v1197
        %v1199 = vpop.xlane.xlu0 %1198
        %v1200 = vadd.f32 %v924, %v926
        %v1201 = vadd.f32 %v1200, %v1077
        %v1202 = vadd.f32 %v1201, %v1079
        %1203 = vadd.xlane.f32.xlu0 %v1202
        %v1204 = vpop.xlane.xlu0 %1203
        %v1205 = vadd.f32 %v930, %v932
        %v1206 = vadd.f32 %v1205, %v1083
        %v1207 = vadd.f32 %v1206, %v1085
        %1208 = vadd.xlane.f32.xlu0 %v1207
        %v1209 = vpop.xlane.xlu0 %1208
        %v1210 = vadd.f32 %v934, %v936
        %v1211 = vadd.f32 %v1210, %v1087
        %v1212 = vadd.f32 %v1211, %v1089
        %1213 = vadd.xlane.f32.xlu0 %v1212
        %v1214 = vpop.xlane.xlu0 %1213
        %v1215 = vadd.f32 %v940, %v942
        %v1216 = vadd.f32 %v1215, %v1093
        %v1217 = vadd.f32 %v1216, %v1095
        %1218 = vadd.xlane.f32.xlu0 %v1217
        %v1219 = vpop.xlane.xlu0 %1218
        %v1220 = vadd.f32 %v944, %v946
        %v1221 = vadd.f32 %v1220, %v1097
        %v1222 = vadd.f32 %v1221, %v1099
        %1223 = vadd.xlane.f32.xlu0 %v1222
        %v1224 = vpop.xlane.xlu0 %1223
        %v1225 = vadd.f32 %v950, %v952
        %v1226 = vadd.f32 %v1225, %v1103
        %v1227 = vadd.f32 %v1226, %v1105
        %1228 = vadd.xlane.f32.xlu0 %v1227
        %v1229 = vpop.xlane.xlu0 %1228
        %v1230 = vadd.f32 %v954, %v956
        %v1231 = vadd.f32 %v1230, %v1107
        %v1232 = vadd.f32 %v1231, %v1109
        %1233 = vadd.xlane.f32.xlu0 %v1232
        %v1234 = vpop.xlane.xlu0 %1233
        %v1235 = vadd.f32 %v960, %v962
        %v1236 = vadd.f32 %v1235, %v1113
        %v1237 = vadd.f32 %v1236, %v1115
        %1238 = vadd.xlane.f32.xlu0 %v1237
        %v1239 = vpop.xlane.xlu0 %1238
        %v1240 = vadd.f32 %v964, %v966
        %v1241 = vadd.f32 %v1240, %v1117
        %v1242 = vadd.f32 %v1241, %v1119
        %1243 = vadd.xlane.f32.xlu0 %v1242
        %v1244 = vpop.xlane.xlu0 %1243
        %v1245 = vadd.f32 %v970, %v972
        %v1246 = vadd.f32 %v1245, %v1123
        %v1247 = vadd.f32 %v1246, %v1125
        %1248 = vadd.xlane.f32.xlu0 %v1247
        %v1249 = vpop.xlane.xlu0 %1248
        %v1250 = vadd.f32 %v974, %v976
        %v1251 = vadd.f32 %v1250, %v1127
        %v1252 = vadd.f32 %v1251, %v1129
        %1253 = vadd.xlane.f32.xlu0 %v1252
        %v1254 = vpop.xlane.xlu0 %1253
        %v1255 = vadd.f32 %v980, %v982
        %v1256 = vadd.f32 %v1255, %v1133
        %v1257 = vadd.f32 %v1256, %v1135
        %1258 = vadd.xlane.f32.xlu0 %v1257
        %v1259 = vpop.xlane.xlu0 %1258
        %v1260 = vadd.f32 %v984, %v986
        %v1261 = vadd.f32 %v1260, %v1137
        %v1262 = vadd.f32 %v1261, %v1139
        %1263 = vadd.xlane.f32.xlu0 %v1262
        %v1264 = vpop.xlane.xlu0 %1263
        %v1265 = vadd.f32 %v990, %v992
        %v1266 = vadd.f32 %v1265, %v1143
        %v1267 = vadd.f32 %v1266, %v1145
        %1268 = vadd.xlane.f32.xlu0 %v1267
        %v1269 = vpop.xlane.xlu0 %1268
        %v1270 = vadd.f32 %v994, %v996
        %v1271 = vadd.f32 %v1270, %v1147
        %v1272 = vadd.f32 %v1271, %v1149
        %1273 = vadd.xlane.f32.xlu0 %v1272
        %v1274 = vpop.xlane.xlu0 %1273
        %v1275 = vadd.f32 %v1000, %v1002
        %v1276 = vadd.f32 %v1275, %v1153
        %v1277 = vadd.f32 %v1276, %v1155
        %1278 = vadd.xlane.f32.xlu0 %v1277
        %v1279 = vpop.xlane.xlu0 %1278
        %v1280 = vadd.f32 %v1004, %v1006
        %v1281 = vadd.f32 %v1280, %v1157
        %v1282 = vadd.f32 %v1281, %v1159
        %1283 = vadd.xlane.f32.xlu0 %v1282
        %v1284 = vpop.xlane.xlu0 %1283
        %v1285 = vadd.f32 %v1010, %v1012
        %v1286 = vadd.f32 %v1285, %v1163
        %v1287 = vadd.f32 %v1286, %v1165
        %1288 = vadd.xlane.f32.xlu0 %v1287
        %v1289 = vpop.xlane.xlu0 %1288
        %v1290 = vadd.f32 %v1014, %v1016
        %v1291 = vadd.f32 %v1290, %v1167
        %v1292 = vadd.f32 %v1291, %v1169
        %1293 = vadd.xlane.f32.xlu0 %v1292
        %v1294 = vpop.xlane.xlu0 %1293
        %v1295 = vadd.f32 %v1020, %v1022
        %v1296 = vadd.f32 %v1295, %v1173
        %v1297 = vadd.f32 %v1296, %v1175
        %1298 = vadd.xlane.f32.xlu0 %v1297
        %v1299 = vpop.xlane.xlu0 %1298
        %v1300 = vadd.f32 %v1024, %v1026
        %v1301 = vadd.f32 %v1300, %v1177
        %v1302 = vadd.f32 %v1301, %v1179
        %1303 = vadd.xlane.f32.xlu0 %v1302
        %v1304 = vpop.xlane.xlu0 %1303
        %v1305 = vadd.f32 %v1030, %v1032
        %v1306 = vadd.f32 %v1305, %v1183
        %v1307 = vadd.f32 %v1306, %v1185
        %1308 = vadd.xlane.f32.xlu0 %v1307
        %v1309 = vpop.xlane.xlu0 %1308
        %v1310 = vadd.f32 %v1034, %v1036
        %v1311 = vadd.f32 %v1310, %v1187
        %v1312 = vadd.f32 %v1311, %v1189
        %1313 = vadd.xlane.f32.xlu0 %v1312
        %v1314 = vpop.xlane.xlu0 %1313
        %v1315 = vrcp.pop 512.0
        %v1316 = vmul.f32 %v1199, %v1315
        %v1317 = vmul.f32 %v1204, %v1315
        %v1318 = vmul.f32 %v1209, %v1315
        %v1319 = vmul.f32 %v1214, %v1315
        %v1320 = vmul.f32 %v1219, %v1315
        %v1321 = vmul.f32 %v1224, %v1315
        %v1322 = vmul.f32 %v1229, %v1315
        %v1323 = vmul.f32 %v1234, %v1315
        %v1324 = vmul.f32 %v1239, %v1315
        %v1325 = vmul.f32 %v1244, %v1315
        %v1326 = vmul.f32 %v1249, %v1315
        %v1327 = vmul.f32 %v1254, %v1315
        %v1328 = vmul.f32 %v1259, %v1315
        %v1329 = vmul.f32 %v1264, %v1315
        %v1330 = vmul.f32 %v1269, %v1315
        %v1331 = vmul.f32 %v1274, %v1315
        %v1332 = vmul.f32 %v1279, %v1315
        %v1333 = vmul.f32 %v1284, %v1315
        %v1334 = vmul.f32 %v1289, %v1315
        %v1335 = vmul.f32 %v1294, %v1315
        %v1336 = vmul.f32 %v1299, %v1315
        %v1337 = vmul.f32 %v1304, %v1315
        %v1338 = vmul.f32 %v1309, %v1315
        %v1339 = vmul.f32 %v1314, %v1315
        %v1340 = vsub.f32 %v920, %v1316
        %v1341 = vsub.f32 %v922, %v1316
        %v1342 = vsub.f32 %v1073, %v1316
        %v1343 = vsub.f32 %v1075, %v1316
        %v1344 = vsub.f32 %v924, %v1317
        %v1345 = vsub.f32 %v926, %v1317
        %v1346 = vsub.f32 %v1077, %v1317
        %v1347 = vsub.f32 %v1079, %v1317
        %v1348 = vsub.f32 %v930, %v1318
        %v1349 = vsub.f32 %v932, %v1318
        %v1350 = vsub.f32 %v1083, %v1318
        %v1351 = vsub.f32 %v1085, %v1318
        %v1352 = vsub.f32 %v934, %v1319
        %v1353 = vsub.f32 %v936, %v1319
        %v1354 = vsub.f32 %v1087, %v1319
        %v1355 = vsub.f32 %v1089, %v1319
        %v1356 = vsub.f32 %v940, %v1320
        %v1357 = vsub.f32 %v942, %v1320
        %v1358 = vsub.f32 %v1093, %v1320
        %v1359 = vsub.f32 %v1095, %v1320
        %v1360 = vsub.f32 %v944, %v1321
        %v1361 = vsub.f32 %v946, %v1321
        %v1362 = vsub.f32 %v1097, %v1321
        %v1363 = vsub.f32 %v1099, %v1321
        %v1364 = vsub.f32 %v950, %v1322
        %v1365 = vsub.f32 %v952, %v1322
        %v1366 = vsub.f32 %v1103, %v1322
        %v1367 = vsub.f32 %v1105, %v1322
        %v1368 = vsub.f32 %v954, %v1323
        %v1369 = vsub.f32 %v956, %v1323
        %v1370 = vsub.f32 %v1107, %v1323
        %v1371 = vsub.f32 %v1109, %v1323
        %v1372 = vsub.f32 %v960, %v1324
        %v1373 = vsub.f32 %v962, %v1324
        %v1374 = vsub.f32 %v1113, %v1324
        %v1375 = vsub.f32 %v1115, %v1324
        %v1376 = vsub.f32 %v964, %v1325
        %v1377 = vsub.f32 %v966, %v1325
        %v1378 = vsub.f32 %v1117, %v1325
        %v1379 = vsub.f32 %v1119, %v1325
        %v1380 = vsub.f32 %v970, %v1326
        %v1381 = vsub.f32 %v972, %v1326
        %v1382 = vsub.f32 %v1123, %v1326
        %v1383 = vsub.f32 %v1125, %v1326
        %v1384 = vsub.f32 %v974, %v1327
        %v1385 = vsub.f32 %v976, %v1327
        %v1386 = vsub.f32 %v1127, %v1327
        %v1387 = vsub.f32 %v1129, %v1327
        %v1388 = vsub.f32 %v980, %v1328
        %v1389 = vsub.f32 %v982, %v1328
        %v1390 = vsub.f32 %v1133, %v1328
        %v1391 = vsub.f32 %v1135, %v1328
        %v1392 = vsub.f32 %v984, %v1329
        %v1393 = vsub.f32 %v986, %v1329
        %v1394 = vsub.f32 %v1137, %v1329
        %v1395 = vsub.f32 %v1139, %v1329
        %v1396 = vsub.f32 %v990, %v1330
        %v1397 = vsub.f32 %v992, %v1330
        %v1398 = vsub.f32 %v1143, %v1330
        %v1399 = vsub.f32 %v1145, %v1330
        %v1400 = vsub.f32 %v994, %v1331
        %v1401 = vsub.f32 %v996, %v1331
        %v1402 = vsub.f32 %v1147, %v1331
        %v1403 = vsub.f32 %v1149, %v1331
        %v1404 = vsub.f32 %v1000, %v1332
        %v1405 = vsub.f32 %v1002, %v1332
        %v1406 = vsub.f32 %v1153, %v1332
        %v1407 = vsub.f32 %v1155, %v1332
        %v1408 = vsub.f32 %v1004, %v1333
        %v1409 = vsub.f32 %v1006, %v1333
        %v1410 = vsub.f32 %v1157, %v1333
        %v1411 = vsub.f32 %v1159, %v1333
        %v1412 = vsub.f32 %v1010, %v1334
        %v1413 = vsub.f32 %v1012, %v1334
        %v1414 = vsub.f32 %v1163, %v1334
        %v1415 = vsub.f32 %v1165, %v1334
        %v1416 = vsub.f32 %v1014, %v1335
        %v1417 = vsub.f32 %v1016, %v1335
        %v1418 = vsub.f32 %v1167, %v1335
        %v1419 = vsub.f32 %v1169, %v1335
        %v1420 = vsub.f32 %v1020, %v1336
        %v1421 = vsub.f32 %v1022, %v1336
        %v1422 = vsub.f32 %v1173, %v1336
        %v1423 = vsub.f32 %v1175, %v1336
        %v1424 = vsub.f32 %v1024, %v1337
        %v1425 = vsub.f32 %v1026, %v1337
        %v1426 = vsub.f32 %v1177, %v1337
        %v1427 = vsub.f32 %v1179, %v1337
        %v1428 = vsub.f32 %v1030, %v1338
        %v1429 = vsub.f32 %v1032, %v1338
        %v1430 = vsub.f32 %v1183, %v1338
        %v1431 = vsub.f32 %v1185, %v1338
        %v1432 = vsub.f32 %v1034, %v1339
        %v1433 = vsub.f32 %v1036, %v1339
        %v1434 = vsub.f32 %v1187, %v1339
        %v1435 = vsub.f32 %v1189, %v1339
        %v1436 = vmul.f32 %v1340, %v1340
        %v1437 = vmul.f32 %v1341, %v1341
        %v1438 = vmul.f32 %v1342, %v1342
        %v1439 = vmul.f32 %v1343, %v1343
        %v1440 = vmul.f32 %v1344, %v1344
        %v1441 = vmul.f32 %v1345, %v1345
        %v1442 = vmul.f32 %v1346, %v1346
        %v1443 = vmul.f32 %v1347, %v1347
        %v1444 = vmul.f32 %v1348, %v1348
        %v1445 = vmul.f32 %v1349, %v1349
        %v1446 = vmul.f32 %v1350, %v1350
        %v1447 = vmul.f32 %v1351, %v1351
        %v1448 = vmul.f32 %v1352, %v1352
        %v1449 = vmul.f32 %v1353, %v1353
        %v1450 = vmul.f32 %v1354, %v1354
        %v1451 = vmul.f32 %v1355, %v1355
        %v1452 = vmul.f32 %v1356, %v1356
        %v1453 = vmul.f32 %v1357, %v1357
        %v1454 = vmul.f32 %v1358, %v1358
        %v1455 = vmul.f32 %v1359, %v1359
        %v1456 = vmul.f32 %v1360, %v1360
        %v1457 = vmul.f32 %v1361, %v1361
        %v1458 = vmul.f32 %v1362, %v1362
        %v1459 = vmul.f32 %v1363, %v1363
        %v1460 = vmul.f32 %v1364, %v1364
        %v1461 = vmul.f32 %v1365, %v1365
        %v1462 = vmul.f32 %v1366, %v1366
        %v1463 = vmul.f32 %v1367, %v1367
        %v1464 = vmul.f32 %v1368, %v1368
        %v1465 = vmul.f32 %v1369, %v1369
        %v1466 = vmul.f32 %v1370, %v1370
        %v1467 = vmul.f32 %v1371, %v1371
        %v1468 = vmul.f32 %v1372, %v1372
        %v1469 = vmul.f32 %v1373, %v1373
        %v1470 = vmul.f32 %v1374, %v1374
        %v1471 = vmul.f32 %v1375, %v1375
        %v1472 = vmul.f32 %v1376, %v1376
        %v1473 = vmul.f32 %v1377, %v1377
        %v1474 = vmul.f32 %v1378, %v1378
        %v1475 = vmul.f32 %v1379, %v1379
        %v1476 = vmul.f32 %v1380, %v1380
        %v1477 = vmul.f32 %v1381, %v1381
        %v1478 = vmul.f32 %v1382, %v1382
        %v1479 = vmul.f32 %v1383, %v1383
        %v1480 = vmul.f32 %v1384, %v1384
        %v1481 = vmul.f32 %v1385, %v1385
        %v1482 = vmul.f32 %v1386, %v1386
        %v1483 = vmul.f32 %v1387, %v1387
        %v1484 = vmul.f32 %v1388, %v1388
        %v1485 = vmul.f32 %v1389, %v1389
        %v1486 = vmul.f32 %v1390, %v1390
        %v1487 = vmul.f32 %v1391, %v1391
        %v1488 = vmul.f32 %v1392, %v1392
        %v1489 = vmul.f32 %v1393, %v1393
        %v1490 = vmul.f32 %v1394, %v1394
        %v1491 = vmul.f32 %v1395, %v1395
        %v1492 = vmul.f32 %v1396, %v1396
        %v1493 = vmul.f32 %v1397, %v1397
        %v1494 = vmul.f32 %v1398, %v1398
        %v1495 = vmul.f32 %v1399, %v1399
        %v1496 = vmul.f32 %v1400, %v1400
        %v1497 = vmul.f32 %v1401, %v1401
        %v1498 = vmul.f32 %v1402, %v1402
        %v1499 = vmul.f32 %v1403, %v1403
        %v1500 = vmul.f32 %v1404, %v1404
        %v1501 = vmul.f32 %v1405, %v1405
        %v1502 = vmul.f32 %v1406, %v1406
        %v1503 = vmul.f32 %v1407, %v1407
        %v1504 = vmul.f32 %v1408, %v1408
        %v1505 = vmul.f32 %v1409, %v1409
        %v1506 = vmul.f32 %v1410, %v1410
        %v1507 = vmul.f32 %v1411, %v1411
        %v1508 = vmul.f32 %v1412, %v1412
        %v1509 = vmul.f32 %v1413, %v1413
        %v1510 = vmul.f32 %v1414, %v1414
        %v1511 = vmul.f32 %v1415, %v1415
        %v1512 = vmul.f32 %v1416, %v1416
        %v1513 = vmul.f32 %v1417, %v1417
        %v1514 = vmul.f32 %v1418, %v1418
        %v1515 = vmul.f32 %v1419, %v1419
        %v1516 = vmul.f32 %v1420, %v1420
        %v1517 = vmul.f32 %v1421, %v1421
        %v1518 = vmul.f32 %v1422, %v1422
        %v1519 = vmul.f32 %v1423, %v1423
        %v1520 = vmul.f32 %v1424, %v1424
        %v1521 = vmul.f32 %v1425, %v1425
        %v1522 = vmul.f32 %v1426, %v1426
        %v1523 = vmul.f32 %v1427, %v1427
        %v1524 = vmul.f32 %v1428, %v1428
        %v1525 = vmul.f32 %v1429, %v1429
        %v1526 = vmul.f32 %v1430, %v1430
        %v1527 = vmul.f32 %v1431, %v1431
        %v1528 = vmul.f32 %v1432, %v1432
        %v1529 = vmul.f32 %v1433, %v1433
        %v1530 = vmul.f32 %v1434, %v1434
        %v1531 = vmul.f32 %v1435, %v1435
        %v1532 = vadd.f32 %v1436, %v1437
        %v1533 = vadd.f32 %v1532, %v1438
        %v1534 = vadd.f32 %v1533, %v1439
        %1535 = vadd.xlane.f32.xlu0 %v1534
        %v1536 = vpop.xlane.xlu0 %1535
        %v1537 = vadd.f32 %v1440, %v1441
        %v1538 = vadd.f32 %v1537, %v1442
        %v1539 = vadd.f32 %v1538, %v1443
        %1540 = vadd.xlane.f32.xlu0 %v1539
        %v1541 = vpop.xlane.xlu0 %1540
        %v1542 = vadd.f32 %v1444, %v1445
        %v1543 = vadd.f32 %v1542, %v1446
        %v1544 = vadd.f32 %v1543, %v1447
        %1545 = vadd.xlane.f32.xlu0 %v1544
        %v1546 = vpop.xlane.xlu0 %1545
        %v1547 = vadd.f32 %v1448, %v1449
        %v1548 = vadd.f32 %v1547, %v1450
        %v1549 = vadd.f32 %v1548, %v1451
        %1550 = vadd.xlane.f32.xlu0 %v1549
        %v1551 = vpop.xlane.xlu0 %1550
        %v1552 = vadd.f32 %v1452, %v1453
        %v1553 = vadd.f32 %v1552, %v1454
        %v1554 = vadd.f32 %v1553, %v1455
        %1555 = vadd.xlane.f32.xlu0 %v1554
        %v1556 = vpop.xlane.xlu0 %1555
        %v1557 = vadd.f32 %v1456, %v1457
        %v1558 = vadd.f32 %v1557, %v1458
        %v1559 = vadd.f32 %v1558, %v1459
        %1560 = vadd.xlane.f32.xlu0 %v1559
        %v1561 = vpop.xlane.xlu0 %1560
        %v1562 = vadd.f32 %v1460, %v1461
        %v1563 = vadd.f32 %v1562, %v1462
        %v1564 = vadd.f32 %v1563, %v1463
        %1565 = vadd.xlane.f32.xlu0 %v1564
        %v1566 = vpop.xlane.xlu0 %1565
        %v1567 = vadd.f32 %v1464, %v1465
        %v1568 = vadd.f32 %v1567, %v1466
        %v1569 = vadd.f32 %v1568, %v1467
        %1570 = vadd.xlane.f32.xlu0 %v1569
        %v1571 = vpop.xlane.xlu0 %1570
        %v1572 = vadd.f32 %v1468, %v1469
        %v1573 = vadd.f32 %v1572, %v1470
        %v1574 = vadd.f32 %v1573, %v1471
        %1575 = vadd.xlane.f32.xlu0 %v1574
        %v1576 = vpop.xlane.xlu0 %1575
        %v1577 = vadd.f32 %v1472, %v1473
        %v1578 = vadd.f32 %v1577, %v1474
        %v1579 = vadd.f32 %v1578, %v1475
        %1580 = vadd.xlane.f32.xlu0 %v1579
        %v1581 = vpop.xlane.xlu0 %1580
        %v1582 = vadd.f32 %v1476, %v1477
        %v1583 = vadd.f32 %v1582, %v1478
        %v1584 = vadd.f32 %v1583, %v1479
        %1585 = vadd.xlane.f32.xlu0 %v1584
        %v1586 = vpop.xlane.xlu0 %1585
        %v1587 = vadd.f32 %v1480, %v1481
        %v1588 = vadd.f32 %v1587, %v1482
        %v1589 = vadd.f32 %v1588, %v1483
        %1590 = vadd.xlane.f32.xlu0 %v1589
        %v1591 = vpop.xlane.xlu0 %1590
        %v1592 = vadd.f32 %v1484, %v1485
        %v1593 = vadd.f32 %v1592, %v1486
        %v1594 = vadd.f32 %v1593, %v1487
        %1595 = vadd.xlane.f32.xlu0 %v1594
        %v1596 = vpop.xlane.xlu0 %1595
        %v1597 = vadd.f32 %v1488, %v1489
        %v1598 = vadd.f32 %v1597, %v1490
        %v1599 = vadd.f32 %v1598, %v1491
        %1600 = vadd.xlane.f32.xlu0 %v1599
        %v1601 = vpop.xlane.xlu0 %1600
        %v1602 = vadd.f32 %v1492, %v1493
        %v1603 = vadd.f32 %v1602, %v1494
        %v1604 = vadd.f32 %v1603, %v1495
        %1605 = vadd.xlane.f32.xlu0 %v1604
        %v1606 = vpop.xlane.xlu0 %1605
        %v1607 = vadd.f32 %v1496, %v1497
        %v1608 = vadd.f32 %v1607, %v1498
        %v1609 = vadd.f32 %v1608, %v1499
        %1610 = vadd.xlane.f32.xlu0 %v1609
        %v1611 = vpop.xlane.xlu0 %1610
        %v1612 = vadd.f32 %v1500, %v1501
        %v1613 = vadd.f32 %v1612, %v1502
        %v1614 = vadd.f32 %v1613, %v1503
        %1615 = vadd.xlane.f32.xlu0 %v1614
        %v1616 = vpop.xlane.xlu0 %1615
        %v1617 = vadd.f32 %v1504, %v1505
        %v1618 = vadd.f32 %v1617, %v1506
        %v1619 = vadd.f32 %v1618, %v1507
        %1620 = vadd.xlane.f32.xlu0 %v1619
        %v1621 = vpop.xlane.xlu0 %1620
        %v1622 = vadd.f32 %v1508, %v1509
        %v1623 = vadd.f32 %v1622, %v1510
        %v1624 = vadd.f32 %v1623, %v1511
        %1625 = vadd.xlane.f32.xlu0 %v1624
        %v1626 = vpop.xlane.xlu0 %1625
        %v1627 = vadd.f32 %v1512, %v1513
        %v1628 = vadd.f32 %v1627, %v1514
        %v1629 = vadd.f32 %v1628, %v1515
        %1630 = vadd.xlane.f32.xlu0 %v1629
        %v1631 = vpop.xlane.xlu0 %1630
        %v1632 = vadd.f32 %v1516, %v1517
        %v1633 = vadd.f32 %v1632, %v1518
        %v1634 = vadd.f32 %v1633, %v1519
        %1635 = vadd.xlane.f32.xlu0 %v1634
        %v1636 = vpop.xlane.xlu0 %1635
        %v1637 = vadd.f32 %v1520, %v1521
        %v1638 = vadd.f32 %v1637, %v1522
        %v1639 = vadd.f32 %v1638, %v1523
        %1640 = vadd.xlane.f32.xlu0 %v1639
        %v1641 = vpop.xlane.xlu0 %1640
        %v1642 = vadd.f32 %v1524, %v1525
        %v1643 = vadd.f32 %v1642, %v1526
        %v1644 = vadd.f32 %v1643, %v1527
        %1645 = vadd.xlane.f32.xlu0 %v1644
        %v1646 = vpop.xlane.xlu0 %1645
        %v1647 = vadd.f32 %v1528, %v1529
        %v1648 = vadd.f32 %v1647, %v1530
        %v1649 = vadd.f32 %v1648, %v1531
        %1650 = vadd.xlane.f32.xlu0 %v1649
        %v1651 = vpop.xlane.xlu0 %1650
        %v1652 = vmul.f32 %v1536, %v1315
        %v1653 = vmul.f32 %v1541, %v1315
        %v1654 = vmul.f32 %v1546, %v1315
        %v1655 = vmul.f32 %v1551, %v1315
        %v1656 = vmul.f32 %v1556, %v1315
        %v1657 = vmul.f32 %v1561, %v1315
        %v1658 = vmul.f32 %v1566, %v1315
        %v1659 = vmul.f32 %v1571, %v1315
        %v1660 = vmul.f32 %v1576, %v1315
        %v1661 = vmul.f32 %v1581, %v1315
        %v1662 = vmul.f32 %v1586, %v1315
        %v1663 = vmul.f32 %v1591, %v1315
        %v1664 = vmul.f32 %v1596, %v1315
        %v1665 = vmul.f32 %v1601, %v1315
        %v1666 = vmul.f32 %v1606, %v1315
        %v1667 = vmul.f32 %v1611, %v1315
        %v1668 = vmul.f32 %v1616, %v1315
        %v1669 = vmul.f32 %v1621, %v1315
        %v1670 = vmul.f32 %v1626, %v1315
        %v1671 = vmul.f32 %v1631, %v1315
        %v1672 = vmul.f32 %v1636, %v1315
        %v1673 = vmul.f32 %v1641, %v1315
        %v1674 = vmul.f32 %v1646, %v1315
        %v1675 = vmul.f32 %v1651, %v1315
        %v1676 = vadd.f32 %v1652, 1e-05
        %v1677 = vadd.f32 %v1653, 1e-05
        %v1678 = vadd.f32 %v1654, 1e-05
        %v1679 = vadd.f32 %v1655, 1e-05
        %v1680 = vadd.f32 %v1656, 1e-05
        %v1681 = vadd.f32 %v1657, 1e-05
        %v1682 = vadd.f32 %v1658, 1e-05
        %v1683 = vadd.f32 %v1659, 1e-05
        %v1684 = vadd.f32 %v1660, 1e-05
        %v1685 = vadd.f32 %v1661, 1e-05
        %v1686 = vadd.f32 %v1662, 1e-05
        %v1687 = vadd.f32 %v1663, 1e-05
        %v1688 = vadd.f32 %v1664, 1e-05
        %v1689 = vadd.f32 %v1665, 1e-05
        %v1690 = vadd.f32 %v1666, 1e-05
        %v1691 = vadd.f32 %v1667, 1e-05
        %v1692 = vadd.f32 %v1668, 1e-05
        %v1693 = vadd.f32 %v1669, 1e-05
        %v1694 = vadd.f32 %v1670, 1e-05
        %v1695 = vadd.f32 %v1671, 1e-05
        %v1696 = vadd.f32 %v1672, 1e-05
        %v1697 = vadd.f32 %v1673, 1e-05
        %v1698 = vadd.f32 %v1674, 1e-05
        %v1699 = vadd.f32 %v1675, 1e-05
        %v1700 = vrsqrt.pop %v1676
        %v1701 = vrsqrt.pop %v1677
        %v1702 = vrsqrt.pop %v1678
        %v1703 = vrsqrt.pop %v1679
        %v1704 = vrsqrt.pop %v1680
        %v1705 = vrsqrt.pop %v1681
        %v1706 = vrsqrt.pop %v1682
        %v1707 = vrsqrt.pop %v1683
        %v1708 = vrsqrt.pop %v1684
        %v1709 = vrsqrt.pop %v1685
        %v1710 = vrsqrt.pop %v1686
        %v1711 = vrsqrt.pop %v1687
        %v1712 = vrsqrt.pop %v1688
        %v1713 = vrsqrt.pop %v1689
        %v1714 = vrsqrt.pop %v1690
        %v1715 = vrsqrt.pop %v1691
        %v1716 = vrsqrt.pop %v1692
        %v1717 = vrsqrt.pop %v1693
        %v1718 = vrsqrt.pop %v1694
        %v1719 = vrsqrt.pop %v1695
        %v1720 = vrsqrt.pop %v1696
        %v1721 = vrsqrt.pop %v1697
        %v1722 = vrsqrt.pop %v1698
        %v1723 = vrsqrt.pop %v1699
        %v1724 = vmul.f32 %v1340, %v1700
        %v1725 = vmul.f32 %v1341, %v1700
        %v1726 = vmul.f32 %v1342, %v1700
        %v1727 = vmul.f32 %v1343, %v1700
        %v1728 = vmul.f32 %v1344, %v1701
        %v1729 = vmul.f32 %v1345, %v1701
        %v1730 = vmul.f32 %v1346, %v1701
        %v1731 = vmul.f32 %v1347, %v1701
        %v1732 = vmul.f32 %v1348, %v1702
        %v1733 = vmul.f32 %v1349, %v1702
        %v1734 = vmul.f32 %v1350, %v1702
        %v1735 = vmul.f32 %v1351, %v1702
        %v1736 = vmul.f32 %v1352, %v1703
        %v1737 = vmul.f32 %v1353, %v1703
        %v1738 = vmul.f32 %v1354, %v1703
        %v1739 = vmul.f32 %v1355, %v1703
        %v1740 = vmul.f32 %v1356, %v1704
        %v1741 = vmul.f32 %v1357, %v1704
        %v1742 = vmul.f32 %v1358, %v1704
        %v1743 = vmul.f32 %v1359, %v1704
        %v1744 = vmul.f32 %v1360, %v1705
        %v1745 = vmul.f32 %v1361, %v1705
        %v1746 = vmul.f32 %v1362, %v1705
        %v1747 = vmul.f32 %v1363, %v1705
        %v1748 = vmul.f32 %v1364, %v1706
        %v1749 = vmul.f32 %v1365, %v1706
        %v1750 = vmul.f32 %v1366, %v1706
        %v1751 = vmul.f32 %v1367, %v1706
        %v1752 = vmul.f32 %v1368, %v1707
        %v1753 = vmul.f32 %v1369, %v1707
        %v1754 = vmul.f32 %v1370, %v1707
        %v1755 = vmul.f32 %v1371, %v1707
        %v1756 = vmul.f32 %v1372, %v1708
        %v1757 = vmul.f32 %v1373, %v1708
        %v1758 = vmul.f32 %v1374, %v1708
        %v1759 = vmul.f32 %v1375, %v1708
        %v1760 = vmul.f32 %v1376, %v1709
        %v1761 = vmul.f32 %v1377, %v1709
        %v1762 = vmul.f32 %v1378, %v1709
        %v1763 = vmul.f32 %v1379, %v1709
        %v1764 = vmul.f32 %v1380, %v1710
        %v1765 = vmul.f32 %v1381, %v1710
        %v1766 = vmul.f32 %v1382, %v1710
        %v1767 = vmul.f32 %v1383, %v1710
        %v1768 = vmul.f32 %v1384, %v1711
        %v1769 = vmul.f32 %v1385, %v1711
        %v1770 = vmul.f32 %v1386, %v1711
        %v1771 = vmul.f32 %v1387, %v1711
        %v1772 = vmul.f32 %v1388, %v1712
        %v1773 = vmul.f32 %v1389, %v1712
        %v1774 = vmul.f32 %v1390, %v1712
        %v1775 = vmul.f32 %v1391, %v1712
        %v1776 = vmul.f32 %v1392, %v1713
        %v1777 = vmul.f32 %v1393, %v1713
        %v1778 = vmul.f32 %v1394, %v1713
        %v1779 = vmul.f32 %v1395, %v1713
        %v1780 = vmul.f32 %v1396, %v1714
        %v1781 = vmul.f32 %v1397, %v1714
        %v1782 = vmul.f32 %v1398, %v1714
        %v1783 = vmul.f32 %v1399, %v1714
        %v1784 = vmul.f32 %v1400, %v1715
        %v1785 = vmul.f32 %v1401, %v1715
        %v1786 = vmul.f32 %v1402, %v1715
        %v1787 = vmul.f32 %v1403, %v1715
        %v1788 = vmul.f32 %v1404, %v1716
        %v1789 = vmul.f32 %v1405, %v1716
        %v1790 = vmul.f32 %v1406, %v1716
        %v1791 = vmul.f32 %v1407, %v1716
        %v1792 = vmul.f32 %v1408, %v1717
        %v1793 = vmul.f32 %v1409, %v1717
        %v1794 = vmul.f32 %v1410, %v1717
        %v1795 = vmul.f32 %v1411, %v1717
        %v1796 = vmul.f32 %v1412, %v1718
        %v1797 = vmul.f32 %v1413, %v1718
        %v1798 = vmul.f32 %v1414, %v1718
        %v1799 = vmul.f32 %v1415, %v1718
        %v1800 = vmul.f32 %v1416, %v1719
        %v1801 = vmul.f32 %v1417, %v1719
        %v1802 = vmul.f32 %v1418, %v1719
        %v1803 = vmul.f32 %v1419, %v1719
        %v1804 = vmul.f32 %v1420, %v1720
        %v1805 = vmul.f32 %v1421, %v1720
        %v1806 = vmul.f32 %v1422, %v1720
        %v1807 = vmul.f32 %v1423, %v1720
        %v1808 = vmul.f32 %v1424, %v1721
        %v1809 = vmul.f32 %v1425, %v1721
        %v1810 = vmul.f32 %v1426, %v1721
        %v1811 = vmul.f32 %v1427, %v1721
        %v1812 = vmul.f32 %v1428, %v1722
        %v1813 = vmul.f32 %v1429, %v1722
        %v1814 = vmul.f32 %v1430, %v1722
        %v1815 = vmul.f32 %v1431, %v1722
        %v1816 = vmul.f32 %v1432, %v1723
        %v1817 = vmul.f32 %v1433, %v1723
        %v1818 = vmul.f32 %v1434, %v1723
        %v1819 = vmul.f32 %v1435, %v1723
        %v1821 = vlaneseq
        %v1822 = vshrl.u32 %v1821, 7
        %v1823 = vsub.s32 0, %v1822
        %v1824 = vrot.slane %v1192, %v1823
        %v1825 = vlaneseq
        %v1826 = vshrl.u32 %v1825, 7
        %v1827 = vsub.s32 1, %v1826
        %v1828 = vrot.slane %v1192, %v1827
        %v1829 = vlaneseq
        %v1830 = vshrl.u32 %v1829, 7
        %v1831 = vsub.s32 2, %v1830
        %v1832 = vrot.slane %v1192, %v1831
        %v1833 = vlaneseq
        %v1834 = vshrl.u32 %v1833, 7
        %v1835 = vsub.s32 3, %v1834
        %v1836 = vrot.slane %v1192, %v1835
        %v1841 = vmul.f32 %v1724, %v1824
        %v1842 = vmul.f32 %v1725, %v1828
        %v1843 = vmul.f32 %v1726, %v1832
        %v1844 = vmul.f32 %v1727, %v1836
        %v1845 = vmul.f32 %v1728, %v1824
        %v1846 = vmul.f32 %v1729, %v1828
        %v1847 = vmul.f32 %v1730, %v1832
        %v1848 = vmul.f32 %v1731, %v1836
        %v1849 = vmul.f32 %v1732, %v1824
        %v1850 = vmul.f32 %v1733, %v1828
        %v1851 = vmul.f32 %v1734, %v1832
        %v1852 = vmul.f32 %v1735, %v1836
        %v1853 = vmul.f32 %v1736, %v1824
        %v1854 = vmul.f32 %v1737, %v1828
        %v1855 = vmul.f32 %v1738, %v1832
        %v1856 = vmul.f32 %v1739, %v1836
        %v1857 = vmul.f32 %v1740, %v1824
        %v1858 = vmul.f32 %v1741, %v1828
        %v1859 = vmul.f32 %v1742, %v1832
        %v1860 = vmul.f32 %v1743, %v1836
        %v1861 = vmul.f32 %v1744, %v1824
        %v1862 = vmul.f32 %v1745, %v1828
        %v1863 = vmul.f32 %v1746, %v1832
        %v1864 = vmul.f32 %v1747, %v1836
        %v1865 = vmul.f32 %v1748, %v1824
        %v1866 = vmul.f32 %v1749, %v1828
        %v1867 = vmul.f32 %v1750, %v1832
        %v1868 = vmul.f32 %v1751, %v1836
        %v1869 = vmul.f32 %v1752, %v1824
        %v1870 = vmul.f32 %v1753, %v1828
        %v1871 = vmul.f32 %v1754, %v1832
        %v1872 = vmul.f32 %v1755, %v1836
        %v1873 = vmul.f32 %v1756, %v1824
        %v1874 = vmul.f32 %v1757, %v1828
        %v1875 = vmul.f32 %v1758, %v1832
        %v1876 = vmul.f32 %v1759, %v1836
        %v1877 = vmul.f32 %v1760, %v1824
        %v1878 = vmul.f32 %v1761, %v1828
        %v1879 = vmul.f32 %v1762, %v1832
        %v1880 = vmul.f32 %v1763, %v1836
        %v1881 = vmul.f32 %v1764, %v1824
        %v1882 = vmul.f32 %v1765, %v1828
        %v1883 = vmul.f32 %v1766, %v1832
        %v1884 = vmul.f32 %v1767, %v1836
        %v1885 = vmul.f32 %v1768, %v1824
        %v1886 = vmul.f32 %v1769, %v1828
        %v1887 = vmul.f32 %v1770, %v1832
        %v1888 = vmul.f32 %v1771, %v1836
        %v1889 = vmul.f32 %v1772, %v1824
        %v1890 = vmul.f32 %v1773, %v1828
        %v1891 = vmul.f32 %v1774, %v1832
        %v1892 = vmul.f32 %v1775, %v1836
        %v1893 = vmul.f32 %v1776, %v1824
        %v1894 = vmul.f32 %v1777, %v1828
        %v1895 = vmul.f32 %v1778, %v1832
        %v1896 = vmul.f32 %v1779, %v1836
        %v1897 = vmul.f32 %v1780, %v1824
        %v1898 = vmul.f32 %v1781, %v1828
        %v1899 = vmul.f32 %v1782, %v1832
        %v1900 = vmul.f32 %v1783, %v1836
        %v1901 = vmul.f32 %v1784, %v1824
        %v1902 = vmul.f32 %v1785, %v1828
        %v1903 = vmul.f32 %v1786, %v1832
        %v1904 = vmul.f32 %v1787, %v1836
        %v1905 = vmul.f32 %v1788, %v1824
        %v1906 = vmul.f32 %v1789, %v1828
        %v1907 = vmul.f32 %v1790, %v1832
        %v1908 = vmul.f32 %v1791, %v1836
        %v1909 = vmul.f32 %v1792, %v1824
        %v1910 = vmul.f32 %v1793, %v1828
        %v1911 = vmul.f32 %v1794, %v1832
        %v1912 = vmul.f32 %v1795, %v1836
        %v1913 = vmul.f32 %v1796, %v1824
        %v1914 = vmul.f32 %v1797, %v1828
        %v1915 = vmul.f32 %v1798, %v1832
        %v1916 = vmul.f32 %v1799, %v1836
        %v1917 = vmul.f32 %v1800, %v1824
        %v1918 = vmul.f32 %v1801, %v1828
        %v1919 = vmul.f32 %v1802, %v1832
        %v1920 = vmul.f32 %v1803, %v1836
        %v1921 = vmul.f32 %v1804, %v1824
        %v1922 = vmul.f32 %v1805, %v1828
        %v1923 = vmul.f32 %v1806, %v1832
        %v1924 = vmul.f32 %v1807, %v1836
        %v1925 = vmul.f32 %v1808, %v1824
        %v1926 = vmul.f32 %v1809, %v1828
        %v1927 = vmul.f32 %v1810, %v1832
        %v1928 = vmul.f32 %v1811, %v1836
        %v1929 = vmul.f32 %v1812, %v1824
        %v1930 = vmul.f32 %v1813, %v1828
        %v1931 = vmul.f32 %v1814, %v1832
        %v1932 = vmul.f32 %v1815, %v1836
        %v1933 = vmul.f32 %v1816, %v1824
        %v1934 = vmul.f32 %v1817, %v1828
        %v1935 = vmul.f32 %v1818, %v1832
        %v1936 = vmul.f32 %v1819, %v1836
        %v1938 = vlaneseq
        %v1939 = vshrl.u32 %v1938, 7
        %v1940 = vsub.s32 0, %v1939
        %v1941 = vrot.slane %v1194, %v1940
        %v1942 = vlaneseq
        %v1943 = vshrl.u32 %v1942, 7
        %v1944 = vsub.s32 1, %v1943
        %v1945 = vrot.slane %v1194, %v1944
        %v1946 = vlaneseq
        %v1947 = vshrl.u32 %v1946, 7
        %v1948 = vsub.s32 2, %v1947
        %v1949 = vrot.slane %v1194, %v1948
        %v1950 = vlaneseq
        %v1951 = vshrl.u32 %v1950, 7
        %v1952 = vsub.s32 3, %v1951
        %v1953 = vrot.slane %v1194, %v1952
        %v1958 = vadd.f32 %v1841, %v1941
        %v1959 = vadd.f32 %v1842, %v1945
        %v1960 = vadd.f32 %v1843, %v1949
        %v1961 = vadd.f32 %v1844, %v1953
        %v1962 = vadd.f32 %v1845, %v1941
        %v1963 = vadd.f32 %v1846, %v1945
        %v1964 = vadd.f32 %v1847, %v1949
        %v1965 = vadd.f32 %v1848, %v1953
        %v1966 = vadd.f32 %v1849, %v1941
        %v1967 = vadd.f32 %v1850, %v1945
        %v1968 = vadd.f32 %v1851, %v1949
        %v1969 = vadd.f32 %v1852, %v1953
        %v1970 = vadd.f32 %v1853, %v1941
        %v1971 = vadd.f32 %v1854, %v1945
        %v1972 = vadd.f32 %v1855, %v1949
        %v1973 = vadd.f32 %v1856, %v1953
        %v1974 = vadd.f32 %v1857, %v1941
        %v1975 = vadd.f32 %v1858, %v1945
        %v1976 = vadd.f32 %v1859, %v1949
        %v1977 = vadd.f32 %v1860, %v1953
        %v1978 = vadd.f32 %v1861, %v1941
        %v1979 = vadd.f32 %v1862, %v1945
        %v1980 = vadd.f32 %v1863, %v1949
        %v1981 = vadd.f32 %v1864, %v1953
        %v1982 = vadd.f32 %v1865, %v1941
        %v1983 = vadd.f32 %v1866, %v1945
        %v1984 = vadd.f32 %v1867, %v1949
        %v1985 = vadd.f32 %v1868, %v1953
        %v1986 = vadd.f32 %v1869, %v1941
        %v1987 = vadd.f32 %v1870, %v1945
        %v1988 = vadd.f32 %v1871, %v1949
        %v1989 = vadd.f32 %v1872, %v1953
        %v1990 = vadd.f32 %v1873, %v1941
        %v1991 = vadd.f32 %v1874, %v1945
        %v1992 = vadd.f32 %v1875, %v1949
        %v1993 = vadd.f32 %v1876, %v1953
        %v1994 = vadd.f32 %v1877, %v1941
        %v1995 = vadd.f32 %v1878, %v1945
        %v1996 = vadd.f32 %v1879, %v1949
        %v1997 = vadd.f32 %v1880, %v1953
        %v1998 = vadd.f32 %v1881, %v1941
        %v1999 = vadd.f32 %v1882, %v1945
        %v2000 = vadd.f32 %v1883, %v1949
        %v2001 = vadd.f32 %v1884, %v1953
        %v2002 = vadd.f32 %v1885, %v1941
        %v2003 = vadd.f32 %v1886, %v1945
        %v2004 = vadd.f32 %v1887, %v1949
        %v2005 = vadd.f32 %v1888, %v1953
        %v2006 = vadd.f32 %v1889, %v1941
        %v2007 = vadd.f32 %v1890, %v1945
        %v2008 = vadd.f32 %v1891, %v1949
        %v2009 = vadd.f32 %v1892, %v1953
        %v2010 = vadd.f32 %v1893, %v1941
        %v2011 = vadd.f32 %v1894, %v1945
        %v2012 = vadd.f32 %v1895, %v1949
        %v2013 = vadd.f32 %v1896, %v1953
        %v2014 = vadd.f32 %v1897, %v1941
        %v2015 = vadd.f32 %v1898, %v1945
        %v2016 = vadd.f32 %v1899, %v1949
        %v2017 = vadd.f32 %v1900, %v1953
        %v2018 = vadd.f32 %v1901, %v1941
        %v2019 = vadd.f32 %v1902, %v1945
        %v2020 = vadd.f32 %v1903, %v1949
        %v2021 = vadd.f32 %v1904, %v1953
        %v2022 = vadd.f32 %v1905, %v1941
        %v2023 = vadd.f32 %v1906, %v1945
        %v2024 = vadd.f32 %v1907, %v1949
        %v2025 = vadd.f32 %v1908, %v1953
        %v2026 = vadd.f32 %v1909, %v1941
        %v2027 = vadd.f32 %v1910, %v1945
        %v2028 = vadd.f32 %v1911, %v1949
        %v2029 = vadd.f32 %v1912, %v1953
        %v2030 = vadd.f32 %v1913, %v1941
        %v2031 = vadd.f32 %v1914, %v1945
        %v2032 = vadd.f32 %v1915, %v1949
        %v2033 = vadd.f32 %v1916, %v1953
        %v2034 = vadd.f32 %v1917, %v1941
        %v2035 = vadd.f32 %v1918, %v1945
        %v2036 = vadd.f32 %v1919, %v1949
        %v2037 = vadd.f32 %v1920, %v1953
        %v2038 = vadd.f32 %v1921, %v1941
        %v2039 = vadd.f32 %v1922, %v1945
        %v2040 = vadd.f32 %v1923, %v1949
        %v2041 = vadd.f32 %v1924, %v1953
        %v2042 = vadd.f32 %v1925, %v1941
        %v2043 = vadd.f32 %v1926, %v1945
        %v2044 = vadd.f32 %v1927, %v1949
        %v2045 = vadd.f32 %v1928, %v1953
        %v2046 = vadd.f32 %v1929, %v1941
        %v2047 = vadd.f32 %v1930, %v1945
        %v2048 = vadd.f32 %v1931, %v1949
        %v2049 = vadd.f32 %v1932, %v1953
        %v2050 = vadd.f32 %v1933, %v1941
        %v2051 = vadd.f32 %v1934, %v1945
        %v2052 = vadd.f32 %v1935, %v1949
        %v2053 = vadd.f32 %v1936, %v1953
        %v2054 = vpack.c.bf16 %v1962, %v1958
        %v2055 = vpack.c.bf16 %v1963, %v1959
        %v2056 = vpack.c.bf16 %v1964, %v1960
        %v2057 = vpack.c.bf16 %v1965, %v1961
        %v2058 = vpack.c.bf16 %v1970, %v1966
        %v2059 = vpack.c.bf16 %v1971, %v1967
        %v2060 = vpack.c.bf16 %v1972, %v1968
        %v2061 = vpack.c.bf16 %v1973, %v1969
        %v2062 = vpack.c.bf16 %v1978, %v1974
        %v2063 = vpack.c.bf16 %v1979, %v1975
        %v2064 = vpack.c.bf16 %v1980, %v1976
        %v2065 = vpack.c.bf16 %v1981, %v1977
        %v2066 = vpack.c.bf16 %v1986, %v1982
        %v2067 = vpack.c.bf16 %v1987, %v1983
        %v2068 = vpack.c.bf16 %v1988, %v1984
        %v2069 = vpack.c.bf16 %v1989, %v1985
        %v2070 = vpack.c.bf16 %v1994, %v1990
        %v2071 = vpack.c.bf16 %v1995, %v1991
        %v2072 = vpack.c.bf16 %v1996, %v1992
        %v2073 = vpack.c.bf16 %v1997, %v1993
        %v2074 = vpack.c.bf16 %v2002, %v1998
        %v2075 = vpack.c.bf16 %v2003, %v1999
        %v2076 = vpack.c.bf16 %v2004, %v2000
        %v2077 = vpack.c.bf16 %v2005, %v2001
        %v2078 = vpack.c.bf16 %v2010, %v2006
        %v2079 = vpack.c.bf16 %v2011, %v2007
        %v2080 = vpack.c.bf16 %v2012, %v2008
        %v2081 = vpack.c.bf16 %v2013, %v2009
        %v2082 = vpack.c.bf16 %v2018, %v2014
        %v2083 = vpack.c.bf16 %v2019, %v2015
        %v2084 = vpack.c.bf16 %v2020, %v2016
        %v2085 = vpack.c.bf16 %v2021, %v2017
        %v2086 = vpack.c.bf16 %v2026, %v2022
        %v2087 = vpack.c.bf16 %v2027, %v2023
        %v2088 = vpack.c.bf16 %v2028, %v2024
        %v2089 = vpack.c.bf16 %v2029, %v2025
        %v2090 = vpack.c.bf16 %v2034, %v2030
        %v2091 = vpack.c.bf16 %v2035, %v2031
        %v2092 = vpack.c.bf16 %v2036, %v2032
        %v2093 = vpack.c.bf16 %v2037, %v2033
        %v2094 = vpack.c.bf16 %v2042, %v2038
        %v2095 = vpack.c.bf16 %v2043, %v2039
        %v2096 = vpack.c.bf16 %v2044, %v2040
        %v2097 = vpack.c.bf16 %v2045, %v2041
        %v2098 = vpack.c.bf16 %v2050, %v2046
        %v2099 = vpack.c.bf16 %v2051, %v2047
        %v2100 = vpack.c.bf16 %v2052, %v2048
        %v2101 = vpack.c.bf16 %v2053, %v2049
        %v2102 = vmul.bf16 %v2054, 1036860877
        %v2103 = vmul.bf16 %v2055, 1036860877
        %v2104 = vmul.bf16 %v2056, 1036860877
        %v2105 = vmul.bf16 %v2057, 1036860877
        %v2106 = vmul.bf16 %v2058, 1036860877
        %v2107 = vmul.bf16 %v2059, 1036860877
        %v2108 = vmul.bf16 %v2060, 1036860877
        %v2109 = vmul.bf16 %v2061, 1036860877
        %v2110 = vmul.bf16 %v2062, 1036860877
        %v2111 = vmul.bf16 %v2063, 1036860877
        %v2112 = vmul.bf16 %v2064, 1036860877
        %v2113 = vmul.bf16 %v2065, 1036860877
        %v2114 = vmul.bf16 %v2066, 1036860877
        %v2115 = vmul.bf16 %v2067, 1036860877
        %v2116 = vmul.bf16 %v2068, 1036860877
        %v2117 = vmul.bf16 %v2069, 1036860877
        %v2118 = vmul.bf16 %v2070, 1036860877
        %v2119 = vmul.bf16 %v2071, 1036860877
        %v2120 = vmul.bf16 %v2072, 1036860877
        %v2121 = vmul.bf16 %v2073, 1036860877
        %v2122 = vmul.bf16 %v2074, 1036860877
        %v2123 = vmul.bf16 %v2075, 1036860877
        %v2124 = vmul.bf16 %v2076, 1036860877
        %v2125 = vmul.bf16 %v2077, 1036860877
        %v2126 = vmul.bf16 %v2078, 1036860877
        %v2127 = vmul.bf16 %v2079, 1036860877
        %v2128 = vmul.bf16 %v2080, 1036860877
        %v2129 = vmul.bf16 %v2081, 1036860877
        %v2130 = vmul.bf16 %v2082, 1036860877
        %v2131 = vmul.bf16 %v2083, 1036860877
        %v2132 = vmul.bf16 %v2084, 1036860877
        %v2133 = vmul.bf16 %v2085, 1036860877
        %v2134 = vmul.bf16 %v2086, 1036860877
        %v2135 = vmul.bf16 %v2087, 1036860877
        %v2136 = vmul.bf16 %v2088, 1036860877
        %v2137 = vmul.bf16 %v2089, 1036860877
        %v2138 = vmul.bf16 %v2090, 1036860877
        %v2139 = vmul.bf16 %v2091, 1036860877
        %v2140 = vmul.bf16 %v2092, 1036860877
        %v2141 = vmul.bf16 %v2093, 1036860877
        %v2142 = vmul.bf16 %v2094, 1036860877
        %v2143 = vmul.bf16 %v2095, 1036860877
        %v2144 = vmul.bf16 %v2096, 1036860877
        %v2145 = vmul.bf16 %v2097, 1036860877
        %v2146 = vmul.bf16 %v2098, 1036860877
        %v2147 = vmul.bf16 %v2099, 1036860877
        %v2148 = vmul.bf16 %v2100, 1036860877
        %v2149 = vmul.bf16 %v2101, 1036860877
        %v2150 = vmax.bf16 %v2054, %v2102
        %v2151 = vmax.bf16 %v2055, %v2103
        %v2152 = vmax.bf16 %v2056, %v2104
        %v2153 = vmax.bf16 %v2057, %v2105
        %v2154 = vmax.bf16 %v2058, %v2106
        %v2155 = vmax.bf16 %v2059, %v2107
        %v2156 = vmax.bf16 %v2060, %v2108
        %v2157 = vmax.bf16 %v2061, %v2109
        %v2158 = vmax.bf16 %v2062, %v2110
        %v2159 = vmax.bf16 %v2063, %v2111
        %v2160 = vmax.bf16 %v2064, %v2112
        %v2161 = vmax.bf16 %v2065, %v2113
        %v2162 = vmax.bf16 %v2066, %v2114
        %v2163 = vmax.bf16 %v2067, %v2115
        %v2164 = vmax.bf16 %v2068, %v2116
        %v2165 = vmax.bf16 %v2069, %v2117
        %v2166 = vmax.bf16 %v2070, %v2118
        %v2167 = vmax.bf16 %v2071, %v2119
        %v2168 = vmax.bf16 %v2072, %v2120
        %v2169 = vmax.bf16 %v2073, %v2121
        %v2170 = vmax.bf16 %v2074, %v2122
        %v2171 = vmax.bf16 %v2075, %v2123
        %v2172 = vmax.bf16 %v2076, %v2124
        %v2173 = vmax.bf16 %v2077, %v2125
        %v2174 = vmax.bf16 %v2078, %v2126
        %v2175 = vmax.bf16 %v2079, %v2127
        %v2176 = vmax.bf16 %v2080, %v2128
        %v2177 = vmax.bf16 %v2081, %v2129
        %v2178 = vmax.bf16 %v2082, %v2130
        %v2179 = vmax.bf16 %v2083, %v2131
        %v2180 = vmax.bf16 %v2084, %v2132
        %v2181 = vmax.bf16 %v2085, %v2133
        %v2182 = vmax.bf16 %v2086, %v2134
        %v2183 = vmax.bf16 %v2087, %v2135
        %v2184 = vmax.bf16 %v2088, %v2136
        %v2185 = vmax.bf16 %v2089, %v2137
        %v2186 = vmax.bf16 %v2090, %v2138
        %v2187 = vmax.bf16 %v2091, %v2139
        %v2188 = vmax.bf16 %v2092, %v2140
        %v2189 = vmax.bf16 %v2093, %v2141
        %v2190 = vmax.bf16 %v2094, %v2142
        %v2191 = vmax.bf16 %v2095, %v2143
        %v2192 = vmax.bf16 %v2096, %v2144
        %v2193 = vmax.bf16 %v2097, %v2145
        %v2194 = vmax.bf16 %v2098, %v2146
        %v2195 = vmax.bf16 %v2099, %v2147
        %v2196 = vmax.bf16 %v2100, %v2148
        %v2197 = vmax.bf16 %v2101, %v2149
        %v2198 = vld [vmem:[#allocation8] sm:$0xff]
        %v2199 = vld [vmem:[#allocation8 + $0x8] sm:$0xff]
        %v2200 = vld [vmem:[#allocation8 + $0x10] sm:$0xff]
        %v2201 = vld [vmem:[#allocation8 + $0x18] sm:$0xff]
        %v2202 = vld [vmem:[#allocation8 + $0x20] sm:$0xff]
        %v2203 = vld [vmem:[#allocation8 + $0x28] sm:$0xff]
        %v2204 = vld [vmem:[#allocation8 + $0x30] sm:$0xff]
        %v2205 = vld [vmem:[#allocation8 + $0x38] sm:$0xff]
        %v2206 = vld [vmem:[#allocation8 + $0x40] sm:$0xff]
        %v2207 = vld [vmem:[#allocation8 + $0x48] sm:$0xff]
        %v2208 = vld [vmem:[#allocation8 + $0x50] sm:$0xff]
        %v2209 = vld [vmem:[#allocation8 + $0x58] sm:$0xff]
        %v2210 = vld [vmem:[#allocation8 + $0x60] sm:$0xff]
        %v2211 = vld [vmem:[#allocation8 + $0x68] sm:$0xff]
        %v2212 = vld [vmem:[#allocation8 + $0x70] sm:$0xff]
        %v2213 = vld [vmem:[#allocation8 + $0x78] sm:$0xff]
        %v2214 = vld [vmem:[#allocation8 + $0x80] sm:$0xff]
        %v2215 = vld [vmem:[#allocation8 + $0x88] sm:$0xff]
        %v2216 = vld [vmem:[#allocation8 + $0x90] sm:$0xff]
        %v2217 = vld [vmem:[#allocation8 + $0x98] sm:$0xff]
        %v2218 = vld [vmem:[#allocation8 + $0xa0] sm:$0xff]
        %v2219 = vld [vmem:[#allocation8 + $0xa8] sm:$0xff]
        %v2220 = vld [vmem:[#allocation8 + $0xb0] sm:$0xff]
        %v2221 = vld [vmem:[#allocation8 + $0xb8] sm:$0xff]
        %v2222 = vld [vmem:[#allocation8 + $0xc0] sm:$0xff]
        %v2223 = vld [vmem:[#allocation8 + $0xc8] sm:$0xff]
        %v2224 = vld [vmem:[#allocation8 + $0xd0] sm:$0xff]
        %v2225 = vld [vmem:[#allocation8 + $0xd8] sm:$0xff]
        %v2226 = vld [vmem:[#allocation8 + $0xe0] sm:$0xff]
        %v2227 = vld [vmem:[#allocation8 + $0xe8] sm:$0xff]
        %v2228 = vld [vmem:[#allocation8 + $0xf0] sm:$0xff]
        %v2229 = vld [vmem:[#allocation8 + $0xf8] sm:$0xff]
        %v2230 = vld [vmem:[#allocation8 + $0x100] sm:$0xff]
        %v2231 = vld [vmem:[#allocation8 + $0x108] sm:$0xff]
        %v2232 = vld [vmem:[#allocation8 + $0x110] sm:$0xff]
        %v2233 = vld [vmem:[#allocation8 + $0x118] sm:$0xff]
        %v2234 = vld [vmem:[#allocation8 + $0x120] sm:$0xff]
        %v2235 = vld [vmem:[#allocation8 + $0x128] sm:$0xff]
        %v2236 = vld [vmem:[#allocation8 + $0x130] sm:$0xff]
        %v2237 = vld [vmem:[#allocation8 + $0x138] sm:$0xff]
        %v2238 = vld [vmem:[#allocation8 + $0x140] sm:$0xff]
        %v2239 = vld [vmem:[#allocation8 + $0x148] sm:$0xff]
        %v2240 = vld [vmem:[#allocation8 + $0x150] sm:$0xff]
        %v2241 = vld [vmem:[#allocation8 + $0x158] sm:$0xff]
        %v2242 = vld [vmem:[#allocation8 + $0x160] sm:$0xff]
        %v2243 = vld [vmem:[#allocation8 + $0x168] sm:$0xff]
        %v2244 = vld [vmem:[#allocation8 + $0x170] sm:$0xff]
        %v2245 = vld [vmem:[#allocation8 + $0x178] sm:$0xff]
        %v2246 = vld [vmem:[#allocation8 + $0x180] sm:$0xff]
        %v2247 = vld [vmem:[#allocation8 + $0x188] sm:$0xff]
        %v2248 = vld [vmem:[#allocation8 + $0x190] sm:$0xff]
        %v2249 = vld [vmem:[#allocation8 + $0x198] sm:$0xff]
        %v2250 = vld [vmem:[#allocation8 + $0x1a0] sm:$0xff]
        %v2251 = vld [vmem:[#allocation8 + $0x1a8] sm:$0xff]
        %v2252 = vld [vmem:[#allocation8 + $0x1b0] sm:$0xff]
        %v2253 = vld [vmem:[#allocation8 + $0x1b8] sm:$0xff]
        %v2254 = vld [vmem:[#allocation8 + $0x1c0] sm:$0xff]
        %v2255 = vld [vmem:[#allocation8 + $0x1c8] sm:$0xff]
        %v2256 = vld [vmem:[#allocation8 + $0x1d0] sm:$0xff]
        %v2257 = vld [vmem:[#allocation8 + $0x1d8] sm:$0xff]
        %v2258 = vld [vmem:[#allocation8 + $0x1e0] sm:$0xff]
        %v2259 = vld [vmem:[#allocation8 + $0x1e8] sm:$0xff]
        %v2260 = vld [vmem:[#allocation8 + $0x1f0] sm:$0xff]
        %v2261 = vld [vmem:[#allocation8 + $0x1f8] sm:$0xff]
        %v2262 = vld [vmem:[#allocation8 + $0x200] sm:$0xff]
        %v2263 = vld [vmem:[#allocation8 + $0x208] sm:$0xff]
        %v2264 = vld [vmem:[#allocation8 + $0x210] sm:$0xff]
        %v2265 = vld [vmem:[#allocation8 + $0x218] sm:$0xff]
        %v2266 = vld [vmem:[#allocation8 + $0x220] sm:$0xff]
        %v2267 = vld [vmem:[#allocation8 + $0x228] sm:$0xff]
        %v2268 = vld [vmem:[#allocation8 + $0x230] sm:$0xff]
        %v2269 = vld [vmem:[#allocation8 + $0x238] sm:$0xff]
        %v2270 = vld [vmem:[#allocation8 + $0x240] sm:$0xff]
        %v2271 = vld [vmem:[#allocation8 + $0x248] sm:$0xff]
        %v2272 = vld [vmem:[#allocation8 + $0x250] sm:$0xff]
        %v2273 = vld [vmem:[#allocation8 + $0x258] sm:$0xff]
        %v2274 = vld [vmem:[#allocation8 + $0x260] sm:$0xff]
        %v2275 = vld [vmem:[#allocation8 + $0x268] sm:$0xff]
        %v2276 = vld [vmem:[#allocation8 + $0x270] sm:$0xff]
        %v2277 = vld [vmem:[#allocation8 + $0x278] sm:$0xff]
        %v2278 = vld [vmem:[#allocation8 + $0x280] sm:$0xff]
        %v2279 = vld [vmem:[#allocation8 + $0x288] sm:$0xff]
        %v2280 = vld [vmem:[#allocation8 + $0x290] sm:$0xff]
        %v2281 = vld [vmem:[#allocation8 + $0x298] sm:$0xff]
        %v2282 = vld [vmem:[#allocation8 + $0x2a0] sm:$0xff]
        %v2283 = vld [vmem:[#allocation8 + $0x2a8] sm:$0xff]
        %v2284 = vld [vmem:[#allocation8 + $0x2b0] sm:$0xff]
        %v2285 = vld [vmem:[#allocation8 + $0x2b8] sm:$0xff]
        %v2286 = vld [vmem:[#allocation8 + $0x2c0] sm:$0xff]
        %v2287 = vld [vmem:[#allocation8 + $0x2c8] sm:$0xff]
        %v2288 = vld [vmem:[#allocation8 + $0x2d0] sm:$0xff]
        %v2289 = vld [vmem:[#allocation8 + $0x2d8] sm:$0xff]
        %v2290 = vld [vmem:[#allocation8 + $0x2e0] sm:$0xff]
        %v2291 = vld [vmem:[#allocation8 + $0x2e8] sm:$0xff]
        %v2292 = vld [vmem:[#allocation8 + $0x2f0] sm:$0xff]
        %v2293 = vld [vmem:[#allocation8 + $0x2f8] sm:$0xff]
        %v2294 = vld [vmem:[#allocation8 + $0x300] sm:$0xff]
        %v2295 = vld [vmem:[#allocation8 + $0x308] sm:$0xff]
        %v2296 = vld [vmem:[#allocation8 + $0x310] sm:$0xff]
        %v2297 = vld [vmem:[#allocation8 + $0x318] sm:$0xff]
        %v2298 = vld [vmem:[#allocation8 + $0x320] sm:$0xff]
        %v2299 = vld [vmem:[#allocation8 + $0x328] sm:$0xff]
        %v2300 = vld [vmem:[#allocation8 + $0x330] sm:$0xff]
        %v2301 = vld [vmem:[#allocation8 + $0x338] sm:$0xff]
        %v2302 = vld [vmem:[#allocation8 + $0x340] sm:$0xff]
        %v2303 = vld [vmem:[#allocation8 + $0x348] sm:$0xff]
        %v2304 = vld [vmem:[#allocation8 + $0x350] sm:$0xff]
        %v2305 = vld [vmem:[#allocation8 + $0x358] sm:$0xff]
        %v2306 = vld [vmem:[#allocation8 + $0x360] sm:$0xff]
        %v2307 = vld [vmem:[#allocation8 + $0x368] sm:$0xff]
        %v2308 = vld [vmem:[#allocation8 + $0x370] sm:$0xff]
        %v2309 = vld [vmem:[#allocation8 + $0x378] sm:$0xff]
        %v2310 = vld [vmem:[#allocation8 + $0x380] sm:$0xff]
        %v2311 = vld [vmem:[#allocation8 + $0x388] sm:$0xff]
        %v2312 = vld [vmem:[#allocation8 + $0x390] sm:$0xff]
        %v2313 = vld [vmem:[#allocation8 + $0x398] sm:$0xff]
        %v2314 = vld [vmem:[#allocation8 + $0x3a0] sm:$0xff]
        %v2315 = vld [vmem:[#allocation8 + $0x3a8] sm:$0xff]
        %v2316 = vld [vmem:[#allocation8 + $0x3b0] sm:$0xff]
        %v2317 = vld [vmem:[#allocation8 + $0x3b8] sm:$0xff]
        %v2318 = vld [vmem:[#allocation8 + $0x3c0] sm:$0xff]
        %v2319 = vld [vmem:[#allocation8 + $0x3c8] sm:$0xff]
        %v2320 = vld [vmem:[#allocation8 + $0x3d0] sm:$0xff]
        %v2321 = vld [vmem:[#allocation8 + $0x3d8] sm:$0xff]
        %v2322 = vld [vmem:[#allocation8 + $0x3e0] sm:$0xff]
        %v2323 = vld [vmem:[#allocation8 + $0x3e8] sm:$0xff]
        %v2324 = vld [vmem:[#allocation8 + $0x3f0] sm:$0xff]
        %v2325 = vld [vmem:[#allocation8 + $0x3f8] sm:$0xff]
        %v2326 = vld [vmem:[#allocation10] ss:$4 sm:$0xf]
        %v2328 = vlaneseq
        %v2329 = vshrl.u32 %v2328, 7
        %v2330 = vsub.s32 0, %v2329
        %v2331 = vrot.slane %v2326, %v2330
        %v2332 = vlaneseq
        %v2333 = vshrl.u32 %v2332, 7
        %v2334 = vsub.s32 1, %v2333
        %v2335 = vrot.slane %v2326, %v2334
        %v2336 = vlaneseq
        %v2337 = vshrl.u32 %v2336, 7
        %v2338 = vsub.s32 2, %v2337
        %v2339 = vrot.slane %v2326, %v2338
        %v2340 = vlaneseq
        %v2341 = vshrl.u32 %v2340, 7
        %v2342 = vsub.s32 3, %v2341
        %v2343 = vrot.slane %v2326, %v2342
        %v2476 = vunpack.c.l.b16 %v2198
        %v2477 = vunpack.c.h.b16 %v2198
        %v2478 = vunpack.c.l.b16 %v2199
        %v2479 = vunpack.c.h.b16 %v2199
        %v2480 = vunpack.c.l.b16 %v2200
        %v2481 = vunpack.c.h.b16 %v2200
        %v2482 = vunpack.c.l.b16 %v2201
        %v2483 = vunpack.c.h.b16 %v2201
        %v2484 = vunpack.c.l.b16 %v2202
        %v2485 = vunpack.c.h.b16 %v2202
        %v2486 = vunpack.c.l.b16 %v2203
        %v2487 = vunpack.c.h.b16 %v2203
        %v2488 = vunpack.c.l.b16 %v2204
        %v2489 = vunpack.c.h.b16 %v2204
        %v2490 = vunpack.c.l.b16 %v2205
        %v2491 = vunpack.c.h.b16 %v2205
        %v2492 = vunpack.c.l.b16 %v2206
        %v2493 = vunpack.c.h.b16 %v2206
        %v2494 = vunpack.c.l.b16 %v2207
        %v2495 = vunpack.c.h.b16 %v2207
        %v2496 = vunpack.c.l.b16 %v2208
        %v2497 = vunpack.c.h.b16 %v2208
        %v2498 = vunpack.c.l.b16 %v2209
        %v2499 = vunpack.c.h.b16 %v2209
        %v2500 = vunpack.c.l.b16 %v2210
        %v2501 = vunpack.c.h.b16 %v2210
        %v2502 = vunpack.c.l.b16 %v2211
        %v2503 = vunpack.c.h.b16 %v2211
        %v2504 = vunpack.c.l.b16 %v2212
        %v2505 = vunpack.c.h.b16 %v2212
        %v2506 = vunpack.c.l.b16 %v2213
        %v2507 = vunpack.c.h.b16 %v2213
        %v2508 = vunpack.c.l.b16 %v2214
        %v2509 = vunpack.c.h.b16 %v2214
        %v2510 = vunpack.c.l.b16 %v2215
        %v2511 = vunpack.c.h.b16 %v2215
        %v2512 = vunpack.c.l.b16 %v2216
        %v2513 = vunpack.c.h.b16 %v2216
        %v2514 = vunpack.c.l.b16 %v2217
        %v2515 = vunpack.c.h.b16 %v2217
        %v2516 = vunpack.c.l.b16 %v2218
        %v2517 = vunpack.c.h.b16 %v2218
        %v2518 = vunpack.c.l.b16 %v2219
        %v2519 = vunpack.c.h.b16 %v2219
        %v2520 = vunpack.c.l.b16 %v2220
        %v2521 = vunpack.c.h.b16 %v2220
        %v2522 = vunpack.c.l.b16 %v2221
        %v2523 = vunpack.c.h.b16 %v2221
        %v2524 = vunpack.c.l.b16 %v2222
        %v2525 = vunpack.c.h.b16 %v2222
        %v2526 = vunpack.c.l.b16 %v2223
        %v2527 = vunpack.c.h.b16 %v2223
        %v2528 = vunpack.c.l.b16 %v2224
        %v2529 = vunpack.c.h.b16 %v2224
        %v2530 = vunpack.c.l.b16 %v2225
        %v2531 = vunpack.c.h.b16 %v2225
        %v2532 = vunpack.c.l.b16 %v2226
        %v2533 = vunpack.c.h.b16 %v2226
        %v2534 = vunpack.c.l.b16 %v2227
        %v2535 = vunpack.c.h.b16 %v2227
        %v2536 = vunpack.c.l.b16 %v2228
        %v2537 = vunpack.c.h.b16 %v2228
        %v2538 = vunpack.c.l.b16 %v2229
        %v2539 = vunpack.c.h.b16 %v2229
        %v2540 = vunpack.c.l.b16 %v2230
        %v2541 = vunpack.c.h.b16 %v2230
        %v2542 = vunpack.c.l.b16 %v2231
        %v2543 = vunpack.c.h.b16 %v2231
        %v2544 = vunpack.c.l.b16 %v2232
        %v2545 = vunpack.c.h.b16 %v2232
        %v2546 = vunpack.c.l.b16 %v2233
        %v2547 = vunpack.c.h.b16 %v2233
        %v2548 = vunpack.c.l.b16 %v2234
        %v2549 = vunpack.c.h.b16 %v2234
        %v2550 = vunpack.c.l.b16 %v2235
        %v2551 = vunpack.c.h.b16 %v2235
        %v2552 = vunpack.c.l.b16 %v2236
        %v2553 = vunpack.c.h.b16 %v2236
        %v2554 = vunpack.c.l.b16 %v2237
        %v2555 = vunpack.c.h.b16 %v2237
        %v2556 = vunpack.c.l.b16 %v2238
        %v2557 = vunpack.c.h.b16 %v2238
        %v2558 = vunpack.c.l.b16 %v2239
        %v2559 = vunpack.c.h.b16 %v2239
        %v2560 = vunpack.c.l.b16 %v2240
        %v2561 = vunpack.c.h.b16 %v2240
        %v2562 = vunpack.c.l.b16 %v2241
        %v2563 = vunpack.c.h.b16 %v2241
        %v2564 = vunpack.c.l.b16 %v2242
        %v2565 = vunpack.c.h.b16 %v2242
        %v2566 = vunpack.c.l.b16 %v2243
        %v2567 = vunpack.c.h.b16 %v2243
        %v2568 = vunpack.c.l.b16 %v2244
        %v2569 = vunpack.c.h.b16 %v2244
        %v2570 = vunpack.c.l.b16 %v2245
        %v2571 = vunpack.c.h.b16 %v2245
        %v2572 = vunpack.c.l.b16 %v2246
        %v2573 = vunpack.c.h.b16 %v2246
        %v2574 = vunpack.c.l.b16 %v2247
        %v2575 = vunpack.c.h.b16 %v2247
        %v2576 = vunpack.c.l.b16 %v2248
        %v2577 = vunpack.c.h.b16 %v2248
        %v2578 = vunpack.c.l.b16 %v2249
        %v2579 = vunpack.c.h.b16 %v2249
        %v2580 = vunpack.c.l.b16 %v2250
        %v2581 = vunpack.c.h.b16 %v2250
        %v2582 = vunpack.c.l.b16 %v2251
        %v2583 = vunpack.c.h.b16 %v2251
        %v2584 = vunpack.c.l.b16 %v2252
        %v2585 = vunpack.c.h.b16 %v2252
        %v2586 = vunpack.c.l.b16 %v2253
        %v2587 = vunpack.c.h.b16 %v2253
        %v2588 = vunpack.c.l.b16 %v2254
        %v2589 = vunpack.c.h.b16 %v2254
        %v2590 = vunpack.c.l.b16 %v2255
        %v2591 = vunpack.c.h.b16 %v2255
        %v2592 = vunpack.c.l.b16 %v2256
        %v2593 = vunpack.c.h.b16 %v2256
        %v2594 = vunpack.c.l.b16 %v2257
        %v2595 = vunpack.c.h.b16 %v2257
        %v2596 = vunpack.c.l.b16 %v2258
        %v2597 = vunpack.c.h.b16 %v2258
        %v2598 = vunpack.c.l.b16 %v2259
        %v2599 = vunpack.c.h.b16 %v2259
        %v2600 = vunpack.c.l.b16 %v2260
        %v2601 = vunpack.c.h.b16 %v2260
        %v2602 = vunpack.c.l.b16 %v2261
        %v2603 = vunpack.c.h.b16 %v2261
        %v2604 = vunpack.c.l.b16 %v2262
        %v2605 = vunpack.c.h.b16 %v2262
        %v2606 = vunpack.c.l.b16 %v2263
        %v2607 = vunpack.c.h.b16 %v2263
        %v2608 = vunpack.c.l.b16 %v2264
        %v2609 = vunpack.c.h.b16 %v2264
        %v2610 = vunpack.c.l.b16 %v2265
        %v2611 = vunpack.c.h.b16 %v2265
        %v2612 = vunpack.c.l.b16 %v2266
        %v2613 = vunpack.c.h.b16 %v2266
        %v2614 = vunpack.c.l.b16 %v2267
        %v2615 = vunpack.c.h.b16 %v2267
        %v2616 = vunpack.c.l.b16 %v2268
        %v2617 = vunpack.c.h.b16 %v2268
        %v2618 = vunpack.c.l.b16 %v2269
        %v2619 = vunpack.c.h.b16 %v2269
        %v2620 = vunpack.c.l.b16 %v2270
        %v2621 = vunpack.c.h.b16 %v2270
        %v2622 = vunpack.c.l.b16 %v2271
        %v2623 = vunpack.c.h.b16 %v2271
        %v2624 = vunpack.c.l.b16 %v2272
        %v2625 = vunpack.c.h.b16 %v2272
        %v2626 = vunpack.c.l.b16 %v2273
        %v2627 = vunpack.c.h.b16 %v2273
        %v2628 = vunpack.c.l.b16 %v2274
        %v2629 = vunpack.c.h.b16 %v2274
        %v2630 = vunpack.c.l.b16 %v2275
        %v2631 = vunpack.c.h.b16 %v2275
        %v2632 = vunpack.c.l.b16 %v2276
        %v2633 = vunpack.c.h.b16 %v2276
        %v2634 = vunpack.c.l.b16 %v2277
        %v2635 = vunpack.c.h.b16 %v2277
        %v2636 = vunpack.c.l.b16 %v2278
        %v2637 = vunpack.c.h.b16 %v2278
        %v2638 = vunpack.c.l.b16 %v2279
        %v2639 = vunpack.c.h.b16 %v2279
        %v2640 = vunpack.c.l.b16 %v2280
        %v2641 = vunpack.c.h.b16 %v2280
        %v2642 = vunpack.c.l.b16 %v2281
        %v2643 = vunpack.c.h.b16 %v2281
        %v2644 = vunpack.c.l.b16 %v2282
        %v2645 = vunpack.c.h.b16 %v2282
        %v2646 = vunpack.c.l.b16 %v2283
        %v2647 = vunpack.c.h.b16 %v2283
        %v2648 = vunpack.c.l.b16 %v2284
        %v2649 = vunpack.c.h.b16 %v2284
        %v2650 = vunpack.c.l.b16 %v2285
        %v2651 = vunpack.c.h.b16 %v2285
        %v2652 = vunpack.c.l.b16 %v2286
        %v2653 = vunpack.c.h.b16 %v2286
        %v2654 = vunpack.c.l.b16 %v2287
        %v2655 = vunpack.c.h.b16 %v2287
        %v2656 = vunpack.c.l.b16 %v2288
        %v2657 = vunpack.c.h.b16 %v2288
        %v2658 = vunpack.c.l.b16 %v2289
        %v2659 = vunpack.c.h.b16 %v2289
        %v2660 = vunpack.c.l.b16 %v2290
        %v2661 = vunpack.c.h.b16 %v2290
        %v2662 = vunpack.c.l.b16 %v2291
        %v2663 = vunpack.c.h.b16 %v2291
        %v2664 = vunpack.c.l.b16 %v2292
        %v2665 = vunpack.c.h.b16 %v2292
        %v2666 = vunpack.c.l.b16 %v2293
        %v2667 = vunpack.c.h.b16 %v2293
        %v2668 = vunpack.c.l.b16 %v2294
        %v2669 = vunpack.c.h.b16 %v2294
        %v2670 = vunpack.c.l.b16 %v2295
        %v2671 = vunpack.c.h.b16 %v2295
        %v2672 = vunpack.c.l.b16 %v2296
        %v2673 = vunpack.c.h.b16 %v2296
        %v2674 = vunpack.c.l.b16 %v2297
        %v2675 = vunpack.c.h.b16 %v2297
        %v2676 = vunpack.c.l.b16 %v2298
        %v2677 = vunpack.c.h.b16 %v2298
        %v2678 = vunpack.c.l.b16 %v2299
        %v2679 = vunpack.c.h.b16 %v2299
        %v2680 = vunpack.c.l.b16 %v2300
        %v2681 = vunpack.c.h.b16 %v2300
        %v2682 = vunpack.c.l.b16 %v2301
        %v2683 = vunpack.c.h.b16 %v2301
        %v2684 = vunpack.c.l.b16 %v2302
        %v2685 = vunpack.c.h.b16 %v2302
        %v2686 = vunpack.c.l.b16 %v2303
        %v2687 = vunpack.c.h.b16 %v2303
        %v2688 = vunpack.c.l.b16 %v2304
        %v2689 = vunpack.c.h.b16 %v2304
        %v2690 = vunpack.c.l.b16 %v2305
        %v2691 = vunpack.c.h.b16 %v2305
        %v2692 = vunpack.c.l.b16 %v2306
        %v2693 = vunpack.c.h.b16 %v2306
        %v2694 = vunpack.c.l.b16 %v2307
        %v2695 = vunpack.c.h.b16 %v2307
        %v2696 = vunpack.c.l.b16 %v2308
        %v2697 = vunpack.c.h.b16 %v2308
        %v2698 = vunpack.c.l.b16 %v2309
        %v2699 = vunpack.c.h.b16 %v2309
        %v2700 = vunpack.c.l.b16 %v2310
        %v2701 = vunpack.c.h.b16 %v2310
        %v2702 = vunpack.c.l.b16 %v2311
        %v2703 = vunpack.c.h.b16 %v2311
        %v2704 = vunpack.c.l.b16 %v2312
        %v2705 = vunpack.c.h.b16 %v2312
        %v2706 = vunpack.c.l.b16 %v2313
        %v2707 = vunpack.c.h.b16 %v2313
        %v2708 = vunpack.c.l.b16 %v2314
        %v2709 = vunpack.c.h.b16 %v2314
        %v2710 = vunpack.c.l.b16 %v2315
        %v2711 = vunpack.c.h.b16 %v2315
        %v2712 = vunpack.c.l.b16 %v2316
        %v2713 = vunpack.c.h.b16 %v2316
        %v2714 = vunpack.c.l.b16 %v2317
        %v2715 = vunpack.c.h.b16 %v2317
        %v2716 = vunpack.c.l.b16 %v2318
        %v2717 = vunpack.c.h.b16 %v2318
        %v2718 = vunpack.c.l.b16 %v2319
        %v2719 = vunpack.c.h.b16 %v2319
        %v2720 = vunpack.c.l.b16 %v2320
        %v2721 = vunpack.c.h.b16 %v2320
        %v2722 = vunpack.c.l.b16 %v2321
        %v2723 = vunpack.c.h.b16 %v2321
        %v2724 = vunpack.c.l.b16 %v2322
        %v2725 = vunpack.c.h.b16 %v2322
        %v2726 = vunpack.c.l.b16 %v2323
        %v2727 = vunpack.c.h.b16 %v2323
        %v2728 = vunpack.c.l.b16 %v2324
        %v2729 = vunpack.c.h.b16 %v2324
        %v2730 = vunpack.c.l.b16 %v2325
        %v2731 = vunpack.c.h.b16 %v2325
        %v2732 = vpack.c.b16 %v2480, %v2476
        %v2733 = vpack.c.b16 %v2481, %v2477
        %v2734 = vpack.c.b16 %v2482, %v2478
        %v2735 = vpack.c.b16 %v2483, %v2479
        %v2736 = vpack.c.b16 %v2488, %v2484
        %v2737 = vpack.c.b16 %v2489, %v2485
        %v2738 = vpack.c.b16 %v2490, %v2486
        %v2739 = vpack.c.b16 %v2491, %v2487
        %v2740 = vpack.c.b16 %v2496, %v2492
        %v2741 = vpack.c.b16 %v2497, %v2493
        %v2742 = vpack.c.b16 %v2498, %v2494
        %v2743 = vpack.c.b16 %v2499, %v2495
        %v2744 = vpack.c.b16 %v2504, %v2500
        %v2745 = vpack.c.b16 %v2505, %v2501
        %v2746 = vpack.c.b16 %v2506, %v2502
        %v2747 = vpack.c.b16 %v2507, %v2503
        %v2748 = vpack.c.b16 %v2512, %v2508
        %v2749 = vpack.c.b16 %v2513, %v2509
        %v2750 = vpack.c.b16 %v2514, %v2510
        %v2751 = vpack.c.b16 %v2515, %v2511
        %v2752 = vpack.c.b16 %v2520, %v2516
        %v2753 = vpack.c.b16 %v2521, %v2517
        %v2754 = vpack.c.b16 %v2522, %v2518
        %v2755 = vpack.c.b16 %v2523, %v2519
        %v2756 = vpack.c.b16 %v2528, %v2524
        %v2757 = vpack.c.b16 %v2529, %v2525
        %v2758 = vpack.c.b16 %v2530, %v2526
        %v2759 = vpack.c.b16 %v2531, %v2527
        %v2760 = vpack.c.b16 %v2536, %v2532
        %v2761 = vpack.c.b16 %v2537, %v2533
        %v2762 = vpack.c.b16 %v2538, %v2534
        %v2763 = vpack.c.b16 %v2539, %v2535
        %v2764 = vpack.c.b16 %v2544, %v2540
        %v2765 = vpack.c.b16 %v2545, %v2541
        %v2766 = vpack.c.b16 %v2546, %v2542
        %v2767 = vpack.c.b16 %v2547, %v2543
        %v2768 = vpack.c.b16 %v2552, %v2548
        %v2769 = vpack.c.b16 %v2553, %v2549
        %v2770 = vpack.c.b16 %v2554, %v2550
        %v2771 = vpack.c.b16 %v2555, %v2551
        %v2772 = vpack.c.b16 %v2560, %v2556
        %v2773 = vpack.c.b16 %v2561, %v2557
        %v2774 = vpack.c.b16 %v2562, %v2558
        %v2775 = vpack.c.b16 %v2563, %v2559
        %v2776 = vpack.c.b16 %v2568, %v2564
        %v2777 = vpack.c.b16 %v2569, %v2565
        %v2778 = vpack.c.b16 %v2570, %v2566
        %v2779 = vpack.c.b16 %v2571, %v2567
        %v2780 = vpack.c.b16 %v2576, %v2572
        %v2781 = vpack.c.b16 %v2577, %v2573
        %v2782 = vpack.c.b16 %v2578, %v2574
        %v2783 = vpack.c.b16 %v2579, %v2575
        %v2784 = vpack.c.b16 %v2584, %v2580
        %v2785 = vpack.c.b16 %v2585, %v2581
        %v2786 = vpack.c.b16 %v2586, %v2582
        %v2787 = vpack.c.b16 %v2587, %v2583
        %v2788 = vpack.c.b16 %v2592, %v2588
        %v2789 = vpack.c.b16 %v2593, %v2589
        %v2790 = vpack.c.b16 %v2594, %v2590
        %v2791 = vpack.c.b16 %v2595, %v2591
        %v2792 = vpack.c.b16 %v2600, %v2596
        %v2793 = vpack.c.b16 %v2601, %v2597
        %v2794 = vpack.c.b16 %v2602, %v2598
        %v2795 = vpack.c.b16 %v2603, %v2599
        %v2796 = vpack.c.b16 %v2608, %v2604
        %v2797 = vpack.c.b16 %v2609, %v2605
        %v2798 = vpack.c.b16 %v2610, %v2606
        %v2799 = vpack.c.b16 %v2611, %v2607
        %v2800 = vpack.c.b16 %v2616, %v2612
        %v2801 = vpack.c.b16 %v2617, %v2613
        %v2802 = vpack.c.b16 %v2618, %v2614
        %v2803 = vpack.c.b16 %v2619, %v2615
        %v2804 = vpack.c.b16 %v2624, %v2620
        %v2805 = vpack.c.b16 %v2625, %v2621
        %v2806 = vpack.c.b16 %v2626, %v2622
        %v2807 = vpack.c.b16 %v2627, %v2623
        %v2808 = vpack.c.b16 %v2632, %v2628
        %v2809 = vpack.c.b16 %v2633, %v2629
        %v2810 = vpack.c.b16 %v2634, %v2630
        %v2811 = vpack.c.b16 %v2635, %v2631
        %v2812 = vpack.c.b16 %v2640, %v2636
        %v2813 = vpack.c.b16 %v2641, %v2637
        %v2814 = vpack.c.b16 %v2642, %v2638
        %v2815 = vpack.c.b16 %v2643, %v2639
        %v2816 = vpack.c.b16 %v2648, %v2644
        %v2817 = vpack.c.b16 %v2649, %v2645
        %v2818 = vpack.c.b16 %v2650, %v2646
        %v2819 = vpack.c.b16 %v2651, %v2647
        %v2820 = vpack.c.b16 %v2656, %v2652
        %v2821 = vpack.c.b16 %v2657, %v2653
        %v2822 = vpack.c.b16 %v2658, %v2654
        %v2823 = vpack.c.b16 %v2659, %v2655
        %v2824 = vpack.c.b16 %v2664, %v2660
        %v2825 = vpack.c.b16 %v2665, %v2661
        %v2826 = vpack.c.b16 %v2666, %v2662
        %v2827 = vpack.c.b16 %v2667, %v2663
        %v2828 = vpack.c.b16 %v2672, %v2668
        %v2829 = vpack.c.b16 %v2673, %v2669
        %v2830 = vpack.c.b16 %v2674, %v2670
        %v2831 = vpack.c.b16 %v2675, %v2671
        %v2832 = vpack.c.b16 %v2680, %v2676
        %v2833 = vpack.c.b16 %v2681, %v2677
        %v2834 = vpack.c.b16 %v2682, %v2678
        %v2835 = vpack.c.b16 %v2683, %v2679
        %v2836 = vpack.c.b16 %v2688, %v2684
        %v2837 = vpack.c.b16 %v2689, %v2685
        %v2838 = vpack.c.b16 %v2690, %v2686
        %v2839 = vpack.c.b16 %v2691, %v2687
        %v2840 = vpack.c.b16 %v2696, %v2692
        %v2841 = vpack.c.b16 %v2697, %v2693
        %v2842 = vpack.c.b16 %v2698, %v2694
        %v2843 = vpack.c.b16 %v2699, %v2695
        %v2844 = vpack.c.b16 %v2704, %v2700
        %v2845 = vpack.c.b16 %v2705, %v2701
        %v2846 = vpack.c.b16 %v2706, %v2702
        %v2847 = vpack.c.b16 %v2707, %v2703
        %v2848 = vpack.c.b16 %v2712, %v2708
        %v2849 = vpack.c.b16 %v2713, %v2709
        %v2850 = vpack.c.b16 %v2714, %v2710
        %v2851 = vpack.c.b16 %v2715, %v2711
        %v2852 = vpack.c.b16 %v2720, %v2716
        %v2853 = vpack.c.b16 %v2721, %v2717
        %v2854 = vpack.c.b16 %v2722, %v2718
        %v2855 = vpack.c.b16 %v2723, %v2719
        %v2856 = vpack.c.b16 %v2728, %v2724
        %v2857 = vpack.c.b16 %v2729, %v2725
        %v2858 = vpack.c.b16 %v2730, %v2726
        %v2859 = vpack.c.b16 %v2731, %v2727
        %2988 = vmatprep.subr.bf16.mxu0 %v2733
        %2989 = vmatpush1.bf16.msra.mxu0 %v2732
        %2990 = vmatprep.subr.bf16.mxu0 %v2737
        %2991 = vmatpush1.bf16.msra.mxu0 %v2736
        %2992 = vmatprep.subr.bf16.mxu0 %v2741
        %2993 = vmatpush1.bf16.msra.mxu0 %v2740
        %2994 = vmatprep.subr.bf16.mxu0 %v2745
        %2995 = vmatpush1.bf16.msra.mxu0 %v2744
        %2996 = vmatprep.subr.bf16.mxu0 %v2749
        %2997 = vmatpush1.bf16.msra.mxu0 %v2748
        %2998 = vmatprep.subr.bf16.mxu0 %v2753
        %2999 = vmatpush1.bf16.msra.mxu0 %v2752
        %3000 = vmatprep.subr.bf16.mxu0 %v2757
        %3001 = vmatpush1.bf16.msra.mxu0 %v2756
        %3002 = vmatprep.subr.bf16.mxu0 %v2761
        %3003 = vmatpush1.bf16.msra.mxu0 %v2760
        %3004 = vmatprep.subr.bf16.mxu0 %v2765
        %3005 = vmatpush1.bf16.msra.mxu0 %v2764
        %3006 = vmatprep.subr.bf16.mxu0 %v2769
        %3007 = vmatpush1.bf16.msra.mxu0 %v2768
        %3008 = vmatprep.subr.bf16.mxu0 %v2773
        %3009 = vmatpush1.bf16.msra.mxu0 %v2772
        %3010 = vmatprep.subr.bf16.mxu0 %v2777
        %3011 = vmatpush1.bf16.msra.mxu0 %v2776
        %3012 = vmatprep.subr.bf16.mxu0 %v2781
        %3013 = vmatpush1.bf16.msra.mxu0 %v2780
        %3014 = vmatprep.subr.bf16.mxu0 %v2785
        %3015 = vmatpush1.bf16.msra.mxu0 %v2784
        %3016 = vmatprep.subr.bf16.mxu0 %v2789
        %3017 = vmatpush1.bf16.msra.mxu0 %v2788
        %3018 = vmatprep.subr.bf16.mxu0 %v2793
        %3019 = vmatpush1.bf16.msra.mxu0 %v2792
        %3020 = vmatprep.mubr.bf16.mxu0 %v2151
        %3021 = vmatmul.mubr.bf16.gmra.mrb[0].mxu0 %v2150
        %v3022 = vpop.f32.mrb[0].mxu0
        %v3023 = vadd.f32 %v2331, %v3022
        %v3024 = vpop.f32.mrb[0].mxu0
        %v3025 = vadd.f32 %v2335, %v3024
        %v3026 = vpop.f32.mrb[0].mxu0
        %v3027 = vadd.f32 %v2331, %v3026
        %v3028 = vpop.f32.mrb[0].mxu0
        %v3029 = vadd.f32 %v2335, %v3028
        %3030 = vmatprep.mubr.bf16.mxu0 %v2155
        %3031 = vmatmul.mubr.bf16.gmra.mrb[0].mxu0 %v2154
        %v3032 = vpop.f32.mrb[0].mxu0
        %v3033 = vadd.f32 %v2331, %v3032
        %v3034 = vpop.f32.mrb[0].mxu0
        %v3035 = vadd.f32 %v2335, %v3034
        %v3036 = vpop.f32.mrb[0].mxu0
        %v3037 = vadd.f32 %v2331, %v3036
        %v3038 = vpop.f32.mrb[0].mxu0
        %v3039 = vadd.f32 %v2335, %v3038
        %3040 = vmatprep.mubr.bf16.mxu0 %v2159
        %3041 = vmatmul.mubr.bf16.gmra.mrb[0].mxu0 %v2158
        %v3042 = vpop.f32.mrb[0].mxu0
        %v3043 = vadd.f32 %v2331, %v3042
        %v3044 = vpop.f32.mrb[0].mxu0
        %v3045 = vadd.f32 %v2335, %v3044
        %v3046 = vpop.f32.mrb[0].mxu0
        %v3047 = vadd.f32 %v2331, %v3046
        %v3048 = vpop.f32.mrb[0].mxu0
        %v3049 = vadd.f32 %v2335, %v3048
        %3050 = vmatprep.mubr.bf16.mxu0 %v2163
        %3051 = vmatmul.mubr.bf16.gmra.mrb[0].mxu0 %v2162
        %v3052 = vpop.f32.mrb[0].mxu0
        %v3053 = vadd.f32 %v2331, %v3052
        %v3054 = vpop.f32.mrb[0].mxu0
        %v3055 = vadd.f32 %v2335, %v3054
        %v3056 = vpop.f32.mrb[0].mxu0
        %v3057 = vadd.f32 %v2331, %v3056
        %v3058 = vpop.f32.mrb[0].mxu0
        %v3059 = vadd.f32 %v2335, %v3058
        %3060 = vmatprep.mubr.bf16.mxu0 %v2167
        %3061 = vmatmul.mubr.bf16.gmra.mrb[0].mxu0 %v2166
        %v3062 = vpop.f32.mrb[0].mxu0
        %v3063 = vadd.f32 %v2331, %v3062
        %v3064 = vpop.f32.mrb[0].mxu0
        %v3065 = vadd.f32 %v2335, %v3064
        %v3066 = vpop.f32.mrb[0].mxu0
        %v3067 = vadd.f32 %v2331, %v3066
        %v3068 = vpop.f32.mrb[0].mxu0
        %v3069 = vadd.f32 %v2335, %v3068
        %3070 = vmatprep.mubr.bf16.mxu0 %v2171
        %3071 = vmatmul.mubr.bf16.gmra.mrb[0].mxu0 %v2170
        %v3072 = vpop.f32.mrb[0].mxu0
        %v3073 = vadd.f32 %v2331, %v3072
        %v3074 = vpop.f32.mrb[0].mxu0
        %v3075 = vadd.f32 %v2335, %v3074
        %v3076 = vpop.f32.mrb[0].mxu0
        %v3077 = vadd.f32 %v2331, %v3076
        %v3078 = vpop.f32.mrb[0].mxu0
        %v3079 = vadd.f32 %v2335, %v3078
        %3080 = vmatprep.mubr.bf16.mxu0 %v2175
        %3081 = vmatmul.mubr.bf16.gmra.mrb[0].mxu0 %v2174
        %v3082 = vpop.f32.mrb[0].mxu0
        %v3083 = vadd.f32 %v2331, %v3082
        %v3084 = vpop.f32.mrb[0].mxu0
        %v3085 = vadd.f32 %v2335, %v3084
        %v3086 = vpop.f32.mrb[0].mxu0
        %v3087 = vadd.f32 %v2331, %v3086
        %v3088 = vpop.f32.mrb[0].mxu0
        %v3089 = vadd.f32 %v2335, %v3088
        %3090 = vmatprep.mubr.bf16.mxu0 %v2179
        %3091 = vmatmul.mubr.bf16.gmra.mrb[0].mxu0 %v2178
        %v3092 = vpop.f32.mrb[0].mxu0
        %v3093 = vadd.f32 %v2331, %v3092
        %v3094 = vpop.f32.mrb[0].mxu0
        %v3095 = vadd.f32 %v2335, %v3094
        %v3096 = vpop.f32.mrb[0].mxu0
        %v3097 = vadd.f32 %v2331, %v3096
        %v3098 = vpop.f32.mrb[0].mxu0
        %v3099 = vadd.f32 %v2335, %v3098
        %3100 = vmatprep.mubr.bf16.mxu0 %v2183
        %3101 = vmatmul.mubr.bf16.gmra.mrb[0].mxu0 %v2182
        %v3102 = vpop.f32.mrb[0].mxu0
        %v3103 = vadd.f32 %v2331, %v3102
        %v3104 = vpop.f32.mrb[0].mxu0
        %v3105 = vadd.f32 %v2335, %v3104
        %v3106 = vpop.f32.mrb[0].mxu0
        %v3107 = vadd.f32 %v2331, %v3106
        %v3108 = vpop.f32.mrb[0].mxu0
        %v3109 = vadd.f32 %v2335, %v3108
        %3110 = vmatprep.mubr.bf16.mxu0 %v2187
        %3111 = vmatmul.mubr.bf16.gmra.mrb[0].mxu0 %v2186
        %v3112 = vpop.f32.mrb[0].mxu0
        %v3113 = vadd.f32 %v2331, %v3112
        %v3114 = vpop.f32.mrb[0].mxu0
        %v3115 = vadd.f32 %v2335, %v3114
        %v3116 = vpop.f32.mrb[0].mxu0
        %v3117 = vadd.f32 %v2331, %v3116
        %v3118 = vpop.f32.mrb[0].mxu0
        %v3119 = vadd.f32 %v2335, %v3118
        %3120 = vmatprep.mubr.bf16.mxu0 %v2191
        %3121 = vmatmul.mubr.bf16.gmra.mrb[0].mxu0 %v2190
        %v3122 = vpop.f32.mrb[0].mxu0
        %v3123 = vadd.f32 %v2331, %v3122
        %v3124 = vpop.f32.mrb[0].mxu0
        %v3125 = vadd.f32 %v2335, %v3124
        %v3126 = vpop.f32.mrb[0].mxu0
        %v3127 = vadd.f32 %v2331, %v3126
        %v3128 = vpop.f32.mrb[0].mxu0
        %v3129 = vadd.f32 %v2335, %v3128
        %3130 = vmatprep.mubr.bf16.mxu0 %v2195
        %3131 = vmatmul.mubr.bf16.gmra.mrb[0].mxu0 %v2194
        %v3132 = vpop.f32.mrb[0].mxu0
        %v3133 = vadd.f32 %v2331, %v3132
        %v3134 = vpop.f32.mrb[0].mxu0
        %v3135 = vadd.f32 %v2335, %v3134
        %v3136 = vpop.f32.mrb[0].mxu0
        %v3137 = vadd.f32 %v2331, %v3136
        %v3138 = vpop.f32.mrb[0].mxu0
        %v3139 = vadd.f32 %v2335, %v3138
        %3140 = vdwg.mxu0
        %3141 = vmatprep.subr.bf16.mxu0 %v2797
        %3142 = vmatpush1.bf16.msra.mxu0 %v2796
        %3143 = vmatprep.subr.bf16.mxu0 %v2801
        %3144 = vmatpush1.bf16.msra.mxu0 %v2800
        %3145 = vmatprep.subr.bf16.mxu0 %v2805
        %3146 = vmatpush1.bf16.msra.mxu0 %v2804
        %3147 = vmatprep.subr.bf16.mxu0 %v2809
        %3148 = vmatpush1.bf16.msra.mxu0 %v2808
        %3149 = vmatprep.subr.bf16.mxu0 %v2813
        %3150 = vmatpush1.bf16.msra.mxu0 %v2812
        %3151 = vmatprep.subr.bf16.mxu0 %v2817
        %3152 = vmatpush1.bf16.msra.mxu0 %v2816
        %3153 = vmatprep.subr.bf16.mxu0 %v2821
        %3154 = vmatpush1.bf16.msra.mxu0 %v2820
        %3155 = vmatprep.subr.bf16.mxu0 %v2825
        %3156 = vmatpush1.bf16.msra.mxu0 %v2824
        %3157 = vmatprep.subr.bf16.mxu0 %v2829
        %3158 = vmatpush1.bf16.msra.mxu0 %v2828
        %3159 = vmatprep.subr.bf16.mxu0 %v2833
        %3160 = vmatpush1.bf16.msra.mxu0 %v2832
        %3161 = vmatprep.subr.bf16.mxu0 %v2837
        %3162 = vmatpush1.bf16.msra.mxu0 %v2836
        %3163 = vmatprep.subr.bf16.mxu0 %v2841
        %3164 = vmatpush1.bf16.msra.mxu0 %v2840
        %3165 = vmatprep.subr.bf16.mxu0 %v2845
        %3166 = vmatpush1.bf16.msra.mxu0 %v2844
        %3167 = vmatprep.subr.bf16.mxu0 %v2849
        %3168 = vmatpush1.bf16.msra.mxu0 %v2848
        %3169 = vmatprep.subr.bf16.mxu0 %v2853
        %3170 = vmatpush1.bf16.msra.mxu0 %v2852
        %3171 = vmatprep.subr.bf16.mxu0 %v2857
        %3172 = vmatpush1.bf16.msra.mxu0 %v2856
        %3173 = vmatprep.mubr.bf16.mxu0 %v2153
        %3174 = vmatmul.mubr.bf16.gmra.mrb[0].mxu0 %v2152
        %v3175 = vpop.f32.mrb[0].mxu0
        %v3176 = vadd.f32 %v3023, %v3175
        %v3177 = vpop.f32.mrb[0].mxu0
        %v3178 = vadd.f32 %v3025, %v3177
        %v3179 = vpop.f32.mrb[0].mxu0
        %v3180 = vadd.f32 %v3027, %v3179
        %v3181 = vpop.f32.mrb[0].mxu0
        %v3182 = vadd.f32 %v3029, %v3181
        %3183 = vmatprep.mubr.bf16.mxu0 %v2157
        %3184 = vmatmul.mubr.bf16.gmra.mrb[0].mxu0 %v2156
        %v3185 = vpop.f32.mrb[0].mxu0
        %v3186 = vadd.f32 %v3033, %v3185
        %v3187 = vpop.f32.mrb[0].mxu0
        %v3188 = vadd.f32 %v3035, %v3187
        %v3189 = vpop.f32.mrb[0].mxu0
        %v3190 = vadd.f32 %v3037, %v3189
        %v3191 = vpop.f32.mrb[0].mxu0
        %v3192 = vadd.f32 %v3039, %v3191
        %3193 = vmatprep.mubr.bf16.mxu0 %v2161
        %3194 = vmatmul.mubr.bf16.gmra.mrb[0].mxu0 %v2160
        %v3195 = vpop.f32.mrb[0].mxu0
        %v3196 = vadd.f32 %v3043, %v3195
        %v3197 = vpop.f32.mrb[0].mxu0
        %v3198 = vadd.f32 %v3045, %v3197
        %v3199 = vpop.f32.mrb[0].mxu0
        %v3200 = vadd.f32 %v3047, %v3199
        %v3201 = vpop.f32.mrb[0].mxu0
        %v3202 = vadd.f32 %v3049, %v3201
        %3203 = vmatprep.mubr.bf16.mxu0 %v2165
        %3204 = vmatmul.mubr.bf16.gmra.mrb[0].mxu0 %v2164
        %v3205 = vpop.f32.mrb[0].mxu0
        %v3206 = vadd.f32 %v3053, %v3205
        %v3207 = vpop.f32.mrb[0].mxu0
        %v3208 = vadd.f32 %v3055, %v3207
        %v3209 = vpop.f32.mrb[0].mxu0
        %v3210 = vadd.f32 %v3057, %v3209
        %v3211 = vpop.f32.mrb[0].mxu0
        %v3212 = vadd.f32 %v3059, %v3211
        %3213 = vmatprep.mubr.bf16.mxu0 %v2169
        %3214 = vmatmul.mubr.bf16.gmra.mrb[0].mxu0 %v2168
        %v3215 = vpop.f32.mrb[0].mxu0
        %v3216 = vadd.f32 %v3063, %v3215
        %v3217 = vpop.f32.mrb[0].mxu0
        %v3218 = vadd.f32 %v3065, %v3217
        %v3219 = vpop.f32.mrb[0].mxu0
        %v3220 = vadd.f32 %v3067, %v3219
        %v3221 = vpop.f32.mrb[0].mxu0
        %v3222 = vadd.f32 %v3069, %v3221
        %3223 = vmatprep.mubr.bf16.mxu0 %v2173
        %3224 = vmatmul.mubr.bf16.gmra.mrb[0].mxu0 %v2172
        %v3225 = vpop.f32.mrb[0].mxu0
        %v3226 = vadd.f32 %v3073, %v3225
        %v3227 = vpop.f32.mrb[0].mxu0
        %v3228 = vadd.f32 %v3075, %v3227
        %v3229 = vpop.f32.mrb[0].mxu0
        %v3230 = vadd.f32 %v3077, %v3229
        %v3231 = vpop.f32.mrb[0].mxu0
        %v3232 = vadd.f32 %v3079, %v3231
        %3233 = vmatprep.mubr.bf16.mxu0 %v2177
        %3234 = vmatmul.mubr.bf16.gmra.mrb[0].mxu0 %v2176
        %v3235 = vpop.f32.mrb[0].mxu0
        %v3236 = vadd.f32 %v3083, %v3235
        %v3237 = vpop.f32.mrb[0].mxu0
        %v3238 = vadd.f32 %v3085, %v3237
        %v3239 = vpop.f32.mrb[0].mxu0
        %v3240 = vadd.f32 %v3087, %v3239
        %v3241 = vpop.f32.mrb[0].mxu0
        %v3242 = vadd.f32 %v3089, %v3241
        %3243 = vmatprep.mubr.bf16.mxu0 %v2181
        %3244 = vmatmul.mubr.bf16.gmra.mrb[0].mxu0 %v2180
        %v3245 = vpop.f32.mrb[0].mxu0
        %v3246 = vadd.f32 %v3093, %v3245
        %v3247 = vpop.f32.mrb[0].mxu0
        %v3248 = vadd.f32 %v3095, %v3247
        %v3249 = vpop.f32.mrb[0].mxu0
        %v3250 = vadd.f32 %v3097, %v3249
        %v3251 = vpop.f32.mrb[0].mxu0
        %v3252 = vadd.f32 %v3099, %v3251
        %3253 = vmatprep.mubr.bf16.mxu0 %v2185
        %3254 = vmatmul.mubr.bf16.gmra.mrb[0].mxu0 %v2184
        %v3255 = vpop.f32.mrb[0].mxu0
        %v3256 = vadd.f32 %v3103, %v3255
        %v3257 = vpop.f32.mrb[0].mxu0
        %v3258 = vadd.f32 %v3105, %v3257
        %v3259 = vpop.f32.mrb[0].mxu0
        %v3260 = vadd.f32 %v3107, %v3259
        %v3261 = vpop.f32.mrb[0].mxu0
        %v3262 = vadd.f32 %v3109, %v3261
        %3263 = vmatprep.mubr.bf16.mxu0 %v2189
        %3264 = vmatmul.mubr.bf16.gmra.mrb[0].mxu0 %v2188
        %v3265 = vpop.f32.mrb[0].mxu0
        %v3266 = vadd.f32 %v3113, %v3265
        %v3267 = vpop.f32.mrb[0].mxu0
        %v3268 = vadd.f32 %v3115, %v3267
        %v3269 = vpop.f32.mrb[0].mxu0
        %v3270 = vadd.f32 %v3117, %v3269
        %v3271 = vpop.f32.mrb[0].mxu0
        %v3272 = vadd.f32 %v3119, %v3271
        %3273 = vmatprep.mubr.bf16.mxu0 %v2193
        %3274 = vmatmul.mubr.bf16.gmra.mrb[0].mxu0 %v2192
        %v3275 = vpop.f32.mrb[0].mxu0
        %v3276 = vadd.f32 %v3123, %v3275
        %v3277 = vpop.f32.mrb[0].mxu0
        %v3278 = vadd.f32 %v3125, %v3277
        %v3279 = vpop.f32.mrb[0].mxu0
        %v3280 = vadd.f32 %v3127, %v3279
        %v3281 = vpop.f32.mrb[0].mxu0
        %v3282 = vadd.f32 %v3129, %v3281
        %3283 = vmatprep.mubr.bf16.mxu0 %v2197
        %3284 = vmatmul.mubr.bf16.gmra.mrb[0].mxu0 %v2196
        %v3285 = vpop.f32.mrb[0].mxu0
        %v3286 = vadd.f32 %v3133, %v3285
        %v3287 = vpop.f32.mrb[0].mxu0
        %v3288 = vadd.f32 %v3135, %v3287
        %v3289 = vpop.f32.mrb[0].mxu0
        %v3290 = vadd.f32 %v3137, %v3289
        %v3291 = vpop.f32.mrb[0].mxu0
        %v3292 = vadd.f32 %v3139, %v3291
        %3293 = vdwg.mxu0
        %3294 = vmatprep.subr.bf16.mxu0 %v2735
        %3295 = vmatpush1.bf16.msra.mxu0 %v2734
        %3296 = vmatprep.subr.bf16.mxu0 %v2739
        %3297 = vmatpush1.bf16.msra.mxu0 %v2738
        %3298 = vmatprep.subr.bf16.mxu0 %v2743
        %3299 = vmatpush1.bf16.msra.mxu0 %v2742
        %3300 = vmatprep.subr.bf16.mxu0 %v2747
        %3301 = vmatpush1.bf16.msra.mxu0 %v2746
        %3302 = vmatprep.subr.bf16.mxu0 %v2751
        %3303 = vmatpush1.bf16.msra.mxu0 %v2750
        %3304 = vmatprep.subr.bf16.mxu0 %v2755
        %3305 = vmatpush1.bf16.msra.mxu0 %v2754
        %3306 = vmatprep.subr.bf16.mxu0 %v2759
        %3307 = vmatpush1.bf16.msra.mxu0 %v2758
        %3308 = vmatprep.subr.bf16.mxu0 %v2763
        %3309 = vmatpush1.bf16.msra.mxu0 %v2762
        %3310 = vmatprep.subr.bf16.mxu0 %v2767
        %3311 = vmatpush1.bf16.msra.mxu0 %v2766
        %3312 = vmatprep.subr.bf16.mxu0 %v2771
        %3313 = vmatpush1.bf16.msra.mxu0 %v2770
        %3314 = vmatprep.subr.bf16.mxu0 %v2775
        %3315 = vmatpush1.bf16.msra.mxu0 %v2774
        %3316 = vmatprep.subr.bf16.mxu0 %v2779
        %3317 = vmatpush1.bf16.msra.mxu0 %v2778
        %3318 = vmatprep.subr.bf16.mxu0 %v2783
        %3319 = vmatpush1.bf16.msra.mxu0 %v2782
        %3320 = vmatprep.subr.bf16.mxu0 %v2787
        %3321 = vmatpush1.bf16.msra.mxu0 %v2786
        %3322 = vmatprep.subr.bf16.mxu0 %v2791
        %3323 = vmatpush1.bf16.msra.mxu0 %v2790
        %3324 = vmatprep.subr.bf16.mxu0 %v2795
        %3325 = vmatpush1.bf16.msra.mxu0 %v2794
        %3326 = vmatprep.mubr.bf16.mxu0 %v2151
        %3327 = vmatmul.mubr.bf16.gmra.mrb[0].mxu0 %v2150
        %v3328 = vpop.f32.mrb[0].mxu0
        %v3329 = vadd.f32 %v2339, %v3328
        %v3330 = vpop.f32.mrb[0].mxu0
        %v3331 = vadd.f32 %v2343, %v3330
        %v3332 = vpop.f32.mrb[0].mxu0
        %v3333 = vadd.f32 %v2339, %v3332
        %v3334 = vpop.f32.mrb[0].mxu0
        %v3335 = vadd.f32 %v2343, %v3334
        %3336 = vmatprep.mubr.bf16.mxu0 %v2155
        %3337 = vmatmul.mubr.bf16.gmra.mrb[0].mxu0 %v2154
        %v3338 = vpop.f32.mrb[0].mxu0
        %v3339 = vadd.f32 %v2339, %v3338
        %v3340 = vpop.f32.mrb[0].mxu0
        %v3341 = vadd.f32 %v2343, %v3340
        %v3342 = vpop.f32.mrb[0].mxu0
        %v3343 = vadd.f32 %v2339, %v3342
        %v3344 = vpop.f32.mrb[0].mxu0
        %v3345 = vadd.f32 %v2343, %v3344
        %3346 = vmatprep.mubr.bf16.mxu0 %v2159
        %3347 = vmatmul.mubr.bf16.gmra.mrb[0].mxu0 %v2158
        %v3348 = vpop.f32.mrb[0].mxu0
        %v3349 = vadd.f32 %v2339, %v3348
        %v3350 = vpop.f32.mrb[0].mxu0
        %v3351 = vadd.f32 %v2343, %v3350
        %v3352 = vpop.f32.mrb[0].mxu0
        %v3353 = vadd.f32 %v2339, %v3352
        %v3354 = vpop.f32.mrb[0].mxu0
        %v3355 = vadd.f32 %v2343, %v3354
        %3356 = vmatprep.mubr.bf16.mxu0 %v2163
        %3357 = vmatmul.mubr.bf16.gmra.mrb[0].mxu0 %v2162
        %v3358 = vpop.f32.mrb[0].mxu0
        %v3359 = vadd.f32 %v2339, %v3358
        %v3360 = vpop.f32.mrb[0].mxu0
        %v3361 = vadd.f32 %v2343, %v3360
        %v3362 = vpop.f32.mrb[0].mxu0
        %v3363 = vadd.f32 %v2339, %v3362
        %v3364 = vpop.f32.mrb[0].mxu0
        %v3365 = vadd.f32 %v2343, %v3364
        %3366 = vmatprep.mubr.bf16.mxu0 %v2167
        %3367 = vmatmul.mubr.bf16.gmra.mrb[0].mxu0 %v2166
        %v3368 = vpop.f32.mrb[0].mxu0
        %v3369 = vadd.f32 %v2339, %v3368
        %v3370 = vpop.f32.mrb[0].mxu0
        %v3371 = vadd.f32 %v2343, %v3370
        %v3372 = vpop.f32.mrb[0].mxu0
        %v3373 = vadd.f32 %v2339, %v3372
        %v3374 = vpop.f32.mrb[0].mxu0
        %v3375 = vadd.f32 %v2343, %v3374
        %3376 = vmatprep.mubr.bf16.mxu0 %v2171
        %3377 = vmatmul.mubr.bf16.gmra.mrb[0].mxu0 %v2170
        %v3378 = vpop.f32.mrb[0].mxu0
        %v3379 = vadd.f32 %v2339, %v3378
        %v3380 = vpop.f32.mrb[0].mxu0
        %v3381 = vadd.f32 %v2343, %v3380
        %v3382 = vpop.f32.mrb[0].mxu0
        %v3383 = vadd.f32 %v2339, %v3382
        %v3384 = vpop.f32.mrb[0].mxu0
        %v3385 = vadd.f32 %v2343, %v3384
        %3386 = vmatprep.mubr.bf16.mxu0 %v2175
        %3387 = vmatmul.mubr.bf16.gmra.mrb[0].mxu0 %v2174
        %v3388 = vpop.f32.mrb[0].mxu0
        %v3389 = vadd.f32 %v2339, %v3388
        %v3390 = vpop.f32.mrb[0].mxu0
        %v3391 = vadd.f32 %v2343, %v3390
        %v3392 = vpop.f32.mrb[0].mxu0
        %v3393 = vadd.f32 %v2339, %v3392
        %v3394 = vpop.f32.mrb[0].mxu0
        %v3395 = vadd.f32 %v2343, %v3394
        %3396 = vmatprep.mubr.bf16.mxu0 %v2179
        %3397 = vmatmul.mubr.bf16.gmra.mrb[0].mxu0 %v2178
        %v3398 = vpop.f32.mrb[0].mxu0
        %v3399 = vadd.f32 %v2339, %v3398
        %v3400 = vpop.f32.mrb[0].mxu0
        %v3401 = vadd.f32 %v2343, %v3400
        %v3402 = vpop.f32.mrb[0].mxu0
        %v3403 = vadd.f32 %v2339, %v3402
        %v3404 = vpop.f32.mrb[0].mxu0
        %v3405 = vadd.f32 %v2343, %v3404
        %3406 = vmatprep.mubr.bf16.mxu0 %v2183
        %3407 = vmatmul.mubr.bf16.gmra.mrb[0].mxu0 %v2182
        %v3408 = vpop.f32.mrb[0].mxu0
        %v3409 = vadd.f32 %v2339, %v3408
        %v3410 = vpop.f32.mrb[0].mxu0
        %v3411 = vadd.f32 %v2343, %v3410
        %v3412 = vpop.f32.mrb[0].mxu0
        %v3413 = vadd.f32 %v2339, %v3412
        %v3414 = vpop.f32.mrb[0].mxu0
        %v3415 = vadd.f32 %v2343, %v3414
        %3416 = vmatprep.mubr.bf16.mxu0 %v2187
        %3417 = vmatmul.mubr.bf16.gmra.mrb[0].mxu0 %v2186
        %v3418 = vpop.f32.mrb[0].mxu0
        %v3419 = vadd.f32 %v2339, %v3418
        %v3420 = vpop.f32.mrb[0].mxu0
        %v3421 = vadd.f32 %v2343, %v3420
        %v3422 = vpop.f32.mrb[0].mxu0
        %v3423 = vadd.f32 %v2339, %v3422
        %v3424 = vpop.f32.mrb[0].mxu0
        %v3425 = vadd.f32 %v2343, %v3424
        %3426 = vmatprep.mubr.bf16.mxu0 %v2191
        %3427 = vmatmul.mubr.bf16.gmra.mrb[0].mxu0 %v2190
        %v3428 = vpop.f32.mrb[0].mxu0
        %v3429 = vadd.f32 %v2339, %v3428
        %v3430 = vpop.f32.mrb[0].mxu0
        %v3431 = vadd.f32 %v2343, %v3430
        %v3432 = vpop.f32.mrb[0].mxu0
        %v3433 = vadd.f32 %v2339, %v3432
        %v3434 = vpop.f32.mrb[0].mxu0
        %v3435 = vadd.f32 %v2343, %v3434
        %3436 = vmatprep.mubr.bf16.mxu0 %v2195
        %3437 = vmatmul.mubr.bf16.gmra.mrb[0].mxu0 %v2194
        %v3438 = vpop.f32.mrb[0].mxu0
        %v3439 = vadd.f32 %v2339, %v3438
        %v3440 = vpop.f32.mrb[0].mxu0
        %v3441 = vadd.f32 %v2343, %v3440
        %v3442 = vpop.f32.mrb[0].mxu0
        %v3443 = vadd.f32 %v2339, %v3442
        %v3444 = vpop.f32.mrb[0].mxu0
        %v3445 = vadd.f32 %v2343, %v3444
        %3446 = vdwg.mxu0
        %3447 = vmatprep.subr.bf16.mxu0 %v2799
        %3448 = vmatpush1.bf16.msra.mxu0 %v2798
        %3449 = vmatprep.subr.bf16.mxu0 %v2803
        %3450 = vmatpush1.bf16.msra.mxu0 %v2802
        %3451 = vmatprep.subr.bf16.mxu0 %v2807
        %3452 = vmatpush1.bf16.msra.mxu0 %v2806
        %3453 = vmatprep.subr.bf16.mxu0 %v2811
        %3454 = vmatpush1.bf16.msra.mxu0 %v2810
        %3455 = vmatprep.subr.bf16.mxu0 %v2815
        %3456 = vmatpush1.bf16.msra.mxu0 %v2814
        %3457 = vmatprep.subr.bf16.mxu0 %v2819
        %3458 = vmatpush1.bf16.msra.mxu0 %v2818
        %3459 = vmatprep.subr.bf16.mxu0 %v2823
        %3460 = vmatpush1.bf16.msra.mxu0 %v2822
        %3461 = vmatprep.subr.bf16.mxu0 %v2827
        %3462 = vmatpush1.bf16.msra.mxu0 %v2826
        %3463 = vmatprep.subr.bf16.mxu0 %v2831
        %3464 = vmatpush1.bf16.msra.mxu0 %v2830
        %3465 = vmatprep.subr.bf16.mxu0 %v2835
        %3466 = vmatpush1.bf16.msra.mxu0 %v2834
        %3467 = vmatprep.subr.bf16.mxu0 %v2839
        %3468 = vmatpush1.bf16.msra.mxu0 %v2838
        %3469 = vmatprep.subr.bf16.mxu0 %v2843
        %3470 = vmatpush1.bf16.msra.mxu0 %v2842
        %3471 = vmatprep.subr.bf16.mxu0 %v2847
        %3472 = vmatpush1.bf16.msra.mxu0 %v2846
        %3473 = vmatprep.subr.bf16.mxu0 %v2851
        %3474 = vmatpush1.bf16.msra.mxu0 %v2850
        %3475 = vmatprep.subr.bf16.mxu0 %v2855
        %3476 = vmatpush1.bf16.msra.mxu0 %v2854
        %3477 = vmatprep.subr.bf16.mxu0 %v2859
        %3478 = vmatpush1.bf16.msra.mxu0 %v2858
        %3479 = vmatprep.mubr.bf16.mxu0 %v2153
        %3480 = vmatmul.mubr.bf16.gmra.mrb[0].mxu0 %v2152
        %v3481 = vpop.f32.mrb[0].mxu0
        %v3482 = vadd.f32 %v3329, %v3481
        %v3483 = vpop.f32.mrb[0].mxu0
        %v3484 = vadd.f32 %v3331, %v3483
        %v3485 = vpop.f32.mrb[0].mxu0
        %v3486 = vadd.f32 %v3333, %v3485
        %v3487 = vpop.f32.mrb[0].mxu0
        %v3488 = vadd.f32 %v3335, %v3487
        %3489 = vmatprep.mubr.bf16.mxu0 %v2157
        %3490 = vmatmul.mubr.bf16.gmra.mrb[0].mxu0 %v2156
        %v3491 = vpop.f32.mrb[0].mxu0
        %v3492 = vadd.f32 %v3339, %v3491
        %v3493 = vpop.f32.mrb[0].mxu0
        %v3494 = vadd.f32 %v3341, %v3493
        %v3495 = vpop.f32.mrb[0].mxu0
        %v3496 = vadd.f32 %v3343, %v3495
        %v3497 = vpop.f32.mrb[0].mxu0
        %v3498 = vadd.f32 %v3345, %v3497
        %3499 = vmatprep.mubr.bf16.mxu0 %v2161
        %3500 = vmatmul.mubr.bf16.gmra.mrb[0].mxu0 %v2160
        %v3501 = vpop.f32.mrb[0].mxu0
        %v3502 = vadd.f32 %v3349, %v3501
        %v3503 = vpop.f32.mrb[0].mxu0
        %v3504 = vadd.f32 %v3351, %v3503
        %v3505 = vpop.f32.mrb[0].mxu0
        %v3506 = vadd.f32 %v3353, %v3505
        %v3507 = vpop.f32.mrb[0].mxu0
        %v3508 = vadd.f32 %v3355, %v3507
        %3509 = vmatprep.mubr.bf16.mxu0 %v2165
        %3510 = vmatmul.mubr.bf16.gmra.mrb[0].mxu0 %v2164
        %v3511 = vpop.f32.mrb[0].mxu0
        %v3512 = vadd.f32 %v3359, %v3511
        %v3513 = vpop.f32.mrb[0].mxu0
        %v3514 = vadd.f32 %v3361, %v3513
        %v3515 = vpop.f32.mrb[0].mxu0
        %v3516 = vadd.f32 %v3363, %v3515
        %v3517 = vpop.f32.mrb[0].mxu0
        %v3518 = vadd.f32 %v3365, %v3517
        %3519 = vmatprep.mubr.bf16.mxu0 %v2169
        %3520 = vmatmul.mubr.bf16.gmra.mrb[0].mxu0 %v2168
        %v3521 = vpop.f32.mrb[0].mxu0
        %v3522 = vadd.f32 %v3369, %v3521
        %v3523 = vpop.f32.mrb[0].mxu0
        %v3524 = vadd.f32 %v3371, %v3523
        %v3525 = vpop.f32.mrb[0].mxu0
        %v3526 = vadd.f32 %v3373, %v3525
        %v3527 = vpop.f32.mrb[0].mxu0
        %v3528 = vadd.f32 %v3375, %v3527
        %3529 = vmatprep.mubr.bf16.mxu0 %v2173
        %3530 = vmatmul.mubr.bf16.gmra.mrb[0].mxu0 %v2172
        %v3531 = vpop.f32.mrb[0].mxu0
        %v3532 = vadd.f32 %v3379, %v3531
        %v3533 = vpop.f32.mrb[0].mxu0
        %v3534 = vadd.f32 %v3381, %v3533
        %v3535 = vpop.f32.mrb[0].mxu0
        %v3536 = vadd.f32 %v3383, %v3535
        %v3537 = vpop.f32.mrb[0].mxu0
        %v3538 = vadd.f32 %v3385, %v3537
        %3539 = vmatprep.mubr.bf16.mxu0 %v2177
        %3540 = vmatmul.mubr.bf16.gmra.mrb[0].mxu0 %v2176
        %v3541 = vpop.f32.mrb[0].mxu0
        %v3542 = vadd.f32 %v3389, %v3541
        %v3543 = vpop.f32.mrb[0].mxu0
        %v3544 = vadd.f32 %v3391, %v3543
        %v3545 = vpop.f32.mrb[0].mxu0
        %v3546 = vadd.f32 %v3393, %v3545
        %v3547 = vpop.f32.mrb[0].mxu0
        %v3548 = vadd.f32 %v3395, %v3547
        %3549 = vmatprep.mubr.bf16.mxu0 %v2181
        %3550 = vmatmul.mubr.bf16.gmra.mrb[0].mxu0 %v2180
        %v3551 = vpop.f32.mrb[0].mxu0
        %v3552 = vadd.f32 %v3399, %v3551
        %v3553 = vpop.f32.mrb[0].mxu0
        %v3554 = vadd.f32 %v3401, %v3553
        %v3555 = vpop.f32.mrb[0].mxu0
        %v3556 = vadd.f32 %v3403, %v3555
        %v3557 = vpop.f32.mrb[0].mxu0
        %v3558 = vadd.f32 %v3405, %v3557
        %3559 = vmatprep.mubr.bf16.mxu0 %v2185
        %3560 = vmatmul.mubr.bf16.gmra.mrb[0].mxu0 %v2184
        %v3561 = vpop.f32.mrb[0].mxu0
        %v3562 = vadd.f32 %v3409, %v3561
        %v3563 = vpop.f32.mrb[0].mxu0
        %v3564 = vadd.f32 %v3411, %v3563
        %v3565 = vpop.f32.mrb[0].mxu0
        %v3566 = vadd.f32 %v3413, %v3565
        %v3567 = vpop.f32.mrb[0].mxu0
        %v3568 = vadd.f32 %v3415, %v3567
        %3569 = vmatprep.mubr.bf16.mxu0 %v2189
        %3570 = vmatmul.mubr.bf16.gmra.mrb[0].mxu0 %v2188
        %v3571 = vpop.f32.mrb[0].mxu0
        %v3572 = vadd.f32 %v3419, %v3571
        %v3573 = vpop.f32.mrb[0].mxu0
        %v3574 = vadd.f32 %v3421, %v3573
        %v3575 = vpop.f32.mrb[0].mxu0
        %v3576 = vadd.f32 %v3423, %v3575
        %v3577 = vpop.f32.mrb[0].mxu0
        %v3578 = vadd.f32 %v3425, %v3577
        %3579 = vmatprep.mubr.bf16.mxu0 %v2193
        %3580 = vmatmul.mubr.bf16.gmra.mrb[0].mxu0 %v2192
        %v3581 = vpop.f32.mrb[0].mxu0
        %v3582 = vadd.f32 %v3429, %v3581
        %v3583 = vpop.f32.mrb[0].mxu0
        %v3584 = vadd.f32 %v3431, %v3583
        %v3585 = vpop.f32.mrb[0].mxu0
        %v3586 = vadd.f32 %v3433, %v3585
        %v3587 = vpop.f32.mrb[0].mxu0
        %v3588 = vadd.f32 %v3435, %v3587
        %3589 = vmatprep.mubr.bf16.mxu0 %v2197
        %3590 = vmatmul.mubr.bf16.gmra.mrb[0].mxu0 %v2196
        %v3591 = vpop.f32.mrb[0].mxu0
        %v3592 = vadd.f32 %v3439, %v3591
        %v3593 = vpop.f32.mrb[0].mxu0
        %v3594 = vadd.f32 %v3441, %v3593
        %v3595 = vpop.f32.mrb[0].mxu0
        %v3596 = vadd.f32 %v3443, %v3595
        %v3597 = vpop.f32.mrb[0].mxu0
        %v3598 = vadd.f32 %v3445, %v3597
        %3599 = vdwg.mxu0
        %s3600 = scalar_lea.vmem [#allocation10], 1
        %v3601 = vld [vmem:[%s3600] ss:$4 sm:$0xf]
        %s3602 = scalar_lea.vmem [#allocation10], 2
        %v3603 = vld [vmem:[%s3602] ss:$4 sm:$0xf]
        %v3604 = vadd.f32 %v3176, %v3178
        %v3605 = vadd.f32 %v3604, %v3482
        %v3606 = vadd.f32 %v3605, %v3484
        %3607 = vadd.xlane.f32.xlu0 %v3606
        %v3608 = vpop.xlane.xlu0 %3607
        %v3609 = vadd.f32 %v3180, %v3182
        %v3610 = vadd.f32 %v3609, %v3486
        %v3611 = vadd.f32 %v3610, %v3488
        %3612 = vadd.xlane.f32.xlu0 %v3611
        %v3613 = vpop.xlane.xlu0 %3612
        %v3614 = vadd.f32 %v3186, %v3188
        %v3615 = vadd.f32 %v3614, %v3492
        %v3616 = vadd.f32 %v3615, %v3494
        %3617 = vadd.xlane.f32.xlu0 %v3616
        %v3618 = vpop.xlane.xlu0 %3617
        %v3619 = vadd.f32 %v3190, %v3192
        %v3620 = vadd.f32 %v3619, %v3496
        %v3621 = vadd.f32 %v3620, %v3498
        %3622 = vadd.xlane.f32.xlu0 %v3621
        %v3623 = vpop.xlane.xlu0 %3622
        %v3624 = vadd.f32 %v3196, %v3198
        %v3625 = vadd.f32 %v3624, %v3502
        %v3626 = vadd.f32 %v3625, %v3504
        %3627 = vadd.xlane.f32.xlu0 %v3626
        %v3628 = vpop.xlane.xlu0 %3627
        %v3629 = vadd.f32 %v3200, %v3202
        %v3630 = vadd.f32 %v3629, %v3506
        %v3631 = vadd.f32 %v3630, %v3508
        %3632 = vadd.xlane.f32.xlu0 %v3631
        %v3633 = vpop.xlane.xlu0 %3632
        %v3634 = vadd.f32 %v3206, %v3208
        %v3635 = vadd.f32 %v3634, %v3512
        %v3636 = vadd.f32 %v3635, %v3514
        %3637 = vadd.xlane.f32.xlu0 %v3636
        %v3638 = vpop.xlane.xlu0 %3637
        %v3639 = vadd.f32 %v3210, %v3212
        %v3640 = vadd.f32 %v3639, %v3516
        %v3641 = vadd.f32 %v3640, %v3518
        %3642 = vadd.xlane.f32.xlu0 %v3641
        %v3643 = vpop.xlane.xlu0 %3642
        %v3644 = vadd.f32 %v3216, %v3218
        %v3645 = vadd.f32 %v3644, %v3522
        %v3646 = vadd.f32 %v3645, %v3524
        %3647 = vadd.xlane.f32.xlu0 %v3646
        %v3648 = vpop.xlane.xlu0 %3647
        %v3649 = vadd.f32 %v3220, %v3222
        %v3650 = vadd.f32 %v3649, %v3526
        %v3651 = vadd.f32 %v3650, %v3528
        %3652 = vadd.xlane.f32.xlu0 %v3651
        %v3653 = vpop.xlane.xlu0 %3652
        %v3654 = vadd.f32 %v3226, %v3228
        %v3655 = vadd.f32 %v3654, %v3532
        %v3656 = vadd.f32 %v3655, %v3534
        %3657 = vadd.xlane.f32.xlu0 %v3656
        %v3658 = vpop.xlane.xlu0 %3657
        %v3659 = vadd.f32 %v3230, %v3232
        %v3660 = vadd.f32 %v3659, %v3536
        %v3661 = vadd.f32 %v3660, %v3538
        %3662 = vadd.xlane.f32.xlu0 %v3661
        %v3663 = vpop.xlane.xlu0 %3662
        %v3664 = vadd.f32 %v3236, %v3238
        %v3665 = vadd.f32 %v3664, %v3542
        %v3666 = vadd.f32 %v3665, %v3544
        %3667 = vadd.xlane.f32.xlu0 %v3666
        %v3668 = vpop.xlane.xlu0 %3667
        %v3669 = vadd.f32 %v3240, %v3242
        %v3670 = vadd.f32 %v3669, %v3546
        %v3671 = vadd.f32 %v3670, %v3548
        %3672 = vadd.xlane.f32.xlu0 %v3671
        %v3673 = vpop.xlane.xlu0 %3672
        %v3674 = vadd.f32 %v3246, %v3248
        %v3675 = vadd.f32 %v3674, %v3552
        %v3676 = vadd.f32 %v3675, %v3554
        %3677 = vadd.xlane.f32.xlu0 %v3676
        %v3678 = vpop.xlane.xlu0 %3677
        %v3679 = vadd.f32 %v3250, %v3252
        %v3680 = vadd.f32 %v3679, %v3556
        %v3681 = vadd.f32 %v3680, %v3558
        %3682 = vadd.xlane.f32.xlu0 %v3681
        %v3683 = vpop.xlane.xlu0 %3682
        %v3684 = vadd.f32 %v3256, %v3258
        %v3685 = vadd.f32 %v3684, %v3562
        %v3686 = vadd.f32 %v3685, %v3564
        %3687 = vadd.xlane.f32.xlu0 %v3686
        %v3688 = vpop.xlane.xlu0 %3687
        %v3689 = vadd.f32 %v3260, %v3262
        %v3690 = vadd.f32 %v3689, %v3566
        %v3691 = vadd.f32 %v3690, %v3568
        %3692 = vadd.xlane.f32.xlu0 %v3691
        %v3693 = vpop.xlane.xlu0 %3692
        %v3694 = vadd.f32 %v3266, %v3268
        %v3695 = vadd.f32 %v3694, %v3572
        %v3696 = vadd.f32 %v3695, %v3574
        %3697 = vadd.xlane.f32.xlu0 %v3696
        %v3698 = vpop.xlane.xlu0 %3697
        %v3699 = vadd.f32 %v3270, %v3272
        %v3700 = vadd.f32 %v3699, %v3576
        %v3701 = vadd.f32 %v3700, %v3578
        %3702 = vadd.xlane.f32.xlu0 %v3701
        %v3703 = vpop.xlane.xlu0 %3702
        %v3704 = vadd.f32 %v3276, %v3278
        %v3705 = vadd.f32 %v3704, %v3582
        %v3706 = vadd.f32 %v3705, %v3584
        %3707 = vadd.xlane.f32.xlu0 %v3706
        %v3708 = vpop.xlane.xlu0 %3707
        %v3709 = vadd.f32 %v3280, %v3282
        %v3710 = vadd.f32 %v3709, %v3586
        %v3711 = vadd.f32 %v3710, %v3588
        %3712 = vadd.xlane.f32.xlu0 %v3711
        %v3713 = vpop.xlane.xlu0 %3712
        %v3714 = vadd.f32 %v3286, %v3288
        %v3715 = vadd.f32 %v3714, %v3592
        %v3716 = vadd.f32 %v3715, %v3594
        %3717 = vadd.xlane.f32.xlu0 %v3716
        %v3718 = vpop.xlane.xlu0 %3717
        %v3719 = vadd.f32 %v3290, %v3292
        %v3720 = vadd.f32 %v3719, %v3596
        %v3721 = vadd.f32 %v3720, %v3598
        %3722 = vadd.xlane.f32.xlu0 %v3721
        %v3723 = vpop.xlane.xlu0 %3722
        %v3724 = vmul.f32 %v3608, %v1315
        %v3725 = vmul.f32 %v3613, %v1315
        %v3726 = vmul.f32 %v3618, %v1315
        %v3727 = vmul.f32 %v3623, %v1315
        %v3728 = vmul.f32 %v3628, %v1315
        %v3729 = vmul.f32 %v3633, %v1315
        %v3730 = vmul.f32 %v3638, %v1315
        %v3731 = vmul.f32 %v3643, %v1315
        %v3732 = vmul.f32 %v3648, %v1315
        %v3733 = vmul.f32 %v3653, %v1315
        %v3734 = vmul.f32 %v3658, %v1315
        %v3735 = vmul.f32 %v3663, %v1315
        %v3736 = vmul.f32 %v3668, %v1315
        %v3737 = vmul.f32 %v3673, %v1315
        %v3738 = vmul.f32 %v3678, %v1315
        %v3739 = vmul.f32 %v3683, %v1315
        %v3740 = vmul.f32 %v3688, %v1315
        %v3741 = vmul.f32 %v3693, %v1315
        %v3742 = vmul.f32 %v3698, %v1315
        %v3743 = vmul.f32 %v3703, %v1315
        %v3744 = vmul.f32 %v3708, %v1315
        %v3745 = vmul.f32 %v3713, %v1315
        %v3746 = vmul.f32 %v3718, %v1315
        %v3747 = vmul.f32 %v3723, %v1315
        %v3748 = vsub.f32 %v3176, %v3724
        %v3749 = vsub.f32 %v3178, %v3724
        %v3750 = vsub.f32 %v3482, %v3724
        %v3751 = vsub.f32 %v3484, %v3724
        %v3752 = vsub.f32 %v3180, %v3725
        %v3753 = vsub.f32 %v3182, %v3725
        %v3754 = vsub.f32 %v3486, %v3725
        %v3755 = vsub.f32 %v3488, %v3725
        %v3756 = vsub.f32 %v3186, %v3726
        %v3757 = vsub.f32 %v3188, %v3726
        %v3758 = vsub.f32 %v3492, %v3726
        %v3759 = vsub.f32 %v3494, %v3726
        %v3760 = vsub.f32 %v3190, %v3727
        %v3761 = vsub.f32 %v3192, %v3727
        %v3762 = vsub.f32 %v3496, %v3727
        %v3763 = vsub.f32 %v3498, %v3727
        %v3764 = vsub.f32 %v3196, %v3728
        %v3765 = vsub.f32 %v3198, %v3728
        %v3766 = vsub.f32 %v3502, %v3728
        %v3767 = vsub.f32 %v3504, %v3728
        %v3768 = vsub.f32 %v3200, %v3729
        %v3769 = vsub.f32 %v3202, %v3729
        %v3770 = vsub.f32 %v3506, %v3729
        %v3771 = vsub.f32 %v3508, %v3729
        %v3772 = vsub.f32 %v3206, %v3730
        %v3773 = vsub.f32 %v3208, %v3730
        %v3774 = vsub.f32 %v3512, %v3730
        %v3775 = vsub.f32 %v3514, %v3730
        %v3776 = vsub.f32 %v3210, %v3731
        %v3777 = vsub.f32 %v3212, %v3731
        %v3778 = vsub.f32 %v3516, %v3731
        %v3779 = vsub.f32 %v3518, %v3731
        %v3780 = vsub.f32 %v3216, %v3732
        %v3781 = vsub.f32 %v3218, %v3732
        %v3782 = vsub.f32 %v3522, %v3732
        %v3783 = vsub.f32 %v3524, %v3732
        %v3784 = vsub.f32 %v3220, %v3733
        %v3785 = vsub.f32 %v3222, %v3733
        %v3786 = vsub.f32 %v3526, %v3733
        %v3787 = vsub.f32 %v3528, %v3733
        %v3788 = vsub.f32 %v3226, %v3734
        %v3789 = vsub.f32 %v3228, %v3734
        %v3790 = vsub.f32 %v3532, %v3734
        %v3791 = vsub.f32 %v3534, %v3734
        %v3792 = vsub.f32 %v3230, %v3735
        %v3793 = vsub.f32 %v3232, %v3735
        %v3794 = vsub.f32 %v3536, %v3735
        %v3795 = vsub.f32 %v3538, %v3735
        %v3796 = vsub.f32 %v3236, %v3736
        %v3797 = vsub.f32 %v3238, %v3736
        %v3798 = vsub.f32 %v3542, %v3736
        %v3799 = vsub.f32 %v3544, %v3736
        %v3800 = vsub.f32 %v3240, %v3737
        %v3801 = vsub.f32 %v3242, %v3737
        %v3802 = vsub.f32 %v3546, %v3737
        %v3803 = vsub.f32 %v3548, %v3737
        %v3804 = vsub.f32 %v3246, %v3738
        %v3805 = vsub.f32 %v3248, %v3738
        %v3806 = vsub.f32 %v3552, %v3738
        %v3807 = vsub.f32 %v3554, %v3738
        %v3808 = vsub.f32 %v3250, %v3739
        %v3809 = vsub.f32 %v3252, %v3739
        %v3810 = vsub.f32 %v3556, %v3739
        %v3811 = vsub.f32 %v3558, %v3739
        %v3812 = vsub.f32 %v3256, %v3740
        %v3813 = vsub.f32 %v3258, %v3740
        %v3814 = vsub.f32 %v3562, %v3740
        %v3815 = vsub.f32 %v3564, %v3740
        %v3816 = vsub.f32 %v3260, %v3741
        %v3817 = vsub.f32 %v3262, %v3741
        %v3818 = vsub.f32 %v3566, %v3741
        %v3819 = vsub.f32 %v3568, %v3741
        %v3820 = vsub.f32 %v3266, %v3742
        %v3821 = vsub.f32 %v3268, %v3742
        %v3822 = vsub.f32 %v3572, %v3742
        %v3823 = vsub.f32 %v3574, %v3742
        %v3824 = vsub.f32 %v3270, %v3743
        %v3825 = vsub.f32 %v3272, %v3743
        %v3826 = vsub.f32 %v3576, %v3743
        %v3827 = vsub.f32 %v3578, %v3743
        %v3828 = vsub.f32 %v3276, %v3744
        %v3829 = vsub.f32 %v3278, %v3744
        %v3830 = vsub.f32 %v3582, %v3744
        %v3831 = vsub.f32 %v3584, %v3744
        %v3832 = vsub.f32 %v3280, %v3745
        %v3833 = vsub.f32 %v3282, %v3745
        %v3834 = vsub.f32 %v3586, %v3745
        %v3835 = vsub.f32 %v3588, %v3745
        %v3836 = vsub.f32 %v3286, %v3746
        %v3837 = vsub.f32 %v3288, %v3746
        %v3838 = vsub.f32 %v3592, %v3746
        %v3839 = vsub.f32 %v3594, %v3746
        %v3840 = vsub.f32 %v3290, %v3747
        %v3841 = vsub.f32 %v3292, %v3747
        %v3842 = vsub.f32 %v3596, %v3747
        %v3843 = vsub.f32 %v3598, %v3747
        %v3844 = vmul.f32 %v3748, %v3748
        %v3845 = vmul.f32 %v3749, %v3749
        %v3846 = vmul.f32 %v3750, %v3750
        %v3847 = vmul.f32 %v3751, %v3751
        %v3848 = vmul.f32 %v3752, %v3752
        %v3849 = vmul.f32 %v3753, %v3753
        %v3850 = vmul.f32 %v3754, %v3754
        %v3851 = vmul.f32 %v3755, %v3755
        %v3852 = vmul.f32 %v3756, %v3756
        %v3853 = vmul.f32 %v3757, %v3757
        %v3854 = vmul.f32 %v3758, %v3758
        %v3855 = vmul.f32 %v3759, %v3759
        %v3856 = vmul.f32 %v3760, %v3760
        %v3857 = vmul.f32 %v3761, %v3761
        %v3858 = vmul.f32 %v3762, %v3762
        %v3859 = vmul.f32 %v3763, %v3763
        %v3860 = vmul.f32 %v3764, %v3764
        %v3861 = vmul.f32 %v3765, %v3765
        %v3862 = vmul.f32 %v3766, %v3766
        %v3863 = vmul.f32 %v3767, %v3767
        %v3864 = vmul.f32 %v3768, %v3768
        %v3865 = vmul.f32 %v3769, %v3769
        %v3866 = vmul.f32 %v3770, %v3770
        %v3867 = vmul.f32 %v3771, %v3771
        %v3868 = vmul.f32 %v3772, %v3772
        %v3869 = vmul.f32 %v3773, %v3773
        %v3870 = vmul.f32 %v3774, %v3774
        %v3871 = vmul.f32 %v3775, %v3775
        %v3872 = vmul.f32 %v3776, %v3776
        %v3873 = vmul.f32 %v3777, %v3777
        %v3874 = vmul.f32 %v3778, %v3778
        %v3875 = vmul.f32 %v3779, %v3779
        %v3876 = vmul.f32 %v3780, %v3780
        %v3877 = vmul.f32 %v3781, %v3781
        %v3878 = vmul.f32 %v3782, %v3782
        %v3879 = vmul.f32 %v3783, %v3783
        %v3880 = vmul.f32 %v3784, %v3784
        %v3881 = vmul.f32 %v3785, %v3785
        %v3882 = vmul.f32 %v3786, %v3786
        %v3883 = vmul.f32 %v3787, %v3787
        %v3884 = vmul.f32 %v3788, %v3788
        %v3885 = vmul.f32 %v3789, %v3789
        %v3886 = vmul.f32 %v3790, %v3790
        %v3887 = vmul.f32 %v3791, %v3791
        %v3888 = vmul.f32 %v3792, %v3792
        %v3889 = vmul.f32 %v3793, %v3793
        %v3890 = vmul.f32 %v3794, %v3794
        %v3891 = vmul.f32 %v3795, %v3795
        %v3892 = vmul.f32 %v3796, %v3796
        %v3893 = vmul.f32 %v3797, %v3797
        %v3894 = vmul.f32 %v3798, %v3798
        %v3895 = vmul.f32 %v3799, %v3799
        %v3896 = vmul.f32 %v3800, %v3800
        %v3897 = vmul.f32 %v3801, %v3801
        %v3898 = vmul.f32 %v3802, %v3802
        %v3899 = vmul.f32 %v3803, %v3803
        %v3900 = vmul.f32 %v3804, %v3804
        %v3901 = vmul.f32 %v3805, %v3805
        %v3902 = vmul.f32 %v3806, %v3806
        %v3903 = vmul.f32 %v3807, %v3807
        %v3904 = vmul.f32 %v3808, %v3808
        %v3905 = vmul.f32 %v3809, %v3809
        %v3906 = vmul.f32 %v3810, %v3810
        %v3907 = vmul.f32 %v3811, %v3811
        %v3908 = vmul.f32 %v3812, %v3812
        %v3909 = vmul.f32 %v3813, %v3813
        %v3910 = vmul.f32 %v3814, %v3814
        %v3911 = vmul.f32 %v3815, %v3815
        %v3912 = vmul.f32 %v3816, %v3816
        %v3913 = vmul.f32 %v3817, %v3817
        %v3914 = vmul.f32 %v3818, %v3818
        %v3915 = vmul.f32 %v3819, %v3819
        %v3916 = vmul.f32 %v3820, %v3820
        %v3917 = vmul.f32 %v3821, %v3821
        %v3918 = vmul.f32 %v3822, %v3822
        %v3919 = vmul.f32 %v3823, %v3823
        %v3920 = vmul.f32 %v3824, %v3824
        %v3921 = vmul.f32 %v3825, %v3825
        %v3922 = vmul.f32 %v3826, %v3826
        %v3923 = vmul.f32 %v3827, %v3827
        %v3924 = vmul.f32 %v3828, %v3828
        %v3925 = vmul.f32 %v3829, %v3829
        %v3926 = vmul.f32 %v3830, %v3830
        %v3927 = vmul.f32 %v3831, %v3831
        %v3928 = vmul.f32 %v3832, %v3832
        %v3929 = vmul.f32 %v3833, %v3833
        %v3930 = vmul.f32 %v3834, %v3834
        %v3931 = vmul.f32 %v3835, %v3835
        %v3932 = vmul.f32 %v3836, %v3836
        %v3933 = vmul.f32 %v3837, %v3837
        %v3934 = vmul.f32 %v3838, %v3838
        %v3935 = vmul.f32 %v3839, %v3839
        %v3936 = vmul.f32 %v3840, %v3840
        %v3937 = vmul.f32 %v3841, %v3841
        %v3938 = vmul.f32 %v3842, %v3842
        %v3939 = vmul.f32 %v3843, %v3843
        %v3940 = vadd.f32 %v3844, %v3845
        %v3941 = vadd.f32 %v3940, %v3846
        %v3942 = vadd.f32 %v3941, %v3847
        %3943 = vadd.xlane.f32.xlu0 %v3942
        %v3944 = vpop.xlane.xlu0 %3943
        %v3945 = vadd.f32 %v3848, %v3849
        %v3946 = vadd.f32 %v3945, %v3850
        %v3947 = vadd.f32 %v3946, %v3851
        %3948 = vadd.xlane.f32.xlu0 %v3947
        %v3949 = vpop.xlane.xlu0 %3948
        %v3950 = vadd.f32 %v3852, %v3853
        %v3951 = vadd.f32 %v3950, %v3854
        %v3952 = vadd.f32 %v3951, %v3855
        %3953 = vadd.xlane.f32.xlu0 %v3952
        %v3954 = vpop.xlane.xlu0 %3953
        %v3955 = vadd.f32 %v3856, %v3857
        %v3956 = vadd.f32 %v3955, %v3858
        %v3957 = vadd.f32 %v3956, %v3859
        %3958 = vadd.xlane.f32.xlu0 %v3957
        %v3959 = vpop.xlane.xlu0 %3958
        %v3960 = vadd.f32 %v3860, %v3861
        %v3961 = vadd.f32 %v3960, %v3862
        %v3962 = vadd.f32 %v3961, %v3863
        %3963 = vadd.xlane.f32.xlu0 %v3962
        %v3964 = vpop.xlane.xlu0 %3963
        %v3965 = vadd.f32 %v3864, %v3865
        %v3966 = vadd.f32 %v3965, %v3866
        %v3967 = vadd.f32 %v3966, %v3867
        %3968 = vadd.xlane.f32.xlu0 %v3967
        %v3969 = vpop.xlane.xlu0 %3968
        %v3970 = vadd.f32 %v3868, %v3869
        %v3971 = vadd.f32 %v3970, %v3870
        %v3972 = vadd.f32 %v3971, %v3871
        %3973 = vadd.xlane.f32.xlu0 %v3972
        %v3974 = vpop.xlane.xlu0 %3973
        %v3975 = vadd.f32 %v3872, %v3873
        %v3976 = vadd.f32 %v3975, %v3874
        %v3977 = vadd.f32 %v3976, %v3875
        %3978 = vadd.xlane.f32.xlu0 %v3977
        %v3979 = vpop.xlane.xlu0 %3978
        %v3980 = vadd.f32 %v3876, %v3877
        %v3981 = vadd.f32 %v3980, %v3878
        %v3982 = vadd.f32 %v3981, %v3879
        %3983 = vadd.xlane.f32.xlu0 %v3982
        %v3984 = vpop.xlane.xlu0 %3983
        %v3985 = vadd.f32 %v3880, %v3881
        %v3986 = vadd.f32 %v3985, %v3882
        %v3987 = vadd.f32 %v3986, %v3883
        %3988 = vadd.xlane.f32.xlu0 %v3987
        %v3989 = vpop.xlane.xlu0 %3988
        %v3990 = vadd.f32 %v3884, %v3885
        %v3991 = vadd.f32 %v3990, %v3886
        %v3992 = vadd.f32 %v3991, %v3887
        %3993 = vadd.xlane.f32.xlu0 %v3992
        %v3994 = vpop.xlane.xlu0 %3993
        %v3995 = vadd.f32 %v3888, %v3889
        %v3996 = vadd.f32 %v3995, %v3890
        %v3997 = vadd.f32 %v3996, %v3891
        %3998 = vadd.xlane.f32.xlu0 %v3997
        %v3999 = vpop.xlane.xlu0 %3998
        %v4000 = vadd.f32 %v3892, %v3893
        %v4001 = vadd.f32 %v4000, %v3894
        %v4002 = vadd.f32 %v4001, %v3895
        %4003 = vadd.xlane.f32.xlu0 %v4002
        %v4004 = vpop.xlane.xlu0 %4003
        %v4005 = vadd.f32 %v3896, %v3897
        %v4006 = vadd.f32 %v4005, %v3898
        %v4007 = vadd.f32 %v4006, %v3899
        %4008 = vadd.xlane.f32.xlu0 %v4007
        %v4009 = vpop.xlane.xlu0 %4008
        %v4010 = vadd.f32 %v3900, %v3901
        %v4011 = vadd.f32 %v4010, %v3902
        %v4012 = vadd.f32 %v4011, %v3903
        %4013 = vadd.xlane.f32.xlu0 %v4012
        %v4014 = vpop.xlane.xlu0 %4013
        %v4015 = vadd.f32 %v3904, %v3905
        %v4016 = vadd.f32 %v4015, %v3906
        %v4017 = vadd.f32 %v4016, %v3907
        %4018 = vadd.xlane.f32.xlu0 %v4017
        %v4019 = vpop.xlane.xlu0 %4018
        %v4020 = vadd.f32 %v3908, %v3909
        %v4021 = vadd.f32 %v4020, %v3910
        %v4022 = vadd.f32 %v4021, %v3911
        %4023 = vadd.xlane.f32.xlu0 %v4022
        %v4024 = vpop.xlane.xlu0 %4023
        %v4025 = vadd.f32 %v3912, %v3913
        %v4026 = vadd.f32 %v4025, %v3914
        %v4027 = vadd.f32 %v4026, %v3915
        %4028 = vadd.xlane.f32.xlu0 %v4027
        %v4029 = vpop.xlane.xlu0 %4028
        %v4030 = vadd.f32 %v3916, %v3917
        %v4031 = vadd.f32 %v4030, %v3918
        %v4032 = vadd.f32 %v4031, %v3919
        %4033 = vadd.xlane.f32.xlu0 %v4032
        %v4034 = vpop.xlane.xlu0 %4033
        %v4035 = vadd.f32 %v3920, %v3921
        %v4036 = vadd.f32 %v4035, %v3922
        %v4037 = vadd.f32 %v4036, %v3923
        %4038 = vadd.xlane.f32.xlu0 %v4037
        %v4039 = vpop.xlane.xlu0 %4038
        %v4040 = vadd.f32 %v3924, %v3925
        %v4041 = vadd.f32 %v4040, %v3926
        %v4042 = vadd.f32 %v4041, %v3927
        %4043 = vadd.xlane.f32.xlu0 %v4042
        %v4044 = vpop.xlane.xlu0 %4043
        %v4045 = vadd.f32 %v3928, %v3929
        %v4046 = vadd.f32 %v4045, %v3930
        %v4047 = vadd.f32 %v4046, %v3931
        %4048 = vadd.xlane.f32.xlu0 %v4047
        %v4049 = vpop.xlane.xlu0 %4048
        %v4050 = vadd.f32 %v3932, %v3933
        %v4051 = vadd.f32 %v4050, %v3934
        %v4052 = vadd.f32 %v4051, %v3935
        %4053 = vadd.xlane.f32.xlu0 %v4052
        %v4054 = vpop.xlane.xlu0 %4053
        %v4055 = vadd.f32 %v3936, %v3937
        %v4056 = vadd.f32 %v4055, %v3938
        %v4057 = vadd.f32 %v4056, %v3939
        %4058 = vadd.xlane.f32.xlu0 %v4057
        %v4059 = vpop.xlane.xlu0 %4058
        %v4060 = vmul.f32 %v3944, %v1315
        %v4061 = vmul.f32 %v3949, %v1315
        %v4062 = vmul.f32 %v3954, %v1315
        %v4063 = vmul.f32 %v3959, %v1315
        %v4064 = vmul.f32 %v3964, %v1315
        %v4065 = vmul.f32 %v3969, %v1315
        %v4066 = vmul.f32 %v3974, %v1315
        %v4067 = vmul.f32 %v3979, %v1315
        %v4068 = vmul.f32 %v3984, %v1315
        %v4069 = vmul.f32 %v3989, %v1315
        %v4070 = vmul.f32 %v3994, %v1315
        %v4071 = vmul.f32 %v3999, %v1315
        %v4072 = vmul.f32 %v4004, %v1315
        %v4073 = vmul.f32 %v4009, %v1315
        %v4074 = vmul.f32 %v4014, %v1315
        %v4075 = vmul.f32 %v4019, %v1315
        %v4076 = vmul.f32 %v4024, %v1315
        %v4077 = vmul.f32 %v4029, %v1315
        %v4078 = vmul.f32 %v4034, %v1315
        %v4079 = vmul.f32 %v4039, %v1315
        %v4080 = vmul.f32 %v4044, %v1315
        %v4081 = vmul.f32 %v4049, %v1315
        %v4082 = vmul.f32 %v4054, %v1315
        %v4083 = vmul.f32 %v4059, %v1315
        %v4084 = vadd.f32 %v4060, 1e-05
        %v4085 = vadd.f32 %v4061, 1e-05
        %v4086 = vadd.f32 %v4062, 1e-05
        %v4087 = vadd.f32 %v4063, 1e-05
        %v4088 = vadd.f32 %v4064, 1e-05
        %v4089 = vadd.f32 %v4065, 1e-05
        %v4090 = vadd.f32 %v4066, 1e-05
        %v4091 = vadd.f32 %v4067, 1e-05
        %v4092 = vadd.f32 %v4068, 1e-05
        %v4093 = vadd.f32 %v4069, 1e-05
        %v4094 = vadd.f32 %v4070, 1e-05
        %v4095 = vadd.f32 %v4071, 1e-05
        %v4096 = vadd.f32 %v4072, 1e-05
        %v4097 = vadd.f32 %v4073, 1e-05
        %v4098 = vadd.f32 %v4074, 1e-05
        %v4099 = vadd.f32 %v4075, 1e-05
        %v4100 = vadd.f32 %v4076, 1e-05
        %v4101 = vadd.f32 %v4077, 1e-05
        %v4102 = vadd.f32 %v4078, 1e-05
        %v4103 = vadd.f32 %v4079, 1e-05
        %v4104 = vadd.f32 %v4080, 1e-05
        %v4105 = vadd.f32 %v4081, 1e-05
        %v4106 = vadd.f32 %v4082, 1e-05
        %v4107 = vadd.f32 %v4083, 1e-05
        %v4108 = vrsqrt.pop %v4084
        %v4109 = vrsqrt.pop %v4085
        %v4110 = vrsqrt.pop %v4086
        %v4111 = vrsqrt.pop %v4087
        %v4112 = vrsqrt.pop %v4088
        %v4113 = vrsqrt.pop %v4089
        %v4114 = vrsqrt.pop %v4090
        %v4115 = vrsqrt.pop %v4091
        %v4116 = vrsqrt.pop %v4092
        %v4117 = vrsqrt.pop %v4093
        %v4118 = vrsqrt.pop %v4094
        %v4119 = vrsqrt.pop %v4095
        %v4120 = vrsqrt.pop %v4096
        %v4121 = vrsqrt.pop %v4097
        %v4122 = vrsqrt.pop %v4098
        %v4123 = vrsqrt.pop %v4099
        %v4124 = vrsqrt.pop %v4100
        %v4125 = vrsqrt.pop %v4101
        %v4126 = vrsqrt.pop %v4102
        %v4127 = vrsqrt.pop %v4103
        %v4128 = vrsqrt.pop %v4104
        %v4129 = vrsqrt.pop %v4105
        %v4130 = vrsqrt.pop %v4106
        %v4131 = vrsqrt.pop %v4107
        %v4132 = vmul.f32 %v3748, %v4108
        %v4133 = vmul.f32 %v3749, %v4108
        %v4134 = vmul.f32 %v3750, %v4108
        %v4135 = vmul.f32 %v3751, %v4108
        %v4136 = vmul.f32 %v3752, %v4109
        %v4137 = vmul.f32 %v3753, %v4109
        %v4138 = vmul.f32 %v3754, %v4109
        %v4139 = vmul.f32 %v3755, %v4109
        %v4140 = vmul.f32 %v3756, %v4110
        %v4141 = vmul.f32 %v3757, %v4110
        %v4142 = vmul.f32 %v3758, %v4110
        %v4143 = vmul.f32 %v3759, %v4110
        %v4144 = vmul.f32 %v3760, %v4111
        %v4145 = vmul.f32 %v3761, %v4111
        %v4146 = vmul.f32 %v3762, %v4111
        %v4147 = vmul.f32 %v3763, %v4111
        %v4148 = vmul.f32 %v3764, %v4112
        %v4149 = vmul.f32 %v3765, %v4112
        %v4150 = vmul.f32 %v3766, %v4112
        %v4151 = vmul.f32 %v3767, %v4112
        %v4152 = vmul.f32 %v3768, %v4113
        %v4153 = vmul.f32 %v3769, %v4113
        %v4154 = vmul.f32 %v3770, %v4113
        %v4155 = vmul.f32 %v3771, %v4113
        %v4156 = vmul.f32 %v3772, %v4114
        %v4157 = vmul.f32 %v3773, %v4114
        %v4158 = vmul.f32 %v3774, %v4114
        %v4159 = vmul.f32 %v3775, %v4114
        %v4160 = vmul.f32 %v3776, %v4115
        %v4161 = vmul.f32 %v3777, %v4115
        %v4162 = vmul.f32 %v3778, %v4115
        %v4163 = vmul.f32 %v3779, %v4115
        %v4164 = vmul.f32 %v3780, %v4116
        %v4165 = vmul.f32 %v3781, %v4116
        %v4166 = vmul.f32 %v3782, %v4116
        %v4167 = vmul.f32 %v3783, %v4116
        %v4168 = vmul.f32 %v3784, %v4117
        %v4169 = vmul.f32 %v3785, %v4117
        %v4170 = vmul.f32 %v3786, %v4117
        %v4171 = vmul.f32 %v3787, %v4117
        %v4172 = vmul.f32 %v3788, %v4118
        %v4173 = vmul.f32 %v3789, %v4118
        %v4174 = vmul.f32 %v3790, %v4118
        %v4175 = vmul.f32 %v3791, %v4118
        %v4176 = vmul.f32 %v3792, %v4119
        %v4177 = vmul.f32 %v3793, %v4119
        %v4178 = vmul.f32 %v3794, %v4119
        %v4179 = vmul.f32 %v3795, %v4119
        %v4180 = vmul.f32 %v3796, %v4120
        %v4181 = vmul.f32 %v3797, %v4120
        %v4182 = vmul.f32 %v3798, %v4120
        %v4183 = vmul.f32 %v3799, %v4120
        %v4184 = vmul.f32 %v3800, %v4121
        %v4185 = vmul.f32 %v3801, %v4121
        %v4186 = vmul.f32 %v3802, %v4121
        %v4187 = vmul.f32 %v3803, %v4121
        %v4188 = vmul.f32 %v3804, %v4122
        %v4189 = vmul.f32 %v3805, %v4122
        %v4190 = vmul.f32 %v3806, %v4122
        %v4191 = vmul.f32 %v3807, %v4122
        %v4192 = vmul.f32 %v3808, %v4123
        %v4193 = vmul.f32 %v3809, %v4123
        %v4194 = vmul.f32 %v3810, %v4123
        %v4195 = vmul.f32 %v3811, %v4123
        %v4196 = vmul.f32 %v3812, %v4124
        %v4197 = vmul.f32 %v3813, %v4124
        %v4198 = vmul.f32 %v3814, %v4124
        %v4199 = vmul.f32 %v3815, %v4124
        %v4200 = vmul.f32 %v3816, %v4125
        %v4201 = vmul.f32 %v3817, %v4125
        %v4202 = vmul.f32 %v3818, %v4125
        %v4203 = vmul.f32 %v3819, %v4125
        %v4204 = vmul.f32 %v3820, %v4126
        %v4205 = vmul.f32 %v3821, %v4126
        %v4206 = vmul.f32 %v3822, %v4126
        %v4207 = vmul.f32 %v3823, %v4126
        %v4208 = vmul.f32 %v3824, %v4127
        %v4209 = vmul.f32 %v3825, %v4127
        %v4210 = vmul.f32 %v3826, %v4127
        %v4211 = vmul.f32 %v3827, %v4127
        %v4212 = vmul.f32 %v3828, %v4128
        %v4213 = vmul.f32 %v3829, %v4128
        %v4214 = vmul.f32 %v3830, %v4128
        %v4215 = vmul.f32 %v3831, %v4128
        %v4216 = vmul.f32 %v3832, %v4129
        %v4217 = vmul.f32 %v3833, %v4129
        %v4218 = vmul.f32 %v3834, %v4129
        %v4219 = vmul.f32 %v3835, %v4129
        %v4220 = vmul.f32 %v3836, %v4130
        %v4221 = vmul.f32 %v3837, %v4130
        %v4222 = vmul.f32 %v3838, %v4130
        %v4223 = vmul.f32 %v3839, %v4130
        %v4224 = vmul.f32 %v3840, %v4131
        %v4225 = vmul.f32 %v3841, %v4131
        %v4226 = vmul.f32 %v3842, %v4131
        %v4227 = vmul.f32 %v3843, %v4131
        %v4229 = vlaneseq
        %v4230 = vshrl.u32 %v4229, 7
        %v4231 = vsub.s32 0, %v4230
        %v4232 = vrot.slane %v3601, %v4231
        %v4233 = vlaneseq
        %v4234 = vshrl.u32 %v4233, 7
        %v4235 = vsub.s32 1, %v4234
        %v4236 = vrot.slane %v3601, %v4235
        %v4237 = vlaneseq
        %v4238 = vshrl.u32 %v4237, 7
        %v4239 = vsub.s32 2, %v4238
        %v4240 = vrot.slane %v3601, %v4239
        %v4241 = vlaneseq
        %v4242 = vshrl.u32 %v4241, 7
        %v4243 = vsub.s32 3, %v4242
        %v4244 = vrot.slane %v3601, %v4243
        %v4249 = vmul.f32 %v4132, %v4232
        %v4250 = vmul.f32 %v4133, %v4236
        %v4251 = vmul.f32 %v4134, %v4240
        %v4252 = vmul.f32 %v4135, %v4244
        %v4253 = vmul.f32 %v4136, %v4232
        %v4254 = vmul.f32 %v4137, %v4236
        %v4255 = vmul.f32 %v4138, %v4240
        %v4256 = vmul.f32 %v4139, %v4244
        %v4257 = vmul.f32 %v4140, %v4232
        %v4258 = vmul.f32 %v4141, %v4236
        %v4259 = vmul.f32 %v4142, %v4240
        %v4260 = vmul.f32 %v4143, %v4244
        %v4261 = vmul.f32 %v4144, %v4232
        %v4262 = vmul.f32 %v4145, %v4236
        %v4263 = vmul.f32 %v4146, %v4240
        %v4264 = vmul.f32 %v4147, %v4244
        %v4265 = vmul.f32 %v4148, %v4232
        %v4266 = vmul.f32 %v4149, %v4236
        %v4267 = vmul.f32 %v4150, %v4240
        %v4268 = vmul.f32 %v4151, %v4244
        %v4269 = vmul.f32 %v4152, %v4232
        %v4270 = vmul.f32 %v4153, %v4236
        %v4271 = vmul.f32 %v4154, %v4240
        %v4272 = vmul.f32 %v4155, %v4244
        %v4273 = vmul.f32 %v4156, %v4232
        %v4274 = vmul.f32 %v4157, %v4236
        %v4275 = vmul.f32 %v4158, %v4240
        %v4276 = vmul.f32 %v4159, %v4244
        %v4277 = vmul.f32 %v4160, %v4232
        %v4278 = vmul.f32 %v4161, %v4236
        %v4279 = vmul.f32 %v4162, %v4240
        %v4280 = vmul.f32 %v4163, %v4244
        %v4281 = vmul.f32 %v4164, %v4232
        %v4282 = vmul.f32 %v4165, %v4236
        %v4283 = vmul.f32 %v4166, %v4240
        %v4284 = vmul.f32 %v4167, %v4244
        %v4285 = vmul.f32 %v4168, %v4232
        %v4286 = vmul.f32 %v4169, %v4236
        %v4287 = vmul.f32 %v4170, %v4240
        %v4288 = vmul.f32 %v4171, %v4244
        %v4289 = vmul.f32 %v4172, %v4232
        %v4290 = vmul.f32 %v4173, %v4236
        %v4291 = vmul.f32 %v4174, %v4240
        %v4292 = vmul.f32 %v4175, %v4244
        %v4293 = vmul.f32 %v4176, %v4232
        %v4294 = vmul.f32 %v4177, %v4236
        %v4295 = vmul.f32 %v4178, %v4240
        %v4296 = vmul.f32 %v4179, %v4244
        %v4297 = vmul.f32 %v4180, %v4232
        %v4298 = vmul.f32 %v4181, %v4236
        %v4299 = vmul.f32 %v4182, %v4240
        %v4300 = vmul.f32 %v4183, %v4244
        %v4301 = vmul.f32 %v4184, %v4232
        %v4302 = vmul.f32 %v4185, %v4236
        %v4303 = vmul.f32 %v4186, %v4240
        %v4304 = vmul.f32 %v4187, %v4244
        %v4305 = vmul.f32 %v4188, %v4232
        %v4306 = vmul.f32 %v4189, %v4236
        %v4307 = vmul.f32 %v4190, %v4240
        %v4308 = vmul.f32 %v4191, %v4244
        %v4309 = vmul.f32 %v4192, %v4232
        %v4310 = vmul.f32 %v4193, %v4236
        %v4311 = vmul.f32 %v4194, %v4240
        %v4312 = vmul.f32 %v4195, %v4244
        %v4313 = vmul.f32 %v4196, %v4232
        %v4314 = vmul.f32 %v4197, %v4236
        %v4315 = vmul.f32 %v4198, %v4240
        %v4316 = vmul.f32 %v4199, %v4244
        %v4317 = vmul.f32 %v4200, %v4232
        %v4318 = vmul.f32 %v4201, %v4236
        %v4319 = vmul.f32 %v4202, %v4240
        %v4320 = vmul.f32 %v4203, %v4244
        %v4321 = vmul.f32 %v4204, %v4232
        %v4322 = vmul.f32 %v4205, %v4236
        %v4323 = vmul.f32 %v4206, %v4240
        %v4324 = vmul.f32 %v4207, %v4244
        %v4325 = vmul.f32 %v4208, %v4232
        %v4326 = vmul.f32 %v4209, %v4236
        %v4327 = vmul.f32 %v4210, %v4240
        %v4328 = vmul.f32 %v4211, %v4244
        %v4329 = vmul.f32 %v4212, %v4232
        %v4330 = vmul.f32 %v4213, %v4236
        %v4331 = vmul.f32 %v4214, %v4240
        %v4332 = vmul.f32 %v4215, %v4244
        %v4333 = vmul.f32 %v4216, %v4232
        %v4334 = vmul.f32 %v4217, %v4236
        %v4335 = vmul.f32 %v4218, %v4240
        %v4336 = vmul.f32 %v4219, %v4244
        %v4337 = vmul.f32 %v4220, %v4232
        %v4338 = vmul.f32 %v4221, %v4236
        %v4339 = vmul.f32 %v4222, %v4240
        %v4340 = vmul.f32 %v4223, %v4244
        %v4341 = vmul.f32 %v4224, %v4232
        %v4342 = vmul.f32 %v4225, %v4236
        %v4343 = vmul.f32 %v4226, %v4240
        %v4344 = vmul.f32 %v4227, %v4244
        %v4346 = vlaneseq
        %v4347 = vshrl.u32 %v4346, 7
        %v4348 = vsub.s32 0, %v4347
        %v4349 = vrot.slane %v3603, %v4348
        %v4350 = vlaneseq
        %v4351 = vshrl.u32 %v4350, 7
        %v4352 = vsub.s32 1, %v4351
        %v4353 = vrot.slane %v3603, %v4352
        %v4354 = vlaneseq
        %v4355 = vshrl.u32 %v4354, 7
        %v4356 = vsub.s32 2, %v4355
        %v4357 = vrot.slane %v3603, %v4356
        %v4358 = vlaneseq
        %v4359 = vshrl.u32 %v4358, 7
        %v4360 = vsub.s32 3, %v4359
        %v4361 = vrot.slane %v3603, %v4360
        %v4366 = vadd.f32 %v4249, %v4349
        %v4367 = vadd.f32 %v4250, %v4353
        %v4368 = vadd.f32 %v4251, %v4357
        %v4369 = vadd.f32 %v4252, %v4361
        %v4370 = vadd.f32 %v4253, %v4349
        %v4371 = vadd.f32 %v4254, %v4353
        %v4372 = vadd.f32 %v4255, %v4357
        %v4373 = vadd.f32 %v4256, %v4361
        %v4374 = vadd.f32 %v4257, %v4349
        %v4375 = vadd.f32 %v4258, %v4353
        %v4376 = vadd.f32 %v4259, %v4357
        %v4377 = vadd.f32 %v4260, %v4361
        %v4378 = vadd.f32 %v4261, %v4349
        %v4379 = vadd.f32 %v4262, %v4353
        %v4380 = vadd.f32 %v4263, %v4357
        %v4381 = vadd.f32 %v4264, %v4361
        %v4382 = vadd.f32 %v4265, %v4349
        %v4383 = vadd.f32 %v4266, %v4353
        %v4384 = vadd.f32 %v4267, %v4357
        %v4385 = vadd.f32 %v4268, %v4361
        %v4386 = vadd.f32 %v4269, %v4349
        %v4387 = vadd.f32 %v4270, %v4353
        %v4388 = vadd.f32 %v4271, %v4357
        %v4389 = vadd.f32 %v4272, %v4361
        %v4390 = vadd.f32 %v4273, %v4349
        %v4391 = vadd.f32 %v4274, %v4353
        %v4392 = vadd.f32 %v4275, %v4357
        %v4393 = vadd.f32 %v4276, %v4361
        %v4394 = vadd.f32 %v4277, %v4349
        %v4395 = vadd.f32 %v4278, %v4353
        %v4396 = vadd.f32 %v4279, %v4357
        %v4397 = vadd.f32 %v4280, %v4361
        %v4398 = vadd.f32 %v4281, %v4349
        %v4399 = vadd.f32 %v4282, %v4353
        %v4400 = vadd.f32 %v4283, %v4357
        %v4401 = vadd.f32 %v4284, %v4361
        %v4402 = vadd.f32 %v4285, %v4349
        %v4403 = vadd.f32 %v4286, %v4353
        %v4404 = vadd.f32 %v4287, %v4357
        %v4405 = vadd.f32 %v4288, %v4361
        %v4406 = vadd.f32 %v4289, %v4349
        %v4407 = vadd.f32 %v4290, %v4353
        %v4408 = vadd.f32 %v4291, %v4357
        %v4409 = vadd.f32 %v4292, %v4361
        %v4410 = vadd.f32 %v4293, %v4349
        %v4411 = vadd.f32 %v4294, %v4353
        %v4412 = vadd.f32 %v4295, %v4357
        %v4413 = vadd.f32 %v4296, %v4361
        %v4414 = vadd.f32 %v4297, %v4349
        %v4415 = vadd.f32 %v4298, %v4353
        %v4416 = vadd.f32 %v4299, %v4357
        %v4417 = vadd.f32 %v4300, %v4361
        %v4418 = vadd.f32 %v4301, %v4349
        %v4419 = vadd.f32 %v4302, %v4353
        %v4420 = vadd.f32 %v4303, %v4357
        %v4421 = vadd.f32 %v4304, %v4361
        %v4422 = vadd.f32 %v4305, %v4349
        %v4423 = vadd.f32 %v4306, %v4353
        %v4424 = vadd.f32 %v4307, %v4357
        %v4425 = vadd.f32 %v4308, %v4361
        %v4426 = vadd.f32 %v4309, %v4349
        %v4427 = vadd.f32 %v4310, %v4353
        %v4428 = vadd.f32 %v4311, %v4357
        %v4429 = vadd.f32 %v4312, %v4361
        %v4430 = vadd.f32 %v4313, %v4349
        %v4431 = vadd.f32 %v4314, %v4353
        %v4432 = vadd.f32 %v4315, %v4357
        %v4433 = vadd.f32 %v4316, %v4361
        %v4434 = vadd.f32 %v4317, %v4349
        %v4435 = vadd.f32 %v4318, %v4353
        %v4436 = vadd.f32 %v4319, %v4357
        %v4437 = vadd.f32 %v4320, %v4361
        %v4438 = vadd.f32 %v4321, %v4349
        %v4439 = vadd.f32 %v4322, %v4353
        %v4440 = vadd.f32 %v4323, %v4357
        %v4441 = vadd.f32 %v4324, %v4361
        %v4442 = vadd.f32 %v4325, %v4349
        %v4443 = vadd.f32 %v4326, %v4353
        %v4444 = vadd.f32 %v4327, %v4357
        %v4445 = vadd.f32 %v4328, %v4361
        %v4446 = vadd.f32 %v4329, %v4349
        %v4447 = vadd.f32 %v4330, %v4353
        %v4448 = vadd.f32 %v4331, %v4357
        %v4449 = vadd.f32 %v4332, %v4361
        %v4450 = vadd.f32 %v4333, %v4349
        %v4451 = vadd.f32 %v4334, %v4353
        %v4452 = vadd.f32 %v4335, %v4357
        %v4453 = vadd.f32 %v4336, %v4361
        %v4454 = vadd.f32 %v4337, %v4349
        %v4455 = vadd.f32 %v4338, %v4353
        %v4456 = vadd.f32 %v4339, %v4357
        %v4457 = vadd.f32 %v4340, %v4361
        %v4458 = vadd.f32 %v4341, %v4349
        %v4459 = vadd.f32 %v4342, %v4353
        %v4460 = vadd.f32 %v4343, %v4357
        %v4461 = vadd.f32 %v4344, %v4361
        %v4462 = vpack.c.bf16 %v4370, %v4366
        %v4463 = vpack.c.bf16 %v4371, %v4367
        %v4464 = vpack.c.bf16 %v4372, %v4368
        %v4465 = vpack.c.bf16 %v4373, %v4369
        %v4466 = vpack.c.bf16 %v4378, %v4374
        %v4467 = vpack.c.bf16 %v4379, %v4375
        %v4468 = vpack.c.bf16 %v4380, %v4376
        %v4469 = vpack.c.bf16 %v4381, %v4377
        %v4470 = vpack.c.bf16 %v4386, %v4382
        %v4471 = vpack.c.bf16 %v4387, %v4383
        %v4472 = vpack.c.bf16 %v4388, %v4384
        %v4473 = vpack.c.bf16 %v4389, %v4385
        %v4474 = vpack.c.bf16 %v4394, %v4390
        %v4475 = vpack.c.bf16 %v4395, %v4391
        %v4476 = vpack.c.bf16 %v4396, %v4392
        %v4477 = vpack.c.bf16 %v4397, %v4393
        %v4478 = vpack.c.bf16 %v4402, %v4398
        %v4479 = vpack.c.bf16 %v4403, %v4399
        %v4480 = vpack.c.bf16 %v4404, %v4400
        %v4481 = vpack.c.bf16 %v4405, %v4401
        %v4482 = vpack.c.bf16 %v4410, %v4406
        %v4483 = vpack.c.bf16 %v4411, %v4407
        %v4484 = vpack.c.bf16 %v4412, %v4408
        %v4485 = vpack.c.bf16 %v4413, %v4409
        %v4486 = vpack.c.bf16 %v4418, %v4414
        %v4487 = vpack.c.bf16 %v4419, %v4415
        %v4488 = vpack.c.bf16 %v4420, %v4416
        %v4489 = vpack.c.bf16 %v4421, %v4417
        %v4490 = vpack.c.bf16 %v4426, %v4422
        %v4491 = vpack.c.bf16 %v4427, %v4423
        %v4492 = vpack.c.bf16 %v4428, %v4424
        %v4493 = vpack.c.bf16 %v4429, %v4425
        %v4494 = vpack.c.bf16 %v4434, %v4430
        %v4495 = vpack.c.bf16 %v4435, %v4431
        %v4496 = vpack.c.bf16 %v4436, %v4432
        %v4497 = vpack.c.bf16 %v4437, %v4433
        %v4498 = vpack.c.bf16 %v4442, %v4438
        %v4499 = vpack.c.bf16 %v4443, %v4439
        %v4500 = vpack.c.bf16 %v4444, %v4440
        %v4501 = vpack.c.bf16 %v4445, %v4441
        %v4502 = vpack.c.bf16 %v4450, %v4446
        %v4503 = vpack.c.bf16 %v4451, %v4447
        %v4504 = vpack.c.bf16 %v4452, %v4448
        %v4505 = vpack.c.bf16 %v4453, %v4449
        %v4506 = vpack.c.bf16 %v4458, %v4454
        %v4507 = vpack.c.bf16 %v4459, %v4455
        %v4508 = vpack.c.bf16 %v4460, %v4456
        %v4509 = vpack.c.bf16 %v4461, %v4457
        %v4510 = vmul.bf16 %v4462, 1036860877
        %v4511 = vmul.bf16 %v4463, 1036860877
        %v4512 = vmul.bf16 %v4464, 1036860877
        %v4513 = vmul.bf16 %v4465, 1036860877
        %v4514 = vmul.bf16 %v4466, 1036860877
        %v4515 = vmul.bf16 %v4467, 1036860877
        %v4516 = vmul.bf16 %v4468, 1036860877
        %v4517 = vmul.bf16 %v4469, 1036860877
        %v4518 = vmul.bf16 %v4470, 1036860877
        %v4519 = vmul.bf16 %v4471, 1036860877
        %v4520 = vmul.bf16 %v4472, 1036860877
        %v4521 = vmul.bf16 %v4473, 1036860877
        %v4522 = vmul.bf16 %v4474, 1036860877
        %v4523 = vmul.bf16 %v4475, 1036860877
        %v4524 = vmul.bf16 %v4476, 1036860877
        %v4525 = vmul.bf16 %v4477, 1036860877
        %v4526 = vmul.bf16 %v4478, 1036860877
        %v4527 = vmul.bf16 %v4479, 1036860877
        %v4528 = vmul.bf16 %v4480, 1036860877
        %v4529 = vmul.bf16 %v4481, 1036860877
        %v4530 = vmul.bf16 %v4482, 1036860877
        %v4531 = vmul.bf16 %v4483, 1036860877
        %v4532 = vmul.bf16 %v4484, 1036860877
        %v4533 = vmul.bf16 %v4485, 1036860877
        %v4534 = vmul.bf16 %v4486, 1036860877
        %v4535 = vmul.bf16 %v4487, 1036860877
        %v4536 = vmul.bf16 %v4488, 1036860877
        %v4537 = vmul.bf16 %v4489, 1036860877
        %v4538 = vmul.bf16 %v4490, 1036860877
        %v4539 = vmul.bf16 %v4491, 1036860877
        %v4540 = vmul.bf16 %v4492, 1036860877
        %v4541 = vmul.bf16 %v4493, 1036860877
        %v4542 = vmul.bf16 %v4494, 1036860877
        %v4543 = vmul.bf16 %v4495, 1036860877
        %v4544 = vmul.bf16 %v4496, 1036860877
        %v4545 = vmul.bf16 %v4497, 1036860877
        %v4546 = vmul.bf16 %v4498, 1036860877
        %v4547 = vmul.bf16 %v4499, 1036860877
        %v4548 = vmul.bf16 %v4500, 1036860877
        %v4549 = vmul.bf16 %v4501, 1036860877
        %v4550 = vmul.bf16 %v4502, 1036860877
        %v4551 = vmul.bf16 %v4503, 1036860877
        %v4552 = vmul.bf16 %v4504, 1036860877
        %v4553 = vmul.bf16 %v4505, 1036860877
        %v4554 = vmul.bf16 %v4506, 1036860877
        %v4555 = vmul.bf16 %v4507, 1036860877
        %v4556 = vmul.bf16 %v4508, 1036860877
        %v4557 = vmul.bf16 %v4509, 1036860877
        %v4558 = vmax.bf16 %v4462, %v4510
        %v4559 = vmax.bf16 %v4463, %v4511
        %v4560 = vmax.bf16 %v4464, %v4512
        %v4561 = vmax.bf16 %v4465, %v4513
        %v4562 = vmax.bf16 %v4466, %v4514
        %v4563 = vmax.bf16 %v4467, %v4515
        %v4564 = vmax.bf16 %v4468, %v4516
        %v4565 = vmax.bf16 %v4469, %v4517
        %v4566 = vmax.bf16 %v4470, %v4518
        %v4567 = vmax.bf16 %v4471, %v4519
        %v4568 = vmax.bf16 %v4472, %v4520
        %v4569 = vmax.bf16 %v4473, %v4521
        %v4570 = vmax.bf16 %v4474, %v4522
        %v4571 = vmax.bf16 %v4475, %v4523
        %v4572 = vmax.bf16 %v4476, %v4524
        %v4573 = vmax.bf16 %v4477, %v4525
        %v4574 = vmax.bf16 %v4478, %v4526
        %v4575 = vmax.bf16 %v4479, %v4527
        %v4576 = vmax.bf16 %v4480, %v4528
        %v4577 = vmax.bf16 %v4481, %v4529
        %v4578 = vmax.bf16 %v4482, %v4530
        %v4579 = vmax.bf16 %v4483, %v4531
        %v4580 = vmax.bf16 %v4484, %v4532
        %v4581 = vmax.bf16 %v4485, %v4533
        %v4582 = vmax.bf16 %v4486, %v4534
        %v4583 = vmax.bf16 %v4487, %v4535
        %v4584 = vmax.bf16 %v4488, %v4536
        %v4585 = vmax.bf16 %v4489, %v4537
        %v4586 = vmax.bf16 %v4490, %v4538
        %v4587 = vmax.bf16 %v4491, %v4539
        %v4588 = vmax.bf16 %v4492, %v4540
        %v4589 = vmax.bf16 %v4493, %v4541
        %v4590 = vmax.bf16 %v4494, %v4542
        %v4591 = vmax.bf16 %v4495, %v4543
        %v4592 = vmax.bf16 %v4496, %v4544
        %v4593 = vmax.bf16 %v4497, %v4545
        %v4594 = vmax.bf16 %v4498, %v4546
        %v4595 = vmax.bf16 %v4499, %v4547
        %v4596 = vmax.bf16 %v4500, %v4548
        %v4597 = vmax.bf16 %v4501, %v4549
        %v4598 = vmax.bf16 %v4502, %v4550
        %v4599 = vmax.bf16 %v4503, %v4551
        %v4600 = vmax.bf16 %v4504, %v4552
        %v4601 = vmax.bf16 %v4505, %v4553
        %v4602 = vmax.bf16 %v4506, %v4554
        %v4603 = vmax.bf16 %v4507, %v4555
        %v4604 = vmax.bf16 %v4508, %v4556
        %v4605 = vmax.bf16 %v4509, %v4557
        %v4606 = vld [vmem:[#allocation11] sm:$0xff]
        %v4607 = vld [vmem:[#allocation11 + $0x8] sm:$0xff]
        %v4608 = vld [vmem:[#allocation11 + $0x10] sm:$0xff]
        %v4609 = vld [vmem:[#allocation11 + $0x18] sm:$0xff]
        %v4610 = vld [vmem:[#allocation11 + $0x20] sm:$0xff]
        %v4611 = vld [vmem:[#allocation11 + $0x28] sm:$0xff]
        %v4612 = vld [vmem:[#allocation11 + $0x30] sm:$0xff]
        %v4613 = vld [vmem:[#allocation11 + $0x38] sm:$0xff]
        %v4614 = vld [vmem:[#allocation11 + $0x40] sm:$0xff]
        %v4615 = vld [vmem:[#allocation11 + $0x48] sm:$0xff]
        %v4616 = vld [vmem:[#allocation11 + $0x50] sm:$0xff]
        %v4617 = vld [vmem:[#allocation11 + $0x58] sm:$0xff]
        %v4618 = vld [vmem:[#allocation11 + $0x60] sm:$0xff]
        %v4619 = vld [vmem:[#allocation11 + $0x68] sm:$0xff]
        %v4620 = vld [vmem:[#allocation11 + $0x70] sm:$0xff]
        %v4621 = vld [vmem:[#allocation11 + $0x78] sm:$0xff]
        %v4622 = vld [vmem:[#allocation11 + $0x80] sm:$0xff]
        %v4623 = vld [vmem:[#allocation11 + $0x88] sm:$0xff]
        %v4624 = vld [vmem:[#allocation11 + $0x90] sm:$0xff]
        %v4625 = vld [vmem:[#allocation11 + $0x98] sm:$0xff]
        %v4626 = vld [vmem:[#allocation11 + $0xa0] sm:$0xff]
        %v4627 = vld [vmem:[#allocation11 + $0xa8] sm:$0xff]
        %v4628 = vld [vmem:[#allocation11 + $0xb0] sm:$0xff]
        %v4629 = vld [vmem:[#allocation11 + $0xb8] sm:$0xff]
        %v4630 = vld [vmem:[#allocation11 + $0xc0] sm:$0xff]
        %v4631 = vld [vmem:[#allocation11 + $0xc8] sm:$0xff]
        %v4632 = vld [vmem:[#allocation11 + $0xd0] sm:$0xff]
        %v4633 = vld [vmem:[#allocation11 + $0xd8] sm:$0xff]
        %v4634 = vld [vmem:[#allocation11 + $0xe0] sm:$0xff]
        %v4635 = vld [vmem:[#allocation11 + $0xe8] sm:$0xff]
        %v4636 = vld [vmem:[#allocation11 + $0xf0] sm:$0xff]
        %v4637 = vld [vmem:[#allocation11 + $0xf8] sm:$0xff]
        %v4638 = vld [vmem:[#allocation11 + $0x100] sm:$0xff]
        %v4639 = vld [vmem:[#allocation11 + $0x108] sm:$0xff]
        %v4640 = vld [vmem:[#allocation11 + $0x110] sm:$0xff]
        %v4641 = vld [vmem:[#allocation11 + $0x118] sm:$0xff]
        %v4642 = vld [vmem:[#allocation11 + $0x120] sm:$0xff]
        %v4643 = vld [vmem:[#allocation11 + $0x128] sm:$0xff]
        %v4644 = vld [vmem:[#allocation11 + $0x130] sm:$0xff]
        %v4645 = vld [vmem:[#allocation11 + $0x138] sm:$0xff]
        %v4646 = vld [vmem:[#allocation11 + $0x140] sm:$0xff]
        %v4647 = vld [vmem:[#allocation11 + $0x148] sm:$0xff]
        %v4648 = vld [vmem:[#allocation11 + $0x150] sm:$0xff]
        %v4649 = vld [vmem:[#allocation11 + $0x158] sm:$0xff]
        %v4650 = vld [vmem:[#allocation11 + $0x160] sm:$0xff]
        %v4651 = vld [vmem:[#allocation11 + $0x168] sm:$0xff]
        %v4652 = vld [vmem:[#allocation11 + $0x170] sm:$0xff]
        %v4653 = vld [vmem:[#allocation11 + $0x178] sm:$0xff]
        %v4654 = vld [vmem:[#allocation11 + $0x180] sm:$0xff]
        %v4655 = vld [vmem:[#allocation11 + $0x188] sm:$0xff]
        %v4656 = vld [vmem:[#allocation11 + $0x190] sm:$0xff]
        %v4657 = vld [vmem:[#allocation11 + $0x198] sm:$0xff]
        %v4658 = vld [vmem:[#allocation11 + $0x1a0] sm:$0xff]
        %v4659 = vld [vmem:[#allocation11 + $0x1a8] sm:$0xff]
        %v4660 = vld [vmem:[#allocation11 + $0x1b0] sm:$0xff]
        %v4661 = vld [vmem:[#allocation11 + $0x1b8] sm:$0xff]
        %v4662 = vld [vmem:[#allocation11 + $0x1c0] sm:$0xff]
        %v4663 = vld [vmem:[#allocation11 + $0x1c8] sm:$0xff]
        %v4664 = vld [vmem:[#allocation11 + $0x1d0] sm:$0xff]
        %v4665 = vld [vmem:[#allocation11 + $0x1d8] sm:$0xff]
        %v4666 = vld [vmem:[#allocation11 + $0x1e0] sm:$0xff]
        %v4667 = vld [vmem:[#allocation11 + $0x1e8] sm:$0xff]
        %v4668 = vld [vmem:[#allocation11 + $0x1f0] sm:$0xff]
        %v4669 = vld [vmem:[#allocation11 + $0x1f8] sm:$0xff]
        %v4670 = vld [vmem:[#allocation11 + $0x200] sm:$0xff]
        %v4671 = vld [vmem:[#allocation11 + $0x208] sm:$0xff]
        %v4672 = vld [vmem:[#allocation11 + $0x210] sm:$0xff]
        %v4673 = vld [vmem:[#allocation11 + $0x218] sm:$0xff]
        %v4674 = vld [vmem:[#allocation11 + $0x220] sm:$0xff]
        %v4675 = vld [vmem:[#allocation11 + $0x228] sm:$0xff]
        %v4676 = vld [vmem:[#allocation11 + $0x230] sm:$0xff]
        %v4677 = vld [vmem:[#allocation11 + $0x238] sm:$0xff]
        %v4678 = vld [vmem:[#allocation11 + $0x240] sm:$0xff]
        %v4679 = vld [vmem:[#allocation11 + $0x248] sm:$0xff]
        %v4680 = vld [vmem:[#allocation11 + $0x250] sm:$0xff]
        %v4681 = vld [vmem:[#allocation11 + $0x258] sm:$0xff]
        %v4682 = vld [vmem:[#allocation11 + $0x260] sm:$0xff]
        %v4683 = vld [vmem:[#allocation11 + $0x268] sm:$0xff]
        %v4684 = vld [vmem:[#allocation11 + $0x270] sm:$0xff]
        %v4685 = vld [vmem:[#allocation11 + $0x278] sm:$0xff]
        %v4686 = vld [vmem:[#allocation11 + $0x280] sm:$0xff]
        %v4687 = vld [vmem:[#allocation11 + $0x288] sm:$0xff]
        %v4688 = vld [vmem:[#allocation11 + $0x290] sm:$0xff]
        %v4689 = vld [vmem:[#allocation11 + $0x298] sm:$0xff]
        %v4690 = vld [vmem:[#allocation11 + $0x2a0] sm:$0xff]
        %v4691 = vld [vmem:[#allocation11 + $0x2a8] sm:$0xff]
        %v4692 = vld [vmem:[#allocation11 + $0x2b0] sm:$0xff]
        %v4693 = vld [vmem:[#allocation11 + $0x2b8] sm:$0xff]
        %v4694 = vld [vmem:[#allocation11 + $0x2c0] sm:$0xff]
        %v4695 = vld [vmem:[#allocation11 + $0x2c8] sm:$0xff]
        %v4696 = vld [vmem:[#allocation11 + $0x2d0] sm:$0xff]
        %v4697 = vld [vmem:[#allocation11 + $0x2d8] sm:$0xff]
        %v4698 = vld [vmem:[#allocation11 + $0x2e0] sm:$0xff]
        %v4699 = vld [vmem:[#allocation11 + $0x2e8] sm:$0xff]
        %v4700 = vld [vmem:[#allocation11 + $0x2f0] sm:$0xff]
        %v4701 = vld [vmem:[#allocation11 + $0x2f8] sm:$0xff]
        %v4702 = vld [vmem:[#allocation11 + $0x300] sm:$0xff]
        %v4703 = vld [vmem:[#allocation11 + $0x308] sm:$0xff]
        %v4704 = vld [vmem:[#allocation11 + $0x310] sm:$0xff]
        %v4705 = vld [vmem:[#allocation11 + $0x318] sm:$0xff]
        %v4706 = vld [vmem:[#allocation11 + $0x320] sm:$0xff]
        %v4707 = vld [vmem:[#allocation11 + $0x328] sm:$0xff]
        %v4708 = vld [vmem:[#allocation11 + $0x330] sm:$0xff]
        %v4709 = vld [vmem:[#allocation11 + $0x338] sm:$0xff]
        %v4710 = vld [vmem:[#allocation11 + $0x340] sm:$0xff]
        %v4711 = vld [vmem:[#allocation11 + $0x348] sm:$0xff]
        %v4712 = vld [vmem:[#allocation11 + $0x350] sm:$0xff]
        %v4713 = vld [vmem:[#allocation11 + $0x358] sm:$0xff]
        %v4714 = vld [vmem:[#allocation11 + $0x360] sm:$0xff]
        %v4715 = vld [vmem:[#allocation11 + $0x368] sm:$0xff]
        %v4716 = vld [vmem:[#allocation11 + $0x370] sm:$0xff]
        %v4717 = vld [vmem:[#allocation11 + $0x378] sm:$0xff]
        %v4718 = vld [vmem:[#allocation11 + $0x380] sm:$0xff]
        %v4719 = vld [vmem:[#allocation11 + $0x388] sm:$0xff]
        %v4720 = vld [vmem:[#allocation11 + $0x390] sm:$0xff]
        %v4721 = vld [vmem:[#allocation11 + $0x398] sm:$0xff]
        %v4722 = vld [vmem:[#allocation11 + $0x3a0] sm:$0xff]
        %v4723 = vld [vmem:[#allocation11 + $0x3a8] sm:$0xff]
        %v4724 = vld [vmem:[#allocation11 + $0x3b0] sm:$0xff]
        %v4725 = vld [vmem:[#allocation11 + $0x3b8] sm:$0xff]
        %v4726 = vld [vmem:[#allocation11 + $0x3c0] sm:$0xff]
        %v4727 = vld [vmem:[#allocation11 + $0x3c8] sm:$0xff]
        %v4728 = vld [vmem:[#allocation11 + $0x3d0] sm:$0xff]
        %v4729 = vld [vmem:[#allocation11 + $0x3d8] sm:$0xff]
        %v4730 = vld [vmem:[#allocation11 + $0x3e0] sm:$0xff]
        %v4731 = vld [vmem:[#allocation11 + $0x3e8] sm:$0xff]
        %v4732 = vld [vmem:[#allocation11 + $0x3f0] sm:$0xff]
        %v4733 = vld [vmem:[#allocation11 + $0x3f8] sm:$0xff]
        %v4734 = vld [vmem:[%s6] ss:$4 sm:$0xf]
        %v4736 = vlaneseq
        %v4737 = vshrl.u32 %v4736, 7
        %v4738 = vsub.s32 0, %v4737
        %v4739 = vrot.slane %v4734, %v4738
        %v4740 = vlaneseq
        %v4741 = vshrl.u32 %v4740, 7
        %v4742 = vsub.s32 1, %v4741
        %v4743 = vrot.slane %v4734, %v4742
        %v4744 = vlaneseq
        %v4745 = vshrl.u32 %v4744, 7
        %v4746 = vsub.s32 2, %v4745
        %v4747 = vrot.slane %v4734, %v4746
        %v4748 = vlaneseq
        %v4749 = vshrl.u32 %v4748, 7
        %v4750 = vsub.s32 3, %v4749
        %v4751 = vrot.slane %v4734, %v4750
        %v4884 = vunpack.c.l.b16 %v4606
        %v4885 = vunpack.c.h.b16 %v4606
        %v4886 = vunpack.c.l.b16 %v4607
        %v4887 = vunpack.c.h.b16 %v4607
        %v4888 = vunpack.c.l.b16 %v4608
        %v4889 = vunpack.c.h.b16 %v4608
        %v4890 = vunpack.c.l.b16 %v4609
        %v4891 = vunpack.c.h.b16 %v4609
        %v4892 = vunpack.c.l.b16 %v4610
        %v4893 = vunpack.c.h.b16 %v4610
        %v4894 = vunpack.c.l.b16 %v4611
        %v4895 = vunpack.c.h.b16 %v4611
        %v4896 = vunpack.c.l.b16 %v4612
        %v4897 = vunpack.c.h.b16 %v4612
        %v4898 = vunpack.c.l.b16 %v4613
        %v4899 = vunpack.c.h.b16 %v4613
        %v4900 = vunpack.c.l.b16 %v4614
        %v4901 = vunpack.c.h.b16 %v4614
        %v4902 = vunpack.c.l.b16 %v4615
        %v4903 = vunpack.c.h.b16 %v4615
        %v4904 = vunpack.c.l.b16 %v4616
        %v4905 = vunpack.c.h.b16 %v4616
        %v4906 = vunpack.c.l.b16 %v4617
        %v4907 = vunpack.c.h.b16 %v4617
        %v4908 = vunpack.c.l.b16 %v4618
        %v4909 = vunpack.c.h.b16 %v4618
        %v4910 = vunpack.c.l.b16 %v4619
        %v4911 = vunpack.c.h.b16 %v4619
        %v4912 = vunpack.c.l.b16 %v4620
        %v4913 = vunpack.c.h.b16 %v4620
        %v4914 = vunpack.c.l.b16 %v4621
        %v4915 = vunpack.c.h.b16 %v4621
        %v4916 = vunpack.c.l.b16 %v4622
        %v4917 = vunpack.c.h.b16 %v4622
        %v4918 = vunpack.c.l.b16 %v4623
        %v4919 = vunpack.c.h.b16 %v4623
        %v4920 = vunpack.c.l.b16 %v4624
        %v4921 = vunpack.c.h.b16 %v4624
        %v4922 = vunpack.c.l.b16 %v4625
        %v4923 = vunpack.c.h.b16 %v4625
        %v4924 = vunpack.c.l.b16 %v4626
        %v4925 = vunpack.c.h.b16 %v4626
        %v4926 = vunpack.c.l.b16 %v4627
        %v4927 = vunpack.c.h.b16 %v4627
        %v4928 = vunpack.c.l.b16 %v4628
        %v4929 = vunpack.c.h.b16 %v4628
        %v4930 = vunpack.c.l.b16 %v4629
        %v4931 = vunpack.c.h.b16 %v4629
        %v4932 = vunpack.c.l.b16 %v4630
        %v4933 = vunpack.c.h.b16 %v4630
        %v4934 = vunpack.c.l.b16 %v4631
        %v4935 = vunpack.c.h.b16 %v4631
        %v4936 = vunpack.c.l.b16 %v4632
        %v4937 = vunpack.c.h.b16 %v4632
        %v4938 = vunpack.c.l.b16 %v4633
        %v4939 = vunpack.c.h.b16 %v4633
        %v4940 = vunpack.c.l.b16 %v4634
        %v4941 = vunpack.c.h.b16 %v4634
        %v4942 = vunpack.c.l.b16 %v4635
        %v4943 = vunpack.c.h.b16 %v4635
        %v4944 = vunpack.c.l.b16 %v4636
        %v4945 = vunpack.c.h.b16 %v4636
        %v4946 = vunpack.c.l.b16 %v4637
        %v4947 = vunpack.c.h.b16 %v4637
        %v4948 = vunpack.c.l.b16 %v4638
        %v4949 = vunpack.c.h.b16 %v4638
        %v4950 = vunpack.c.l.b16 %v4639
        %v4951 = vunpack.c.h.b16 %v4639
        %v4952 = vunpack.c.l.b16 %v4640
        %v4953 = vunpack.c.h.b16 %v4640
        %v4954 = vunpack.c.l.b16 %v4641
        %v4955 = vunpack.c.h.b16 %v4641
        %v4956 = vunpack.c.l.b16 %v4642
        %v4957 = vunpack.c.h.b16 %v4642
        %v4958 = vunpack.c.l.b16 %v4643
        %v4959 = vunpack.c.h.b16 %v4643
        %v4960 = vunpack.c.l.b16 %v4644
        %v4961 = vunpack.c.h.b16 %v4644
        %v4962 = vunpack.c.l.b16 %v4645
        %v4963 = vunpack.c.h.b16 %v4645
        %v4964 = vunpack.c.l.b16 %v4646
        %v4965 = vunpack.c.h.b16 %v4646
        %v4966 = vunpack.c.l.b16 %v4647
        %v4967 = vunpack.c.h.b16 %v4647
        %v4968 = vunpack.c.l.b16 %v4648
        %v4969 = vunpack.c.h.b16 %v4648
        %v4970 = vunpack.c.l.b16 %v4649
        %v4971 = vunpack.c.h.b16 %v4649
        %v4972 = vunpack.c.l.b16 %v4650
        %v4973 = vunpack.c.h.b16 %v4650
        %v4974 = vunpack.c.l.b16 %v4651
        %v4975 = vunpack.c.h.b16 %v4651
        %v4976 = vunpack.c.l.b16 %v4652
        %v4977 = vunpack.c.h.b16 %v4652
        %v4978 = vunpack.c.l.b16 %v4653
        %v4979 = vunpack.c.h.b16 %v4653
        %v4980 = vunpack.c.l.b16 %v4654
        %v4981 = vunpack.c.h.b16 %v4654
        %v4982 = vunpack.c.l.b16 %v4655
        %v4983 = vunpack.c.h.b16 %v4655
        %v4984 = vunpack.c.l.b16 %v4656
        %v4985 = vunpack.c.h.b16 %v4656
        %v4986 = vunpack.c.l.b16 %v4657
        %v4987 = vunpack.c.h.b16 %v4657
        %v4988 = vunpack.c.l.b16 %v4658
        %v4989 = vunpack.c.h.b16 %v4658
        %v4990 = vunpack.c.l.b16 %v4659
        %v4991 = vunpack.c.h.b16 %v4659
        %v4992 = vunpack.c.l.b16 %v4660
        %v4993 = vunpack.c.h.b16 %v4660
        %v4994 = vunpack.c.l.b16 %v4661
        %v4995 = vunpack.c.h.b16 %v4661
        %v4996 = vunpack.c.l.b16 %v4662
        %v4997 = vunpack.c.h.b16 %v4662
        %v4998 = vunpack.c.l.b16 %v4663
        %v4999 = vunpack.c.h.b16 %v4663
        %v5000 = vunpack.c.l.b16 %v4664
        %v5001 = vunpack.c.h.b16 %v4664
        %v5002 = vunpack.c.l.b16 %v4665
        %v5003 = vunpack.c.h.b16 %v4665
        %v5004 = vunpack.c.l.b16 %v4666
        %v5005 = vunpack.c.h.b16 %v4666
        %v5006 = vunpack.c.l.b16 %v4667
        %v5007 = vunpack.c.h.b16 %v4667
        %v5008 = vunpack.c.l.b16 %v4668
        %v5009 = vunpack.c.h.b16 %v4668
        %v5010 = vunpack.c.l.b16 %v4669
        %v5011 = vunpack.c.h.b16 %v4669
        %v5012 = vunpack.c.l.b16 %v4670
        %v5013 = vunpack.c.h.b16 %v4670
        %v5014 = vunpack.c.l.b16 %v4671
        %v5015 = vunpack.c.h.b16 %v4671
        %v5016 = vunpack.c.l.b16 %v4672
        %v5017 = vunpack.c.h.b16 %v4672
        %v5018 = vunpack.c.l.b16 %v4673
        %v5019 = vunpack.c.h.b16 %v4673
        %v5020 = vunpack.c.l.b16 %v4674
        %v5021 = vunpack.c.h.b16 %v4674
        %v5022 = vunpack.c.l.b16 %v4675
        %v5023 = vunpack.c.h.b16 %v4675
        %v5024 = vunpack.c.l.b16 %v4676
        %v5025 = vunpack.c.h.b16 %v4676
        %v5026 = vunpack.c.l.b16 %v4677
        %v5027 = vunpack.c.h.b16 %v4677
        %v5028 = vunpack.c.l.b16 %v4678
        %v5029 = vunpack.c.h.b16 %v4678
        %v5030 = vunpack.c.l.b16 %v4679
        %v5031 = vunpack.c.h.b16 %v4679
        %v5032 = vunpack.c.l.b16 %v4680
        %v5033 = vunpack.c.h.b16 %v4680
        %v5034 = vunpack.c.l.b16 %v4681
        %v5035 = vunpack.c.h.b16 %v4681
        %v5036 = vunpack.c.l.b16 %v4682
        %v5037 = vunpack.c.h.b16 %v4682
        %v5038 = vunpack.c.l.b16 %v4683
        %v5039 = vunpack.c.h.b16 %v4683
        %v5040 = vunpack.c.l.b16 %v4684
        %v5041 = vunpack.c.h.b16 %v4684
        %v5042 = vunpack.c.l.b16 %v4685
        %v5043 = vunpack.c.h.b16 %v4685
        %v5044 = vunpack.c.l.b16 %v4686
        %v5045 = vunpack.c.h.b16 %v4686
        %v5046 = vunpack.c.l.b16 %v4687
        %v5047 = vunpack.c.h.b16 %v4687
        %v5048 = vunpack.c.l.b16 %v4688
        %v5049 = vunpack.c.h.b16 %v4688
        %v5050 = vunpack.c.l.b16 %v4689
        %v5051 = vunpack.c.h.b16 %v4689
        %v5052 = vunpack.c.l.b16 %v4690
        %v5053 = vunpack.c.h.b16 %v4690
        %v5054 = vunpack.c.l.b16 %v4691
        %v5055 = vunpack.c.h.b16 %v4691
        %v5056 = vunpack.c.l.b16 %v4692
        %v5057 = vunpack.c.h.b16 %v4692
        %v5058 = vunpack.c.l.b16 %v4693
        %v5059 = vunpack.c.h.b16 %v4693
        %v5060 = vunpack.c.l.b16 %v4694
        %v5061 = vunpack.c.h.b16 %v4694
        %v5062 = vunpack.c.l.b16 %v4695
        %v5063 = vunpack.c.h.b16 %v4695
        %v5064 = vunpack.c.l.b16 %v4696
        %v5065 = vunpack.c.h.b16 %v4696
        %v5066 = vunpack.c.l.b16 %v4697
        %v5067 = vunpack.c.h.b16 %v4697
        %v5068 = vunpack.c.l.b16 %v4698
        %v5069 = vunpack.c.h.b16 %v4698
        %v5070 = vunpack.c.l.b16 %v4699
        %v5071 = vunpack.c.h.b16 %v4699
        %v5072 = vunpack.c.l.b16 %v4700
        %v5073 = vunpack.c.h.b16 %v4700
        %v5074 = vunpack.c.l.b16 %v4701
        %v5075 = vunpack.c.h.b16 %v4701
        %v5076 = vunpack.c.l.b16 %v4702
        %v5077 = vunpack.c.h.b16 %v4702
        %v5078 = vunpack.c.l.b16 %v4703
        %v5079 = vunpack.c.h.b16 %v4703
        %v5080 = vunpack.c.l.b16 %v4704
        %v5081 = vunpack.c.h.b16 %v4704
        %v5082 = vunpack.c.l.b16 %v4705
        %v5083 = vunpack.c.h.b16 %v4705
        %v5084 = vunpack.c.l.b16 %v4706
        %v5085 = vunpack.c.h.b16 %v4706
        %v5086 = vunpack.c.l.b16 %v4707
        %v5087 = vunpack.c.h.b16 %v4707
        %v5088 = vunpack.c.l.b16 %v4708
        %v5089 = vunpack.c.h.b16 %v4708
        %v5090 = vunpack.c.l.b16 %v4709
        %v5091 = vunpack.c.h.b16 %v4709
        %v5092 = vunpack.c.l.b16 %v4710
        %v5093 = vunpack.c.h.b16 %v4710
        %v5094 = vunpack.c.l.b16 %v4711
        %v5095 = vunpack.c.h.b16 %v4711
        %v5096 = vunpack.c.l.b16 %v4712
        %v5097 = vunpack.c.h.b16 %v4712
        %v5098 = vunpack.c.l.b16 %v4713
        %v5099 = vunpack.c.h.b16 %v4713
        %v5100 = vunpack.c.l.b16 %v4714
        %v5101 = vunpack.c.h.b16 %v4714
        %v5102 = vunpack.c.l.b16 %v4715
        %v5103 = vunpack.c.h.b16 %v4715
        %v5104 = vunpack.c.l.b16 %v4716
        %v5105 = vunpack.c.h.b16 %v4716
        %v5106 = vunpack.c.l.b16 %v4717
        %v5107 = vunpack.c.h.b16 %v4717
        %v5108 = vunpack.c.l.b16 %v4718
        %v5109 = vunpack.c.h.b16 %v4718
        %v5110 = vunpack.c.l.b16 %v4719
        %v5111 = vunpack.c.h.b16 %v4719
        %v5112 = vunpack.c.l.b16 %v4720
        %v5113 = vunpack.c.h.b16 %v4720
        %v5114 = vunpack.c.l.b16 %v4721
        %v5115 = vunpack.c.h.b16 %v4721
        %v5116 = vunpack.c.l.b16 %v4722
        %v5117 = vunpack.c.h.b16 %v4722
        %v5118 = vunpack.c.l.b16 %v4723
        %v5119 = vunpack.c.h.b16 %v4723
        %v5120 = vunpack.c.l.b16 %v4724
        %v5121 = vunpack.c.h.b16 %v4724
        %v5122 = vunpack.c.l.b16 %v4725
        %v5123 = vunpack.c.h.b16 %v4725
        %v5124 = vunpack.c.l.b16 %v4726
        %v5125 = vunpack.c.h.b16 %v4726
        %v5126 = vunpack.c.l.b16 %v4727
        %v5127 = vunpack.c.h.b16 %v4727
        %v5128 = vunpack.c.l.b16 %v4728
        %v5129 = vunpack.c.h.b16 %v4728
        %v5130 = vunpack.c.l.b16 %v4729
        %v5131 = vunpack.c.h.b16 %v4729
        %v5132 = vunpack.c.l.b16 %v4730
        %v5133 = vunpack.c.h.b16 %v4730
        %v5134 = vunpack.c.l.b16 %v4731
        %v5135 = vunpack.c.h.b16 %v4731
        %v5136 = vunpack.c.l.b16 %v4732
        %v5137 = vunpack.c.h.b16 %v4732
        %v5138 = vunpack.c.l.b16 %v4733
        %v5139 = vunpack.c.h.b16 %v4733
        %v5140 = vpack.c.b16 %v4888, %v4884
        %v5141 = vpack.c.b16 %v4889, %v4885
        %v5142 = vpack.c.b16 %v4890, %v4886
        %v5143 = vpack.c.b16 %v4891, %v4887
        %v5144 = vpack.c.b16 %v4896, %v4892
        %v5145 = vpack.c.b16 %v4897, %v4893
        %v5146 = vpack.c.b16 %v4898, %v4894
        %v5147 = vpack.c.b16 %v4899, %v4895
        %v5148 = vpack.c.b16 %v4904, %v4900
        %v5149 = vpack.c.b16 %v4905, %v4901
        %v5150 = vpack.c.b16 %v4906, %v4902
        %v5151 = vpack.c.b16 %v4907, %v4903
        %v5152 = vpack.c.b16 %v4912, %v4908
        %v5153 = vpack.c.b16 %v4913, %v4909
        %v5154 = vpack.c.b16 %v4914, %v4910
        %v5155 = vpack.c.b16 %v4915, %v4911
        %v5156 = vpack.c.b16 %v4920, %v4916
        %v5157 = vpack.c.b16 %v4921, %v4917
        %v5158 = vpack.c.b16 %v4922, %v4918
        %v5159 = vpack.c.b16 %v4923, %v4919
        %v5160 = vpack.c.b16 %v4928, %v4924
        %v5161 = vpack.c.b16 %v4929, %v4925
        %v5162 = vpack.c.b16 %v4930, %v4926
        %v5163 = vpack.c.b16 %v4931, %v4927
        %v5164 = vpack.c.b16 %v4936, %v4932
        %v5165 = vpack.c.b16 %v4937, %v4933
        %v5166 = vpack.c.b16 %v4938, %v4934
        %v5167 = vpack.c.b16 %v4939, %v4935
        %v5168 = vpack.c.b16 %v4944, %v4940
        %v5169 = vpack.c.b16 %v4945, %v4941
        %v5170 = vpack.c.b16 %v4946, %v4942
        %v5171 = vpack.c.b16 %v4947, %v4943
        %v5172 = vpack.c.b16 %v4952, %v4948
        %v5173 = vpack.c.b16 %v4953, %v4949
        %v5174 = vpack.c.b16 %v4954, %v4950
        %v5175 = vpack.c.b16 %v4955, %v4951
        %v5176 = vpack.c.b16 %v4960, %v4956
        %v5177 = vpack.c.b16 %v4961, %v4957
        %v5178 = vpack.c.b16 %v4962, %v4958
        %v5179 = vpack.c.b16 %v4963, %v4959
        %v5180 = vpack.c.b16 %v4968, %v4964
        %v5181 = vpack.c.b16 %v4969, %v4965
        %v5182 = vpack.c.b16 %v4970, %v4966
        %v5183 = vpack.c.b16 %v4971, %v4967
        %v5184 = vpack.c.b16 %v4976, %v4972
        %v5185 = vpack.c.b16 %v4977, %v4973
        %v5186 = vpack.c.b16 %v4978, %v4974
        %v5187 = vpack.c.b16 %v4979, %v4975
        %v5188 = vpack.c.b16 %v4984, %v4980
        %v5189 = vpack.c.b16 %v4985, %v4981
        %v5190 = vpack.c.b16 %v4986, %v4982
        %v5191 = vpack.c.b16 %v4987, %v4983
        %v5192 = vpack.c.b16 %v4992, %v4988
        %v5193 = vpack.c.b16 %v4993, %v4989
        %v5194 = vpack.c.b16 %v4994, %v4990
        %v5195 = vpack.c.b16 %v4995, %v4991
        %v5196 = vpack.c.b16 %v5000, %v4996
        %v5197 = vpack.c.b16 %v5001, %v4997
        %v5198 = vpack.c.b16 %v5002, %v4998
        %v5199 = vpack.c.b16 %v5003, %v4999
        %v5200 = vpack.c.b16 %v5008, %v5004
        %v5201 = vpack.c.b16 %v5009, %v5005
        %v5202 = vpack.c.b16 %v5010, %v5006
        %v5203 = vpack.c.b16 %v5011, %v5007
        %v5204 = vpack.c.b16 %v5016, %v5012
        %v5205 = vpack.c.b16 %v5017, %v5013
        %v5206 = vpack.c.b16 %v5018, %v5014
        %v5207 = vpack.c.b16 %v5019, %v5015
        %v5208 = vpack.c.b16 %v5024, %v5020
        %v5209 = vpack.c.b16 %v5025, %v5021
        %v5210 = vpack.c.b16 %v5026, %v5022
        %v5211 = vpack.c.b16 %v5027, %v5023
        %v5212 = vpack.c.b16 %v5032, %v5028
        %v5213 = vpack.c.b16 %v5033, %v5029
        %v5214 = vpack.c.b16 %v5034, %v5030
        %v5215 = vpack.c.b16 %v5035, %v5031
        %v5216 = vpack.c.b16 %v5040, %v5036
        %v5217 = vpack.c.b16 %v5041, %v5037
        %v5218 = vpack.c.b16 %v5042, %v5038
        %v5219 = vpack.c.b16 %v5043, %v5039
        %v5220 = vpack.c.b16 %v5048, %v5044
        %v5221 = vpack.c.b16 %v5049, %v5045
        %v5222 = vpack.c.b16 %v5050, %v5046
        %v5223 = vpack.c.b16 %v5051, %v5047
        %v5224 = vpack.c.b16 %v5056, %v5052
        %v5225 = vpack.c.b16 %v5057, %v5053
        %v5226 = vpack.c.b16 %v5058, %v5054
        %v5227 = vpack.c.b16 %v5059, %v5055
        %v5228 = vpack.c.b16 %v5064, %v5060
        %v5229 = vpack.c.b16 %v5065, %v5061
        %v5230 = vpack.c.b16 %v5066, %v5062
        %v5231 = vpack.c.b16 %v5067, %v5063
        %v5232 = vpack.c.b16 %v5072, %v5068
        %v5233 = vpack.c.b16 %v5073, %v5069
        %v5234 = vpack.c.b16 %v5074, %v5070
        %v5235 = vpack.c.b16 %v5075, %v5071
        %v5236 = vpack.c.b16 %v5080, %v5076
        %v5237 = vpack.c.b16 %v5081, %v5077
        %v5238 = vpack.c.b16 %v5082, %v5078
        %v5239 = vpack.c.b16 %v5083, %v5079
        %v5240 = vpack.c.b16 %v5088, %v5084
        %v5241 = vpack.c.b16 %v5089, %v5085
        %v5242 = vpack.c.b16 %v5090, %v5086
        %v5243 = vpack.c.b16 %v5091, %v5087
        %v5244 = vpack.c.b16 %v5096, %v5092
        %v5245 = vpack.c.b16 %v5097, %v5093
        %v5246 = vpack.c.b16 %v5098, %v5094
        %v5247 = vpack.c.b16 %v5099, %v5095
        %v5248 = vpack.c.b16 %v5104, %v5100
        %v5249 = vpack.c.b16 %v5105, %v5101
        %v5250 = vpack.c.b16 %v5106, %v5102
        %v5251 = vpack.c.b16 %v5107, %v5103
        %v5252 = vpack.c.b16 %v5112, %v5108
        %v5253 = vpack.c.b16 %v5113, %v5109
        %v5254 = vpack.c.b16 %v5114, %v5110
        %v5255 = vpack.c.b16 %v5115, %v5111
        %v5256 = vpack.c.b16 %v5120, %v5116
        %v5257 = vpack.c.b16 %v5121, %v5117
        %v5258 = vpack.c.b16 %v5122, %v5118
        %v5259 = vpack.c.b16 %v5123, %v5119
        %v5260 = vpack.c.b16 %v5128, %v5124
        %v5261 = vpack.c.b16 %v5129, %v5125
        %v5262 = vpack.c.b16 %v5130, %v5126
        %v5263 = vpack.c.b16 %v5131, %v5127
        %v5264 = vpack.c.b16 %v5136, %v5132
        %v5265 = vpack.c.b16 %v5137, %v5133
        %v5266 = vpack.c.b16 %v5138, %v5134
        %v5267 = vpack.c.b16 %v5139, %v5135
        %5396 = vmatprep.subr.bf16.mxu0 %v5141
        %5397 = vmatpush1.bf16.msra.mxu0 %v5140
        %5398 = vmatprep.subr.bf16.mxu0 %v5145
        %5399 = vmatpush1.bf16.msra.mxu0 %v5144
        %5400 = vmatprep.subr.bf16.mxu0 %v5149
        %5401 = vmatpush1.bf16.msra.mxu0 %v5148
        %5402 = vmatprep.subr.bf16.mxu0 %v5153
        %5403 = vmatpush1.bf16.msra.mxu0 %v5152
        %5404 = vmatprep.subr.bf16.mxu0 %v5157
        %5405 = vmatpush1.bf16.msra.mxu0 %v5156
        %5406 = vmatprep.subr.bf16.mxu0 %v5161
        %5407 = vmatpush1.bf16.msra.mxu0 %v5160
        %5408 = vmatprep.subr.bf16.mxu0 %v5165
        %5409 = vmatpush1.bf16.msra.mxu0 %v5164
        %5410 = vmatprep.subr.bf16.mxu0 %v5169
        %5411 = vmatpush1.bf16.msra.mxu0 %v5168
        %5412 = vmatprep.subr.bf16.mxu0 %v5173
        %5413 = vmatpush1.bf16.msra.mxu0 %v5172
        %5414 = vmatprep.subr.bf16.mxu0 %v5177
        %5415 = vmatpush1.bf16.msra.mxu0 %v5176
        %5416 = vmatprep.subr.bf16.mxu0 %v5181
        %5417 = vmatpush1.bf16.msra.mxu0 %v5180
        %5418 = vmatprep.subr.bf16.mxu0 %v5185
        %5419 = vmatpush1.bf16.msra.mxu0 %v5184
        %5420 = vmatprep.subr.bf16.mxu0 %v5189
        %5421 = vmatpush1.bf16.msra.mxu0 %v5188
        %5422 = vmatprep.subr.bf16.mxu0 %v5193
        %5423 = vmatpush1.bf16.msra.mxu0 %v5192
        %5424 = vmatprep.subr.bf16.mxu0 %v5197
        %5425 = vmatpush1.bf16.msra.mxu0 %v5196
        %5426 = vmatprep.subr.bf16.mxu0 %v5201
        %5427 = vmatpush1.bf16.msra.mxu0 %v5200
        %5428 = vmatprep.mubr.bf16.mxu0 %v4559
        %5429 = vmatmul.mubr.bf16.gmra.mrb[0].mxu0 %v4558
        %v5430 = vpop.f32.mrb[0].mxu0
        %v5431 = vadd.f32 %v4739, %v5430
        %v5432 = vpop.f32.mrb[0].mxu0
        %v5433 = vadd.f32 %v4743, %v5432
        %v5434 = vpop.f32.mrb[0].mxu0
        %v5435 = vadd.f32 %v4739, %v5434
        %v5436 = vpop.f32.mrb[0].mxu0
        %v5437 = vadd.f32 %v4743, %v5436
        %5438 = vmatprep.mubr.bf16.mxu0 %v4563
        %5439 = vmatmul.mubr.bf16.gmra.mrb[0].mxu0 %v4562
        %v5440 = vpop.f32.mrb[0].mxu0
        %v5441 = vadd.f32 %v4739, %v5440
        %v5442 = vpop.f32.mrb[0].mxu0
        %v5443 = vadd.f32 %v4743, %v5442
        %v5444 = vpop.f32.mrb[0].mxu0
        %v5445 = vadd.f32 %v4739, %v5444
        %v5446 = vpop.f32.mrb[0].mxu0
        %v5447 = vadd.f32 %v4743, %v5446
        %5448 = vmatprep.mubr.bf16.mxu0 %v4567
        %5449 = vmatmul.mubr.bf16.gmra.mrb[0].mxu0 %v4566
        %v5450 = vpop.f32.mrb[0].mxu0
        %v5451 = vadd.f32 %v4739, %v5450
        %v5452 = vpop.f32.mrb[0].mxu0
        %v5453 = vadd.f32 %v4743, %v5452
        %v5454 = vpop.f32.mrb[0].mxu0
        %v5455 = vadd.f32 %v4739, %v5454
        %v5456 = vpop.f32.mrb[0].mxu0
        %v5457 = vadd.f32 %v4743, %v5456
        %5458 = vmatprep.mubr.bf16.mxu0 %v4571
        %5459 = vmatmul.mubr.bf16.gmra.mrb[0].mxu0 %v4570
        %v5460 = vpop.f32.mrb[0].mxu0
        %v5461 = vadd.f32 %v4739, %v5460
        %v5462 = vpop.f32.mrb[0].mxu0
        %v5463 = vadd.f32 %v4743, %v5462
        %v5464 = vpop.f32.mrb[0].mxu0
        %v5465 = vadd.f32 %v4739, %v5464
        %v5466 = vpop.f32.mrb[0].mxu0
        %v5467 = vadd.f32 %v4743, %v5466
        %5468 = vmatprep.mubr.bf16.mxu0 %v4575
        %5469 = vmatmul.mubr.bf16.gmra.mrb[0].mxu0 %v4574
        %v5470 = vpop.f32.mrb[0].mxu0
        %v5471 = vadd.f32 %v4739, %v5470
        %v5472 = vpop.f32.mrb[0].mxu0
        %v5473 = vadd.f32 %v4743, %v5472
        %v5474 = vpop.f32.mrb[0].mxu0
        %v5475 = vadd.f32 %v4739, %v5474
        %v5476 = vpop.f32.mrb[0].mxu0
        %v5477 = vadd.f32 %v4743, %v5476
        %5478 = vmatprep.mubr.bf16.mxu0 %v4579
        %5479 = vmatmul.mubr.bf16.gmra.mrb[0].mxu0 %v4578
        %v5480 = vpop.f32.mrb[0].mxu0
        %v5481 = vadd.f32 %v4739, %v5480
        %v5482 = vpop.f32.mrb[0].mxu0
        %v5483 = vadd.f32 %v4743, %v5482
        %v5484 = vpop.f32.mrb[0].mxu0
        %v5485 = vadd.f32 %v4739, %v5484
        %v5486 = vpop.f32.mrb[0].mxu0
        %v5487 = vadd.f32 %v4743, %v5486
        %5488 = vmatprep.mubr.bf16.mxu0 %v4583
        %5489 = vmatmul.mubr.bf16.gmra.mrb[0].mxu0 %v4582
        %v5490 = vpop.f32.mrb[0].mxu0
        %v5491 = vadd.f32 %v4739, %v5490
        %v5492 = vpop.f32.mrb[0].mxu0
        %v5493 = vadd.f32 %v4743, %v5492
        %v5494 = vpop.f32.mrb[0].mxu0
        %v5495 = vadd.f32 %v4739, %v5494
        %v5496 = vpop.f32.mrb[0].mxu0
        %v5497 = vadd.f32 %v4743, %v5496
        %5498 = vmatprep.mubr.bf16.mxu0 %v4587
        %5499 = vmatmul.mubr.bf16.gmra.mrb[0].mxu0 %v4586
        %v5500 = vpop.f32.mrb[0].mxu0
        %v5501 = vadd.f32 %v4739, %v5500
        %v5502 = vpop.f32.mrb[0].mxu0
        %v5503 = vadd.f32 %v4743, %v5502
        %v5504 = vpop.f32.mrb[0].mxu0
        %v5505 = vadd.f32 %v4739, %v5504
        %v5506 = vpop.f32.mrb[0].mxu0
        %v5507 = vadd.f32 %v4743, %v5506
        %5508 = vmatprep.mubr.bf16.mxu0 %v4591
        %5509 = vmatmul.mubr.bf16.gmra.mrb[0].mxu0 %v4590
        %v5510 = vpop.f32.mrb[0].mxu0
        %v5511 = vadd.f32 %v4739, %v5510
        %v5512 = vpop.f32.mrb[0].mxu0
        %v5513 = vadd.f32 %v4743, %v5512
        %v5514 = vpop.f32.mrb[0].mxu0
        %v5515 = vadd.f32 %v4739, %v5514
        %v5516 = vpop.f32.mrb[0].mxu0
        %v5517 = vadd.f32 %v4743, %v5516
        %5518 = vmatprep.mubr.bf16.mxu0 %v4595
        %5519 = vmatmul.mubr.bf16.gmra.mrb[0].mxu0 %v4594
        %v5520 = vpop.f32.mrb[0].mxu0
        %v5521 = vadd.f32 %v4739, %v5520
        %v5522 = vpop.f32.mrb[0].mxu0
        %v5523 = vadd.f32 %v4743, %v5522
        %v5524 = vpop.f32.mrb[0].mxu0
        %v5525 = vadd.f32 %v4739, %v5524
        %v5526 = vpop.f32.mrb[0].mxu0
        %v5527 = vadd.f32 %v4743, %v5526
        %5528 = vmatprep.mubr.bf16.mxu0 %v4599
        %5529 = vmatmul.mubr.bf16.gmra.mrb[0].mxu0 %v4598
        %v5530 = vpop.f32.mrb[0].mxu0
        %v5531 = vadd.f32 %v4739, %v5530
        %v5532 = vpop.f32.mrb[0].mxu0
        %v5533 = vadd.f32 %v4743, %v5532
        %v5534 = vpop.f32.mrb[0].mxu0
        %v5535 = vadd.f32 %v4739, %v5534
        %v5536 = vpop.f32.mrb[0].mxu0
        %v5537 = vadd.f32 %v4743, %v5536
        %5538 = vmatprep.mubr.bf16.mxu0 %v4603
        %5539 = vmatmul.mubr.bf16.gmra.mrb[0].mxu0 %v4602
        %v5540 = vpop.f32.mrb[0].mxu0
        %v5541 = vadd.f32 %v4739, %v5540
        %v5542 = vpop.f32.mrb[0].mxu0
        %v5543 = vadd.f32 %v4743, %v5542
        %v5544 = vpop.f32.mrb[0].mxu0
        %v5545 = vadd.f32 %v4739, %v5544
        %v5546 = vpop.f32.mrb[0].mxu0
        %v5547 = vadd.f32 %v4743, %v5546
        %5548 = vdwg.mxu0
        %5549 = vmatprep.subr.bf16.mxu0 %v5205
        %5550 = vmatpush1.bf16.msra.mxu0 %v5204
        %5551 = vmatprep.subr.bf16.mxu0 %v5209
        %5552 = vmatpush1.bf16.msra.mxu0 %v5208
        %5553 = vmatprep.subr.bf16.mxu0 %v5213
        %5554 = vmatpush1.bf16.msra.mxu0 %v5212
        %5555 = vmatprep.subr.bf16.mxu0 %v5217
        %5556 = vmatpush1.bf16.msra.mxu0 %v5216
        %5557 = vmatprep.subr.bf16.mxu0 %v5221
        %5558 = vmatpush1.bf16.msra.mxu0 %v5220
        %5559 = vmatprep.subr.bf16.mxu0 %v5225
        %5560 = vmatpush1.bf16.msra.mxu0 %v5224
        %5561 = vmatprep.subr.bf16.mxu0 %v5229
        %5562 = vmatpush1.bf16.msra.mxu0 %v5228
        %5563 = vmatprep.subr.bf16.mxu0 %v5233
        %5564 = vmatpush1.bf16.msra.mxu0 %v5232
        %5565 = vmatprep.subr.bf16.mxu0 %v5237
        %5566 = vmatpush1.bf16.msra.mxu0 %v5236
        %5567 = vmatprep.subr.bf16.mxu0 %v5241
        %5568 = vmatpush1.bf16.msra.mxu0 %v5240
        %5569 = vmatprep.subr.bf16.mxu0 %v5245
        %5570 = vmatpush1.bf16.msra.mxu0 %v5244
        %5571 = vmatprep.subr.bf16.mxu0 %v5249
        %5572 = vmatpush1.bf16.msra.mxu0 %v5248
        %5573 = vmatprep.subr.bf16.mxu0 %v5253
        %5574 = vmatpush1.bf16.msra.mxu0 %v5252
        %5575 = vmatprep.subr.bf16.mxu0 %v5257
        %5576 = vmatpush1.bf16.msra.mxu0 %v5256
        %5577 = vmatprep.subr.bf16.mxu0 %v5261
        %5578 = vmatpush1.bf16.msra.mxu0 %v5260
        %5579 = vmatprep.subr.bf16.mxu0 %v5265
        %5580 = vmatpush1.bf16.msra.mxu0 %v5264
        %5581 = vmatprep.mubr.bf16.mxu0 %v4561
        %5582 = vmatmul.mubr.bf16.gmra.mrb[0].mxu0 %v4560
        %v5583 = vpop.f32.mrb[0].mxu0
        %v5584 = vadd.f32 %v5431, %v5583
        %v5585 = vpop.f32.mrb[0].mxu0
        %v5586 = vadd.f32 %v5433, %v5585
        %v5587 = vpop.f32.mrb[0].mxu0
        %v5588 = vadd.f32 %v5435, %v5587
        %v5589 = vpop.f32.mrb[0].mxu0
        %v5590 = vadd.f32 %v5437, %v5589
        %5591 = vmatprep.mubr.bf16.mxu0 %v4565
        %5592 = vmatmul.mubr.bf16.gmra.mrb[0].mxu0 %v4564
        %v5593 = vpop.f32.mrb[0].mxu0
        %v5594 = vadd.f32 %v5441, %v5593
        %v5595 = vpop.f32.mrb[0].mxu0
        %v5596 = vadd.f32 %v5443, %v5595
        %v5597 = vpop.f32.mrb[0].mxu0
        %v5598 = vadd.f32 %v5445, %v5597
        %v5599 = vpop.f32.mrb[0].mxu0
        %v5600 = vadd.f32 %v5447, %v5599
        %5601 = vmatprep.mubr.bf16.mxu0 %v4569
        %5602 = vmatmul.mubr.bf16.gmra.mrb[0].mxu0 %v4568
        %v5603 = vpop.f32.mrb[0].mxu0
        %v5604 = vadd.f32 %v5451, %v5603
        %v5605 = vpop.f32.mrb[0].mxu0
        %v5606 = vadd.f32 %v5453, %v5605
        %v5607 = vpop.f32.mrb[0].mxu0
        %v5608 = vadd.f32 %v5455, %v5607
        %v5609 = vpop.f32.mrb[0].mxu0
        %v5610 = vadd.f32 %v5457, %v5609
        %5611 = vmatprep.mubr.bf16.mxu0 %v4573
        %5612 = vmatmul.mubr.bf16.gmra.mrb[0].mxu0 %v4572
        %v5613 = vpop.f32.mrb[0].mxu0
        %v5614 = vadd.f32 %v5461, %v5613
        %v5615 = vpop.f32.mrb[0].mxu0
        %v5616 = vadd.f32 %v5463, %v5615
        %v5617 = vpop.f32.mrb[0].mxu0
        %v5618 = vadd.f32 %v5465, %v5617
        %v5619 = vpop.f32.mrb[0].mxu0
        %v5620 = vadd.f32 %v5467, %v5619
        %5621 = vmatprep.mubr.bf16.mxu0 %v4577
        %5622 = vmatmul.mubr.bf16.gmra.mrb[0].mxu0 %v4576
        %v5623 = vpop.f32.mrb[0].mxu0
        %v5624 = vadd.f32 %v5471, %v5623
        %v5625 = vpop.f32.mrb[0].mxu0
        %v5626 = vadd.f32 %v5473, %v5625
        %v5627 = vpop.f32.mrb[0].mxu0
        %v5628 = vadd.f32 %v5475, %v5627
        %v5629 = vpop.f32.mrb[0].mxu0
        %v5630 = vadd.f32 %v5477, %v5629
        %5631 = vmatprep.mubr.bf16.mxu0 %v4581
        %5632 = vmatmul.mubr.bf16.gmra.mrb[0].mxu0 %v4580
        %v5633 = vpop.f32.mrb[0].mxu0
        %v5634 = vadd.f32 %v5481, %v5633
        %v5635 = vpop.f32.mrb[0].mxu0
        %v5636 = vadd.f32 %v5483, %v5635
        %v5637 = vpop.f32.mrb[0].mxu0
        %v5638 = vadd.f32 %v5485, %v5637
        %v5639 = vpop.f32.mrb[0].mxu0
        %v5640 = vadd.f32 %v5487, %v5639
        %5641 = vmatprep.mubr.bf16.mxu0 %v4585
        %5642 = vmatmul.mubr.bf16.gmra.mrb[0].mxu0 %v4584
        %v5643 = vpop.f32.mrb[0].mxu0
        %v5644 = vadd.f32 %v5491, %v5643
        %v5645 = vpop.f32.mrb[0].mxu0
        %v5646 = vadd.f32 %v5493, %v5645
        %v5647 = vpop.f32.mrb[0].mxu0
        %v5648 = vadd.f32 %v5495, %v5647
        %v5649 = vpop.f32.mrb[0].mxu0
        %v5650 = vadd.f32 %v5497, %v5649
        %5651 = vmatprep.mubr.bf16.mxu0 %v4589
        %5652 = vmatmul.mubr.bf16.gmra.mrb[0].mxu0 %v4588
        %v5653 = vpop.f32.mrb[0].mxu0
        %v5654 = vadd.f32 %v5501, %v5653
        %v5655 = vpop.f32.mrb[0].mxu0
        %v5656 = vadd.f32 %v5503, %v5655
        %v5657 = vpop.f32.mrb[0].mxu0
        %v5658 = vadd.f32 %v5505, %v5657
        %v5659 = vpop.f32.mrb[0].mxu0
        %v5660 = vadd.f32 %v5507, %v5659
        %5661 = vmatprep.mubr.bf16.mxu0 %v4593
        %5662 = vmatmul.mubr.bf16.gmra.mrb[0].mxu0 %v4592
        %v5663 = vpop.f32.mrb[0].mxu0
        %v5664 = vadd.f32 %v5511, %v5663
        %v5665 = vpop.f32.mrb[0].mxu0
        %v5666 = vadd.f32 %v5513, %v5665
        %v5667 = vpop.f32.mrb[0].mxu0
        %v5668 = vadd.f32 %v5515, %v5667
        %v5669 = vpop.f32.mrb[0].mxu0
        %v5670 = vadd.f32 %v5517, %v5669
        %5671 = vmatprep.mubr.bf16.mxu0 %v4597
        %5672 = vmatmul.mubr.bf16.gmra.mrb[0].mxu0 %v4596
        %v5673 = vpop.f32.mrb[0].mxu0
        %v5674 = vadd.f32 %v5521, %v5673
        %v5675 = vpop.f32.mrb[0].mxu0
        %v5676 = vadd.f32 %v5523, %v5675
        %v5677 = vpop.f32.mrb[0].mxu0
        %v5678 = vadd.f32 %v5525, %v5677
        %v5679 = vpop.f32.mrb[0].mxu0
        %v5680 = vadd.f32 %v5527, %v5679
        %5681 = vmatprep.mubr.bf16.mxu0 %v4601
        %5682 = vmatmul.mubr.bf16.gmra.mrb[0].mxu0 %v4600
        %v5683 = vpop.f32.mrb[0].mxu0
        %v5684 = vadd.f32 %v5531, %v5683
        %v5685 = vpop.f32.mrb[0].mxu0
        %v5686 = vadd.f32 %v5533, %v5685
        %v5687 = vpop.f32.mrb[0].mxu0
        %v5688 = vadd.f32 %v5535, %v5687
        %v5689 = vpop.f32.mrb[0].mxu0
        %v5690 = vadd.f32 %v5537, %v5689
        %5691 = vmatprep.mubr.bf16.mxu0 %v4605
        %5692 = vmatmul.mubr.bf16.gmra.mrb[0].mxu0 %v4604
        %v5693 = vpop.f32.mrb[0].mxu0
        %v5694 = vadd.f32 %v5541, %v5693
        %v5695 = vpop.f32.mrb[0].mxu0
        %v5696 = vadd.f32 %v5543, %v5695
        %v5697 = vpop.f32.mrb[0].mxu0
        %v5698 = vadd.f32 %v5545, %v5697
        %v5699 = vpop.f32.mrb[0].mxu0
        %v5700 = vadd.f32 %v5547, %v5699
        %5701 = vdwg.mxu0
        %5702 = vmatprep.subr.bf16.mxu0 %v5143
        %5703 = vmatpush1.bf16.msra.mxu0 %v5142
        %5704 = vmatprep.subr.bf16.mxu0 %v5147
        %5705 = vmatpush1.bf16.msra.mxu0 %v5146
        %5706 = vmatprep.subr.bf16.mxu0 %v5151
        %5707 = vmatpush1.bf16.msra.mxu0 %v5150
        %5708 = vmatprep.subr.bf16.mxu0 %v5155
        %5709 = vmatpush1.bf16.msra.mxu0 %v5154
        %5710 = vmatprep.subr.bf16.mxu0 %v5159
        %5711 = vmatpush1.bf16.msra.mxu0 %v5158
        %5712 = vmatprep.subr.bf16.mxu0 %v5163
        %5713 = vmatpush1.bf16.msra.mxu0 %v5162
        %5714 = vmatprep.subr.bf16.mxu0 %v5167
        %5715 = vmatpush1.bf16.msra.mxu0 %v5166
        %5716 = vmatprep.subr.bf16.mxu0 %v5171
        %5717 = vmatpush1.bf16.msra.mxu0 %v5170
        %5718 = vmatprep.subr.bf16.mxu0 %v5175
        %5719 = vmatpush1.bf16.msra.mxu0 %v5174
        %5720 = vmatprep.subr.bf16.mxu0 %v5179
        %5721 = vmatpush1.bf16.msra.mxu0 %v5178
        %5722 = vmatprep.subr.bf16.mxu0 %v5183
        %5723 = vmatpush1.bf16.msra.mxu0 %v5182
        %5724 = vmatprep.subr.bf16.mxu0 %v5187
        %5725 = vmatpush1.bf16.msra.mxu0 %v5186
        %5726 = vmatprep.subr.bf16.mxu0 %v5191
        %5727 = vmatpush1.bf16.msra.mxu0 %v5190
        %5728 = vmatprep.subr.bf16.mxu0 %v5195
        %5729 = vmatpush1.bf16.msra.mxu0 %v5194
        %5730 = vmatprep.subr.bf16.mxu0 %v5199
        %5731 = vmatpush1.bf16.msra.mxu0 %v5198
        %5732 = vmatprep.subr.bf16.mxu0 %v5203
        %5733 = vmatpush1.bf16.msra.mxu0 %v5202
        %5734 = vmatprep.mubr.bf16.mxu0 %v4559
        %5735 = vmatmul.mubr.bf16.gmra.mrb[0].mxu0 %v4558
        %v5736 = vpop.f32.mrb[0].mxu0
        %v5737 = vadd.f32 %v4747, %v5736
        %v5738 = vpop.f32.mrb[0].mxu0
        %v5739 = vadd.f32 %v4751, %v5738
        %v5740 = vpop.f32.mrb[0].mxu0
        %v5741 = vadd.f32 %v4747, %v5740
        %v5742 = vpop.f32.mrb[0].mxu0
        %v5743 = vadd.f32 %v4751, %v5742
        %5744 = vmatprep.mubr.bf16.mxu0 %v4563
        %5745 = vmatmul.mubr.bf16.gmra.mrb[0].mxu0 %v4562
        %v5746 = vpop.f32.mrb[0].mxu0
        %v5747 = vadd.f32 %v4747, %v5746
        %v5748 = vpop.f32.mrb[0].mxu0
        %v5749 = vadd.f32 %v4751, %v5748
        %v5750 = vpop.f32.mrb[0].mxu0
        %v5751 = vadd.f32 %v4747, %v5750
        %v5752 = vpop.f32.mrb[0].mxu0
        %v5753 = vadd.f32 %v4751, %v5752
        %5754 = vmatprep.mubr.bf16.mxu0 %v4567
        %5755 = vmatmul.mubr.bf16.gmra.mrb[0].mxu0 %v4566
        %v5756 = vpop.f32.mrb[0].mxu0
        %v5757 = vadd.f32 %v4747, %v5756
        %v5758 = vpop.f32.mrb[0].mxu0
        %v5759 = vadd.f32 %v4751, %v5758
        %v5760 = vpop.f32.mrb[0].mxu0
        %v5761 = vadd.f32 %v4747, %v5760
        %v5762 = vpop.f32.mrb[0].mxu0
        %v5763 = vadd.f32 %v4751, %v5762
        %5764 = vmatprep.mubr.bf16.mxu0 %v4571
        %5765 = vmatmul.mubr.bf16.gmra.mrb[0].mxu0 %v4570
        %v5766 = vpop.f32.mrb[0].mxu0
        %v5767 = vadd.f32 %v4747, %v5766
        %v5768 = vpop.f32.mrb[0].mxu0
        %v5769 = vadd.f32 %v4751, %v5768
        %v5770 = vpop.f32.mrb[0].mxu0
        %v5771 = vadd.f32 %v4747, %v5770
        %v5772 = vpop.f32.mrb[0].mxu0
        %v5773 = vadd.f32 %v4751, %v5772
        %5774 = vmatprep.mubr.bf16.mxu0 %v4575
        %5775 = vmatmul.mubr.bf16.gmra.mrb[0].mxu0 %v4574
        %v5776 = vpop.f32.mrb[0].mxu0
        %v5777 = vadd.f32 %v4747, %v5776
        %v5778 = vpop.f32.mrb[0].mxu0
        %v5779 = vadd.f32 %v4751, %v5778
        %v5780 = vpop.f32.mrb[0].mxu0
        %v5781 = vadd.f32 %v4747, %v5780
        %v5782 = vpop.f32.mrb[0].mxu0
        %v5783 = vadd.f32 %v4751, %v5782
        %5784 = vmatprep.mubr.bf16.mxu0 %v4579
        %5785 = vmatmul.mubr.bf16.gmra.mrb[0].mxu0 %v4578
        %v5786 = vpop.f32.mrb[0].mxu0
        %v5787 = vadd.f32 %v4747, %v5786
        %v5788 = vpop.f32.mrb[0].mxu0
        %v5789 = vadd.f32 %v4751, %v5788
        %v5790 = vpop.f32.mrb[0].mxu0
        %v5791 = vadd.f32 %v4747, %v5790
        %v5792 = vpop.f32.mrb[0].mxu0
        %v5793 = vadd.f32 %v4751, %v5792
        %5794 = vmatprep.mubr.bf16.mxu0 %v4583
        %5795 = vmatmul.mubr.bf16.gmra.mrb[0].mxu0 %v4582
        %v5796 = vpop.f32.mrb[0].mxu0
        %v5797 = vadd.f32 %v4747, %v5796
        %v5798 = vpop.f32.mrb[0].mxu0
        %v5799 = vadd.f32 %v4751, %v5798
        %v5800 = vpop.f32.mrb[0].mxu0
        %v5801 = vadd.f32 %v4747, %v5800
        %v5802 = vpop.f32.mrb[0].mxu0
        %v5803 = vadd.f32 %v4751, %v5802
        %5804 = vmatprep.mubr.bf16.mxu0 %v4587
        %5805 = vmatmul.mubr.bf16.gmra.mrb[0].mxu0 %v4586
        %v5806 = vpop.f32.mrb[0].mxu0
        %v5807 = vadd.f32 %v4747, %v5806
        %v5808 = vpop.f32.mrb[0].mxu0
        %v5809 = vadd.f32 %v4751, %v5808
        %v5810 = vpop.f32.mrb[0].mxu0
        %v5811 = vadd.f32 %v4747, %v5810
        %v5812 = vpop.f32.mrb[0].mxu0
        %v5813 = vadd.f32 %v4751, %v5812
        %5814 = vmatprep.mubr.bf16.mxu0 %v4591
        %5815 = vmatmul.mubr.bf16.gmra.mrb[0].mxu0 %v4590
        %v5816 = vpop.f32.mrb[0].mxu0
        %v5817 = vadd.f32 %v4747, %v5816
        %v5818 = vpop.f32.mrb[0].mxu0
        %v5819 = vadd.f32 %v4751, %v5818
        %v5820 = vpop.f32.mrb[0].mxu0
        %v5821 = vadd.f32 %v4747, %v5820
        %v5822 = vpop.f32.mrb[0].mxu0
        %v5823 = vadd.f32 %v4751, %v5822
        %5824 = vmatprep.mubr.bf16.mxu0 %v4595
        %5825 = vmatmul.mubr.bf16.gmra.mrb[0].mxu0 %v4594
        %v5826 = vpop.f32.mrb[0].mxu0
        %v5827 = vadd.f32 %v4747, %v5826
        %v5828 = vpop.f32.mrb[0].mxu0
        %v5829 = vadd.f32 %v4751, %v5828
        %v5830 = vpop.f32.mrb[0].mxu0
        %v5831 = vadd.f32 %v4747, %v5830
        %v5832 = vpop.f32.mrb[0].mxu0
        %v5833 = vadd.f32 %v4751, %v5832
        %5834 = vmatprep.mubr.bf16.mxu0 %v4599
        %5835 = vmatmul.mubr.bf16.gmra.mrb[0].mxu0 %v4598
        %v5836 = vpop.f32.mrb[0].mxu0
        %v5837 = vadd.f32 %v4747, %v5836
        %v5838 = vpop.f32.mrb[0].mxu0
        %v5839 = vadd.f32 %v4751, %v5838
        %v5840 = vpop.f32.mrb[0].mxu0
        %v5841 = vadd.f32 %v4747, %v5840
        %v5842 = vpop.f32.mrb[0].mxu0
        %v5843 = vadd.f32 %v4751, %v5842
        %5844 = vmatprep.mubr.bf16.mxu0 %v4603
        %5845 = vmatmul.mubr.bf16.gmra.mrb[0].mxu0 %v4602
        %v5846 = vpop.f32.mrb[0].mxu0
        %v5847 = vadd.f32 %v4747, %v5846
        %v5848 = vpop.f32.mrb[0].mxu0
        %v5849 = vadd.f32 %v4751, %v5848
        %v5850 = vpop.f32.mrb[0].mxu0
        %v5851 = vadd.f32 %v4747, %v5850
        %v5852 = vpop.f32.mrb[0].mxu0
        %v5853 = vadd.f32 %v4751, %v5852
        %5854 = vdwg.mxu0
        %5855 = vmatprep.subr.bf16.mxu0 %v5207
        %5856 = vmatpush1.bf16.msra.mxu0 %v5206
        %5857 = vmatprep.subr.bf16.mxu0 %v5211
        %5858 = vmatpush1.bf16.msra.mxu0 %v5210
        %5859 = vmatprep.subr.bf16.mxu0 %v5215
        %5860 = vmatpush1.bf16.msra.mxu0 %v5214
        %5861 = vmatprep.subr.bf16.mxu0 %v5219
        %5862 = vmatpush1.bf16.msra.mxu0 %v5218
        %5863 = vmatprep.subr.bf16.mxu0 %v5223
        %5864 = vmatpush1.bf16.msra.mxu0 %v5222
        %5865 = vmatprep.subr.bf16.mxu0 %v5227
        %5866 = vmatpush1.bf16.msra.mxu0 %v5226
        %5867 = vmatprep.subr.bf16.mxu0 %v5231
        %5868 = vmatpush1.bf16.msra.mxu0 %v5230
        %5869 = vmatprep.subr.bf16.mxu0 %v5235
        %5870 = vmatpush1.bf16.msra.mxu0 %v5234
        %5871 = vmatprep.subr.bf16.mxu0 %v5239
        %5872 = vmatpush1.bf16.msra.mxu0 %v5238
        %5873 = vmatprep.subr.bf16.mxu0 %v5243
        %5874 = vmatpush1.bf16.msra.mxu0 %v5242
        %5875 = vmatprep.subr.bf16.mxu0 %v5247
        %5876 = vmatpush1.bf16.msra.mxu0 %v5246
        %5877 = vmatprep.subr.bf16.mxu0 %v5251
        %5878 = vmatpush1.bf16.msra.mxu0 %v5250
        %5879 = vmatprep.subr.bf16.mxu0 %v5255
        %5880 = vmatpush1.bf16.msra.mxu0 %v5254
        %5881 = vmatprep.subr.bf16.mxu0 %v5259
        %5882 = vmatpush1.bf16.msra.mxu0 %v5258
        %5883 = vmatprep.subr.bf16.mxu0 %v5263
        %5884 = vmatpush1.bf16.msra.mxu0 %v5262
        %5885 = vmatprep.subr.bf16.mxu0 %v5267
        %5886 = vmatpush1.bf16.msra.mxu0 %v5266
        %5887 = vmatprep.mubr.bf16.mxu0 %v4561
        %5888 = vmatmul.mubr.bf16.gmra.mrb[0].mxu0 %v4560
        %v5889 = vpop.f32.mrb[0].mxu0
        %v5890 = vadd.f32 %v5737, %v5889
        %v5891 = vpop.f32.mrb[0].mxu0
        %v5892 = vadd.f32 %v5739, %v5891
        %v5893 = vpop.f32.mrb[0].mxu0
        %v5894 = vadd.f32 %v5741, %v5893
        %v5895 = vpop.f32.mrb[0].mxu0
        %v5896 = vadd.f32 %v5743, %v5895
        %5897 = vmatprep.mubr.bf16.mxu0 %v4565
        %5898 = vmatmul.mubr.bf16.gmra.mrb[0].mxu0 %v4564
        %v5899 = vpop.f32.mrb[0].mxu0
        %v5900 = vadd.f32 %v5747, %v5899
        %v5901 = vpop.f32.mrb[0].mxu0
        %v5902 = vadd.f32 %v5749, %v5901
        %v5903 = vpop.f32.mrb[0].mxu0
        %v5904 = vadd.f32 %v5751, %v5903
        %v5905 = vpop.f32.mrb[0].mxu0
        %v5906 = vadd.f32 %v5753, %v5905
        %5907 = vmatprep.mubr.bf16.mxu0 %v4569
        %5908 = vmatmul.mubr.bf16.gmra.mrb[0].mxu0 %v4568
        %v5909 = vpop.f32.mrb[0].mxu0
        %v5910 = vadd.f32 %v5757, %v5909
        %v5911 = vpop.f32.mrb[0].mxu0
        %v5912 = vadd.f32 %v5759, %v5911
        %v5913 = vpop.f32.mrb[0].mxu0
        %v5914 = vadd.f32 %v5761, %v5913
        %v5915 = vpop.f32.mrb[0].mxu0
        %v5916 = vadd.f32 %v5763, %v5915
        %5917 = vmatprep.mubr.bf16.mxu0 %v4573
        %5918 = vmatmul.mubr.bf16.gmra.mrb[0].mxu0 %v4572
        %v5919 = vpop.f32.mrb[0].mxu0
        %v5920 = vadd.f32 %v5767, %v5919
        %v5921 = vpop.f32.mrb[0].mxu0
        %v5922 = vadd.f32 %v5769, %v5921
        %v5923 = vpop.f32.mrb[0].mxu0
        %v5924 = vadd.f32 %v5771, %v5923
        %v5925 = vpop.f32.mrb[0].mxu0
        %v5926 = vadd.f32 %v5773, %v5925
        %5927 = vmatprep.mubr.bf16.mxu0 %v4577
        %5928 = vmatmul.mubr.bf16.gmra.mrb[0].mxu0 %v4576
        %v5929 = vpop.f32.mrb[0].mxu0
        %v5930 = vadd.f32 %v5777, %v5929
        %v5931 = vpop.f32.mrb[0].mxu0
        %v5932 = vadd.f32 %v5779, %v5931
        %v5933 = vpop.f32.mrb[0].mxu0
        %v5934 = vadd.f32 %v5781, %v5933
        %v5935 = vpop.f32.mrb[0].mxu0
        %v5936 = vadd.f32 %v5783, %v5935
        %5937 = vmatprep.mubr.bf16.mxu0 %v4581
        %5938 = vmatmul.mubr.bf16.gmra.mrb[0].mxu0 %v4580
        %v5939 = vpop.f32.mrb[0].mxu0
        %v5940 = vadd.f32 %v5787, %v5939
        %v5941 = vpop.f32.mrb[0].mxu0
        %v5942 = vadd.f32 %v5789, %v5941
        %v5943 = vpop.f32.mrb[0].mxu0
        %v5944 = vadd.f32 %v5791, %v5943
        %v5945 = vpop.f32.mrb[0].mxu0
        %v5946 = vadd.f32 %v5793, %v5945
        %5947 = vmatprep.mubr.bf16.mxu0 %v4585
        %5948 = vmatmul.mubr.bf16.gmra.mrb[0].mxu0 %v4584
        %v5949 = vpop.f32.mrb[0].mxu0
        %v5950 = vadd.f32 %v5797, %v5949
        %v5951 = vpop.f32.mrb[0].mxu0
        %v5952 = vadd.f32 %v5799, %v5951
        %v5953 = vpop.f32.mrb[0].mxu0
        %v5954 = vadd.f32 %v5801, %v5953
        %v5955 = vpop.f32.mrb[0].mxu0
        %v5956 = vadd.f32 %v5803, %v5955
        %5957 = vmatprep.mubr.bf16.mxu0 %v4589
        %5958 = vmatmul.mubr.bf16.gmra.mrb[0].mxu0 %v4588
        %v5959 = vpop.f32.mrb[0].mxu0
        %v5960 = vadd.f32 %v5807, %v5959
        %v5961 = vpop.f32.mrb[0].mxu0
        %v5962 = vadd.f32 %v5809, %v5961
        %v5963 = vpop.f32.mrb[0].mxu0
        %v5964 = vadd.f32 %v5811, %v5963
        %v5965 = vpop.f32.mrb[0].mxu0
        %v5966 = vadd.f32 %v5813, %v5965
        %5967 = vmatprep.mubr.bf16.mxu0 %v4593
        %5968 = vmatmul.mubr.bf16.gmra.mrb[0].mxu0 %v4592
        %v5969 = vpop.f32.mrb[0].mxu0
        %v5970 = vadd.f32 %v5817, %v5969
        %v5971 = vpop.f32.mrb[0].mxu0
        %v5972 = vadd.f32 %v5819, %v5971
        %v5973 = vpop.f32.mrb[0].mxu0
        %v5974 = vadd.f32 %v5821, %v5973
        %v5975 = vpop.f32.mrb[0].mxu0
        %v5976 = vadd.f32 %v5823, %v5975
        %5977 = vmatprep.mubr.bf16.mxu0 %v4597
        %5978 = vmatmul.mubr.bf16.gmra.mrb[0].mxu0 %v4596
        %v5979 = vpop.f32.mrb[0].mxu0
        %v5980 = vadd.f32 %v5827, %v5979
        %v5981 = vpop.f32.mrb[0].mxu0
        %v5982 = vadd.f32 %v5829, %v5981
        %v5983 = vpop.f32.mrb[0].mxu0
        %v5984 = vadd.f32 %v5831, %v5983
        %v5985 = vpop.f32.mrb[0].mxu0
        %v5986 = vadd.f32 %v5833, %v5985
        %5987 = vmatprep.mubr.bf16.mxu0 %v4601
        %5988 = vmatmul.mubr.bf16.gmra.mrb[0].mxu0 %v4600
        %v5989 = vpop.f32.mrb[0].mxu0
        %v5990 = vadd.f32 %v5837, %v5989
        %v5991 = vpop.f32.mrb[0].mxu0
        %v5992 = vadd.f32 %v5839, %v5991
        %v5993 = vpop.f32.mrb[0].mxu0
        %v5994 = vadd.f32 %v5841, %v5993
        %v5995 = vpop.f32.mrb[0].mxu0
        %v5996 = vadd.f32 %v5843, %v5995
        %5997 = vmatprep.mubr.bf16.mxu0 %v4605
        %5998 = vmatmul.mubr.bf16.gmra.mrb[0].mxu0 %v4604
        %v5999 = vpop.f32.mrb[0].mxu0
        %v6000 = vadd.f32 %v5847, %v5999
        %v6001 = vpop.f32.mrb[0].mxu0
        %v6002 = vadd.f32 %v5849, %v6001
        %v6003 = vpop.f32.mrb[0].mxu0
        %v6004 = vadd.f32 %v5851, %v6003
        %v6005 = vpop.f32.mrb[0].mxu0
        %v6006 = vadd.f32 %v5853, %v6005
        %6007 = vdwg.mxu0
        %s6008 = scalar_lea.vmem %s6, 1
        %v6009 = vld [vmem:[%s6008] ss:$4 sm:$0xf]
        %s6010 = scalar_lea.vmem %s6, 2
        %v6011 = vld [vmem:[%s6010] ss:$4 sm:$0xf]
        %v6012 = vadd.f32 %v5584, %v5586
        %v6013 = vadd.f32 %v6012, %v5890
        %v6014 = vadd.f32 %v6013, %v5892
        %6015 = vadd.xlane.f32.xlu0 %v6014
        %v6016 = vpop.xlane.xlu0 %6015
        %v6017 = vadd.f32 %v5588, %v5590
        %v6018 = vadd.f32 %v6017, %v5894
        %v6019 = vadd.f32 %v6018, %v5896
        %6020 = vadd.xlane.f32.xlu0 %v6019
        %v6021 = vpop.xlane.xlu0 %6020
        %v6022 = vadd.f32 %v5594, %v5596
        %v6023 = vadd.f32 %v6022, %v5900
        %v6024 = vadd.f32 %v6023, %v5902
        %6025 = vadd.xlane.f32.xlu0 %v6024
        %v6026 = vpop.xlane.xlu0 %6025
        %v6027 = vadd.f32 %v5598, %v5600
        %v6028 = vadd.f32 %v6027, %v5904
        %v6029 = vadd.f32 %v6028, %v5906
        %6030 = vadd.xlane.f32.xlu0 %v6029
        %v6031 = vpop.xlane.xlu0 %6030
        %v6032 = vadd.f32 %v5604, %v5606
        %v6033 = vadd.f32 %v6032, %v5910
        %v6034 = vadd.f32 %v6033, %v5912
        %6035 = vadd.xlane.f32.xlu0 %v6034
        %v6036 = vpop.xlane.xlu0 %6035
        %v6037 = vadd.f32 %v5608, %v5610
        %v6038 = vadd.f32 %v6037, %v5914
        %v6039 = vadd.f32 %v6038, %v5916
        %6040 = vadd.xlane.f32.xlu0 %v6039
        %v6041 = vpop.xlane.xlu0 %6040
        %v6042 = vadd.f32 %v5614, %v5616
        %v6043 = vadd.f32 %v6042, %v5920
        %v6044 = vadd.f32 %v6043, %v5922
        %6045 = vadd.xlane.f32.xlu0 %v6044
        %v6046 = vpop.xlane.xlu0 %6045
        %v6047 = vadd.f32 %v5618, %v5620
        %v6048 = vadd.f32 %v6047, %v5924
        %v6049 = vadd.f32 %v6048, %v5926
        %6050 = vadd.xlane.f32.xlu0 %v6049
        %v6051 = vpop.xlane.xlu0 %6050
        %v6052 = vadd.f32 %v5624, %v5626
        %v6053 = vadd.f32 %v6052, %v5930
        %v6054 = vadd.f32 %v6053, %v5932
        %6055 = vadd.xlane.f32.xlu0 %v6054
        %v6056 = vpop.xlane.xlu0 %6055
        %v6057 = vadd.f32 %v5628, %v5630
        %v6058 = vadd.f32 %v6057, %v5934
        %v6059 = vadd.f32 %v6058, %v5936
        %6060 = vadd.xlane.f32.xlu0 %v6059
        %v6061 = vpop.xlane.xlu0 %6060
        %v6062 = vadd.f32 %v5634, %v5636
        %v6063 = vadd.f32 %v6062, %v5940
        %v6064 = vadd.f32 %v6063, %v5942
        %6065 = vadd.xlane.f32.xlu0 %v6064
        %v6066 = vpop.xlane.xlu0 %6065
        %v6067 = vadd.f32 %v5638, %v5640
        %v6068 = vadd.f32 %v6067, %v5944
        %v6069 = vadd.f32 %v6068, %v5946
        %6070 = vadd.xlane.f32.xlu0 %v6069
        %v6071 = vpop.xlane.xlu0 %6070
        %v6072 = vadd.f32 %v5644, %v5646
        %v6073 = vadd.f32 %v6072, %v5950
        %v6074 = vadd.f32 %v6073, %v5952
        %6075 = vadd.xlane.f32.xlu0 %v6074
        %v6076 = vpop.xlane.xlu0 %6075
        %v6077 = vadd.f32 %v5648, %v5650
        %v6078 = vadd.f32 %v6077, %v5954
        %v6079 = vadd.f32 %v6078, %v5956
        %6080 = vadd.xlane.f32.xlu0 %v6079
        %v6081 = vpop.xlane.xlu0 %6080
        %v6082 = vadd.f32 %v5654, %v5656
        %v6083 = vadd.f32 %v6082, %v5960
        %v6084 = vadd.f32 %v6083, %v5962
        %6085 = vadd.xlane.f32.xlu0 %v6084
        %v6086 = vpop.xlane.xlu0 %6085
        %v6087 = vadd.f32 %v5658, %v5660
        %v6088 = vadd.f32 %v6087, %v5964
        %v6089 = vadd.f32 %v6088, %v5966
        %6090 = vadd.xlane.f32.xlu0 %v6089
        %v6091 = vpop.xlane.xlu0 %6090
        %v6092 = vadd.f32 %v5664, %v5666
        %v6093 = vadd.f32 %v6092, %v5970
        %v6094 = vadd.f32 %v6093, %v5972
        %6095 = vadd.xlane.f32.xlu0 %v6094
        %v6096 = vpop.xlane.xlu0 %6095
        %v6097 = vadd.f32 %v5668, %v5670
        %v6098 = vadd.f32 %v6097, %v5974
        %v6099 = vadd.f32 %v6098, %v5976
        %6100 = vadd.xlane.f32.xlu0 %v6099
        %v6101 = vpop.xlane.xlu0 %6100
        %v6102 = vadd.f32 %v5674, %v5676
        %v6103 = vadd.f32 %v6102, %v5980
        %v6104 = vadd.f32 %v6103, %v5982
        %6105 = vadd.xlane.f32.xlu0 %v6104
        %v6106 = vpop.xlane.xlu0 %6105
        %v6107 = vadd.f32 %v5678, %v5680
        %v6108 = vadd.f32 %v6107, %v5984
        %v6109 = vadd.f32 %v6108, %v5986
        %6110 = vadd.xlane.f32.xlu0 %v6109
        %v6111 = vpop.xlane.xlu0 %6110
        %v6112 = vadd.f32 %v5684, %v5686
        %v6113 = vadd.f32 %v6112, %v5990
        %v6114 = vadd.f32 %v6113, %v5992
        %6115 = vadd.xlane.f32.xlu0 %v6114
        %v6116 = vpop.xlane.xlu0 %6115
        %v6117 = vadd.f32 %v5688, %v5690
        %v6118 = vadd.f32 %v6117, %v5994
        %v6119 = vadd.f32 %v6118, %v5996
        %6120 = vadd.xlane.f32.xlu0 %v6119
        %v6121 = vpop.xlane.xlu0 %6120
        %v6122 = vadd.f32 %v5694, %v5696
        %v6123 = vadd.f32 %v6122, %v6000
        %v6124 = vadd.f32 %v6123, %v6002
        %6125 = vadd.xlane.f32.xlu0 %v6124
        %v6126 = vpop.xlane.xlu0 %6125
        %v6127 = vadd.f32 %v5698, %v5700
        %v6128 = vadd.f32 %v6127, %v6004
        %v6129 = vadd.f32 %v6128, %v6006
        %6130 = vadd.xlane.f32.xlu0 %v6129
        %v6131 = vpop.xlane.xlu0 %6130
        %v6132 = vmul.f32 %v6016, %v1315
        %v6133 = vmul.f32 %v6021, %v1315
        %v6134 = vmul.f32 %v6026, %v1315
        %v6135 = vmul.f32 %v6031, %v1315
        %v6136 = vmul.f32 %v6036, %v1315
        %v6137 = vmul.f32 %v6041, %v1315
        %v6138 = vmul.f32 %v6046, %v1315
        %v6139 = vmul.f32 %v6051, %v1315
        %v6140 = vmul.f32 %v6056, %v1315
        %v6141 = vmul.f32 %v6061, %v1315
        %v6142 = vmul.f32 %v6066, %v1315
        %v6143 = vmul.f32 %v6071, %v1315
        %v6144 = vmul.f32 %v6076, %v1315
        %v6145 = vmul.f32 %v6081, %v1315
        %v6146 = vmul.f32 %v6086, %v1315
        %v6147 = vmul.f32 %v6091, %v1315
        %v6148 = vmul.f32 %v6096, %v1315
        %v6149 = vmul.f32 %v6101, %v1315
        %v6150 = vmul.f32 %v6106, %v1315
        %v6151 = vmul.f32 %v6111, %v1315
        %v6152 = vmul.f32 %v6116, %v1315
        %v6153 = vmul.f32 %v6121, %v1315
        %v6154 = vmul.f32 %v6126, %v1315
        %v6155 = vmul.f32 %v6131, %v1315
        %v6156 = vsub.f32 %v5584, %v6132
        %v6157 = vsub.f32 %v5586, %v6132
        %v6158 = vsub.f32 %v5890, %v6132
        %v6159 = vsub.f32 %v5892, %v6132
        %v6160 = vsub.f32 %v5588, %v6133
        %v6161 = vsub.f32 %v5590, %v6133
        %v6162 = vsub.f32 %v5894, %v6133
        %v6163 = vsub.f32 %v5896, %v6133
        %v6164 = vsub.f32 %v5594, %v6134
        %v6165 = vsub.f32 %v5596, %v6134
        %v6166 = vsub.f32 %v5900, %v6134
        %v6167 = vsub.f32 %v5902, %v6134
        %v6168 = vsub.f32 %v5598, %v6135
        %v6169 = vsub.f32 %v5600, %v6135
        %v6170 = vsub.f32 %v5904, %v6135
        %v6171 = vsub.f32 %v5906, %v6135
        %v6172 = vsub.f32 %v5604, %v6136
        %v6173 = vsub.f32 %v5606, %v6136
        %v6174 = vsub.f32 %v5910, %v6136
        %v6175 = vsub.f32 %v5912, %v6136
        %v6176 = vsub.f32 %v5608, %v6137
        %v6177 = vsub.f32 %v5610, %v6137
        %v6178 = vsub.f32 %v5914, %v6137
        %v6179 = vsub.f32 %v5916, %v6137
        %v6180 = vsub.f32 %v5614, %v6138
        %v6181 = vsub.f32 %v5616, %v6138
        %v6182 = vsub.f32 %v5920, %v6138
        %v6183 = vsub.f32 %v5922, %v6138
        %v6184 = vsub.f32 %v5618, %v6139
        %v6185 = vsub.f32 %v5620, %v6139
        %v6186 = vsub.f32 %v5924, %v6139
        %v6187 = vsub.f32 %v5926, %v6139
        %v6188 = vsub.f32 %v5624, %v6140
        %v6189 = vsub.f32 %v5626, %v6140
        %v6190 = vsub.f32 %v5930, %v6140
        %v6191 = vsub.f32 %v5932, %v6140
        %v6192 = vsub.f32 %v5628, %v6141
        %v6193 = vsub.f32 %v5630, %v6141
        %v6194 = vsub.f32 %v5934, %v6141
        %v6195 = vsub.f32 %v5936, %v6141
        %v6196 = vsub.f32 %v5634, %v6142
        %v6197 = vsub.f32 %v5636, %v6142
        %v6198 = vsub.f32 %v5940, %v6142
        %v6199 = vsub.f32 %v5942, %v6142
        %v6200 = vsub.f32 %v5638, %v6143
        %v6201 = vsub.f32 %v5640, %v6143
        %v6202 = vsub.f32 %v5944, %v6143
        %v6203 = vsub.f32 %v5946, %v6143
        %v6204 = vsub.f32 %v5644, %v6144
        %v6205 = vsub.f32 %v5646, %v6144
        %v6206 = vsub.f32 %v5950, %v6144
        %v6207 = vsub.f32 %v5952, %v6144
        %v6208 = vsub.f32 %v5648, %v6145
        %v6209 = vsub.f32 %v5650, %v6145
        %v6210 = vsub.f32 %v5954, %v6145
        %v6211 = vsub.f32 %v5956, %v6145
        %v6212 = vsub.f32 %v5654, %v6146
        %v6213 = vsub.f32 %v5656, %v6146
        %v6214 = vsub.f32 %v5960, %v6146
        %v6215 = vsub.f32 %v5962, %v6146
        %v6216 = vsub.f32 %v5658, %v6147
        %v6217 = vsub.f32 %v5660, %v6147
        %v6218 = vsub.f32 %v5964, %v6147
        %v6219 = vsub.f32 %v5966, %v6147
        %v6220 = vsub.f32 %v5664, %v6148
        %v6221 = vsub.f32 %v5666, %v6148
        %v6222 = vsub.f32 %v5970, %v6148
        %v6223 = vsub.f32 %v5972, %v6148
        %v6224 = vsub.f32 %v5668, %v6149
        %v6225 = vsub.f32 %v5670, %v6149
        %v6226 = vsub.f32 %v5974, %v6149
        %v6227 = vsub.f32 %v5976, %v6149
        %v6228 = vsub.f32 %v5674, %v6150
        %v6229 = vsub.f32 %v5676, %v6150
        %v6230 = vsub.f32 %v5980, %v6150
        %v6231 = vsub.f32 %v5982, %v6150
        %v6232 = vsub.f32 %v5678, %v6151
        %v6233 = vsub.f32 %v5680, %v6151
        %v6234 = vsub.f32 %v5984, %v6151
        %v6235 = vsub.f32 %v5986, %v6151
        %v6236 = vsub.f32 %v5684, %v6152
        %v6237 = vsub.f32 %v5686, %v6152
        %v6238 = vsub.f32 %v5990, %v6152
        %v6239 = vsub.f32 %v5992, %v6152
        %v6240 = vsub.f32 %v5688, %v6153
        %v6241 = vsub.f32 %v5690, %v6153
        %v6242 = vsub.f32 %v5994, %v6153
        %v6243 = vsub.f32 %v5996, %v6153
        %v6244 = vsub.f32 %v5694, %v6154
        %v6245 = vsub.f32 %v5696, %v6154
        %v6246 = vsub.f32 %v6000, %v6154
        %v6247 = vsub.f32 %v6002, %v6154
        %v6248 = vsub.f32 %v5698, %v6155
        %v6249 = vsub.f32 %v5700, %v6155
        %v6250 = vsub.f32 %v6004, %v6155
        %v6251 = vsub.f32 %v6006, %v6155
        %v6252 = vmul.f32 %v6156, %v6156
        %v6253 = vmul.f32 %v6157, %v6157
        %v6254 = vmul.f32 %v6158, %v6158
        %v6255 = vmul.f32 %v6159, %v6159
        %v6256 = vmul.f32 %v6160, %v6160
        %v6257 = vmul.f32 %v6161, %v6161
        %v6258 = vmul.f32 %v6162, %v6162
        %v6259 = vmul.f32 %v6163, %v6163
        %v6260 = vmul.f32 %v6164, %v6164
        %v6261 = vmul.f32 %v6165, %v6165
        %v6262 = vmul.f32 %v6166, %v6166
        %v6263 = vmul.f32 %v6167, %v6167
        %v6264 = vmul.f32 %v6168, %v6168
        %v6265 = vmul.f32 %v6169, %v6169
        %v6266 = vmul.f32 %v6170, %v6170
        %v6267 = vmul.f32 %v6171, %v6171
        %v6268 = vmul.f32 %v6172, %v6172
        %v6269 = vmul.f32 %v6173, %v6173
        %v6270 = vmul.f32 %v6174, %v6174
        %v6271 = vmul.f32 %v6175, %v6175
        %v6272 = vmul.f32 %v6176, %v6176
        %v6273 = vmul.f32 %v6177, %v6177
        %v6274 = vmul.f32 %v6178, %v6178
        %v6275 = vmul.f32 %v6179, %v6179
        %v6276 = vmul.f32 %v6180, %v6180
        %v6277 = vmul.f32 %v6181, %v6181
        %v6278 = vmul.f32 %v6182, %v6182
        %v6279 = vmul.f32 %v6183, %v6183
        %v6280 = vmul.f32 %v6184, %v6184
        %v6281 = vmul.f32 %v6185, %v6185
        %v6282 = vmul.f32 %v6186, %v6186
        %v6283 = vmul.f32 %v6187, %v6187
        %v6284 = vmul.f32 %v6188, %v6188
        %v6285 = vmul.f32 %v6189, %v6189
        %v6286 = vmul.f32 %v6190, %v6190
        %v6287 = vmul.f32 %v6191, %v6191
        %v6288 = vmul.f32 %v6192, %v6192
        %v6289 = vmul.f32 %v6193, %v6193
        %v6290 = vmul.f32 %v6194, %v6194
        %v6291 = vmul.f32 %v6195, %v6195
        %v6292 = vmul.f32 %v6196, %v6196
        %v6293 = vmul.f32 %v6197, %v6197
        %v6294 = vmul.f32 %v6198, %v6198
        %v6295 = vmul.f32 %v6199, %v6199
        %v6296 = vmul.f32 %v6200, %v6200
        %v6297 = vmul.f32 %v6201, %v6201
        %v6298 = vmul.f32 %v6202, %v6202
        %v6299 = vmul.f32 %v6203, %v6203
        %v6300 = vmul.f32 %v6204, %v6204
        %v6301 = vmul.f32 %v6205, %v6205
        %v6302 = vmul.f32 %v6206, %v6206
        %v6303 = vmul.f32 %v6207, %v6207
        %v6304 = vmul.f32 %v6208, %v6208
        %v6305 = vmul.f32 %v6209, %v6209
        %v6306 = vmul.f32 %v6210, %v6210
        %v6307 = vmul.f32 %v6211, %v6211
        %v6308 = vmul.f32 %v6212, %v6212
        %v6309 = vmul.f32 %v6213, %v6213
        %v6310 = vmul.f32 %v6214, %v6214
        %v6311 = vmul.f32 %v6215, %v6215
        %v6312 = vmul.f32 %v6216, %v6216
        %v6313 = vmul.f32 %v6217, %v6217
        %v6314 = vmul.f32 %v6218, %v6218
        %v6315 = vmul.f32 %v6219, %v6219
        %v6316 = vmul.f32 %v6220, %v6220
        %v6317 = vmul.f32 %v6221, %v6221
        %v6318 = vmul.f32 %v6222, %v6222
        %v6319 = vmul.f32 %v6223, %v6223
        %v6320 = vmul.f32 %v6224, %v6224
        %v6321 = vmul.f32 %v6225, %v6225
        %v6322 = vmul.f32 %v6226, %v6226
        %v6323 = vmul.f32 %v6227, %v6227
        %v6324 = vmul.f32 %v6228, %v6228
        %v6325 = vmul.f32 %v6229, %v6229
        %v6326 = vmul.f32 %v6230, %v6230
        %v6327 = vmul.f32 %v6231, %v6231
        %v6328 = vmul.f32 %v6232, %v6232
        %v6329 = vmul.f32 %v6233, %v6233
        %v6330 = vmul.f32 %v6234, %v6234
        %v6331 = vmul.f32 %v6235, %v6235
        %v6332 = vmul.f32 %v6236, %v6236
        %v6333 = vmul.f32 %v6237, %v6237
        %v6334 = vmul.f32 %v6238, %v6238
        %v6335 = vmul.f32 %v6239, %v6239
        %v6336 = vmul.f32 %v6240, %v6240
        %v6337 = vmul.f32 %v6241, %v6241
        %v6338 = vmul.f32 %v6242, %v6242
        %v6339 = vmul.f32 %v6243, %v6243
        %v6340 = vmul.f32 %v6244, %v6244
        %v6341 = vmul.f32 %v6245, %v6245
        %v6342 = vmul.f32 %v6246, %v6246
        %v6343 = vmul.f32 %v6247, %v6247
        %v6344 = vmul.f32 %v6248, %v6248
        %v6345 = vmul.f32 %v6249, %v6249
        %v6346 = vmul.f32 %v6250, %v6250
        %v6347 = vmul.f32 %v6251, %v6251
        %v6348 = vadd.f32 %v6252, %v6253
        %v6349 = vadd.f32 %v6348, %v6254
        %v6350 = vadd.f32 %v6349, %v6255
        %6351 = vadd.xlane.f32.xlu0 %v6350
        %v6352 = vpop.xlane.xlu0 %6351
        %v6353 = vadd.f32 %v6256, %v6257
        %v6354 = vadd.f32 %v6353, %v6258
        %v6355 = vadd.f32 %v6354, %v6259
        %6356 = vadd.xlane.f32.xlu0 %v6355
        %v6357 = vpop.xlane.xlu0 %6356
        %v6358 = vadd.f32 %v6260, %v6261
        %v6359 = vadd.f32 %v6358, %v6262
        %v6360 = vadd.f32 %v6359, %v6263
        %6361 = vadd.xlane.f32.xlu0 %v6360
        %v6362 = vpop.xlane.xlu0 %6361
        %v6363 = vadd.f32 %v6264, %v6265
        %v6364 = vadd.f32 %v6363, %v6266
        %v6365 = vadd.f32 %v6364, %v6267
        %6366 = vadd.xlane.f32.xlu0 %v6365
        %v6367 = vpop.xlane.xlu0 %6366
        %v6368 = vadd.f32 %v6268, %v6269
        %v6369 = vadd.f32 %v6368, %v6270
        %v6370 = vadd.f32 %v6369, %v6271
        %6371 = vadd.xlane.f32.xlu0 %v6370
        %v6372 = vpop.xlane.xlu0 %6371
        %v6373 = vadd.f32 %v6272, %v6273
        %v6374 = vadd.f32 %v6373, %v6274
        %v6375 = vadd.f32 %v6374, %v6275
        %6376 = vadd.xlane.f32.xlu0 %v6375
        %v6377 = vpop.xlane.xlu0 %6376
        %v6378 = vadd.f32 %v6276, %v6277
        %v6379 = vadd.f32 %v6378, %v6278
        %v6380 = vadd.f32 %v6379, %v6279
        %6381 = vadd.xlane.f32.xlu0 %v6380
        %v6382 = vpop.xlane.xlu0 %6381
        %v6383 = vadd.f32 %v6280, %v6281
        %v6384 = vadd.f32 %v6383, %v6282
        %v6385 = vadd.f32 %v6384, %v6283
        %6386 = vadd.xlane.f32.xlu0 %v6385
        %v6387 = vpop.xlane.xlu0 %6386
        %v6388 = vadd.f32 %v6284, %v6285
        %v6389 = vadd.f32 %v6388, %v6286
        %v6390 = vadd.f32 %v6389, %v6287
        %6391 = vadd.xlane.f32.xlu0 %v6390
        %v6392 = vpop.xlane.xlu0 %6391
        %v6393 = vadd.f32 %v6288, %v6289
        %v6394 = vadd.f32 %v6393, %v6290
        %v6395 = vadd.f32 %v6394, %v6291
        %6396 = vadd.xlane.f32.xlu0 %v6395
        %v6397 = vpop.xlane.xlu0 %6396
        %v6398 = vadd.f32 %v6292, %v6293
        %v6399 = vadd.f32 %v6398, %v6294
        %v6400 = vadd.f32 %v6399, %v6295
        %6401 = vadd.xlane.f32.xlu0 %v6400
        %v6402 = vpop.xlane.xlu0 %6401
        %v6403 = vadd.f32 %v6296, %v6297
        %v6404 = vadd.f32 %v6403, %v6298
        %v6405 = vadd.f32 %v6404, %v6299
        %6406 = vadd.xlane.f32.xlu0 %v6405
        %v6407 = vpop.xlane.xlu0 %6406
        %v6408 = vadd.f32 %v6300, %v6301
        %v6409 = vadd.f32 %v6408, %v6302
        %v6410 = vadd.f32 %v6409, %v6303
        %6411 = vadd.xlane.f32.xlu0 %v6410
        %v6412 = vpop.xlane.xlu0 %6411
        %v6413 = vadd.f32 %v6304, %v6305
        %v6414 = vadd.f32 %v6413, %v6306
        %v6415 = vadd.f32 %v6414, %v6307
        %6416 = vadd.xlane.f32.xlu0 %v6415
        %v6417 = vpop.xlane.xlu0 %6416
        %v6418 = vadd.f32 %v6308, %v6309
        %v6419 = vadd.f32 %v6418, %v6310
        %v6420 = vadd.f32 %v6419, %v6311
        %6421 = vadd.xlane.f32.xlu0 %v6420
        %v6422 = vpop.xlane.xlu0 %6421
        %v6423 = vadd.f32 %v6312, %v6313
        %v6424 = vadd.f32 %v6423, %v6314
        %v6425 = vadd.f32 %v6424, %v6315
        %6426 = vadd.xlane.f32.xlu0 %v6425
        %v6427 = vpop.xlane.xlu0 %6426
        %v6428 = vadd.f32 %v6316, %v6317
        %v6429 = vadd.f32 %v6428, %v6318
        %v6430 = vadd.f32 %v6429, %v6319
        %6431 = vadd.xlane.f32.xlu0 %v6430
        %v6432 = vpop.xlane.xlu0 %6431
        %v6433 = vadd.f32 %v6320, %v6321
        %v6434 = vadd.f32 %v6433, %v6322
        %v6435 = vadd.f32 %v6434, %v6323
        %6436 = vadd.xlane.f32.xlu0 %v6435
        %v6437 = vpop.xlane.xlu0 %6436
        %v6438 = vadd.f32 %v6324, %v6325
        %v6439 = vadd.f32 %v6438, %v6326
        %v6440 = vadd.f32 %v6439, %v6327
        %6441 = vadd.xlane.f32.xlu0 %v6440
        %v6442 = vpop.xlane.xlu0 %6441
        %v6443 = vadd.f32 %v6328, %v6329
        %v6444 = vadd.f32 %v6443, %v6330
        %v6445 = vadd.f32 %v6444, %v6331
        %6446 = vadd.xlane.f32.xlu0 %v6445
        %v6447 = vpop.xlane.xlu0 %6446
        %v6448 = vadd.f32 %v6332, %v6333
        %v6449 = vadd.f32 %v6448, %v6334
        %v6450 = vadd.f32 %v6449, %v6335
        %6451 = vadd.xlane.f32.xlu0 %v6450
        %v6452 = vpop.xlane.xlu0 %6451
        %v6453 = vadd.f32 %v6336, %v6337
        %v6454 = vadd.f32 %v6453, %v6338
        %v6455 = vadd.f32 %v6454, %v6339
        %6456 = vadd.xlane.f32.xlu0 %v6455
        %v6457 = vpop.xlane.xlu0 %6456
        %v6458 = vadd.f32 %v6340, %v6341
        %v6459 = vadd.f32 %v6458, %v6342
        %v6460 = vadd.f32 %v6459, %v6343
        %6461 = vadd.xlane.f32.xlu0 %v6460
        %v6462 = vpop.xlane.xlu0 %6461
        %v6463 = vadd.f32 %v6344, %v6345
        %v6464 = vadd.f32 %v6463, %v6346
        %v6465 = vadd.f32 %v6464, %v6347
        %6466 = vadd.xlane.f32.xlu0 %v6465
        %v6467 = vpop.xlane.xlu0 %6466
        %v6468 = vmul.f32 %v6352, %v1315
        %v6469 = vmul.f32 %v6357, %v1315
        %v6470 = vmul.f32 %v6362, %v1315
        %v6471 = vmul.f32 %v6367, %v1315
        %v6472 = vmul.f32 %v6372, %v1315
        %v6473 = vmul.f32 %v6377, %v1315
        %v6474 = vmul.f32 %v6382, %v1315
        %v6475 = vmul.f32 %v6387, %v1315
        %v6476 = vmul.f32 %v6392, %v1315
        %v6477 = vmul.f32 %v6397, %v1315
        %v6478 = vmul.f32 %v6402, %v1315
        %v6479 = vmul.f32 %v6407, %v1315
        %v6480 = vmul.f32 %v6412, %v1315
        %v6481 = vmul.f32 %v6417, %v1315
        %v6482 = vmul.f32 %v6422, %v1315
        %v6483 = vmul.f32 %v6427, %v1315
        %v6484 = vmul.f32 %v6432, %v1315
        %v6485 = vmul.f32 %v6437, %v1315
        %v6486 = vmul.f32 %v6442, %v1315
        %v6487 = vmul.f32 %v6447, %v1315
        %v6488 = vmul.f32 %v6452, %v1315
        %v6489 = vmul.f32 %v6457, %v1315
        %v6490 = vmul.f32 %v6462, %v1315
        %v6491 = vmul.f32 %v6467, %v1315
        %v6492 = vadd.f32 %v6468, 1e-05
        %v6493 = vadd.f32 %v6469, 1e-05
        %v6494 = vadd.f32 %v6470, 1e-05
        %v6495 = vadd.f32 %v6471, 1e-05
        %v6496 = vadd.f32 %v6472, 1e-05
        %v6497 = vadd.f32 %v6473, 1e-05
        %v6498 = vadd.f32 %v6474, 1e-05
        %v6499 = vadd.f32 %v6475, 1e-05
        %v6500 = vadd.f32 %v6476, 1e-05
        %v6501 = vadd.f32 %v6477, 1e-05
        %v6502 = vadd.f32 %v6478, 1e-05
        %v6503 = vadd.f32 %v6479, 1e-05
        %v6504 = vadd.f32 %v6480, 1e-05
        %v6505 = vadd.f32 %v6481, 1e-05
        %v6506 = vadd.f32 %v6482, 1e-05
        %v6507 = vadd.f32 %v6483, 1e-05
        %v6508 = vadd.f32 %v6484, 1e-05
        %v6509 = vadd.f32 %v6485, 1e-05
        %v6510 = vadd.f32 %v6486, 1e-05
        %v6511 = vadd.f32 %v6487, 1e-05
        %v6512 = vadd.f32 %v6488, 1e-05
        %v6513 = vadd.f32 %v6489, 1e-05
        %v6514 = vadd.f32 %v6490, 1e-05
        %v6515 = vadd.f32 %v6491, 1e-05
        %v6516 = vrsqrt.pop %v6492
        %v6517 = vrsqrt.pop %v6493
        %v6518 = vrsqrt.pop %v6494
        %v6519 = vrsqrt.pop %v6495
        %v6520 = vrsqrt.pop %v6496
        %v6521 = vrsqrt.pop %v6497
        %v6522 = vrsqrt.pop %v6498
        %v6523 = vrsqrt.pop %v6499
        %v6524 = vrsqrt.pop %v6500
        %v6525 = vrsqrt.pop %v6501
        %v6526 = vrsqrt.pop %v6502
        %v6527 = vrsqrt.pop %v6503
        %v6528 = vrsqrt.pop %v6504
        %v6529 = vrsqrt.pop %v6505
        %v6530 = vrsqrt.pop %v6506
        %v6531 = vrsqrt.pop %v6507
        %v6532 = vrsqrt.pop %v6508
        %v6533 = vrsqrt.pop %v6509
        %v6534 = vrsqrt.pop %v6510
        %v6535 = vrsqrt.pop %v6511
        %v6536 = vrsqrt.pop %v6512
        %v6537 = vrsqrt.pop %v6513
        %v6538 = vrsqrt.pop %v6514
        %v6539 = vrsqrt.pop %v6515
        %v6540 = vmul.f32 %v6156, %v6516
        %v6541 = vmul.f32 %v6157, %v6516
        %v6542 = vmul.f32 %v6158, %v6516
        %v6543 = vmul.f32 %v6159, %v6516
        %v6544 = vmul.f32 %v6160, %v6517
        %v6545 = vmul.f32 %v6161, %v6517
        %v6546 = vmul.f32 %v6162, %v6517
        %v6547 = vmul.f32 %v6163, %v6517
        %v6548 = vmul.f32 %v6164, %v6518
        %v6549 = vmul.f32 %v6165, %v6518
        %v6550 = vmul.f32 %v6166, %v6518
        %v6551 = vmul.f32 %v6167, %v6518
        %v6552 = vmul.f32 %v6168, %v6519
        %v6553 = vmul.f32 %v6169, %v6519
        %v6554 = vmul.f32 %v6170, %v6519
        %v6555 = vmul.f32 %v6171, %v6519
        %v6556 = vmul.f32 %v6172, %v6520
        %v6557 = vmul.f32 %v6173, %v6520
        %v6558 = vmul.f32 %v6174, %v6520
        %v6559 = vmul.f32 %v6175, %v6520
        %v6560 = vmul.f32 %v6176, %v6521
        %v6561 = vmul.f32 %v6177, %v6521
        %v6562 = vmul.f32 %v6178, %v6521
        %v6563 = vmul.f32 %v6179, %v6521
        %v6564 = vmul.f32 %v6180, %v6522
        %v6565 = vmul.f32 %v6181, %v6522
        %v6566 = vmul.f32 %v6182, %v6522
        %v6567 = vmul.f32 %v6183, %v6522
        %v6568 = vmul.f32 %v6184, %v6523
        %v6569 = vmul.f32 %v6185, %v6523
        %v6570 = vmul.f32 %v6186, %v6523
        %v6571 = vmul.f32 %v6187, %v6523
        %v6572 = vmul.f32 %v6188, %v6524
        %v6573 = vmul.f32 %v6189, %v6524
        %v6574 = vmul.f32 %v6190, %v6524
        %v6575 = vmul.f32 %v6191, %v6524
        %v6576 = vmul.f32 %v6192, %v6525
        %v6577 = vmul.f32 %v6193, %v6525
        %v6578 = vmul.f32 %v6194, %v6525
        %v6579 = vmul.f32 %v6195, %v6525
        %v6580 = vmul.f32 %v6196, %v6526
        %v6581 = vmul.f32 %v6197, %v6526
        %v6582 = vmul.f32 %v6198, %v6526
        %v6583 = vmul.f32 %v6199, %v6526
        %v6584 = vmul.f32 %v6200, %v6527
        %v6585 = vmul.f32 %v6201, %v6527
        %v6586 = vmul.f32 %v6202, %v6527
        %v6587 = vmul.f32 %v6203, %v6527
        %v6588 = vmul.f32 %v6204, %v6528
        %v6589 = vmul.f32 %v6205, %v6528
        %v6590 = vmul.f32 %v6206, %v6528
        %v6591 = vmul.f32 %v6207, %v6528
        %v6592 = vmul.f32 %v6208, %v6529
        %v6593 = vmul.f32 %v6209, %v6529
        %v6594 = vmul.f32 %v6210, %v6529
        %v6595 = vmul.f32 %v6211, %v6529
        %v6596 = vmul.f32 %v6212, %v6530
        %v6597 = vmul.f32 %v6213, %v6530
        %v6598 = vmul.f32 %v6214, %v6530
        %v6599 = vmul.f32 %v6215, %v6530
        %v6600 = vmul.f32 %v6216, %v6531
        %v6601 = vmul.f32 %v6217, %v6531
        %v6602 = vmul.f32 %v6218, %v6531
        %v6603 = vmul.f32 %v6219, %v6531
        %v6604 = vmul.f32 %v6220, %v6532
        %v6605 = vmul.f32 %v6221, %v6532
        %v6606 = vmul.f32 %v6222, %v6532
        %v6607 = vmul.f32 %v6223, %v6532
        %v6608 = vmul.f32 %v6224, %v6533
        %v6609 = vmul.f32 %v6225, %v6533
        %v6610 = vmul.f32 %v6226, %v6533
        %v6611 = vmul.f32 %v6227, %v6533
        %v6612 = vmul.f32 %v6228, %v6534
        %v6613 = vmul.f32 %v6229, %v6534
        %v6614 = vmul.f32 %v6230, %v6534
        %v6615 = vmul.f32 %v6231, %v6534
        %v6616 = vmul.f32 %v6232, %v6535
        %v6617 = vmul.f32 %v6233, %v6535
        %v6618 = vmul.f32 %v6234, %v6535
        %v6619 = vmul.f32 %v6235, %v6535
        %v6620 = vmul.f32 %v6236, %v6536
        %v6621 = vmul.f32 %v6237, %v6536
        %v6622 = vmul.f32 %v6238, %v6536
        %v6623 = vmul.f32 %v6239, %v6536
        %v6624 = vmul.f32 %v6240, %v6537
        %v6625 = vmul.f32 %v6241, %v6537
        %v6626 = vmul.f32 %v6242, %v6537
        %v6627 = vmul.f32 %v6243, %v6537
        %v6628 = vmul.f32 %v6244, %v6538
        %v6629 = vmul.f32 %v6245, %v6538
        %v6630 = vmul.f32 %v6246, %v6538
        %v6631 = vmul.f32 %v6247, %v6538
        %v6632 = vmul.f32 %v6248, %v6539
        %v6633 = vmul.f32 %v6249, %v6539
        %v6634 = vmul.f32 %v6250, %v6539
        %v6635 = vmul.f32 %v6251, %v6539
        %v6637 = vlaneseq
        %v6638 = vshrl.u32 %v6637, 7
        %v6639 = vsub.s32 0, %v6638
        %v6640 = vrot.slane %v6009, %v6639
        %v6641 = vlaneseq
        %v6642 = vshrl.u32 %v6641, 7
        %v6643 = vsub.s32 1, %v6642
        %v6644 = vrot.slane %v6009, %v6643
        %v6645 = vlaneseq
        %v6646 = vshrl.u32 %v6645, 7
        %v6647 = vsub.s32 2, %v6646
        %v6648 = vrot.slane %v6009, %v6647
        %v6649 = vlaneseq
        %v6650 = vshrl.u32 %v6649, 7
        %v6651 = vsub.s32 3, %v6650
        %v6652 = vrot.slane %v6009, %v6651
        %v6657 = vmul.f32 %v6540, %v6640
        %v6658 = vmul.f32 %v6541, %v6644
        %v6659 = vmul.f32 %v6542, %v6648
        %v6660 = vmul.f32 %v6543, %v6652
        %v6661 = vmul.f32 %v6544, %v6640
        %v6662 = vmul.f32 %v6545, %v6644
        %v6663 = vmul.f32 %v6546, %v6648
        %v6664 = vmul.f32 %v6547, %v6652
        %v6665 = vmul.f32 %v6548, %v6640
        %v6666 = vmul.f32 %v6549, %v6644
        %v6667 = vmul.f32 %v6550, %v6648
        %v6668 = vmul.f32 %v6551, %v6652
        %v6669 = vmul.f32 %v6552, %v6640
        %v6670 = vmul.f32 %v6553, %v6644
        %v6671 = vmul.f32 %v6554, %v6648
        %v6672 = vmul.f32 %v6555, %v6652
        %v6673 = vmul.f32 %v6556, %v6640
        %v6674 = vmul.f32 %v6557, %v6644
        %v6675 = vmul.f32 %v6558, %v6648
        %v6676 = vmul.f32 %v6559, %v6652
        %v6677 = vmul.f32 %v6560, %v6640
        %v6678 = vmul.f32 %v6561, %v6644
        %v6679 = vmul.f32 %v6562, %v6648
        %v6680 = vmul.f32 %v6563, %v6652
        %v6681 = vmul.f32 %v6564, %v6640
        %v6682 = vmul.f32 %v6565, %v6644
        %v6683 = vmul.f32 %v6566, %v6648
        %v6684 = vmul.f32 %v6567, %v6652
        %v6685 = vmul.f32 %v6568, %v6640
        %v6686 = vmul.f32 %v6569, %v6644
        %v6687 = vmul.f32 %v6570, %v6648
        %v6688 = vmul.f32 %v6571, %v6652
        %v6689 = vmul.f32 %v6572, %v6640
        %v6690 = vmul.f32 %v6573, %v6644
        %v6691 = vmul.f32 %v6574, %v6648
        %v6692 = vmul.f32 %v6575, %v6652
        %v6693 = vmul.f32 %v6576, %v6640
        %v6694 = vmul.f32 %v6577, %v6644
        %v6695 = vmul.f32 %v6578, %v6648
        %v6696 = vmul.f32 %v6579, %v6652
        %v6697 = vmul.f32 %v6580, %v6640
        %v6698 = vmul.f32 %v6581, %v6644
        %v6699 = vmul.f32 %v6582, %v6648
        %v6700 = vmul.f32 %v6583, %v6652
        %v6701 = vmul.f32 %v6584, %v6640
        %v6702 = vmul.f32 %v6585, %v6644
        %v6703 = vmul.f32 %v6586, %v6648
        %v6704 = vmul.f32 %v6587, %v6652
        %v6705 = vmul.f32 %v6588, %v6640
        %v6706 = vmul.f32 %v6589, %v6644
        %v6707 = vmul.f32 %v6590, %v6648
        %v6708 = vmul.f32 %v6591, %v6652
        %v6709 = vmul.f32 %v6592, %v6640
        %v6710 = vmul.f32 %v6593, %v6644
        %v6711 = vmul.f32 %v6594, %v6648
        %v6712 = vmul.f32 %v6595, %v6652
        %v6713 = vmul.f32 %v6596, %v6640
        %v6714 = vmul.f32 %v6597, %v6644
        %v6715 = vmul.f32 %v6598, %v6648
        %v6716 = vmul.f32 %v6599, %v6652
        %v6717 = vmul.f32 %v6600, %v6640
        %v6718 = vmul.f32 %v6601, %v6644
        %v6719 = vmul.f32 %v6602, %v6648
        %v6720 = vmul.f32 %v6603, %v6652
        %v6721 = vmul.f32 %v6604, %v6640
        %v6722 = vmul.f32 %v6605, %v6644
        %v6723 = vmul.f32 %v6606, %v6648
        %v6724 = vmul.f32 %v6607, %v6652
        %v6725 = vmul.f32 %v6608, %v6640
        %v6726 = vmul.f32 %v6609, %v6644
        %v6727 = vmul.f32 %v6610, %v6648
        %v6728 = vmul.f32 %v6611, %v6652
        %v6729 = vmul.f32 %v6612, %v6640
        %v6730 = vmul.f32 %v6613, %v6644
        %v6731 = vmul.f32 %v6614, %v6648
        %v6732 = vmul.f32 %v6615, %v6652
        %v6733 = vmul.f32 %v6616, %v6640
        %v6734 = vmul.f32 %v6617, %v6644
        %v6735 = vmul.f32 %v6618, %v6648
        %v6736 = vmul.f32 %v6619, %v6652
        %v6737 = vmul.f32 %v6620, %v6640
        %v6738 = vmul.f32 %v6621, %v6644
        %v6739 = vmul.f32 %v6622, %v6648
        %v6740 = vmul.f32 %v6623, %v6652
        %v6741 = vmul.f32 %v6624, %v6640
        %v6742 = vmul.f32 %v6625, %v6644
        %v6743 = vmul.f32 %v6626, %v6648
        %v6744 = vmul.f32 %v6627, %v6652
        %v6745 = vmul.f32 %v6628, %v6640
        %v6746 = vmul.f32 %v6629, %v6644
        %v6747 = vmul.f32 %v6630, %v6648
        %v6748 = vmul.f32 %v6631, %v6652
        %v6749 = vmul.f32 %v6632, %v6640
        %v6750 = vmul.f32 %v6633, %v6644
        %v6751 = vmul.f32 %v6634, %v6648
        %v6752 = vmul.f32 %v6635, %v6652
        %v6754 = vlaneseq
        %v6755 = vshrl.u32 %v6754, 7
        %v6756 = vsub.s32 0, %v6755
        %v6757 = vrot.slane %v6011, %v6756
        %v6758 = vlaneseq
        %v6759 = vshrl.u32 %v6758, 7
        %v6760 = vsub.s32 1, %v6759
        %v6761 = vrot.slane %v6011, %v6760
        %v6762 = vlaneseq
        %v6763 = vshrl.u32 %v6762, 7
        %v6764 = vsub.s32 2, %v6763
        %v6765 = vrot.slane %v6011, %v6764
        %v6766 = vlaneseq
        %v6767 = vshrl.u32 %v6766, 7
        %v6768 = vsub.s32 3, %v6767
        %v6769 = vrot.slane %v6011, %v6768
        %v6774 = vadd.f32 %v6657, %v6757
        %v6775 = vadd.f32 %v6658, %v6761
        %v6776 = vadd.f32 %v6659, %v6765
        %v6777 = vadd.f32 %v6660, %v6769
        %v6778 = vadd.f32 %v6661, %v6757
        %v6779 = vadd.f32 %v6662, %v6761
        %v6780 = vadd.f32 %v6663, %v6765
        %v6781 = vadd.f32 %v6664, %v6769
        %v6782 = vadd.f32 %v6665, %v6757
        %v6783 = vadd.f32 %v6666, %v6761
        %v6784 = vadd.f32 %v6667, %v6765
        %v6785 = vadd.f32 %v6668, %v6769
        %v6786 = vadd.f32 %v6669, %v6757
        %v6787 = vadd.f32 %v6670, %v6761
        %v6788 = vadd.f32 %v6671, %v6765
        %v6789 = vadd.f32 %v6672, %v6769
        %v6790 = vadd.f32 %v6673, %v6757
        %v6791 = vadd.f32 %v6674, %v6761
        %v6792 = vadd.f32 %v6675, %v6765
        %v6793 = vadd.f32 %v6676, %v6769
        %v6794 = vadd.f32 %v6677, %v6757
        %v6795 = vadd.f32 %v6678, %v6761
        %v6796 = vadd.f32 %v6679, %v6765
        %v6797 = vadd.f32 %v6680, %v6769
        %v6798 = vadd.f32 %v6681, %v6757
        %v6799 = vadd.f32 %v6682, %v6761
        %v6800 = vadd.f32 %v6683, %v6765
        %v6801 = vadd.f32 %v6684, %v6769
        %v6802 = vadd.f32 %v6685, %v6757
        %v6803 = vadd.f32 %v6686, %v6761
        %v6804 = vadd.f32 %v6687, %v6765
        %v6805 = vadd.f32 %v6688, %v6769
        %v6806 = vadd.f32 %v6689, %v6757
        %v6807 = vadd.f32 %v6690, %v6761
        %v6808 = vadd.f32 %v6691, %v6765
        %v6809 = vadd.f32 %v6692, %v6769
        %v6810 = vadd.f32 %v6693, %v6757
        %v6811 = vadd.f32 %v6694, %v6761
        %v6812 = vadd.f32 %v6695, %v6765
        %v6813 = vadd.f32 %v6696, %v6769
        %v6814 = vadd.f32 %v6697, %v6757
        %v6815 = vadd.f32 %v6698, %v6761
        %v6816 = vadd.f32 %v6699, %v6765
        %v6817 = vadd.f32 %v6700, %v6769
        %v6818 = vadd.f32 %v6701, %v6757
        %v6819 = vadd.f32 %v6702, %v6761
        %v6820 = vadd.f32 %v6703, %v6765
        %v6821 = vadd.f32 %v6704, %v6769
        %v6822 = vadd.f32 %v6705, %v6757
        %v6823 = vadd.f32 %v6706, %v6761
        %v6824 = vadd.f32 %v6707, %v6765
        %v6825 = vadd.f32 %v6708, %v6769
        %v6826 = vadd.f32 %v6709, %v6757
        %v6827 = vadd.f32 %v6710, %v6761
        %v6828 = vadd.f32 %v6711, %v6765
        %v6829 = vadd.f32 %v6712, %v6769
        %v6830 = vadd.f32 %v6713, %v6757
        %v6831 = vadd.f32 %v6714, %v6761
        %v6832 = vadd.f32 %v6715, %v6765
        %v6833 = vadd.f32 %v6716, %v6769
        %v6834 = vadd.f32 %v6717, %v6757
        %v6835 = vadd.f32 %v6718, %v6761
        %v6836 = vadd.f32 %v6719, %v6765
        %v6837 = vadd.f32 %v6720, %v6769
        %v6838 = vadd.f32 %v6721, %v6757
        %v6839 = vadd.f32 %v6722, %v6761
        %v6840 = vadd.f32 %v6723, %v6765
        %v6841 = vadd.f32 %v6724, %v6769
        %v6842 = vadd.f32 %v6725, %v6757
        %v6843 = vadd.f32 %v6726, %v6761
        %v6844 = vadd.f32 %v6727, %v6765
        %v6845 = vadd.f32 %v6728, %v6769
        %v6846 = vadd.f32 %v6729, %v6757
        %v6847 = vadd.f32 %v6730, %v6761
        %v6848 = vadd.f32 %v6731, %v6765
        %v6849 = vadd.f32 %v6732, %v6769
        %v6850 = vadd.f32 %v6733, %v6757
        %v6851 = vadd.f32 %v6734, %v6761
        %v6852 = vadd.f32 %v6735, %v6765
        %v6853 = vadd.f32 %v6736, %v6769
        %v6854 = vadd.f32 %v6737, %v6757
        %v6855 = vadd.f32 %v6738, %v6761
        %v6856 = vadd.f32 %v6739, %v6765
        %v6857 = vadd.f32 %v6740, %v6769
        %v6858 = vadd.f32 %v6741, %v6757
        %v6859 = vadd.f32 %v6742, %v6761
        %v6860 = vadd.f32 %v6743, %v6765
        %v6861 = vadd.f32 %v6744, %v6769
        %v6862 = vadd.f32 %v6745, %v6757
        %v6863 = vadd.f32 %v6746, %v6761
        %v6864 = vadd.f32 %v6747, %v6765
        %v6865 = vadd.f32 %v6748, %v6769
        %v6866 = vadd.f32 %v6749, %v6757
        %v6867 = vadd.f32 %v6750, %v6761
        %v6868 = vadd.f32 %v6751, %v6765
        %v6869 = vadd.f32 %v6752, %v6769
        %v6870 = vpack.c.bf16 %v6778, %v6774
        %v6871 = vpack.c.bf16 %v6779, %v6775
        %v6872 = vpack.c.bf16 %v6780, %v6776
        %v6873 = vpack.c.bf16 %v6781, %v6777
        %v6874 = vpack.c.bf16 %v6786, %v6782
        %v6875 = vpack.c.bf16 %v6787, %v6783
        %v6876 = vpack.c.bf16 %v6788, %v6784
        %v6877 = vpack.c.bf16 %v6789, %v6785
        %v6878 = vpack.c.bf16 %v6794, %v6790
        %v6879 = vpack.c.bf16 %v6795, %v6791
        %v6880 = vpack.c.bf16 %v6796, %v6792
        %v6881 = vpack.c.bf16 %v6797, %v6793
        %v6882 = vpack.c.bf16 %v6802, %v6798
        %v6883 = vpack.c.bf16 %v6803, %v6799
        %v6884 = vpack.c.bf16 %v6804, %v6800
        %v6885 = vpack.c.bf16 %v6805, %v6801
        %v6886 = vpack.c.bf16 %v6810, %v6806
        %v6887 = vpack.c.bf16 %v6811, %v6807
        %v6888 = vpack.c.bf16 %v6812, %v6808
        %v6889 = vpack.c.bf16 %v6813, %v6809
        %v6890 = vpack.c.bf16 %v6818, %v6814
        %v6891 = vpack.c.bf16 %v6819, %v6815
        %v6892 = vpack.c.bf16 %v6820, %v6816
        %v6893 = vpack.c.bf16 %v6821, %v6817
        %v6894 = vpack.c.bf16 %v6826, %v6822
        %v6895 = vpack.c.bf16 %v6827, %v6823
        %v6896 = vpack.c.bf16 %v6828, %v6824
        %v6897 = vpack.c.bf16 %v6829, %v6825
        %v6898 = vpack.c.bf16 %v6834, %v6830
        %v6899 = vpack.c.bf16 %v6835, %v6831
        %v6900 = vpack.c.bf16 %v6836, %v6832
        %v6901 = vpack.c.bf16 %v6837, %v6833
        %v6902 = vpack.c.bf16 %v6842, %v6838
        %v6903 = vpack.c.bf16 %v6843, %v6839
        %v6904 = vpack.c.bf16 %v6844, %v6840
        %v6905 = vpack.c.bf16 %v6845, %v6841
        %v6906 = vpack.c.bf16 %v6850, %v6846
        %v6907 = vpack.c.bf16 %v6851, %v6847
        %v6908 = vpack.c.bf16 %v6852, %v6848
        %v6909 = vpack.c.bf16 %v6853, %v6849
        %v6910 = vpack.c.bf16 %v6858, %v6854
        %v6911 = vpack.c.bf16 %v6859, %v6855
        %v6912 = vpack.c.bf16 %v6860, %v6856
        %v6913 = vpack.c.bf16 %v6861, %v6857
        %v6914 = vpack.c.bf16 %v6866, %v6862
        %v6915 = vpack.c.bf16 %v6867, %v6863
        %v6916 = vpack.c.bf16 %v6868, %v6864
        %v6917 = vpack.c.bf16 %v6869, %v6865
        %v6918 = vmul.bf16 %v6870, 1036860877
        %v6919 = vmul.bf16 %v6871, 1036860877
        %v6920 = vmul.bf16 %v6872, 1036860877
        %v6921 = vmul.bf16 %v6873, 1036860877
        %v6922 = vmul.bf16 %v6874, 1036860877
        %v6923 = vmul.bf16 %v6875, 1036860877
        %v6924 = vmul.bf16 %v6876, 1036860877
        %v6925 = vmul.bf16 %v6877, 1036860877
        %v6926 = vmul.bf16 %v6878, 1036860877
        %v6927 = vmul.bf16 %v6879, 1036860877
        %v6928 = vmul.bf16 %v6880, 1036860877
        %v6929 = vmul.bf16 %v6881, 1036860877
        %v6930 = vmul.bf16 %v6882, 1036860877
        %v6931 = vmul.bf16 %v6883, 1036860877
        %v6932 = vmul.bf16 %v6884, 1036860877
        %v6933 = vmul.bf16 %v6885, 1036860877
        %v6934 = vmul.bf16 %v6886, 1036860877
        %v6935 = vmul.bf16 %v6887, 1036860877
        %v6936 = vmul.bf16 %v6888, 1036860877
        %v6937 = vmul.bf16 %v6889, 1036860877
        %v6938 = vmul.bf16 %v6890, 1036860877
        %v6939 = vmul.bf16 %v6891, 1036860877
        %v6940 = vmul.bf16 %v6892, 1036860877
        %v6941 = vmul.bf16 %v6893, 1036860877
        %v6942 = vmul.bf16 %v6894, 1036860877
        %v6943 = vmul.bf16 %v6895, 1036860877
        %v6944 = vmul.bf16 %v6896, 1036860877
        %v6945 = vmul.bf16 %v6897, 1036860877
        %v6946 = vmul.bf16 %v6898, 1036860877
        %v6947 = vmul.bf16 %v6899, 1036860877
        %v6948 = vmul.bf16 %v6900, 1036860877
        %v6949 = vmul.bf16 %v6901, 1036860877
        %v6950 = vmul.bf16 %v6902, 1036860877
        %v6951 = vmul.bf16 %v6903, 1036860877
        %v6952 = vmul.bf16 %v6904, 1036860877
        %v6953 = vmul.bf16 %v6905, 1036860877
        %v6954 = vmul.bf16 %v6906, 1036860877
        %v6955 = vmul.bf16 %v6907, 1036860877
        %v6956 = vmul.bf16 %v6908, 1036860877
        %v6957 = vmul.bf16 %v6909, 1036860877
        %v6958 = vmul.bf16 %v6910, 1036860877
        %v6959 = vmul.bf16 %v6911, 1036860877
        %v6960 = vmul.bf16 %v6912, 1036860877
        %v6961 = vmul.bf16 %v6913, 1036860877
        %v6962 = vmul.bf16 %v6914, 1036860877
        %v6963 = vmul.bf16 %v6915, 1036860877
        %v6964 = vmul.bf16 %v6916, 1036860877
        %v6965 = vmul.bf16 %v6917, 1036860877
        %v6966 = vmax.bf16 %v6870, %v6918
        %v6967 = vmax.bf16 %v6871, %v6919
        %v6968 = vmax.bf16 %v6872, %v6920
        %v6969 = vmax.bf16 %v6873, %v6921
        %v6970 = vmax.bf16 %v6874, %v6922
        %v6971 = vmax.bf16 %v6875, %v6923
        %v6972 = vmax.bf16 %v6876, %v6924
        %v6973 = vmax.bf16 %v6877, %v6925
        %v6974 = vmax.bf16 %v6878, %v6926
        %v6975 = vmax.bf16 %v6879, %v6927
        %v6976 = vmax.bf16 %v6880, %v6928
        %v6977 = vmax.bf16 %v6881, %v6929
        %v6978 = vmax.bf16 %v6882, %v6930
        %v6979 = vmax.bf16 %v6883, %v6931
        %v6980 = vmax.bf16 %v6884, %v6932
        %v6981 = vmax.bf16 %v6885, %v6933
        %v6982 = vmax.bf16 %v6886, %v6934
        %v6983 = vmax.bf16 %v6887, %v6935
        %v6984 = vmax.bf16 %v6888, %v6936
        %v6985 = vmax.bf16 %v6889, %v6937
        %v6986 = vmax.bf16 %v6890, %v6938
        %v6987 = vmax.bf16 %v6891, %v6939
        %v6988 = vmax.bf16 %v6892, %v6940
        %v6989 = vmax.bf16 %v6893, %v6941
        %v6990 = vmax.bf16 %v6894, %v6942
        %v6991 = vmax.bf16 %v6895, %v6943
        %v6992 = vmax.bf16 %v6896, %v6944
        %v6993 = vmax.bf16 %v6897, %v6945
        %v6994 = vmax.bf16 %v6898, %v6946
        %v6995 = vmax.bf16 %v6899, %v6947
        %v6996 = vmax.bf16 %v6900, %v6948
        %v6997 = vmax.bf16 %v6901, %v6949
        %v6998 = vmax.bf16 %v6902, %v6950
        %v6999 = vmax.bf16 %v6903, %v6951
        %v7000 = vmax.bf16 %v6904, %v6952
        %v7001 = vmax.bf16 %v6905, %v6953
        %v7002 = vmax.bf16 %v6906, %v6954
        %v7003 = vmax.bf16 %v6907, %v6955
        %v7004 = vmax.bf16 %v6908, %v6956
        %v7005 = vmax.bf16 %v6909, %v6957
        %v7006 = vmax.bf16 %v6910, %v6958
        %v7007 = vmax.bf16 %v6911, %v6959
        %v7008 = vmax.bf16 %v6912, %v6960
        %v7009 = vmax.bf16 %v6913, %v6961
        %v7010 = vmax.bf16 %v6914, %v6962
        %v7011 = vmax.bf16 %v6915, %v6963
        %v7012 = vmax.bf16 %v6916, %v6964
        %v7013 = vmax.bf16 %v6917, %v6965
        %v7014 = vld [vmem:[#allocation13] sm:$0xff]
        %v7015 = vld [vmem:[#allocation13 + $0x8] sm:$0xff]
        %v7016 = vld [vmem:[#allocation13 + $0x10] sm:$0xff]
        %v7017 = vld [vmem:[#allocation13 + $0x18] sm:$0xff]
        %v7018 = vld [vmem:[#allocation13 + $0x20] sm:$0xff]
        %v7019 = vld [vmem:[#allocation13 + $0x28] sm:$0xff]
        %v7020 = vld [vmem:[#allocation13 + $0x30] sm:$0xff]
        %v7021 = vld [vmem:[#allocation13 + $0x38] sm:$0xff]
        %v7022 = vld [vmem:[#allocation13 + $0x40] sm:$0xff]
        %v7023 = vld [vmem:[#allocation13 + $0x48] sm:$0xff]
        %v7024 = vld [vmem:[#allocation13 + $0x50] sm:$0xff]
        %v7025 = vld [vmem:[#allocation13 + $0x58] sm:$0xff]
        %v7026 = vld [vmem:[#allocation13 + $0x60] sm:$0xff]
        %v7027 = vld [vmem:[#allocation13 + $0x68] sm:$0xff]
        %v7028 = vld [vmem:[#allocation13 + $0x70] sm:$0xff]
        %v7029 = vld [vmem:[#allocation13 + $0x78] sm:$0xff]
        %v7030 = vld [vmem:[#allocation13 + $0x80] sm:$0xff]
        %v7031 = vld [vmem:[#allocation13 + $0x88] sm:$0xff]
        %v7032 = vld [vmem:[#allocation13 + $0x90] sm:$0xff]
        %v7033 = vld [vmem:[#allocation13 + $0x98] sm:$0xff]
        %v7034 = vld [vmem:[#allocation13 + $0xa0] sm:$0xff]
        %v7035 = vld [vmem:[#allocation13 + $0xa8] sm:$0xff]
        %v7036 = vld [vmem:[#allocation13 + $0xb0] sm:$0xff]
        %v7037 = vld [vmem:[#allocation13 + $0xb8] sm:$0xff]
        %v7038 = vld [vmem:[#allocation13 + $0xc0] sm:$0xff]
        %v7039 = vld [vmem:[#allocation13 + $0xc8] sm:$0xff]
        %v7040 = vld [vmem:[#allocation13 + $0xd0] sm:$0xff]
        %v7041 = vld [vmem:[#allocation13 + $0xd8] sm:$0xff]
        %v7042 = vld [vmem:[#allocation13 + $0xe0] sm:$0xff]
        %v7043 = vld [vmem:[#allocation13 + $0xe8] sm:$0xff]
        %v7044 = vld [vmem:[#allocation13 + $0xf0] sm:$0xff]
        %v7045 = vld [vmem:[#allocation13 + $0xf8] sm:$0xff]
        %v7046 = vld [vmem:[#allocation13 + $0x100] sm:$0xff]
        %v7047 = vld [vmem:[#allocation13 + $0x108] sm:$0xff]
        %v7048 = vld [vmem:[#allocation13 + $0x110] sm:$0xff]
        %v7049 = vld [vmem:[#allocation13 + $0x118] sm:$0xff]
        %v7050 = vld [vmem:[#allocation13 + $0x120] sm:$0xff]
        %v7051 = vld [vmem:[#allocation13 + $0x128] sm:$0xff]
        %v7052 = vld [vmem:[#allocation13 + $0x130] sm:$0xff]
        %v7053 = vld [vmem:[#allocation13 + $0x138] sm:$0xff]
        %v7054 = vld [vmem:[#allocation13 + $0x140] sm:$0xff]
        %v7055 = vld [vmem:[#allocation13 + $0x148] sm:$0xff]
        %v7056 = vld [vmem:[#allocation13 + $0x150] sm:$0xff]
        %v7057 = vld [vmem:[#allocation13 + $0x158] sm:$0xff]
        %v7058 = vld [vmem:[#allocation13 + $0x160] sm:$0xff]
        %v7059 = vld [vmem:[#allocation13 + $0x168] sm:$0xff]
        %v7060 = vld [vmem:[#allocation13 + $0x170] sm:$0xff]
        %v7061 = vld [vmem:[#allocation13 + $0x178] sm:$0xff]
        %v7062 = vld [vmem:[#allocation13 + $0x180] sm:$0xff]
        %v7063 = vld [vmem:[#allocation13 + $0x188] sm:$0xff]
        %v7064 = vld [vmem:[#allocation13 + $0x190] sm:$0xff]
        %v7065 = vld [vmem:[#allocation13 + $0x198] sm:$0xff]
        %v7066 = vld [vmem:[#allocation13 + $0x1a0] sm:$0xff]
        %v7067 = vld [vmem:[#allocation13 + $0x1a8] sm:$0xff]
        %v7068 = vld [vmem:[#allocation13 + $0x1b0] sm:$0xff]
        %v7069 = vld [vmem:[#allocation13 + $0x1b8] sm:$0xff]
        %v7070 = vld [vmem:[#allocation13 + $0x1c0] sm:$0xff]
        %v7071 = vld [vmem:[#allocation13 + $0x1c8] sm:$0xff]
        %v7072 = vld [vmem:[#allocation13 + $0x1d0] sm:$0xff]
        %v7073 = vld [vmem:[#allocation13 + $0x1d8] sm:$0xff]
        %v7074 = vld [vmem:[#allocation13 + $0x1e0] sm:$0xff]
        %v7075 = vld [vmem:[#allocation13 + $0x1e8] sm:$0xff]
        %v7076 = vld [vmem:[#allocation13 + $0x1f0] sm:$0xff]
        %v7077 = vld [vmem:[#allocation13 + $0x1f8] sm:$0xff]
        %v7078 = vld [vmem:[%s8] ss:$4 sm:$0x3]
        %v7080 = vlaneseq
        %v7081 = vshrl.u32 %v7080, 7
        %v7082 = vsub.s32 0, %v7081
        %v7083 = vrot.slane %v7078, %v7082
        %v7084 = vlaneseq
        %v7085 = vshrl.u32 %v7084, 7
        %v7086 = vsub.s32 1, %v7085
        %v7087 = vrot.slane %v7078, %v7086
        %v7154 = vunpack.c.l.b16 %v7014
        %v7155 = vunpack.c.h.b16 %v7014
        %v7156 = vunpack.c.l.b16 %v7015
        %v7157 = vunpack.c.h.b16 %v7015
        %v7158 = vunpack.c.l.b16 %v7016
        %v7159 = vunpack.c.h.b16 %v7016
        %v7160 = vunpack.c.l.b16 %v7017
        %v7161 = vunpack.c.h.b16 %v7017
        %v7162 = vunpack.c.l.b16 %v7018
        %v7163 = vunpack.c.h.b16 %v7018
        %v7164 = vunpack.c.l.b16 %v7019
        %v7165 = vunpack.c.h.b16 %v7019
        %v7166 = vunpack.c.l.b16 %v7020
        %v7167 = vunpack.c.h.b16 %v7020
        %v7168 = vunpack.c.l.b16 %v7021
        %v7169 = vunpack.c.h.b16 %v7021
        %v7170 = vunpack.c.l.b16 %v7022
        %v7171 = vunpack.c.h.b16 %v7022
        %v7172 = vunpack.c.l.b16 %v7023
        %v7173 = vunpack.c.h.b16 %v7023
        %v7174 = vunpack.c.l.b16 %v7024
        %v7175 = vunpack.c.h.b16 %v7024
        %v7176 = vunpack.c.l.b16 %v7025
        %v7177 = vunpack.c.h.b16 %v7025
        %v7178 = vunpack.c.l.b16 %v7026
        %v7179 = vunpack.c.h.b16 %v7026
        %v7180 = vunpack.c.l.b16 %v7027
        %v7181 = vunpack.c.h.b16 %v7027
        %v7182 = vunpack.c.l.b16 %v7028
        %v7183 = vunpack.c.h.b16 %v7028
        %v7184 = vunpack.c.l.b16 %v7029
        %v7185 = vunpack.c.h.b16 %v7029
        %v7186 = vunpack.c.l.b16 %v7030
        %v7187 = vunpack.c.h.b16 %v7030
        %v7188 = vunpack.c.l.b16 %v7031
        %v7189 = vunpack.c.h.b16 %v7031
        %v7190 = vunpack.c.l.b16 %v7032
        %v7191 = vunpack.c.h.b16 %v7032
        %v7192 = vunpack.c.l.b16 %v7033
        %v7193 = vunpack.c.h.b16 %v7033
        %v7194 = vunpack.c.l.b16 %v7034
        %v7195 = vunpack.c.h.b16 %v7034
        %v7196 = vunpack.c.l.b16 %v7035
        %v7197 = vunpack.c.h.b16 %v7035
        %v7198 = vunpack.c.l.b16 %v7036
        %v7199 = vunpack.c.h.b16 %v7036
        %v7200 = vunpack.c.l.b16 %v7037
        %v7201 = vunpack.c.h.b16 %v7037
        %v7202 = vunpack.c.l.b16 %v7038
        %v7203 = vunpack.c.h.b16 %v7038
        %v7204 = vunpack.c.l.b16 %v7039
        %v7205 = vunpack.c.h.b16 %v7039
        %v7206 = vunpack.c.l.b16 %v7040
        %v7207 = vunpack.c.h.b16 %v7040
        %v7208 = vunpack.c.l.b16 %v7041
        %v7209 = vunpack.c.h.b16 %v7041
        %v7210 = vunpack.c.l.b16 %v7042
        %v7211 = vunpack.c.h.b16 %v7042
        %v7212 = vunpack.c.l.b16 %v7043
        %v7213 = vunpack.c.h.b16 %v7043
        %v7214 = vunpack.c.l.b16 %v7044
        %v7215 = vunpack.c.h.b16 %v7044
        %v7216 = vunpack.c.l.b16 %v7045
        %v7217 = vunpack.c.h.b16 %v7045
        %v7218 = vunpack.c.l.b16 %v7046
        %v7219 = vunpack.c.h.b16 %v7046
        %v7220 = vunpack.c.l.b16 %v7047
        %v7221 = vunpack.c.h.b16 %v7047
        %v7222 = vunpack.c.l.b16 %v7048
        %v7223 = vunpack.c.h.b16 %v7048
        %v7224 = vunpack.c.l.b16 %v7049
        %v7225 = vunpack.c.h.b16 %v7049
        %v7226 = vunpack.c.l.b16 %v7050
        %v7227 = vunpack.c.h.b16 %v7050
        %v7228 = vunpack.c.l.b16 %v7051
        %v7229 = vunpack.c.h.b16 %v7051
        %v7230 = vunpack.c.l.b16 %v7052
        %v7231 = vunpack.c.h.b16 %v7052
        %v7232 = vunpack.c.l.b16 %v7053
        %v7233 = vunpack.c.h.b16 %v7053
        %v7234 = vunpack.c.l.b16 %v7054
        %v7235 = vunpack.c.h.b16 %v7054
        %v7236 = vunpack.c.l.b16 %v7055
        %v7237 = vunpack.c.h.b16 %v7055
        %v7238 = vunpack.c.l.b16 %v7056
        %v7239 = vunpack.c.h.b16 %v7056
        %v7240 = vunpack.c.l.b16 %v7057
        %v7241 = vunpack.c.h.b16 %v7057
        %v7242 = vunpack.c.l.b16 %v7058
        %v7243 = vunpack.c.h.b16 %v7058
        %v7244 = vunpack.c.l.b16 %v7059
        %v7245 = vunpack.c.h.b16 %v7059
        %v7246 = vunpack.c.l.b16 %v7060
        %v7247 = vunpack.c.h.b16 %v7060
        %v7248 = vunpack.c.l.b16 %v7061
        %v7249 = vunpack.c.h.b16 %v7061
        %v7250 = vunpack.c.l.b16 %v7062
        %v7251 = vunpack.c.h.b16 %v7062
        %v7252 = vunpack.c.l.b16 %v7063
        %v7253 = vunpack.c.h.b16 %v7063
        %v7254 = vunpack.c.l.b16 %v7064
        %v7255 = vunpack.c.h.b16 %v7064
        %v7256 = vunpack.c.l.b16 %v7065
        %v7257 = vunpack.c.h.b16 %v7065
        %v7258 = vunpack.c.l.b16 %v7066
        %v7259 = vunpack.c.h.b16 %v7066
        %v7260 = vunpack.c.l.b16 %v7067
        %v7261 = vunpack.c.h.b16 %v7067
        %v7262 = vunpack.c.l.b16 %v7068
        %v7263 = vunpack.c.h.b16 %v7068
        %v7264 = vunpack.c.l.b16 %v7069
        %v7265 = vunpack.c.h.b16 %v7069
        %v7266 = vunpack.c.l.b16 %v7070
        %v7267 = vunpack.c.h.b16 %v7070
        %v7268 = vunpack.c.l.b16 %v7071
        %v7269 = vunpack.c.h.b16 %v7071
        %v7270 = vunpack.c.l.b16 %v7072
        %v7271 = vunpack.c.h.b16 %v7072
        %v7272 = vunpack.c.l.b16 %v7073
        %v7273 = vunpack.c.h.b16 %v7073
        %v7274 = vunpack.c.l.b16 %v7074
        %v7275 = vunpack.c.h.b16 %v7074
        %v7276 = vunpack.c.l.b16 %v7075
        %v7277 = vunpack.c.h.b16 %v7075
        %v7278 = vunpack.c.l.b16 %v7076
        %v7279 = vunpack.c.h.b16 %v7076
        %v7280 = vunpack.c.l.b16 %v7077
        %v7281 = vunpack.c.h.b16 %v7077
        %v7282 = vpack.c.b16 %v7156, %v7154
        %v7283 = vpack.c.b16 %v7157, %v7155
        %v7284 = vpack.c.b16 %v7160, %v7158
        %v7285 = vpack.c.b16 %v7161, %v7159
        %v7286 = vpack.c.b16 %v7164, %v7162
        %v7287 = vpack.c.b16 %v7165, %v7163
        %v7288 = vpack.c.b16 %v7168, %v7166
        %v7289 = vpack.c.b16 %v7169, %v7167
        %v7290 = vpack.c.b16 %v7172, %v7170
        %v7291 = vpack.c.b16 %v7173, %v7171
        %v7292 = vpack.c.b16 %v7176, %v7174
        %v7293 = vpack.c.b16 %v7177, %v7175
        %v7294 = vpack.c.b16 %v7180, %v7178
        %v7295 = vpack.c.b16 %v7181, %v7179
        %v7296 = vpack.c.b16 %v7184, %v7182
        %v7297 = vpack.c.b16 %v7185, %v7183
        %v7298 = vpack.c.b16 %v7188, %v7186
        %v7299 = vpack.c.b16 %v7189, %v7187
        %v7300 = vpack.c.b16 %v7192, %v7190
        %v7301 = vpack.c.b16 %v7193, %v7191
        %v7302 = vpack.c.b16 %v7196, %v7194
        %v7303 = vpack.c.b16 %v7197, %v7195
        %v7304 = vpack.c.b16 %v7200, %v7198
        %v7305 = vpack.c.b16 %v7201, %v7199
        %v7306 = vpack.c.b16 %v7204, %v7202
        %v7307 = vpack.c.b16 %v7205, %v7203
        %v7308 = vpack.c.b16 %v7208, %v7206
        %v7309 = vpack.c.b16 %v7209, %v7207
        %v7310 = vpack.c.b16 %v7212, %v7210
        %v7311 = vpack.c.b16 %v7213, %v7211
        %v7312 = vpack.c.b16 %v7216, %v7214
        %v7313 = vpack.c.b16 %v7217, %v7215
        %v7314 = vpack.c.b16 %v7220, %v7218
        %v7315 = vpack.c.b16 %v7221, %v7219
        %v7316 = vpack.c.b16 %v7224, %v7222
        %v7317 = vpack.c.b16 %v7225, %v7223
        %v7318 = vpack.c.b16 %v7228, %v7226
        %v7319 = vpack.c.b16 %v7229, %v7227
        %v7320 = vpack.c.b16 %v7232, %v7230
        %v7321 = vpack.c.b16 %v7233, %v7231
        %v7322 = vpack.c.b16 %v7236, %v7234
        %v7323 = vpack.c.b16 %v7237, %v7235
        %v7324 = vpack.c.b16 %v7240, %v7238
        %v7325 = vpack.c.b16 %v7241, %v7239
        %v7326 = vpack.c.b16 %v7244, %v7242
        %v7327 = vpack.c.b16 %v7245, %v7243
        %v7328 = vpack.c.b16 %v7248, %v7246
        %v7329 = vpack.c.b16 %v7249, %v7247
        %v7330 = vpack.c.b16 %v7252, %v7250
        %v7331 = vpack.c.b16 %v7253, %v7251
        %v7332 = vpack.c.b16 %v7256, %v7254
        %v7333 = vpack.c.b16 %v7257, %v7255
        %v7334 = vpack.c.b16 %v7260, %v7258
        %v7335 = vpack.c.b16 %v7261, %v7259
        %v7336 = vpack.c.b16 %v7264, %v7262
        %v7337 = vpack.c.b16 %v7265, %v7263
        %v7338 = vpack.c.b16 %v7268, %v7266
        %v7339 = vpack.c.b16 %v7269, %v7267
        %v7340 = vpack.c.b16 %v7272, %v7270
        %v7341 = vpack.c.b16 %v7273, %v7271
        %v7342 = vpack.c.b16 %v7276, %v7274
        %v7343 = vpack.c.b16 %v7277, %v7275
        %v7344 = vpack.c.b16 %v7280, %v7278
        %v7345 = vpack.c.b16 %v7281, %v7279
        %7410 = vmatprep.subr.bf16.mxu0 %v7283
        %7411 = vmatpush1.bf16.msra.mxu0 %v7282
        %7412 = vmatprep.subr.bf16.mxu0 %v7285
        %7413 = vmatpush1.bf16.msra.mxu0 %v7284
        %7414 = vmatprep.subr.bf16.mxu0 %v7287
        %7415 = vmatpush1.bf16.msra.mxu0 %v7286
        %7416 = vmatprep.subr.bf16.mxu0 %v7289
        %7417 = vmatpush1.bf16.msra.mxu0 %v7288
        %7418 = vmatprep.subr.bf16.mxu0 %v7291
        %7419 = vmatpush1.bf16.msra.mxu0 %v7290
        %7420 = vmatprep.subr.bf16.mxu0 %v7293
        %7421 = vmatpush1.bf16.msra.mxu0 %v7292
        %7422 = vmatprep.subr.bf16.mxu0 %v7295
        %7423 = vmatpush1.bf16.msra.mxu0 %v7294
        %7424 = vmatprep.subr.bf16.mxu0 %v7297
        %7425 = vmatpush1.bf16.msra.mxu0 %v7296
        %7426 = vmatprep.subr.bf16.mxu0 %v7299
        %7427 = vmatpush1.bf16.msra.mxu0 %v7298
        %7428 = vmatprep.subr.bf16.mxu0 %v7301
        %7429 = vmatpush1.bf16.msra.mxu0 %v7300
        %7430 = vmatprep.subr.bf16.mxu0 %v7303
        %7431 = vmatpush1.bf16.msra.mxu0 %v7302
        %7432 = vmatprep.subr.bf16.mxu0 %v7305
        %7433 = vmatpush1.bf16.msra.mxu0 %v7304
        %7434 = vmatprep.subr.bf16.mxu0 %v7307
        %7435 = vmatpush1.bf16.msra.mxu0 %v7306
        %7436 = vmatprep.subr.bf16.mxu0 %v7309
        %7437 = vmatpush1.bf16.msra.mxu0 %v7308
        %7438 = vmatprep.subr.bf16.mxu0 %v7311
        %7439 = vmatpush1.bf16.msra.mxu0 %v7310
        %7440 = vmatprep.subr.bf16.mxu0 %v7313
        %7441 = vmatpush1.bf16.msra.mxu0 %v7312
        %7442 = vmatprep.mubr.bf16.mxu0 %v6967
        %7443 = vmatmul.mubr.bf16.gmra.mrb[0].mxu0 %v6966
        %v7444 = vpop.f32.mrb[0].mxu0
        %v7445 = vadd.f32 %v7083, %v7444
        %v7446 = vpop.f32.mrb[0].mxu0
        %v7447 = vadd.f32 %v7087, %v7446
        %v7448 = vpop.f32.mrb[0].mxu0
        %v7449 = vadd.f32 %v7083, %v7448
        %v7450 = vpop.f32.mrb[0].mxu0
        %v7451 = vadd.f32 %v7087, %v7450
        %7452 = vmatprep.mubr.bf16.mxu0 %v6971
        %7453 = vmatmul.mubr.bf16.gmra.mrb[0].mxu0 %v6970
        %v7454 = vpop.f32.mrb[0].mxu0
        %v7455 = vadd.f32 %v7083, %v7454
        %v7456 = vpop.f32.mrb[0].mxu0
        %v7457 = vadd.f32 %v7087, %v7456
        %v7458 = vpop.f32.mrb[0].mxu0
        %v7459 = vadd.f32 %v7083, %v7458
        %v7460 = vpop.f32.mrb[0].mxu0
        %v7461 = vadd.f32 %v7087, %v7460
        %7462 = vmatprep.mubr.bf16.mxu0 %v6975
        %7463 = vmatmul.mubr.bf16.gmra.mrb[0].mxu0 %v6974
        %v7464 = vpop.f32.mrb[0].mxu0
        %v7465 = vadd.f32 %v7083, %v7464
        %v7466 = vpop.f32.mrb[0].mxu0
        %v7467 = vadd.f32 %v7087, %v7466
        %v7468 = vpop.f32.mrb[0].mxu0
        %v7469 = vadd.f32 %v7083, %v7468
        %v7470 = vpop.f32.mrb[0].mxu0
        %v7471 = vadd.f32 %v7087, %v7470
        %7472 = vmatprep.mubr.bf16.mxu0 %v6979
        %7473 = vmatmul.mubr.bf16.gmra.mrb[0].mxu0 %v6978
        %v7474 = vpop.f32.mrb[0].mxu0
        %v7475 = vadd.f32 %v7083, %v7474
        %v7476 = vpop.f32.mrb[0].mxu0
        %v7477 = vadd.f32 %v7087, %v7476
        %v7478 = vpop.f32.mrb[0].mxu0
        %v7479 = vadd.f32 %v7083, %v7478
        %v7480 = vpop.f32.mrb[0].mxu0
        %v7481 = vadd.f32 %v7087, %v7480
        %7482 = vmatprep.mubr.bf16.mxu0 %v6983
        %7483 = vmatmul.mubr.bf16.gmra.mrb[0].mxu0 %v6982
        %v7484 = vpop.f32.mrb[0].mxu0
        %v7485 = vadd.f32 %v7083, %v7484
        %v7486 = vpop.f32.mrb[0].mxu0
        %v7487 = vadd.f32 %v7087, %v7486
        %v7488 = vpop.f32.mrb[0].mxu0
        %v7489 = vadd.f32 %v7083, %v7488
        %v7490 = vpop.f32.mrb[0].mxu0
        %v7491 = vadd.f32 %v7087, %v7490
        %7492 = vmatprep.mubr.bf16.mxu0 %v6987
        %7493 = vmatmul.mubr.bf16.gmra.mrb[0].mxu0 %v6986
        %v7494 = vpop.f32.mrb[0].mxu0
        %v7495 = vadd.f32 %v7083, %v7494
        %v7496 = vpop.f32.mrb[0].mxu0
        %v7497 = vadd.f32 %v7087, %v7496
        %v7498 = vpop.f32.mrb[0].mxu0
        %v7499 = vadd.f32 %v7083, %v7498
        %v7500 = vpop.f32.mrb[0].mxu0
        %v7501 = vadd.f32 %v7087, %v7500
        %7502 = vmatprep.mubr.bf16.mxu0 %v6991
        %7503 = vmatmul.mubr.bf16.gmra.mrb[0].mxu0 %v6990
        %v7504 = vpop.f32.mrb[0].mxu0
        %v7505 = vadd.f32 %v7083, %v7504
        %v7506 = vpop.f32.mrb[0].mxu0
        %v7507 = vadd.f32 %v7087, %v7506
        %v7508 = vpop.f32.mrb[0].mxu0
        %v7509 = vadd.f32 %v7083, %v7508
        %v7510 = vpop.f32.mrb[0].mxu0
        %v7511 = vadd.f32 %v7087, %v7510
        %7512 = vmatprep.mubr.bf16.mxu0 %v6995
        %7513 = vmatmul.mubr.bf16.gmra.mrb[0].mxu0 %v6994
        %v7514 = vpop.f32.mrb[0].mxu0
        %v7515 = vadd.f32 %v7083, %v7514
        %v7516 = vpop.f32.mrb[0].mxu0
        %v7517 = vadd.f32 %v7087, %v7516
        %v7518 = vpop.f32.mrb[0].mxu0
        %v7519 = vadd.f32 %v7083, %v7518
        %v7520 = vpop.f32.mrb[0].mxu0
        %v7521 = vadd.f32 %v7087, %v7520
        %7522 = vmatprep.mubr.bf16.mxu0 %v6999
        %7523 = vmatmul.mubr.bf16.gmra.mrb[0].mxu0 %v6998
        %v7524 = vpop.f32.mrb[0].mxu0
        %v7525 = vadd.f32 %v7083, %v7524
        %v7526 = vpop.f32.mrb[0].mxu0
        %v7527 = vadd.f32 %v7087, %v7526
        %v7528 = vpop.f32.mrb[0].mxu0
        %v7529 = vadd.f32 %v7083, %v7528
        %v7530 = vpop.f32.mrb[0].mxu0
        %v7531 = vadd.f32 %v7087, %v7530
        %7532 = vmatprep.mubr.bf16.mxu0 %v7003
        %7533 = vmatmul.mubr.bf16.gmra.mrb[0].mxu0 %v7002
        %v7534 = vpop.f32.mrb[0].mxu0
        %v7535 = vadd.f32 %v7083, %v7534
        %v7536 = vpop.f32.mrb[0].mxu0
        %v7537 = vadd.f32 %v7087, %v7536
        %v7538 = vpop.f32.mrb[0].mxu0
        %v7539 = vadd.f32 %v7083, %v7538
        %v7540 = vpop.f32.mrb[0].mxu0
        %v7541 = vadd.f32 %v7087, %v7540
        %7542 = vmatprep.mubr.bf16.mxu0 %v7007
        %7543 = vmatmul.mubr.bf16.gmra.mrb[0].mxu0 %v7006
        %v7544 = vpop.f32.mrb[0].mxu0
        %v7545 = vadd.f32 %v7083, %v7544
        %v7546 = vpop.f32.mrb[0].mxu0
        %v7547 = vadd.f32 %v7087, %v7546
        %v7548 = vpop.f32.mrb[0].mxu0
        %v7549 = vadd.f32 %v7083, %v7548
        %v7550 = vpop.f32.mrb[0].mxu0
        %v7551 = vadd.f32 %v7087, %v7550
        %7552 = vmatprep.mubr.bf16.mxu0 %v7011
        %7553 = vmatmul.mubr.bf16.gmra.mrb[0].mxu0 %v7010
        %v7554 = vpop.f32.mrb[0].mxu0
        %v7555 = vadd.f32 %v7083, %v7554
        %v7556 = vpop.f32.mrb[0].mxu0
        %v7557 = vadd.f32 %v7087, %v7556
        %v7558 = vpop.f32.mrb[0].mxu0
        %v7559 = vadd.f32 %v7083, %v7558
        %v7560 = vpop.f32.mrb[0].mxu0
        %v7561 = vadd.f32 %v7087, %v7560
        %7562 = vdwg.mxu0
        %7563 = vmatprep.subr.bf16.mxu0 %v7315
        %7564 = vmatpush1.bf16.msra.mxu0 %v7314
        %7565 = vmatprep.subr.bf16.mxu0 %v7317
        %7566 = vmatpush1.bf16.msra.mxu0 %v7316
        %7567 = vmatprep.subr.bf16.mxu0 %v7319
        %7568 = vmatpush1.bf16.msra.mxu0 %v7318
        %7569 = vmatprep.subr.bf16.mxu0 %v7321
        %7570 = vmatpush1.bf16.msra.mxu0 %v7320
        %7571 = vmatprep.subr.bf16.mxu0 %v7323
        %7572 = vmatpush1.bf16.msra.mxu0 %v7322
        %7573 = vmatprep.subr.bf16.mxu0 %v7325
        %7574 = vmatpush1.bf16.msra.mxu0 %v7324
        %7575 = vmatprep.subr.bf16.mxu0 %v7327
        %7576 = vmatpush1.bf16.msra.mxu0 %v7326
        %7577 = vmatprep.subr.bf16.mxu0 %v7329
        %7578 = vmatpush1.bf16.msra.mxu0 %v7328
        %7579 = vmatprep.subr.bf16.mxu0 %v7331
        %7580 = vmatpush1.bf16.msra.mxu0 %v7330
        %7581 = vmatprep.subr.bf16.mxu0 %v7333
        %7582 = vmatpush1.bf16.msra.mxu0 %v7332
        %7583 = vmatprep.subr.bf16.mxu0 %v7335
        %7584 = vmatpush1.bf16.msra.mxu0 %v7334
        %7585 = vmatprep.subr.bf16.mxu0 %v7337
        %7586 = vmatpush1.bf16.msra.mxu0 %v7336
        %7587 = vmatprep.subr.bf16.mxu0 %v7339
        %7588 = vmatpush1.bf16.msra.mxu0 %v7338
        %7589 = vmatprep.subr.bf16.mxu0 %v7341
        %7590 = vmatpush1.bf16.msra.mxu0 %v7340
        %7591 = vmatprep.subr.bf16.mxu0 %v7343
        %7592 = vmatpush1.bf16.msra.mxu0 %v7342
        %7593 = vmatprep.subr.bf16.mxu0 %v7345
        %7594 = vmatpush1.bf16.msra.mxu0 %v7344
        %7595 = vmatprep.mubr.bf16.mxu0 %v6969
        %7596 = vmatmul.mubr.bf16.gmra.mrb[0].mxu0 %v6968
        %v7597 = vpop.f32.mrb[0].mxu0
        %v7598 = vadd.f32 %v7445, %v7597
        %v7599 = vpop.f32.mrb[0].mxu0
        %v7600 = vadd.f32 %v7447, %v7599
        %v7601 = vpop.f32.mrb[0].mxu0
        %v7602 = vadd.f32 %v7449, %v7601
        %v7603 = vpop.f32.mrb[0].mxu0
        %v7604 = vadd.f32 %v7451, %v7603
        %7605 = vmatprep.mubr.bf16.mxu0 %v6973
        %7606 = vmatmul.mubr.bf16.gmra.mrb[0].mxu0 %v6972
        %v7607 = vpop.f32.mrb[0].mxu0
        %v7608 = vadd.f32 %v7455, %v7607
        %v7609 = vpop.f32.mrb[0].mxu0
        %v7610 = vadd.f32 %v7457, %v7609
        %v7611 = vpop.f32.mrb[0].mxu0
        %v7612 = vadd.f32 %v7459, %v7611
        %v7613 = vpop.f32.mrb[0].mxu0
        %v7614 = vadd.f32 %v7461, %v7613
        %7615 = vmatprep.mubr.bf16.mxu0 %v6977
        %7616 = vmatmul.mubr.bf16.gmra.mrb[0].mxu0 %v6976
        %v7617 = vpop.f32.mrb[0].mxu0
        %v7618 = vadd.f32 %v7465, %v7617
        %v7619 = vpop.f32.mrb[0].mxu0
        %v7620 = vadd.f32 %v7467, %v7619
        %v7621 = vpop.f32.mrb[0].mxu0
        %v7622 = vadd.f32 %v7469, %v7621
        %v7623 = vpop.f32.mrb[0].mxu0
        %v7624 = vadd.f32 %v7471, %v7623
        %7625 = vmatprep.mubr.bf16.mxu0 %v6981
        %7626 = vmatmul.mubr.bf16.gmra.mrb[0].mxu0 %v6980
        %v7627 = vpop.f32.mrb[0].mxu0
        %v7628 = vadd.f32 %v7475, %v7627
        %v7629 = vpop.f32.mrb[0].mxu0
        %v7630 = vadd.f32 %v7477, %v7629
        %v7631 = vpop.f32.mrb[0].mxu0
        %v7632 = vadd.f32 %v7479, %v7631
        %v7633 = vpop.f32.mrb[0].mxu0
        %v7634 = vadd.f32 %v7481, %v7633
        %7635 = vmatprep.mubr.bf16.mxu0 %v6985
        %7636 = vmatmul.mubr.bf16.gmra.mrb[0].mxu0 %v6984
        %v7637 = vpop.f32.mrb[0].mxu0
        %v7638 = vadd.f32 %v7485, %v7637
        %v7639 = vpop.f32.mrb[0].mxu0
        %v7640 = vadd.f32 %v7487, %v7639
        %v7641 = vpop.f32.mrb[0].mxu0
        %v7642 = vadd.f32 %v7489, %v7641
        %v7643 = vpop.f32.mrb[0].mxu0
        %v7644 = vadd.f32 %v7491, %v7643
        %7645 = vmatprep.mubr.bf16.mxu0 %v6989
        %7646 = vmatmul.mubr.bf16.gmra.mrb[0].mxu0 %v6988
        %v7647 = vpop.f32.mrb[0].mxu0
        %v7648 = vadd.f32 %v7495, %v7647
        %v7649 = vpop.f32.mrb[0].mxu0
        %v7650 = vadd.f32 %v7497, %v7649
        %v7651 = vpop.f32.mrb[0].mxu0
        %v7652 = vadd.f32 %v7499, %v7651
        %v7653 = vpop.f32.mrb[0].mxu0
        %v7654 = vadd.f32 %v7501, %v7653
        %7655 = vmatprep.mubr.bf16.mxu0 %v6993
        %7656 = vmatmul.mubr.bf16.gmra.mrb[0].mxu0 %v6992
        %v7657 = vpop.f32.mrb[0].mxu0
        %v7658 = vadd.f32 %v7505, %v7657
        %v7659 = vpop.f32.mrb[0].mxu0
        %v7660 = vadd.f32 %v7507, %v7659
        %v7661 = vpop.f32.mrb[0].mxu0
        %v7662 = vadd.f32 %v7509, %v7661
        %v7663 = vpop.f32.mrb[0].mxu0
        %v7664 = vadd.f32 %v7511, %v7663
        %7665 = vmatprep.mubr.bf16.mxu0 %v6997
        %7666 = vmatmul.mubr.bf16.gmra.mrb[0].mxu0 %v6996
        %v7667 = vpop.f32.mrb[0].mxu0
        %v7668 = vadd.f32 %v7515, %v7667
        %v7669 = vpop.f32.mrb[0].mxu0
        %v7670 = vadd.f32 %v7517, %v7669
        %v7671 = vpop.f32.mrb[0].mxu0
        %v7672 = vadd.f32 %v7519, %v7671
        %v7673 = vpop.f32.mrb[0].mxu0
        %v7674 = vadd.f32 %v7521, %v7673
        %7675 = vmatprep.mubr.bf16.mxu0 %v7001
        %7676 = vmatmul.mubr.bf16.gmra.mrb[0].mxu0 %v7000
        %v7677 = vpop.f32.mrb[0].mxu0
        %v7678 = vadd.f32 %v7525, %v7677
        %v7679 = vpop.f32.mrb[0].mxu0
        %v7680 = vadd.f32 %v7527, %v7679
        %v7681 = vpop.f32.mrb[0].mxu0
        %v7682 = vadd.f32 %v7529, %v7681
        %v7683 = vpop.f32.mrb[0].mxu0
        %v7684 = vadd.f32 %v7531, %v7683
        %7685 = vmatprep.mubr.bf16.mxu0 %v7005
        %7686 = vmatmul.mubr.bf16.gmra.mrb[0].mxu0 %v7004
        %v7687 = vpop.f32.mrb[0].mxu0
        %v7688 = vadd.f32 %v7535, %v7687
        %v7689 = vpop.f32.mrb[0].mxu0
        %v7690 = vadd.f32 %v7537, %v7689
        %v7691 = vpop.f32.mrb[0].mxu0
        %v7692 = vadd.f32 %v7539, %v7691
        %v7693 = vpop.f32.mrb[0].mxu0
        %v7694 = vadd.f32 %v7541, %v7693
        %7695 = vmatprep.mubr.bf16.mxu0 %v7009
        %7696 = vmatmul.mubr.bf16.gmra.mrb[0].mxu0 %v7008
        %v7697 = vpop.f32.mrb[0].mxu0
        %v7698 = vadd.f32 %v7545, %v7697
        %v7699 = vpop.f32.mrb[0].mxu0
        %v7700 = vadd.f32 %v7547, %v7699
        %v7701 = vpop.f32.mrb[0].mxu0
        %v7702 = vadd.f32 %v7549, %v7701
        %v7703 = vpop.f32.mrb[0].mxu0
        %v7704 = vadd.f32 %v7551, %v7703
        %7705 = vmatprep.mubr.bf16.mxu0 %v7013
        %7706 = vmatmul.mubr.bf16.gmra.mrb[0].mxu0 %v7012
        %v7707 = vpop.f32.mrb[0].mxu0
        %v7708 = vadd.f32 %v7555, %v7707
        %v7709 = vpop.f32.mrb[0].mxu0
        %v7710 = vadd.f32 %v7557, %v7709
        %v7711 = vpop.f32.mrb[0].mxu0
        %v7712 = vadd.f32 %v7559, %v7711
        %v7713 = vpop.f32.mrb[0].mxu0
        %v7714 = vadd.f32 %v7561, %v7713
        %7715 = vdwg.mxu0
        %s7716 = scalar_lea.vmem %s8, 1
        %v7717 = vld [vmem:[%s7716] ss:$4 sm:$0x3]
        %s7718 = scalar_lea.vmem %s8, 2
        %v7719 = vld [vmem:[%s7718] ss:$4 sm:$0x3]
        %v7720 = vadd.f32 %v7598, %v7600
        %7721 = vadd.xlane.f32.xlu0 %v7720
        %v7722 = vpop.xlane.xlu0 %7721
        %v7723 = vadd.f32 %v7602, %v7604
        %7724 = vadd.xlane.f32.xlu0 %v7723
        %v7725 = vpop.xlane.xlu0 %7724
        %v7726 = vadd.f32 %v7608, %v7610
        %7727 = vadd.xlane.f32.xlu0 %v7726
        %v7728 = vpop.xlane.xlu0 %7727
        %v7729 = vadd.f32 %v7612, %v7614
        %7730 = vadd.xlane.f32.xlu0 %v7729
        %v7731 = vpop.xlane.xlu0 %7730
        %v7732 = vadd.f32 %v7618, %v7620
        %7733 = vadd.xlane.f32.xlu0 %v7732
        %v7734 = vpop.xlane.xlu0 %7733
        %v7735 = vadd.f32 %v7622, %v7624
        %7736 = vadd.xlane.f32.xlu0 %v7735
        %v7737 = vpop.xlane.xlu0 %7736
        %v7738 = vadd.f32 %v7628, %v7630
        %7739 = vadd.xlane.f32.xlu0 %v7738
        %v7740 = vpop.xlane.xlu0 %7739
        %v7741 = vadd.f32 %v7632, %v7634
        %7742 = vadd.xlane.f32.xlu0 %v7741
        %v7743 = vpop.xlane.xlu0 %7742
        %v7744 = vadd.f32 %v7638, %v7640
        %7745 = vadd.xlane.f32.xlu0 %v7744
        %v7746 = vpop.xlane.xlu0 %7745
        %v7747 = vadd.f32 %v7642, %v7644
        %7748 = vadd.xlane.f32.xlu0 %v7747
        %v7749 = vpop.xlane.xlu0 %7748
        %v7750 = vadd.f32 %v7648, %v7650
        %7751 = vadd.xlane.f32.xlu0 %v7750
        %v7752 = vpop.xlane.xlu0 %7751
        %v7753 = vadd.f32 %v7652, %v7654
        %7754 = vadd.xlane.f32.xlu0 %v7753
        %v7755 = vpop.xlane.xlu0 %7754
        %v7756 = vadd.f32 %v7658, %v7660
        %7757 = vadd.xlane.f32.xlu0 %v7756
        %v7758 = vpop.xlane.xlu0 %7757
        %v7759 = vadd.f32 %v7662, %v7664
        %7760 = vadd.xlane.f32.xlu0 %v7759
        %v7761 = vpop.xlane.xlu0 %7760
        %v7762 = vadd.f32 %v7668, %v7670
        %7763 = vadd.xlane.f32.xlu0 %v7762
        %v7764 = vpop.xlane.xlu0 %7763
        %v7765 = vadd.f32 %v7672, %v7674
        %7766 = vadd.xlane.f32.xlu0 %v7765
        %v7767 = vpop.xlane.xlu0 %7766
        %v7768 = vadd.f32 %v7678, %v7680
        %7769 = vadd.xlane.f32.xlu0 %v7768
        %v7770 = vpop.xlane.xlu0 %7769
        %v7771 = vadd.f32 %v7682, %v7684
        %7772 = vadd.xlane.f32.xlu0 %v7771
        %v7773 = vpop.xlane.xlu0 %7772
        %v7774 = vadd.f32 %v7688, %v7690
        %7775 = vadd.xlane.f32.xlu0 %v7774
        %v7776 = vpop.xlane.xlu0 %7775
        %v7777 = vadd.f32 %v7692, %v7694
        %7778 = vadd.xlane.f32.xlu0 %v7777
        %v7779 = vpop.xlane.xlu0 %7778
        %v7780 = vadd.f32 %v7698, %v7700
        %7781 = vadd.xlane.f32.xlu0 %v7780
        %v7782 = vpop.xlane.xlu0 %7781
        %v7783 = vadd.f32 %v7702, %v7704
        %7784 = vadd.xlane.f32.xlu0 %v7783
        %v7785 = vpop.xlane.xlu0 %7784
        %v7786 = vadd.f32 %v7708, %v7710
        %7787 = vadd.xlane.f32.xlu0 %v7786
        %v7788 = vpop.xlane.xlu0 %7787
        %v7789 = vadd.f32 %v7712, %v7714
        %7790 = vadd.xlane.f32.xlu0 %v7789
        %v7791 = vpop.xlane.xlu0 %7790
        %v7792 = vrcp.pop 256.0
        %v7793 = vmul.f32 %v7722, %v7792
        %v7794 = vmul.f32 %v7725, %v7792
        %v7795 = vmul.f32 %v7728, %v7792
        %v7796 = vmul.f32 %v7731, %v7792
        %v7797 = vmul.f32 %v7734, %v7792
        %v7798 = vmul.f32 %v7737, %v7792
        %v7799 = vmul.f32 %v7740, %v7792
        %v7800 = vmul.f32 %v7743, %v7792
        %v7801 = vmul.f32 %v7746, %v7792
        %v7802 = vmul.f32 %v7749, %v7792
        %v7803 = vmul.f32 %v7752, %v7792
        %v7804 = vmul.f32 %v7755, %v7792
        %v7805 = vmul.f32 %v7758, %v7792
        %v7806 = vmul.f32 %v7761, %v7792
        %v7807 = vmul.f32 %v7764, %v7792
        %v7808 = vmul.f32 %v7767, %v7792
        %v7809 = vmul.f32 %v7770, %v7792
        %v7810 = vmul.f32 %v7773, %v7792
        %v7811 = vmul.f32 %v7776, %v7792
        %v7812 = vmul.f32 %v7779, %v7792
        %v7813 = vmul.f32 %v7782, %v7792
        %v7814 = vmul.f32 %v7785, %v7792
        %v7815 = vmul.f32 %v7788, %v7792
        %v7816 = vmul.f32 %v7791, %v7792
        %v7817 = vsub.f32 %v7598, %v7793
        %v7818 = vsub.f32 %v7600, %v7793
        %v7819 = vsub.f32 %v7602, %v7794
        %v7820 = vsub.f32 %v7604, %v7794
        %v7821 = vsub.f32 %v7608, %v7795
        %v7822 = vsub.f32 %v7610, %v7795
        %v7823 = vsub.f32 %v7612, %v7796
        %v7824 = vsub.f32 %v7614, %v7796
        %v7825 = vsub.f32 %v7618, %v7797
        %v7826 = vsub.f32 %v7620, %v7797
        %v7827 = vsub.f32 %v7622, %v7798
        %v7828 = vsub.f32 %v7624, %v7798
        %v7829 = vsub.f32 %v7628, %v7799
        %v7830 = vsub.f32 %v7630, %v7799
        %v7831 = vsub.f32 %v7632, %v7800
        %v7832 = vsub.f32 %v7634, %v7800
        %v7833 = vsub.f32 %v7638, %v7801
        %v7834 = vsub.f32 %v7640, %v7801
        %v7835 = vsub.f32 %v7642, %v7802
        %v7836 = vsub.f32 %v7644, %v7802
        %v7837 = vsub.f32 %v7648, %v7803
        %v7838 = vsub.f32 %v7650, %v7803
        %v7839 = vsub.f32 %v7652, %v7804
        %v7840 = vsub.f32 %v7654, %v7804
        %v7841 = vsub.f32 %v7658, %v7805
        %v7842 = vsub.f32 %v7660, %v7805
        %v7843 = vsub.f32 %v7662, %v7806
        %v7844 = vsub.f32 %v7664, %v7806
        %v7845 = vsub.f32 %v7668, %v7807
        %v7846 = vsub.f32 %v7670, %v7807
        %v7847 = vsub.f32 %v7672, %v7808
        %v7848 = vsub.f32 %v7674, %v7808
        %v7849 = vsub.f32 %v7678, %v7809
        %v7850 = vsub.f32 %v7680, %v7809
        %v7851 = vsub.f32 %v7682, %v7810
        %v7852 = vsub.f32 %v7684, %v7810
        %v7853 = vsub.f32 %v7688, %v7811
        %v7854 = vsub.f32 %v7690, %v7811
        %v7855 = vsub.f32 %v7692, %v7812
        %v7856 = vsub.f32 %v7694, %v7812
        %v7857 = vsub.f32 %v7698, %v7813
        %v7858 = vsub.f32 %v7700, %v7813
        %v7859 = vsub.f32 %v7702, %v7814
        %v7860 = vsub.f32 %v7704, %v7814
        %v7861 = vsub.f32 %v7708, %v7815
        %v7862 = vsub.f32 %v7710, %v7815
        %v7863 = vsub.f32 %v7712, %v7816
        %v7864 = vsub.f32 %v7714, %v7816
        %v7865 = vmul.f32 %v7817, %v7817
        %v7866 = vmul.f32 %v7818, %v7818
        %v7867 = vmul.f32 %v7819, %v7819
        %v7868 = vmul.f32 %v7820, %v7820
        %v7869 = vmul.f32 %v7821, %v7821
        %v7870 = vmul.f32 %v7822, %v7822
        %v7871 = vmul.f32 %v7823, %v7823
        %v7872 = vmul.f32 %v7824, %v7824
        %v7873 = vmul.f32 %v7825, %v7825
        %v7874 = vmul.f32 %v7826, %v7826
        %v7875 = vmul.f32 %v7827, %v7827
        %v7876 = vmul.f32 %v7828, %v7828
        %v7877 = vmul.f32 %v7829, %v7829
        %v7878 = vmul.f32 %v7830, %v7830
        %v7879 = vmul.f32 %v7831, %v7831
        %v7880 = vmul.f32 %v7832, %v7832
        %v7881 = vmul.f32 %v7833, %v7833
        %v7882 = vmul.f32 %v7834, %v7834
        %v7883 = vmul.f32 %v7835, %v7835
        %v7884 = vmul.f32 %v7836, %v7836
        %v7885 = vmul.f32 %v7837, %v7837
        %v7886 = vmul.f32 %v7838, %v7838
        %v7887 = vmul.f32 %v7839, %v7839
        %v7888 = vmul.f32 %v7840, %v7840
        %v7889 = vmul.f32 %v7841, %v7841
        %v7890 = vmul.f32 %v7842, %v7842
        %v7891 = vmul.f32 %v7843, %v7843
        %v7892 = vmul.f32 %v7844, %v7844
        %v7893 = vmul.f32 %v7845, %v7845
        %v7894 = vmul.f32 %v7846, %v7846
        %v7895 = vmul.f32 %v7847, %v7847
        %v7896 = vmul.f32 %v7848, %v7848
        %v7897 = vmul.f32 %v7849, %v7849
        %v7898 = vmul.f32 %v7850, %v7850
        %v7899 = vmul.f32 %v7851, %v7851
        %v7900 = vmul.f32 %v7852, %v7852
        %v7901 = vmul.f32 %v7853, %v7853
        %v7902 = vmul.f32 %v7854, %v7854
        %v7903 = vmul.f32 %v7855, %v7855
        %v7904 = vmul.f32 %v7856, %v7856
        %v7905 = vmul.f32 %v7857, %v7857
        %v7906 = vmul.f32 %v7858, %v7858
        %v7907 = vmul.f32 %v7859, %v7859
        %v7908 = vmul.f32 %v7860, %v7860
        %v7909 = vmul.f32 %v7861, %v7861
        %v7910 = vmul.f32 %v7862, %v7862
        %v7911 = vmul.f32 %v7863, %v7863
        %v7912 = vmul.f32 %v7864, %v7864
        %v7913 = vadd.f32 %v7865, %v7866
        %7914 = vadd.xlane.f32.xlu0 %v7913
        %v7915 = vpop.xlane.xlu0 %7914
        %v7916 = vadd.f32 %v7867, %v7868
        %7917 = vadd.xlane.f32.xlu0 %v7916
        %v7918 = vpop.xlane.xlu0 %7917
        %v7919 = vadd.f32 %v7869, %v7870
        %7920 = vadd.xlane.f32.xlu0 %v7919
        %v7921 = vpop.xlane.xlu0 %7920
        %v7922 = vadd.f32 %v7871, %v7872
        %7923 = vadd.xlane.f32.xlu0 %v7922
        %v7924 = vpop.xlane.xlu0 %7923
        %v7925 = vadd.f32 %v7873, %v7874
        %7926 = vadd.xlane.f32.xlu0 %v7925
        %v7927 = vpop.xlane.xlu0 %7926
        %v7928 = vadd.f32 %v7875, %v7876
        %7929 = vadd.xlane.f32.xlu0 %v7928
        %v7930 = vpop.xlane.xlu0 %7929
        %v7931 = vadd.f32 %v7877, %v7878
        %7932 = vadd.xlane.f32.xlu0 %v7931
        %v7933 = vpop.xlane.xlu0 %7932
        %v7934 = vadd.f32 %v7879, %v7880
        %7935 = vadd.xlane.f32.xlu0 %v7934
        %v7936 = vpop.xlane.xlu0 %7935
        %v7937 = vadd.f32 %v7881, %v7882
        %7938 = vadd.xlane.f32.xlu0 %v7937
        %v7939 = vpop.xlane.xlu0 %7938
        %v7940 = vadd.f32 %v7883, %v7884
        %7941 = vadd.xlane.f32.xlu0 %v7940
        %v7942 = vpop.xlane.xlu0 %7941
        %v7943 = vadd.f32 %v7885, %v7886
        %7944 = vadd.xlane.f32.xlu0 %v7943
        %v7945 = vpop.xlane.xlu0 %7944
        %v7946 = vadd.f32 %v7887, %v7888
        %7947 = vadd.xlane.f32.xlu0 %v7946
        %v7948 = vpop.xlane.xlu0 %7947
        %v7949 = vadd.f32 %v7889, %v7890
        %7950 = vadd.xlane.f32.xlu0 %v7949
        %v7951 = vpop.xlane.xlu0 %7950
        %v7952 = vadd.f32 %v7891, %v7892
        %7953 = vadd.xlane.f32.xlu0 %v7952
        %v7954 = vpop.xlane.xlu0 %7953
        %v7955 = vadd.f32 %v7893, %v7894
        %7956 = vadd.xlane.f32.xlu0 %v7955
        %v7957 = vpop.xlane.xlu0 %7956
        %v7958 = vadd.f32 %v7895, %v7896
        %7959 = vadd.xlane.f32.xlu0 %v7958
        %v7960 = vpop.xlane.xlu0 %7959
        %v7961 = vadd.f32 %v7897, %v7898
        %7962 = vadd.xlane.f32.xlu0 %v7961
        %v7963 = vpop.xlane.xlu0 %7962
        %v7964 = vadd.f32 %v7899, %v7900
        %7965 = vadd.xlane.f32.xlu0 %v7964
        %v7966 = vpop.xlane.xlu0 %7965
        %v7967 = vadd.f32 %v7901, %v7902
        %7968 = vadd.xlane.f32.xlu0 %v7967
        %v7969 = vpop.xlane.xlu0 %7968
        %v7970 = vadd.f32 %v7903, %v7904
        %7971 = vadd.xlane.f32.xlu0 %v7970
        %v7972 = vpop.xlane.xlu0 %7971
        %v7973 = vadd.f32 %v7905, %v7906
        %7974 = vadd.xlane.f32.xlu0 %v7973
        %v7975 = vpop.xlane.xlu0 %7974
        %v7976 = vadd.f32 %v7907, %v7908
        %7977 = vadd.xlane.f32.xlu0 %v7976
        %v7978 = vpop.xlane.xlu0 %7977
        %v7979 = vadd.f32 %v7909, %v7910
        %7980 = vadd.xlane.f32.xlu0 %v7979
        %v7981 = vpop.xlane.xlu0 %7980
        %v7982 = vadd.f32 %v7911, %v7912
        %7983 = vadd.xlane.f32.xlu0 %v7982
        %v7984 = vpop.xlane.xlu0 %7983
        %v7985 = vmul.f32 %v7915, %v7792
        %v7986 = vmul.f32 %v7918, %v7792
        %v7987 = vmul.f32 %v7921, %v7792
        %v7988 = vmul.f32 %v7924, %v7792
        %v7989 = vmul.f32 %v7927, %v7792
        %v7990 = vmul.f32 %v7930, %v7792
        %v7991 = vmul.f32 %v7933, %v7792
        %v7992 = vmul.f32 %v7936, %v7792
        %v7993 = vmul.f32 %v7939, %v7792
        %v7994 = vmul.f32 %v7942, %v7792
        %v7995 = vmul.f32 %v7945, %v7792
        %v7996 = vmul.f32 %v7948, %v7792
        %v7997 = vmul.f32 %v7951, %v7792
        %v7998 = vmul.f32 %v7954, %v7792
        %v7999 = vmul.f32 %v7957, %v7792
        %v8000 = vmul.f32 %v7960, %v7792
        %v8001 = vmul.f32 %v7963, %v7792
        %v8002 = vmul.f32 %v7966, %v7792
        %v8003 = vmul.f32 %v7969, %v7792
        %v8004 = vmul.f32 %v7972, %v7792
        %v8005 = vmul.f32 %v7975, %v7792
        %v8006 = vmul.f32 %v7978, %v7792
        %v8007 = vmul.f32 %v7981, %v7792
        %v8008 = vmul.f32 %v7984, %v7792
        %v8009 = vadd.f32 %v7985, 1e-05
        %v8010 = vadd.f32 %v7986, 1e-05
        %v8011 = vadd.f32 %v7987, 1e-05
        %v8012 = vadd.f32 %v7988, 1e-05
        %v8013 = vadd.f32 %v7989, 1e-05
        %v8014 = vadd.f32 %v7990, 1e-05
        %v8015 = vadd.f32 %v7991, 1e-05
        %v8016 = vadd.f32 %v7992, 1e-05
        %v8017 = vadd.f32 %v7993, 1e-05
        %v8018 = vadd.f32 %v7994, 1e-05
        %v8019 = vadd.f32 %v7995, 1e-05
        %v8020 = vadd.f32 %v7996, 1e-05
        %v8021 = vadd.f32 %v7997, 1e-05
        %v8022 = vadd.f32 %v7998, 1e-05
        %v8023 = vadd.f32 %v7999, 1e-05
        %v8024 = vadd.f32 %v8000, 1e-05
        %v8025 = vadd.f32 %v8001, 1e-05
        %v8026 = vadd.f32 %v8002, 1e-05
        %v8027 = vadd.f32 %v8003, 1e-05
        %v8028 = vadd.f32 %v8004, 1e-05
        %v8029 = vadd.f32 %v8005, 1e-05
        %v8030 = vadd.f32 %v8006, 1e-05
        %v8031 = vadd.f32 %v8007, 1e-05
        %v8032 = vadd.f32 %v8008, 1e-05
        %v8033 = vrsqrt.pop %v8009
        %v8034 = vrsqrt.pop %v8010
        %v8035 = vrsqrt.pop %v8011
        %v8036 = vrsqrt.pop %v8012
        %v8037 = vrsqrt.pop %v8013
        %v8038 = vrsqrt.pop %v8014
        %v8039 = vrsqrt.pop %v8015
        %v8040 = vrsqrt.pop %v8016
        %v8041 = vrsqrt.pop %v8017
        %v8042 = vrsqrt.pop %v8018
        %v8043 = vrsqrt.pop %v8019
        %v8044 = vrsqrt.pop %v8020
        %v8045 = vrsqrt.pop %v8021
        %v8046 = vrsqrt.pop %v8022
        %v8047 = vrsqrt.pop %v8023
        %v8048 = vrsqrt.pop %v8024
        %v8049 = vrsqrt.pop %v8025
        %v8050 = vrsqrt.pop %v8026
        %v8051 = vrsqrt.pop %v8027
        %v8052 = vrsqrt.pop %v8028
        %v8053 = vrsqrt.pop %v8029
        %v8054 = vrsqrt.pop %v8030
        %v8055 = vrsqrt.pop %v8031
        %v8056 = vrsqrt.pop %v8032
        %v8057 = vmul.f32 %v7817, %v8033
        %v8058 = vmul.f32 %v7818, %v8033
        %v8059 = vmul.f32 %v7819, %v8034
        %v8060 = vmul.f32 %v7820, %v8034
        %v8061 = vmul.f32 %v7821, %v8035
        %v8062 = vmul.f32 %v7822, %v8035
        %v8063 = vmul.f32 %v7823, %v8036
        %v8064 = vmul.f32 %v7824, %v8036
        %v8065 = vmul.f32 %v7825, %v8037
        %v8066 = vmul.f32 %v7826, %v8037
        %v8067 = vmul.f32 %v7827, %v8038
        %v8068 = vmul.f32 %v7828, %v8038
        %v8069 = vmul.f32 %v7829, %v8039
        %v8070 = vmul.f32 %v7830, %v8039
        %v8071 = vmul.f32 %v7831, %v8040
        %v8072 = vmul.f32 %v7832, %v8040
        %v8073 = vmul.f32 %v7833, %v8041
        %v8074 = vmul.f32 %v7834, %v8041
        %v8075 = vmul.f32 %v7835, %v8042
        %v8076 = vmul.f32 %v7836, %v8042
        %v8077 = vmul.f32 %v7837, %v8043
        %v8078 = vmul.f32 %v7838, %v8043
        %v8079 = vmul.f32 %v7839, %v8044
        %v8080 = vmul.f32 %v7840, %v8044
        %v8081 = vmul.f32 %v7841, %v8045
        %v8082 = vmul.f32 %v7842, %v8045
        %v8083 = vmul.f32 %v7843, %v8046
        %v8084 = vmul.f32 %v7844, %v8046
        %v8085 = vmul.f32 %v7845, %v8047
        %v8086 = vmul.f32 %v7846, %v8047
        %v8087 = vmul.f32 %v7847, %v8048
        %v8088 = vmul.f32 %v7848, %v8048
        %v8089 = vmul.f32 %v7849, %v8049
        %v8090 = vmul.f32 %v7850, %v8049
        %v8091 = vmul.f32 %v7851, %v8050
        %v8092 = vmul.f32 %v7852, %v8050
        %v8093 = vmul.f32 %v7853, %v8051
        %v8094 = vmul.f32 %v7854, %v8051
        %v8095 = vmul.f32 %v7855, %v8052
        %v8096 = vmul.f32 %v7856, %v8052
        %v8097 = vmul.f32 %v7857, %v8053
        %v8098 = vmul.f32 %v7858, %v8053
        %v8099 = vmul.f32 %v7859, %v8054
        %v8100 = vmul.f32 %v7860, %v8054
        %v8101 = vmul.f32 %v7861, %v8055
        %v8102 = vmul.f32 %v7862, %v8055
        %v8103 = vmul.f32 %v7863, %v8056
        %v8104 = vmul.f32 %v7864, %v8056
        %v8106 = vlaneseq
        %v8107 = vshrl.u32 %v8106, 7
        %v8108 = vsub.s32 0, %v8107
        %v8109 = vrot.slane %v7717, %v8108
        %v8110 = vlaneseq
        %v8111 = vshrl.u32 %v8110, 7
        %v8112 = vsub.s32 1, %v8111
        %v8113 = vrot.slane %v7717, %v8112
        %v8116 = vmul.f32 %v8057, %v8109
        %v8117 = vmul.f32 %v8058, %v8113
        %v8118 = vmul.f32 %v8059, %v8109
        %v8119 = vmul.f32 %v8060, %v8113
        %v8120 = vmul.f32 %v8061, %v8109
        %v8121 = vmul.f32 %v8062, %v8113
        %v8122 = vmul.f32 %v8063, %v8109
        %v8123 = vmul.f32 %v8064, %v8113
        %v8124 = vmul.f32 %v8065, %v8109
        %v8125 = vmul.f32 %v8066, %v8113
        %v8126 = vmul.f32 %v8067, %v8109
        %v8127 = vmul.f32 %v8068, %v8113
        %v8128 = vmul.f32 %v8069, %v8109
        %v8129 = vmul.f32 %v8070, %v8113
        %v8130 = vmul.f32 %v8071, %v8109
        %v8131 = vmul.f32 %v8072, %v8113
        %v8132 = vmul.f32 %v8073, %v8109
        %v8133 = vmul.f32 %v8074, %v8113
        %v8134 = vmul.f32 %v8075, %v8109
        %v8135 = vmul.f32 %v8076, %v8113
        %v8136 = vmul.f32 %v8077, %v8109
        %v8137 = vmul.f32 %v8078, %v8113
        %v8138 = vmul.f32 %v8079, %v8109
        %v8139 = vmul.f32 %v8080, %v8113
        %v8140 = vmul.f32 %v8081, %v8109
        %v8141 = vmul.f32 %v8082, %v8113
        %v8142 = vmul.f32 %v8083, %v8109
        %v8143 = vmul.f32 %v8084, %v8113
        %v8144 = vmul.f32 %v8085, %v8109
        %v8145 = vmul.f32 %v8086, %v8113
        %v8146 = vmul.f32 %v8087, %v8109
        %v8147 = vmul.f32 %v8088, %v8113
        %v8148 = vmul.f32 %v8089, %v8109
        %v8149 = vmul.f32 %v8090, %v8113
        %v8150 = vmul.f32 %v8091, %v8109
        %v8151 = vmul.f32 %v8092, %v8113
        %v8152 = vmul.f32 %v8093, %v8109
        %v8153 = vmul.f32 %v8094, %v8113
        %v8154 = vmul.f32 %v8095, %v8109
        %v8155 = vmul.f32 %v8096, %v8113
        %v8156 = vmul.f32 %v8097, %v8109
        %v8157 = vmul.f32 %v8098, %v8113
        %v8158 = vmul.f32 %v8099, %v8109
        %v8159 = vmul.f32 %v8100, %v8113
        %v8160 = vmul.f32 %v8101, %v8109
        %v8161 = vmul.f32 %v8102, %v8113
        %v8162 = vmul.f32 %v8103, %v8109
        %v8163 = vmul.f32 %v8104, %v8113
        %v8165 = vlaneseq
        %v8166 = vshrl.u32 %v8165, 7
        %v8167 = vsub.s32 0, %v8166
        %v8168 = vrot.slane %v7719, %v8167
        %v8169 = vlaneseq
        %v8170 = vshrl.u32 %v8169, 7
        %v8171 = vsub.s32 1, %v8170
        %v8172 = vrot.slane %v7719, %v8171
        %v8175 = vadd.f32 %v8116, %v8168
        %v8176 = vadd.f32 %v8117, %v8172
        %v8177 = vadd.f32 %v8118, %v8168
        %v8178 = vadd.f32 %v8119, %v8172
        %v8179 = vadd.f32 %v8120, %v8168
        %v8180 = vadd.f32 %v8121, %v8172
        %v8181 = vadd.f32 %v8122, %v8168
        %v8182 = vadd.f32 %v8123, %v8172
        %v8183 = vadd.f32 %v8124, %v8168
        %v8184 = vadd.f32 %v8125, %v8172
        %v8185 = vadd.f32 %v8126, %v8168
        %v8186 = vadd.f32 %v8127, %v8172
        %v8187 = vadd.f32 %v8128, %v8168
        %v8188 = vadd.f32 %v8129, %v8172
        %v8189 = vadd.f32 %v8130, %v8168
        %v8190 = vadd.f32 %v8131, %v8172
        %v8191 = vadd.f32 %v8132, %v8168
        %v8192 = vadd.f32 %v8133, %v8172
        %v8193 = vadd.f32 %v8134, %v8168
        %v8194 = vadd.f32 %v8135, %v8172
        %v8195 = vadd.f32 %v8136, %v8168
        %v8196 = vadd.f32 %v8137, %v8172
        %v8197 = vadd.f32 %v8138, %v8168
        %v8198 = vadd.f32 %v8139, %v8172
        %v8199 = vadd.f32 %v8140, %v8168
        %v8200 = vadd.f32 %v8141, %v8172
        %v8201 = vadd.f32 %v8142, %v8168
        %v8202 = vadd.f32 %v8143, %v8172
        %v8203 = vadd.f32 %v8144, %v8168
        %v8204 = vadd.f32 %v8145, %v8172
        %v8205 = vadd.f32 %v8146, %v8168
        %v8206 = vadd.f32 %v8147, %v8172
        %v8207 = vadd.f32 %v8148, %v8168
        %v8208 = vadd.f32 %v8149, %v8172
        %v8209 = vadd.f32 %v8150, %v8168
        %v8210 = vadd.f32 %v8151, %v8172
        %v8211 = vadd.f32 %v8152, %v8168
        %v8212 = vadd.f32 %v8153, %v8172
        %v8213 = vadd.f32 %v8154, %v8168
        %v8214 = vadd.f32 %v8155, %v8172
        %v8215 = vadd.f32 %v8156, %v8168
        %v8216 = vadd.f32 %v8157, %v8172
        %v8217 = vadd.f32 %v8158, %v8168
        %v8218 = vadd.f32 %v8159, %v8172
        %v8219 = vadd.f32 %v8160, %v8168
        %v8220 = vadd.f32 %v8161, %v8172
        %v8221 = vadd.f32 %v8162, %v8168
        %v8222 = vadd.f32 %v8163, %v8172
        %v8223 = vpack.c.bf16 %v8177, %v8175
        %v8224 = vpack.c.bf16 %v8178, %v8176
        %v8225 = vpack.c.bf16 %v8181, %v8179
        %v8226 = vpack.c.bf16 %v8182, %v8180
        %v8227 = vpack.c.bf16 %v8185, %v8183
        %v8228 = vpack.c.bf16 %v8186, %v8184
        %v8229 = vpack.c.bf16 %v8189, %v8187
        %v8230 = vpack.c.bf16 %v8190, %v8188
        %v8231 = vpack.c.bf16 %v8193, %v8191
        %v8232 = vpack.c.bf16 %v8194, %v8192
        %v8233 = vpack.c.bf16 %v8197, %v8195
        %v8234 = vpack.c.bf16 %v8198, %v8196
        %v8235 = vpack.c.bf16 %v8201, %v8199
        %v8236 = vpack.c.bf16 %v8202, %v8200
        %v8237 = vpack.c.bf16 %v8205, %v8203
        %v8238 = vpack.c.bf16 %v8206, %v8204
        %v8239 = vpack.c.bf16 %v8209, %v8207
        %v8240 = vpack.c.bf16 %v8210, %v8208
        %v8241 = vpack.c.bf16 %v8213, %v8211
        %v8242 = vpack.c.bf16 %v8214, %v8212
        %v8243 = vpack.c.bf16 %v8217, %v8215
        %v8244 = vpack.c.bf16 %v8218, %v8216
        %v8245 = vpack.c.bf16 %v8221, %v8219
        %v8246 = vpack.c.bf16 %v8222, %v8220
        %v8247 = vmul.bf16 %v8223, 1036860877
        %v8248 = vmul.bf16 %v8224, 1036860877
        %v8249 = vmul.bf16 %v8225, 1036860877
        %v8250 = vmul.bf16 %v8226, 1036860877
        %v8251 = vmul.bf16 %v8227, 1036860877
        %v8252 = vmul.bf16 %v8228, 1036860877
        %v8253 = vmul.bf16 %v8229, 1036860877
        %v8254 = vmul.bf16 %v8230, 1036860877
        %v8255 = vmul.bf16 %v8231, 1036860877
        %v8256 = vmul.bf16 %v8232, 1036860877
        %v8257 = vmul.bf16 %v8233, 1036860877
        %v8258 = vmul.bf16 %v8234, 1036860877
        %v8259 = vmul.bf16 %v8235, 1036860877
        %v8260 = vmul.bf16 %v8236, 1036860877
        %v8261 = vmul.bf16 %v8237, 1036860877
        %v8262 = vmul.bf16 %v8238, 1036860877
        %v8263 = vmul.bf16 %v8239, 1036860877
        %v8264 = vmul.bf16 %v8240, 1036860877
        %v8265 = vmul.bf16 %v8241, 1036860877
        %v8266 = vmul.bf16 %v8242, 1036860877
        %v8267 = vmul.bf16 %v8243, 1036860877
        %v8268 = vmul.bf16 %v8244, 1036860877
        %v8269 = vmul.bf16 %v8245, 1036860877
        %v8270 = vmul.bf16 %v8246, 1036860877
        %v8271 = vmax.bf16 %v8223, %v8247
        %v8272 = vmax.bf16 %v8224, %v8248
        %v8273 = vmax.bf16 %v8225, %v8249
        %v8274 = vmax.bf16 %v8226, %v8250
        %v8275 = vmax.bf16 %v8227, %v8251
        %v8276 = vmax.bf16 %v8228, %v8252
        %v8277 = vmax.bf16 %v8229, %v8253
        %v8278 = vmax.bf16 %v8230, %v8254
        %v8279 = vmax.bf16 %v8231, %v8255
        %v8280 = vmax.bf16 %v8232, %v8256
        %v8281 = vmax.bf16 %v8233, %v8257
        %v8282 = vmax.bf16 %v8234, %v8258
        %v8283 = vmax.bf16 %v8235, %v8259
        %v8284 = vmax.bf16 %v8236, %v8260
        %v8285 = vmax.bf16 %v8237, %v8261
        %v8286 = vmax.bf16 %v8238, %v8262
        %v8287 = vmax.bf16 %v8239, %v8263
        %v8288 = vmax.bf16 %v8240, %v8264
        %v8289 = vmax.bf16 %v8241, %v8265
        %v8290 = vmax.bf16 %v8242, %v8266
        %v8291 = vmax.bf16 %v8243, %v8267
        %v8292 = vmax.bf16 %v8244, %v8268
        %v8293 = vmax.bf16 %v8245, %v8269
        %v8294 = vmax.bf16 %v8246, %v8270
        %v8295 = vld [vmem:[#allocation14] sm:$0xff]
        %v8296 = vld [vmem:[#allocation14 + $0x8] sm:$0xff]
        %v8297 = vld [vmem:[#allocation14 + $0x10] sm:$0xff]
        %v8298 = vld [vmem:[#allocation14 + $0x18] sm:$0xff]
        %v8299 = vld [vmem:[#allocation14 + $0x20] sm:$0xff]
        %v8300 = vld [vmem:[#allocation14 + $0x28] sm:$0xff]
        %v8301 = vld [vmem:[#allocation14 + $0x30] sm:$0xff]
        %v8302 = vld [vmem:[#allocation14 + $0x38] sm:$0xff]
        %v8303 = vld [vmem:[#allocation14 + $0x40] sm:$0xff]
        %v8304 = vld [vmem:[#allocation14 + $0x48] sm:$0xff]
        %v8305 = vld [vmem:[#allocation14 + $0x50] sm:$0xff]
        %v8306 = vld [vmem:[#allocation14 + $0x58] sm:$0xff]
        %v8307 = vld [vmem:[#allocation14 + $0x60] sm:$0xff]
        %v8308 = vld [vmem:[#allocation14 + $0x68] sm:$0xff]
        %v8309 = vld [vmem:[#allocation14 + $0x70] sm:$0xff]
        %v8310 = vld [vmem:[#allocation14 + $0x78] sm:$0xff]
        %v8311 = vld [vmem:[#allocation14 + $0x80] sm:$0xff]
        %v8312 = vld [vmem:[#allocation14 + $0x88] sm:$0xff]
        %v8313 = vld [vmem:[#allocation14 + $0x90] sm:$0xff]
        %v8314 = vld [vmem:[#allocation14 + $0x98] sm:$0xff]
        %v8315 = vld [vmem:[#allocation14 + $0xa0] sm:$0xff]
        %v8316 = vld [vmem:[#allocation14 + $0xa8] sm:$0xff]
        %v8317 = vld [vmem:[#allocation14 + $0xb0] sm:$0xff]
        %v8318 = vld [vmem:[#allocation14 + $0xb8] sm:$0xff]
        %v8319 = vld [vmem:[#allocation14 + $0xc0] sm:$0xff]
        %v8320 = vld [vmem:[#allocation14 + $0xc8] sm:$0xff]
        %v8321 = vld [vmem:[#allocation14 + $0xd0] sm:$0xff]
        %v8322 = vld [vmem:[#allocation14 + $0xd8] sm:$0xff]
        %v8323 = vld [vmem:[#allocation14 + $0xe0] sm:$0xff]
        %v8324 = vld [vmem:[#allocation14 + $0xe8] sm:$0xff]
        %v8325 = vld [vmem:[#allocation14 + $0xf0] sm:$0xff]
        %v8326 = vld [vmem:[#allocation14 + $0xf8] sm:$0xff]
        %v8327 = vld [vmem:[%s10] ss:$4 sm:$0x3]
        %v8329 = vlaneseq
        %v8330 = vshrl.u32 %v8329, 7
        %v8331 = vsub.s32 0, %v8330
        %v8332 = vrot.slane %v8327, %v8331
        %v8333 = vlaneseq
        %v8334 = vshrl.u32 %v8333, 7
        %v8335 = vsub.s32 1, %v8334
        %v8336 = vrot.slane %v8327, %v8335
        %v8371 = vunpack.c.l.b16 %v8295
        %v8372 = vunpack.c.h.b16 %v8295
        %v8373 = vunpack.c.l.b16 %v8296
        %v8374 = vunpack.c.h.b16 %v8296
        %v8375 = vunpack.c.l.b16 %v8297
        %v8376 = vunpack.c.h.b16 %v8297
        %v8377 = vunpack.c.l.b16 %v8298
        %v8378 = vunpack.c.h.b16 %v8298
        %v8379 = vunpack.c.l.b16 %v8299
        %v8380 = vunpack.c.h.b16 %v8299
        %v8381 = vunpack.c.l.b16 %v8300
        %v8382 = vunpack.c.h.b16 %v8300
        %v8383 = vunpack.c.l.b16 %v8301
        %v8384 = vunpack.c.h.b16 %v8301
        %v8385 = vunpack.c.l.b16 %v8302
        %v8386 = vunpack.c.h.b16 %v8302
        %v8387 = vunpack.c.l.b16 %v8303
        %v8388 = vunpack.c.h.b16 %v8303
        %v8389 = vunpack.c.l.b16 %v8304
        %v8390 = vunpack.c.h.b16 %v8304
        %v8391 = vunpack.c.l.b16 %v8305
        %v8392 = vunpack.c.h.b16 %v8305
        %v8393 = vunpack.c.l.b16 %v8306
        %v8394 = vunpack.c.h.b16 %v8306
        %v8395 = vunpack.c.l.b16 %v8307
        %v8396 = vunpack.c.h.b16 %v8307
        %v8397 = vunpack.c.l.b16 %v8308
        %v8398 = vunpack.c.h.b16 %v8308
        %v8399 = vunpack.c.l.b16 %v8309
        %v8400 = vunpack.c.h.b16 %v8309
        %v8401 = vunpack.c.l.b16 %v8310
        %v8402 = vunpack.c.h.b16 %v8310
        %v8403 = vunpack.c.l.b16 %v8311
        %v8404 = vunpack.c.h.b16 %v8311
        %v8405 = vunpack.c.l.b16 %v8312
        %v8406 = vunpack.c.h.b16 %v8312
        %v8407 = vunpack.c.l.b16 %v8313
        %v8408 = vunpack.c.h.b16 %v8313
        %v8409 = vunpack.c.l.b16 %v8314
        %v8410 = vunpack.c.h.b16 %v8314
        %v8411 = vunpack.c.l.b16 %v8315
        %v8412 = vunpack.c.h.b16 %v8315
        %v8413 = vunpack.c.l.b16 %v8316
        %v8414 = vunpack.c.h.b16 %v8316
        %v8415 = vunpack.c.l.b16 %v8317
        %v8416 = vunpack.c.h.b16 %v8317
        %v8417 = vunpack.c.l.b16 %v8318
        %v8418 = vunpack.c.h.b16 %v8318
        %v8419 = vunpack.c.l.b16 %v8319
        %v8420 = vunpack.c.h.b16 %v8319
        %v8421 = vunpack.c.l.b16 %v8320
        %v8422 = vunpack.c.h.b16 %v8320
        %v8423 = vunpack.c.l.b16 %v8321
        %v8424 = vunpack.c.h.b16 %v8321
        %v8425 = vunpack.c.l.b16 %v8322
        %v8426 = vunpack.c.h.b16 %v8322
        %v8427 = vunpack.c.l.b16 %v8323
        %v8428 = vunpack.c.h.b16 %v8323
        %v8429 = vunpack.c.l.b16 %v8324
        %v8430 = vunpack.c.h.b16 %v8324
        %v8431 = vunpack.c.l.b16 %v8325
        %v8432 = vunpack.c.h.b16 %v8325
        %v8433 = vunpack.c.l.b16 %v8326
        %v8434 = vunpack.c.h.b16 %v8326
        %v8435 = vpack.c.b16 %v8373, %v8371
        %v8436 = vpack.c.b16 %v8374, %v8372
        %v8437 = vpack.c.b16 %v8377, %v8375
        %v8438 = vpack.c.b16 %v8378, %v8376
        %v8439 = vpack.c.b16 %v8381, %v8379
        %v8440 = vpack.c.b16 %v8382, %v8380
        %v8441 = vpack.c.b16 %v8385, %v8383
        %v8442 = vpack.c.b16 %v8386, %v8384
        %v8443 = vpack.c.b16 %v8389, %v8387
        %v8444 = vpack.c.b16 %v8390, %v8388
        %v8445 = vpack.c.b16 %v8393, %v8391
        %v8446 = vpack.c.b16 %v8394, %v8392
        %v8447 = vpack.c.b16 %v8397, %v8395
        %v8448 = vpack.c.b16 %v8398, %v8396
        %v8449 = vpack.c.b16 %v8401, %v8399
        %v8450 = vpack.c.b16 %v8402, %v8400
        %v8451 = vpack.c.b16 %v8405, %v8403
        %v8452 = vpack.c.b16 %v8406, %v8404
        %v8453 = vpack.c.b16 %v8409, %v8407
        %v8454 = vpack.c.b16 %v8410, %v8408
        %v8455 = vpack.c.b16 %v8413, %v8411
        %v8456 = vpack.c.b16 %v8414, %v8412
        %v8457 = vpack.c.b16 %v8417, %v8415
        %v8458 = vpack.c.b16 %v8418, %v8416
        %v8459 = vpack.c.b16 %v8421, %v8419
        %v8460 = vpack.c.b16 %v8422, %v8420
        %v8461 = vpack.c.b16 %v8425, %v8423
        %v8462 = vpack.c.b16 %v8426, %v8424
        %v8463 = vpack.c.b16 %v8429, %v8427
        %v8464 = vpack.c.b16 %v8430, %v8428
        %v8465 = vpack.c.b16 %v8433, %v8431
        %v8466 = vpack.c.b16 %v8434, %v8432
        %8499 = vmatprep.subr.bf16.mxu0 %v8436
        %8500 = vmatpush1.bf16.msra.mxu0 %v8435
        %8501 = vmatprep.subr.bf16.mxu0 %v8438
        %8502 = vmatpush1.bf16.msra.mxu0 %v8437
        %8503 = vmatprep.subr.bf16.mxu0 %v8440
        %8504 = vmatpush1.bf16.msra.mxu0 %v8439
        %8505 = vmatprep.subr.bf16.mxu0 %v8442
        %8506 = vmatpush1.bf16.msra.mxu0 %v8441
        %8507 = vmatprep.subr.bf16.mxu0 %v8444
        %8508 = vmatpush1.bf16.msra.mxu0 %v8443
        %8509 = vmatprep.subr.bf16.mxu0 %v8446
        %8510 = vmatpush1.bf16.msra.mxu0 %v8445
        %8511 = vmatprep.subr.bf16.mxu0 %v8448
        %8512 = vmatpush1.bf16.msra.mxu0 %v8447
        %8513 = vmatprep.subr.bf16.mxu0 %v8450
        %8514 = vmatpush1.bf16.msra.mxu0 %v8449
        %8515 = vmatprep.subr.bf16.mxu0 %v8452
        %8516 = vmatpush1.bf16.msra.mxu0 %v8451
        %8517 = vmatprep.subr.bf16.mxu0 %v8454
        %8518 = vmatpush1.bf16.msra.mxu0 %v8453
        %8519 = vmatprep.subr.bf16.mxu0 %v8456
        %8520 = vmatpush1.bf16.msra.mxu0 %v8455
        %8521 = vmatprep.subr.bf16.mxu0 %v8458
        %8522 = vmatpush1.bf16.msra.mxu0 %v8457
        %8523 = vmatprep.subr.bf16.mxu0 %v8460
        %8524 = vmatpush1.bf16.msra.mxu0 %v8459
        %8525 = vmatprep.subr.bf16.mxu0 %v8462
        %8526 = vmatpush1.bf16.msra.mxu0 %v8461
        %8527 = vmatprep.subr.bf16.mxu0 %v8464
        %8528 = vmatpush1.bf16.msra.mxu0 %v8463
        %8529 = vmatprep.subr.bf16.mxu0 %v8466
        %8530 = vmatpush1.bf16.msra.mxu0 %v8465
        %8531 = vmatprep.mubr.bf16.mxu0 %v8272
        %8532 = vmatmul.mubr.bf16.gmra.mrb[0].mxu0 %v8271
        %v8533 = vpop.f32.mrb[0].mxu0
        %v8534 = vadd.f32 %v8332, %v8533
        %v8535 = vpop.f32.mrb[0].mxu0
        %v8536 = vadd.f32 %v8336, %v8535
        %v8537 = vpop.f32.mrb[0].mxu0
        %v8538 = vadd.f32 %v8332, %v8537
        %v8539 = vpop.f32.mrb[0].mxu0
        %v8540 = vadd.f32 %v8336, %v8539
        %8541 = vmatprep.mubr.bf16.mxu0 %v8274
        %8542 = vmatmul.mubr.bf16.gmra.mrb[0].mxu0 %v8273
        %v8543 = vpop.f32.mrb[0].mxu0
        %v8544 = vadd.f32 %v8332, %v8543
        %v8545 = vpop.f32.mrb[0].mxu0
        %v8546 = vadd.f32 %v8336, %v8545
        %v8547 = vpop.f32.mrb[0].mxu0
        %v8548 = vadd.f32 %v8332, %v8547
        %v8549 = vpop.f32.mrb[0].mxu0
        %v8550 = vadd.f32 %v8336, %v8549
        %8551 = vmatprep.mubr.bf16.mxu0 %v8276
        %8552 = vmatmul.mubr.bf16.gmra.mrb[0].mxu0 %v8275
        %v8553 = vpop.f32.mrb[0].mxu0
        %v8554 = vadd.f32 %v8332, %v8553
        %v8555 = vpop.f32.mrb[0].mxu0
        %v8556 = vadd.f32 %v8336, %v8555
        %v8557 = vpop.f32.mrb[0].mxu0
        %v8558 = vadd.f32 %v8332, %v8557
        %v8559 = vpop.f32.mrb[0].mxu0
        %v8560 = vadd.f32 %v8336, %v8559
        %8561 = vmatprep.mubr.bf16.mxu0 %v8278
        %8562 = vmatmul.mubr.bf16.gmra.mrb[0].mxu0 %v8277
        %v8563 = vpop.f32.mrb[0].mxu0
        %v8564 = vadd.f32 %v8332, %v8563
        %v8565 = vpop.f32.mrb[0].mxu0
        %v8566 = vadd.f32 %v8336, %v8565
        %v8567 = vpop.f32.mrb[0].mxu0
        %v8568 = vadd.f32 %v8332, %v8567
        %v8569 = vpop.f32.mrb[0].mxu0
        %v8570 = vadd.f32 %v8336, %v8569
        %8571 = vmatprep.mubr.bf16.mxu0 %v8280
        %8572 = vmatmul.mubr.bf16.gmra.mrb[0].mxu0 %v8279
        %v8573 = vpop.f32.mrb[0].mxu0
        %v8574 = vadd.f32 %v8332, %v8573
        %v8575 = vpop.f32.mrb[0].mxu0
        %v8576 = vadd.f32 %v8336, %v8575
        %v8577 = vpop.f32.mrb[0].mxu0
        %v8578 = vadd.f32 %v8332, %v8577
        %v8579 = vpop.f32.mrb[0].mxu0
        %v8580 = vadd.f32 %v8336, %v8579
        %8581 = vmatprep.mubr.bf16.mxu0 %v8282
        %8582 = vmatmul.mubr.bf16.gmra.mrb[0].mxu0 %v8281
        %v8583 = vpop.f32.mrb[0].mxu0
        %v8584 = vadd.f32 %v8332, %v8583
        %v8585 = vpop.f32.mrb[0].mxu0
        %v8586 = vadd.f32 %v8336, %v8585
        %v8587 = vpop.f32.mrb[0].mxu0
        %v8588 = vadd.f32 %v8332, %v8587
        %v8589 = vpop.f32.mrb[0].mxu0
        %v8590 = vadd.f32 %v8336, %v8589
        %8591 = vmatprep.mubr.bf16.mxu0 %v8284
        %8592 = vmatmul.mubr.bf16.gmra.mrb[0].mxu0 %v8283
        %v8593 = vpop.f32.mrb[0].mxu0
        %v8594 = vadd.f32 %v8332, %v8593
        %v8595 = vpop.f32.mrb[0].mxu0
        %v8596 = vadd.f32 %v8336, %v8595
        %v8597 = vpop.f32.mrb[0].mxu0
        %v8598 = vadd.f32 %v8332, %v8597
        %v8599 = vpop.f32.mrb[0].mxu0
        %v8600 = vadd.f32 %v8336, %v8599
        %8601 = vmatprep.mubr.bf16.mxu0 %v8286
        %8602 = vmatmul.mubr.bf16.gmra.mrb[0].mxu0 %v8285
        %v8603 = vpop.f32.mrb[0].mxu0
        %v8604 = vadd.f32 %v8332, %v8603
        %v8605 = vpop.f32.mrb[0].mxu0
        %v8606 = vadd.f32 %v8336, %v8605
        %v8607 = vpop.f32.mrb[0].mxu0
        %v8608 = vadd.f32 %v8332, %v8607
        %v8609 = vpop.f32.mrb[0].mxu0
        %v8610 = vadd.f32 %v8336, %v8609
        %8611 = vmatprep.mubr.bf16.mxu0 %v8288
        %8612 = vmatmul.mubr.bf16.gmra.mrb[0].mxu0 %v8287
        %v8613 = vpop.f32.mrb[0].mxu0
        %v8614 = vadd.f32 %v8332, %v8613
        %v8615 = vpop.f32.mrb[0].mxu0
        %v8616 = vadd.f32 %v8336, %v8615
        %v8617 = vpop.f32.mrb[0].mxu0
        %v8618 = vadd.f32 %v8332, %v8617
        %v8619 = vpop.f32.mrb[0].mxu0
        %v8620 = vadd.f32 %v8336, %v8619
        %8621 = vmatprep.mubr.bf16.mxu0 %v8290
        %8622 = vmatmul.mubr.bf16.gmra.mrb[0].mxu0 %v8289
        %v8623 = vpop.f32.mrb[0].mxu0
        %v8624 = vadd.f32 %v8332, %v8623
        %v8625 = vpop.f32.mrb[0].mxu0
        %v8626 = vadd.f32 %v8336, %v8625
        %v8627 = vpop.f32.mrb[0].mxu0
        %v8628 = vadd.f32 %v8332, %v8627
        %v8629 = vpop.f32.mrb[0].mxu0
        %v8630 = vadd.f32 %v8336, %v8629
        %8631 = vmatprep.mubr.bf16.mxu0 %v8292
        %8632 = vmatmul.mubr.bf16.gmra.mrb[0].mxu0 %v8291
        %v8633 = vpop.f32.mrb[0].mxu0
        %v8634 = vadd.f32 %v8332, %v8633
        %v8635 = vpop.f32.mrb[0].mxu0
        %v8636 = vadd.f32 %v8336, %v8635
        %v8637 = vpop.f32.mrb[0].mxu0
        %v8638 = vadd.f32 %v8332, %v8637
        %v8639 = vpop.f32.mrb[0].mxu0
        %v8640 = vadd.f32 %v8336, %v8639
        %8641 = vmatprep.mubr.bf16.mxu0 %v8294
        %8642 = vmatmul.mubr.bf16.gmra.mrb[0].mxu0 %v8293
        %v8643 = vpop.f32.mrb[0].mxu0
        %v8644 = vadd.f32 %v8332, %v8643
        %v8645 = vpop.f32.mrb[0].mxu0
        %v8646 = vadd.f32 %v8336, %v8645
        %v8647 = vpop.f32.mrb[0].mxu0
        %v8648 = vadd.f32 %v8332, %v8647
        %v8649 = vpop.f32.mrb[0].mxu0
        %v8650 = vadd.f32 %v8336, %v8649
        %8651 = vdwg.mxu0
        %s8652 = scalar_lea.vmem %s10, 1
        %v8653 = vld [vmem:[%s8652] ss:$4 sm:$0x3]
        %s8654 = scalar_lea.vmem %s10, 2
        %v8655 = vld [vmem:[%s8654] ss:$4 sm:$0x3]
        %v8656 = vadd.f32 %v8534, %v8536
        %8657 = vadd.xlane.f32.xlu0 %v8656
        %v8658 = vpop.xlane.xlu0 %8657
        %v8659 = vadd.f32 %v8538, %v8540
        %8660 = vadd.xlane.f32.xlu0 %v8659
        %v8661 = vpop.xlane.xlu0 %8660
        %v8662 = vadd.f32 %v8544, %v8546
        %8663 = vadd.xlane.f32.xlu0 %v8662
        %v8664 = vpop.xlane.xlu0 %8663
        %v8665 = vadd.f32 %v8548, %v8550
        %8666 = vadd.xlane.f32.xlu0 %v8665
        %v8667 = vpop.xlane.xlu0 %8666
        %v8668 = vadd.f32 %v8554, %v8556
        %8669 = vadd.xlane.f32.xlu0 %v8668
        %v8670 = vpop.xlane.xlu0 %8669
        %v8671 = vadd.f32 %v8558, %v8560
        %8672 = vadd.xlane.f32.xlu0 %v8671
        %v8673 = vpop.xlane.xlu0 %8672
        %v8674 = vadd.f32 %v8564, %v8566
        %8675 = vadd.xlane.f32.xlu0 %v8674
        %v8676 = vpop.xlane.xlu0 %8675
        %v8677 = vadd.f32 %v8568, %v8570
        %8678 = vadd.xlane.f32.xlu0 %v8677
        %v8679 = vpop.xlane.xlu0 %8678
        %v8680 = vadd.f32 %v8574, %v8576
        %8681 = vadd.xlane.f32.xlu0 %v8680
        %v8682 = vpop.xlane.xlu0 %8681
        %v8683 = vadd.f32 %v8578, %v8580
        %8684 = vadd.xlane.f32.xlu0 %v8683
        %v8685 = vpop.xlane.xlu0 %8684
        %v8686 = vadd.f32 %v8584, %v8586
        %8687 = vadd.xlane.f32.xlu0 %v8686
        %v8688 = vpop.xlane.xlu0 %8687
        %v8689 = vadd.f32 %v8588, %v8590
        %8690 = vadd.xlane.f32.xlu0 %v8689
        %v8691 = vpop.xlane.xlu0 %8690
        %v8692 = vadd.f32 %v8594, %v8596
        %8693 = vadd.xlane.f32.xlu0 %v8692
        %v8694 = vpop.xlane.xlu0 %8693
        %v8695 = vadd.f32 %v8598, %v8600
        %8696 = vadd.xlane.f32.xlu0 %v8695
        %v8697 = vpop.xlane.xlu0 %8696
        %v8698 = vadd.f32 %v8604, %v8606
        %8699 = vadd.xlane.f32.xlu0 %v8698
        %v8700 = vpop.xlane.xlu0 %8699
        %v8701 = vadd.f32 %v8608, %v8610
        %8702 = vadd.xlane.f32.xlu0 %v8701
        %v8703 = vpop.xlane.xlu0 %8702
        %v8704 = vadd.f32 %v8614, %v8616
        %8705 = vadd.xlane.f32.xlu0 %v8704
        %v8706 = vpop.xlane.xlu0 %8705
        %v8707 = vadd.f32 %v8618, %v8620
        %8708 = vadd.xlane.f32.xlu0 %v8707
        %v8709 = vpop.xlane.xlu0 %8708
        %v8710 = vadd.f32 %v8624, %v8626
        %8711 = vadd.xlane.f32.xlu0 %v8710
        %v8712 = vpop.xlane.xlu0 %8711
        %v8713 = vadd.f32 %v8628, %v8630
        %8714 = vadd.xlane.f32.xlu0 %v8713
        %v8715 = vpop.xlane.xlu0 %8714
        %v8716 = vadd.f32 %v8634, %v8636
        %8717 = vadd.xlane.f32.xlu0 %v8716
        %v8718 = vpop.xlane.xlu0 %8717
        %v8719 = vadd.f32 %v8638, %v8640
        %8720 = vadd.xlane.f32.xlu0 %v8719
        %v8721 = vpop.xlane.xlu0 %8720
        %v8722 = vadd.f32 %v8644, %v8646
        %8723 = vadd.xlane.f32.xlu0 %v8722
        %v8724 = vpop.xlane.xlu0 %8723
        %v8725 = vadd.f32 %v8648, %v8650
        %8726 = vadd.xlane.f32.xlu0 %v8725
        %v8727 = vpop.xlane.xlu0 %8726
        %v8728 = vmul.f32 %v8658, %v7792
        %v8729 = vmul.f32 %v8661, %v7792
        %v8730 = vmul.f32 %v8664, %v7792
        %v8731 = vmul.f32 %v8667, %v7792
        %v8732 = vmul.f32 %v8670, %v7792
        %v8733 = vmul.f32 %v8673, %v7792
        %v8734 = vmul.f32 %v8676, %v7792
        %v8735 = vmul.f32 %v8679, %v7792
        %v8736 = vmul.f32 %v8682, %v7792
        %v8737 = vmul.f32 %v8685, %v7792
        %v8738 = vmul.f32 %v8688, %v7792
        %v8739 = vmul.f32 %v8691, %v7792
        %v8740 = vmul.f32 %v8694, %v7792
        %v8741 = vmul.f32 %v8697, %v7792
        %v8742 = vmul.f32 %v8700, %v7792
        %v8743 = vmul.f32 %v8703, %v7792
        %v8744 = vmul.f32 %v8706, %v7792
        %v8745 = vmul.f32 %v8709, %v7792
        %v8746 = vmul.f32 %v8712, %v7792
        %v8747 = vmul.f32 %v8715, %v7792
        %v8748 = vmul.f32 %v8718, %v7792
        %v8749 = vmul.f32 %v8721, %v7792
        %v8750 = vmul.f32 %v8724, %v7792
        %v8751 = vmul.f32 %v8727, %v7792
        %v8752 = vsub.f32 %v8534, %v8728
        %v8753 = vsub.f32 %v8536, %v8728
        %v8754 = vsub.f32 %v8538, %v8729
        %v8755 = vsub.f32 %v8540, %v8729
        %v8756 = vsub.f32 %v8544, %v8730
        %v8757 = vsub.f32 %v8546, %v8730
        %v8758 = vsub.f32 %v8548, %v8731
        %v8759 = vsub.f32 %v8550, %v8731
        %v8760 = vsub.f32 %v8554, %v8732
        %v8761 = vsub.f32 %v8556, %v8732
        %v8762 = vsub.f32 %v8558, %v8733
        %v8763 = vsub.f32 %v8560, %v8733
        %v8764 = vsub.f32 %v8564, %v8734
        %v8765 = vsub.f32 %v8566, %v8734
        %v8766 = vsub.f32 %v8568, %v8735
        %v8767 = vsub.f32 %v8570, %v8735
        %v8768 = vsub.f32 %v8574, %v8736
        %v8769 = vsub.f32 %v8576, %v8736
        %v8770 = vsub.f32 %v8578, %v8737
        %v8771 = vsub.f32 %v8580, %v8737
        %v8772 = vsub.f32 %v8584, %v8738
        %v8773 = vsub.f32 %v8586, %v8738
        %v8774 = vsub.f32 %v8588, %v8739
        %v8775 = vsub.f32 %v8590, %v8739
        %v8776 = vsub.f32 %v8594, %v8740
        %v8777 = vsub.f32 %v8596, %v8740
        %v8778 = vsub.f32 %v8598, %v8741
        %v8779 = vsub.f32 %v8600, %v8741
        %v8780 = vsub.f32 %v8604, %v8742
        %v8781 = vsub.f32 %v8606, %v8742
        %v8782 = vsub.f32 %v8608, %v8743
        %v8783 = vsub.f32 %v8610, %v8743
        %v8784 = vsub.f32 %v8614, %v8744
        %v8785 = vsub.f32 %v8616, %v8744
        %v8786 = vsub.f32 %v8618, %v8745
        %v8787 = vsub.f32 %v8620, %v8745
        %v8788 = vsub.f32 %v8624, %v8746
        %v8789 = vsub.f32 %v8626, %v8746
        %v8790 = vsub.f32 %v8628, %v8747
        %v8791 = vsub.f32 %v8630, %v8747
        %v8792 = vsub.f32 %v8634, %v8748
        %v8793 = vsub.f32 %v8636, %v8748
        %v8794 = vsub.f32 %v8638, %v8749
        %v8795 = vsub.f32 %v8640, %v8749
        %v8796 = vsub.f32 %v8644, %v8750
        %v8797 = vsub.f32 %v8646, %v8750
        %v8798 = vsub.f32 %v8648, %v8751
        %v8799 = vsub.f32 %v8650, %v8751
        %v8800 = vmul.f32 %v8752, %v8752
        %v8801 = vmul.f32 %v8753, %v8753
        %v8802 = vmul.f32 %v8754, %v8754
        %v8803 = vmul.f32 %v8755, %v8755
        %v8804 = vmul.f32 %v8756, %v8756
        %v8805 = vmul.f32 %v8757, %v8757
        %v8806 = vmul.f32 %v8758, %v8758
        %v8807 = vmul.f32 %v8759, %v8759
        %v8808 = vmul.f32 %v8760, %v8760
        %v8809 = vmul.f32 %v8761, %v8761
        %v8810 = vmul.f32 %v8762, %v8762
        %v8811 = vmul.f32 %v8763, %v8763
        %v8812 = vmul.f32 %v8764, %v8764
        %v8813 = vmul.f32 %v8765, %v8765
        %v8814 = vmul.f32 %v8766, %v8766
        %v8815 = vmul.f32 %v8767, %v8767
        %v8816 = vmul.f32 %v8768, %v8768
        %v8817 = vmul.f32 %v8769, %v8769
        %v8818 = vmul.f32 %v8770, %v8770
        %v8819 = vmul.f32 %v8771, %v8771
        %v8820 = vmul.f32 %v8772, %v8772
        %v8821 = vmul.f32 %v8773, %v8773
        %v8822 = vmul.f32 %v8774, %v8774
        %v8823 = vmul.f32 %v8775, %v8775
        %v8824 = vmul.f32 %v8776, %v8776
        %v8825 = vmul.f32 %v8777, %v8777
        %v8826 = vmul.f32 %v8778, %v8778
        %v8827 = vmul.f32 %v8779, %v8779
        %v8828 = vmul.f32 %v8780, %v8780
        %v8829 = vmul.f32 %v8781, %v8781
        %v8830 = vmul.f32 %v8782, %v8782
        %v8831 = vmul.f32 %v8783, %v8783
        %v8832 = vmul.f32 %v8784, %v8784
        %v8833 = vmul.f32 %v8785, %v8785
        %v8834 = vmul.f32 %v8786, %v8786
        %v8835 = vmul.f32 %v8787, %v8787
        %v8836 = vmul.f32 %v8788, %v8788
        %v8837 = vmul.f32 %v8789, %v8789
        %v8838 = vmul.f32 %v8790, %v8790
        %v8839 = vmul.f32 %v8791, %v8791
        %v8840 = vmul.f32 %v8792, %v8792
        %v8841 = vmul.f32 %v8793, %v8793
        %v8842 = vmul.f32 %v8794, %v8794
        %v8843 = vmul.f32 %v8795, %v8795
        %v8844 = vmul.f32 %v8796, %v8796
        %v8845 = vmul.f32 %v8797, %v8797
        %v8846 = vmul.f32 %v8798, %v8798
        %v8847 = vmul.f32 %v8799, %v8799
        %v8848 = vadd.f32 %v8800, %v8801
        %8849 = vadd.xlane.f32.xlu0 %v8848
        %v8850 = vpop.xlane.xlu0 %8849
        %v8851 = vadd.f32 %v8802, %v8803
        %8852 = vadd.xlane.f32.xlu0 %v8851
        %v8853 = vpop.xlane.xlu0 %8852
        %v8854 = vadd.f32 %v8804, %v8805
        %8855 = vadd.xlane.f32.xlu0 %v8854
        %v8856 = vpop.xlane.xlu0 %8855
        %v8857 = vadd.f32 %v8806, %v8807
        %8858 = vadd.xlane.f32.xlu0 %v8857
        %v8859 = vpop.xlane.xlu0 %8858
        %v8860 = vadd.f32 %v8808, %v8809
        %8861 = vadd.xlane.f32.xlu0 %v8860
        %v8862 = vpop.xlane.xlu0 %8861
        %v8863 = vadd.f32 %v8810, %v8811
        %8864 = vadd.xlane.f32.xlu0 %v8863
        %v8865 = vpop.xlane.xlu0 %8864
        %v8866 = vadd.f32 %v8812, %v8813
        %8867 = vadd.xlane.f32.xlu0 %v8866
        %v8868 = vpop.xlane.xlu0 %8867
        %v8869 = vadd.f32 %v8814, %v8815
        %8870 = vadd.xlane.f32.xlu0 %v8869
        %v8871 = vpop.xlane.xlu0 %8870
        %v8872 = vadd.f32 %v8816, %v8817
        %8873 = vadd.xlane.f32.xlu0 %v8872
        %v8874 = vpop.xlane.xlu0 %8873
        %v8875 = vadd.f32 %v8818, %v8819
        %8876 = vadd.xlane.f32.xlu0 %v8875
        %v8877 = vpop.xlane.xlu0 %8876
        %v8878 = vadd.f32 %v8820, %v8821
        %8879 = vadd.xlane.f32.xlu0 %v8878
        %v8880 = vpop.xlane.xlu0 %8879
        %v8881 = vadd.f32 %v8822, %v8823
        %8882 = vadd.xlane.f32.xlu0 %v8881
        %v8883 = vpop.xlane.xlu0 %8882
        %v8884 = vadd.f32 %v8824, %v8825
        %8885 = vadd.xlane.f32.xlu0 %v8884
        %v8886 = vpop.xlane.xlu0 %8885
        %v8887 = vadd.f32 %v8826, %v8827
        %8888 = vadd.xlane.f32.xlu0 %v8887
        %v8889 = vpop.xlane.xlu0 %8888
        %v8890 = vadd.f32 %v8828, %v8829
        %8891 = vadd.xlane.f32.xlu0 %v8890
        %v8892 = vpop.xlane.xlu0 %8891
        %v8893 = vadd.f32 %v8830, %v8831
        %8894 = vadd.xlane.f32.xlu0 %v8893
        %v8895 = vpop.xlane.xlu0 %8894
        %v8896 = vadd.f32 %v8832, %v8833
        %8897 = vadd.xlane.f32.xlu0 %v8896
        %v8898 = vpop.xlane.xlu0 %8897
        %v8899 = vadd.f32 %v8834, %v8835
        %8900 = vadd.xlane.f32.xlu0 %v8899
        %v8901 = vpop.xlane.xlu0 %8900
        %v8902 = vadd.f32 %v8836, %v8837
        %8903 = vadd.xlane.f32.xlu0 %v8902
        %v8904 = vpop.xlane.xlu0 %8903
        %v8905 = vadd.f32 %v8838, %v8839
        %8906 = vadd.xlane.f32.xlu0 %v8905
        %v8907 = vpop.xlane.xlu0 %8906
        %v8908 = vadd.f32 %v8840, %v8841
        %8909 = vadd.xlane.f32.xlu0 %v8908
        %v8910 = vpop.xlane.xlu0 %8909
        %v8911 = vadd.f32 %v8842, %v8843
        %8912 = vadd.xlane.f32.xlu0 %v8911
        %v8913 = vpop.xlane.xlu0 %8912
        %v8914 = vadd.f32 %v8844, %v8845
        %8915 = vadd.xlane.f32.xlu0 %v8914
        %v8916 = vpop.xlane.xlu0 %8915
        %v8917 = vadd.f32 %v8846, %v8847
        %8918 = vadd.xlane.f32.xlu0 %v8917
        %v8919 = vpop.xlane.xlu0 %8918
        %v8920 = vmul.f32 %v8850, %v7792
        %v8921 = vmul.f32 %v8853, %v7792
        %v8922 = vmul.f32 %v8856, %v7792
        %v8923 = vmul.f32 %v8859, %v7792
        %v8924 = vmul.f32 %v8862, %v7792
        %v8925 = vmul.f32 %v8865, %v7792
        %v8926 = vmul.f32 %v8868, %v7792
        %v8927 = vmul.f32 %v8871, %v7792
        %v8928 = vmul.f32 %v8874, %v7792
        %v8929 = vmul.f32 %v8877, %v7792
        %v8930 = vmul.f32 %v8880, %v7792
        %v8931 = vmul.f32 %v8883, %v7792
        %v8932 = vmul.f32 %v8886, %v7792
        %v8933 = vmul.f32 %v8889, %v7792
        %v8934 = vmul.f32 %v8892, %v7792
        %v8935 = vmul.f32 %v8895, %v7792
        %v8936 = vmul.f32 %v8898, %v7792
        %v8937 = vmul.f32 %v8901, %v7792
        %v8938 = vmul.f32 %v8904, %v7792
        %v8939 = vmul.f32 %v8907, %v7792
        %v8940 = vmul.f32 %v8910, %v7792
        %v8941 = vmul.f32 %v8913, %v7792
        %v8942 = vmul.f32 %v8916, %v7792
        %v8943 = vmul.f32 %v8919, %v7792
        %v8944 = vadd.f32 %v8920, 1e-05
        %v8945 = vadd.f32 %v8921, 1e-05
        %v8946 = vadd.f32 %v8922, 1e-05
        %v8947 = vadd.f32 %v8923, 1e-05
        %v8948 = vadd.f32 %v8924, 1e-05
        %v8949 = vadd.f32 %v8925, 1e-05
        %v8950 = vadd.f32 %v8926, 1e-05
        %v8951 = vadd.f32 %v8927, 1e-05
        %v8952 = vadd.f32 %v8928, 1e-05
        %v8953 = vadd.f32 %v8929, 1e-05
        %v8954 = vadd.f32 %v8930, 1e-05
        %v8955 = vadd.f32 %v8931, 1e-05
        %v8956 = vadd.f32 %v8932, 1e-05
        %v8957 = vadd.f32 %v8933, 1e-05
        %v8958 = vadd.f32 %v8934, 1e-05
        %v8959 = vadd.f32 %v8935, 1e-05
        %v8960 = vadd.f32 %v8936, 1e-05
        %v8961 = vadd.f32 %v8937, 1e-05
        %v8962 = vadd.f32 %v8938, 1e-05
        %v8963 = vadd.f32 %v8939, 1e-05
        %v8964 = vadd.f32 %v8940, 1e-05
        %v8965 = vadd.f32 %v8941, 1e-05
        %v8966 = vadd.f32 %v8942, 1e-05
        %v8967 = vadd.f32 %v8943, 1e-05
        %v8968 = vrsqrt.pop %v8944
        %v8969 = vrsqrt.pop %v8945
        %v8970 = vrsqrt.pop %v8946
        %v8971 = vrsqrt.pop %v8947
        %v8972 = vrsqrt.pop %v8948
        %v8973 = vrsqrt.pop %v8949
        %v8974 = vrsqrt.pop %v8950
        %v8975 = vrsqrt.pop %v8951
        %v8976 = vrsqrt.pop %v8952
        %v8977 = vrsqrt.pop %v8953
        %v8978 = vrsqrt.pop %v8954
        %v8979 = vrsqrt.pop %v8955
        %v8980 = vrsqrt.pop %v8956
        %v8981 = vrsqrt.pop %v8957
        %v8982 = vrsqrt.pop %v8958
        %v8983 = vrsqrt.pop %v8959
        %v8984 = vrsqrt.pop %v8960
        %v8985 = vrsqrt.pop %v8961
        %v8986 = vrsqrt.pop %v8962
        %v8987 = vrsqrt.pop %v8963
        %v8988 = vrsqrt.pop %v8964
        %v8989 = vrsqrt.pop %v8965
        %v8990 = vrsqrt.pop %v8966
        %v8991 = vrsqrt.pop %v8967
        %v8992 = vmul.f32 %v8752, %v8968
        %v8993 = vmul.f32 %v8753, %v8968
        %v8994 = vmul.f32 %v8754, %v8969
        %v8995 = vmul.f32 %v8755, %v8969
        %v8996 = vmul.f32 %v8756, %v8970
        %v8997 = vmul.f32 %v8757, %v8970
        %v8998 = vmul.f32 %v8758, %v8971
        %v8999 = vmul.f32 %v8759, %v8971
        %v9000 = vmul.f32 %v8760, %v8972
        %v9001 = vmul.f32 %v8761, %v8972
        %v9002 = vmul.f32 %v8762, %v8973
        %v9003 = vmul.f32 %v8763, %v8973
        %v9004 = vmul.f32 %v8764, %v8974
        %v9005 = vmul.f32 %v8765, %v8974
        %v9006 = vmul.f32 %v8766, %v8975
        %v9007 = vmul.f32 %v8767, %v8975
        %v9008 = vmul.f32 %v8768, %v8976
        %v9009 = vmul.f32 %v8769, %v8976
        %v9010 = vmul.f32 %v8770, %v8977
        %v9011 = vmul.f32 %v8771, %v8977
        %v9012 = vmul.f32 %v8772, %v8978
        %v9013 = vmul.f32 %v8773, %v8978
        %v9014 = vmul.f32 %v8774, %v8979
        %v9015 = vmul.f32 %v8775, %v8979
        %v9016 = vmul.f32 %v8776, %v8980
        %v9017 = vmul.f32 %v8777, %v8980
        %v9018 = vmul.f32 %v8778, %v8981
        %v9019 = vmul.f32 %v8779, %v8981
        %v9020 = vmul.f32 %v8780, %v8982
        %v9021 = vmul.f32 %v8781, %v8982
        %v9022 = vmul.f32 %v8782, %v8983
        %v9023 = vmul.f32 %v8783, %v8983
        %v9024 = vmul.f32 %v8784, %v8984
        %v9025 = vmul.f32 %v8785, %v8984
        %v9026 = vmul.f32 %v8786, %v8985
        %v9027 = vmul.f32 %v8787, %v8985
        %v9028 = vmul.f32 %v8788, %v8986
        %v9029 = vmul.f32 %v8789, %v8986
        %v9030 = vmul.f32 %v8790, %v8987
        %v9031 = vmul.f32 %v8791, %v8987
        %v9032 = vmul.f32 %v8792, %v8988
        %v9033 = vmul.f32 %v8793, %v8988
        %v9034 = vmul.f32 %v8794, %v8989
        %v9035 = vmul.f32 %v8795, %v8989
        %v9036 = vmul.f32 %v8796, %v8990
        %v9037 = vmul.f32 %v8797, %v8990
        %v9038 = vmul.f32 %v8798, %v8991
        %v9039 = vmul.f32 %v8799, %v8991
        %v9041 = vlaneseq
        %v9042 = vshrl.u32 %v9041, 7
        %v9043 = vsub.s32 0, %v9042
        %v9044 = vrot.slane %v8653, %v9043
        %v9045 = vlaneseq
        %v9046 = vshrl.u32 %v9045, 7
        %v9047 = vsub.s32 1, %v9046
        %v9048 = vrot.slane %v8653, %v9047
        %v9051 = vmul.f32 %v8992, %v9044
        %v9052 = vmul.f32 %v8993, %v9048
        %v9053 = vmul.f32 %v8994, %v9044
        %v9054 = vmul.f32 %v8995, %v9048
        %v9055 = vmul.f32 %v8996, %v9044
        %v9056 = vmul.f32 %v8997, %v9048
        %v9057 = vmul.f32 %v8998, %v9044
        %v9058 = vmul.f32 %v8999, %v9048
        %v9059 = vmul.f32 %v9000, %v9044
        %v9060 = vmul.f32 %v9001, %v9048
        %v9061 = vmul.f32 %v9002, %v9044
        %v9062 = vmul.f32 %v9003, %v9048
        %v9063 = vmul.f32 %v9004, %v9044
        %v9064 = vmul.f32 %v9005, %v9048
        %v9065 = vmul.f32 %v9006, %v9044
        %v9066 = vmul.f32 %v9007, %v9048
        %v9067 = vmul.f32 %v9008, %v9044
        %v9068 = vmul.f32 %v9009, %v9048
        %v9069 = vmul.f32 %v9010, %v9044
        %v9070 = vmul.f32 %v9011, %v9048
        %v9071 = vmul.f32 %v9012, %v9044
        %v9072 = vmul.f32 %v9013, %v9048
        %v9073 = vmul.f32 %v9014, %v9044
        %v9074 = vmul.f32 %v9015, %v9048
        %v9075 = vmul.f32 %v9016, %v9044
        %v9076 = vmul.f32 %v9017, %v9048
        %v9077 = vmul.f32 %v9018, %v9044
        %v9078 = vmul.f32 %v9019, %v9048
        %v9079 = vmul.f32 %v9020, %v9044
        %v9080 = vmul.f32 %v9021, %v9048
        %v9081 = vmul.f32 %v9022, %v9044
        %v9082 = vmul.f32 %v9023, %v9048
        %v9083 = vmul.f32 %v9024, %v9044
        %v9084 = vmul.f32 %v9025, %v9048
        %v9085 = vmul.f32 %v9026, %v9044
        %v9086 = vmul.f32 %v9027, %v9048
        %v9087 = vmul.f32 %v9028, %v9044
        %v9088 = vmul.f32 %v9029, %v9048
        %v9089 = vmul.f32 %v9030, %v9044
        %v9090 = vmul.f32 %v9031, %v9048
        %v9091 = vmul.f32 %v9032, %v9044
        %v9092 = vmul.f32 %v9033, %v9048
        %v9093 = vmul.f32 %v9034, %v9044
        %v9094 = vmul.f32 %v9035, %v9048
        %v9095 = vmul.f32 %v9036, %v9044
        %v9096 = vmul.f32 %v9037, %v9048
        %v9097 = vmul.f32 %v9038, %v9044
        %v9098 = vmul.f32 %v9039, %v9048
        %v9100 = vlaneseq
        %v9101 = vshrl.u32 %v9100, 7
        %v9102 = vsub.s32 0, %v9101
        %v9103 = vrot.slane %v8655, %v9102
        %v9104 = vlaneseq
        %v9105 = vshrl.u32 %v9104, 7
        %v9106 = vsub.s32 1, %v9105
        %v9107 = vrot.slane %v8655, %v9106
        %v9110 = vadd.f32 %v9051, %v9103
        %v9111 = vadd.f32 %v9052, %v9107
        %v9112 = vadd.f32 %v9053, %v9103
        %v9113 = vadd.f32 %v9054, %v9107
        %v9114 = vadd.f32 %v9055, %v9103
        %v9115 = vadd.f32 %v9056, %v9107
        %v9116 = vadd.f32 %v9057, %v9103
        %v9117 = vadd.f32 %v9058, %v9107
        %v9118 = vadd.f32 %v9059, %v9103
        %v9119 = vadd.f32 %v9060, %v9107
        %v9120 = vadd.f32 %v9061, %v9103
        %v9121 = vadd.f32 %v9062, %v9107
        %v9122 = vadd.f32 %v9063, %v9103
        %v9123 = vadd.f32 %v9064, %v9107
        %v9124 = vadd.f32 %v9065, %v9103
        %v9125 = vadd.f32 %v9066, %v9107
        %v9126 = vadd.f32 %v9067, %v9103
        %v9127 = vadd.f32 %v9068, %v9107
        %v9128 = vadd.f32 %v9069, %v9103
        %v9129 = vadd.f32 %v9070, %v9107
        %v9130 = vadd.f32 %v9071, %v9103
        %v9131 = vadd.f32 %v9072, %v9107
        %v9132 = vadd.f32 %v9073, %v9103
        %v9133 = vadd.f32 %v9074, %v9107
        %v9134 = vadd.f32 %v9075, %v9103
        %v9135 = vadd.f32 %v9076, %v9107
        %v9136 = vadd.f32 %v9077, %v9103
        %v9137 = vadd.f32 %v9078, %v9107
        %v9138 = vadd.f32 %v9079, %v9103
        %v9139 = vadd.f32 %v9080, %v9107
        %v9140 = vadd.f32 %v9081, %v9103
        %v9141 = vadd.f32 %v9082, %v9107
        %v9142 = vadd.f32 %v9083, %v9103
        %v9143 = vadd.f32 %v9084, %v9107
        %v9144 = vadd.f32 %v9085, %v9103
        %v9145 = vadd.f32 %v9086, %v9107
        %v9146 = vadd.f32 %v9087, %v9103
        %v9147 = vadd.f32 %v9088, %v9107
        %v9148 = vadd.f32 %v9089, %v9103
        %v9149 = vadd.f32 %v9090, %v9107
        %v9150 = vadd.f32 %v9091, %v9103
        %v9151 = vadd.f32 %v9092, %v9107
        %v9152 = vadd.f32 %v9093, %v9103
        %v9153 = vadd.f32 %v9094, %v9107
        %v9154 = vadd.f32 %v9095, %v9103
        %v9155 = vadd.f32 %v9096, %v9107
        %v9156 = vadd.f32 %v9097, %v9103
        %v9157 = vadd.f32 %v9098, %v9107
        %v9158 = vpack.c.bf16 %v9112, %v9110
        %v9159 = vpack.c.bf16 %v9113, %v9111
        %v9160 = vpack.c.bf16 %v9116, %v9114
        %v9161 = vpack.c.bf16 %v9117, %v9115
        %v9162 = vpack.c.bf16 %v9120, %v9118
        %v9163 = vpack.c.bf16 %v9121, %v9119
        %v9164 = vpack.c.bf16 %v9124, %v9122
        %v9165 = vpack.c.bf16 %v9125, %v9123
        %v9166 = vpack.c.bf16 %v9128, %v9126
        %v9167 = vpack.c.bf16 %v9129, %v9127
        %v9168 = vpack.c.bf16 %v9132, %v9130
        %v9169 = vpack.c.bf16 %v9133, %v9131
        %v9170 = vpack.c.bf16 %v9136, %v9134
        %v9171 = vpack.c.bf16 %v9137, %v9135
        %v9172 = vpack.c.bf16 %v9140, %v9138
        %v9173 = vpack.c.bf16 %v9141, %v9139
        %v9174 = vpack.c.bf16 %v9144, %v9142
        %v9175 = vpack.c.bf16 %v9145, %v9143
        %v9176 = vpack.c.bf16 %v9148, %v9146
        %v9177 = vpack.c.bf16 %v9149, %v9147
        %v9178 = vpack.c.bf16 %v9152, %v9150
        %v9179 = vpack.c.bf16 %v9153, %v9151
        %v9180 = vpack.c.bf16 %v9156, %v9154
        %v9181 = vpack.c.bf16 %v9157, %v9155
        %v9182 = vmul.bf16 %v9158, 1036860877
        %v9183 = vmul.bf16 %v9159, 1036860877
        %v9184 = vmul.bf16 %v9160, 1036860877
        %v9185 = vmul.bf16 %v9161, 1036860877
        %v9186 = vmul.bf16 %v9162, 1036860877
        %v9187 = vmul.bf16 %v9163, 1036860877
        %v9188 = vmul.bf16 %v9164, 1036860877
        %v9189 = vmul.bf16 %v9165, 1036860877
        %v9190 = vmul.bf16 %v9166, 1036860877
        %v9191 = vmul.bf16 %v9167, 1036860877
        %v9192 = vmul.bf16 %v9168, 1036860877
        %v9193 = vmul.bf16 %v9169, 1036860877
        %v9194 = vmul.bf16 %v9170, 1036860877
        %v9195 = vmul.bf16 %v9171, 1036860877
        %v9196 = vmul.bf16 %v9172, 1036860877
        %v9197 = vmul.bf16 %v9173, 1036860877
        %v9198 = vmul.bf16 %v9174, 1036860877
        %v9199 = vmul.bf16 %v9175, 1036860877
        %v9200 = vmul.bf16 %v9176, 1036860877
        %v9201 = vmul.bf16 %v9177, 1036860877
        %v9202 = vmul.bf16 %v9178, 1036860877
        %v9203 = vmul.bf16 %v9179, 1036860877
        %v9204 = vmul.bf16 %v9180, 1036860877
        %v9205 = vmul.bf16 %v9181, 1036860877
        %v9206 = vmax.bf16 %v9158, %v9182
        %v9207 = vmax.bf16 %v9159, %v9183
        %v9208 = vmax.bf16 %v9160, %v9184
        %v9209 = vmax.bf16 %v9161, %v9185
        %v9210 = vmax.bf16 %v9162, %v9186
        %v9211 = vmax.bf16 %v9163, %v9187
        %v9212 = vmax.bf16 %v9164, %v9188
        %v9213 = vmax.bf16 %v9165, %v9189
        %v9214 = vmax.bf16 %v9166, %v9190
        %v9215 = vmax.bf16 %v9167, %v9191
        %v9216 = vmax.bf16 %v9168, %v9192
        %v9217 = vmax.bf16 %v9169, %v9193
        %v9218 = vmax.bf16 %v9170, %v9194
        %v9219 = vmax.bf16 %v9171, %v9195
        %v9220 = vmax.bf16 %v9172, %v9196
        %v9221 = vmax.bf16 %v9173, %v9197
        %v9222 = vmax.bf16 %v9174, %v9198
        %v9223 = vmax.bf16 %v9175, %v9199
        %v9224 = vmax.bf16 %v9176, %v9200
        %v9225 = vmax.bf16 %v9177, %v9201
        %v9226 = vmax.bf16 %v9178, %v9202
        %v9227 = vmax.bf16 %v9179, %v9203
        %v9228 = vmax.bf16 %v9180, %v9204
        %v9229 = vmax.bf16 %v9181, %v9205
        %v9230 = vld [vmem:[#allocation16] sm:$0xf]
        %v9231 = vld [vmem:[#allocation16 + $0x4] sm:$0xf]
        %v9232 = vld [vmem:[#allocation16 + $0x8] sm:$0xf]
        %v9233 = vld [vmem:[#allocation16 + $0xc] sm:$0xf]
        %v9234 = vld [vmem:[#allocation16 + $0x10] sm:$0xf]
        %v9235 = vld [vmem:[#allocation16 + $0x14] sm:$0xf]
        %v9236 = vld [vmem:[#allocation16 + $0x18] sm:$0xf]
        %v9237 = vld [vmem:[#allocation16 + $0x1c] sm:$0xf]
        %v9238 = vld [vmem:[#allocation16 + $0x20] sm:$0xf]
        %v9239 = vld [vmem:[#allocation16 + $0x24] sm:$0xf]
        %v9240 = vld [vmem:[#allocation16 + $0x28] sm:$0xf]
        %v9241 = vld [vmem:[#allocation16 + $0x2c] sm:$0xf]
        %v9242 = vld [vmem:[#allocation16 + $0x30] sm:$0xf]
        %v9243 = vld [vmem:[#allocation16 + $0x34] sm:$0xf]
        %v9244 = vld [vmem:[#allocation16 + $0x38] sm:$0xf]
        %v9245 = vld [vmem:[#allocation16 + $0x3c] sm:$0xf]
        %v9246 = vld [vmem:[#allocation16 + $0x40] sm:$0xf]
        %v9247 = vld [vmem:[#allocation16 + $0x44] sm:$0xf]
        %v9248 = vld [vmem:[#allocation16 + $0x48] sm:$0xf]
        %v9249 = vld [vmem:[#allocation16 + $0x4c] sm:$0xf]
        %v9250 = vld [vmem:[#allocation16 + $0x50] sm:$0xf]
        %v9251 = vld [vmem:[#allocation16 + $0x54] sm:$0xf]
        %v9252 = vld [vmem:[#allocation16 + $0x58] sm:$0xf]
        %v9253 = vld [vmem:[#allocation16 + $0x5c] sm:$0xf]
        %v9254 = vld [vmem:[#allocation16 + $0x60] sm:$0xf]
        %v9255 = vld [vmem:[#allocation16 + $0x64] sm:$0xf]
        %v9256 = vld [vmem:[#allocation16 + $0x68] sm:$0xf]
        %v9257 = vld [vmem:[#allocation16 + $0x6c] sm:$0xf]
        %v9258 = vld [vmem:[#allocation16 + $0x70] sm:$0xf]
        %v9259 = vld [vmem:[#allocation16 + $0x74] sm:$0xf]
        %v9260 = vld [vmem:[#allocation16 + $0x78] sm:$0xf]
        %v9261 = vld [vmem:[#allocation16 + $0x7c] sm:$0xf]
        %v9262 = vld [vmem:[%s12] sm:$0x1]
        %v9264 = vlaneseq
        %v9265 = vshrl.u32 %v9264, 7
        %v9266 = vsub.s32 0, %v9265
        %v9267 = vrot.slane %v9262, %v9266
        %v9301 = vunpack.c.l.b16 %v9230
        %v9302 = vunpack.c.l.b16 %v9231
        %v9303 = vunpack.c.l.b16 %v9232
        %v9304 = vunpack.c.l.b16 %v9233
        %v9305 = vunpack.c.l.b16 %v9234
        %v9306 = vunpack.c.l.b16 %v9235
        %v9307 = vunpack.c.l.b16 %v9236
        %v9308 = vunpack.c.l.b16 %v9237
        %v9309 = vunpack.c.l.b16 %v9238
        %v9310 = vunpack.c.l.b16 %v9239
        %v9311 = vunpack.c.l.b16 %v9240
        %v9312 = vunpack.c.l.b16 %v9241
        %v9313 = vunpack.c.l.b16 %v9242
        %v9314 = vunpack.c.l.b16 %v9243
        %v9315 = vunpack.c.l.b16 %v9244
        %v9316 = vunpack.c.l.b16 %v9245
        %v9317 = vunpack.c.l.b16 %v9246
        %v9318 = vunpack.c.l.b16 %v9247
        %v9319 = vunpack.c.l.b16 %v9248
        %v9320 = vunpack.c.l.b16 %v9249
        %v9321 = vunpack.c.l.b16 %v9250
        %v9322 = vunpack.c.l.b16 %v9251
        %v9323 = vunpack.c.l.b16 %v9252
        %v9324 = vunpack.c.l.b16 %v9253
        %v9325 = vunpack.c.l.b16 %v9254
        %v9326 = vunpack.c.l.b16 %v9255
        %v9327 = vunpack.c.l.b16 %v9256
        %v9328 = vunpack.c.l.b16 %v9257
        %v9329 = vunpack.c.l.b16 %v9258
        %v9330 = vunpack.c.l.b16 %v9259
        %v9331 = vunpack.c.l.b16 %v9260
        %v9332 = vunpack.c.l.b16 %v9261
        %v9333 = vpack.c.b16 %v9302, %v9301
        %v9334 = vpack.c.b16 %v9304, %v9303
        %v9335 = vpack.c.b16 %v9306, %v9305
        %v9336 = vpack.c.b16 %v9308, %v9307
        %v9337 = vpack.c.b16 %v9310, %v9309
        %v9338 = vpack.c.b16 %v9312, %v9311
        %v9339 = vpack.c.b16 %v9314, %v9313
        %v9340 = vpack.c.b16 %v9316, %v9315
        %v9341 = vpack.c.b16 %v9318, %v9317
        %v9342 = vpack.c.b16 %v9320, %v9319
        %v9343 = vpack.c.b16 %v9322, %v9321
        %v9344 = vpack.c.b16 %v9324, %v9323
        %v9345 = vpack.c.b16 %v9326, %v9325
        %v9346 = vpack.c.b16 %v9328, %v9327
        %v9347 = vpack.c.b16 %v9330, %v9329
        %v9348 = vpack.c.b16 %v9332, %v9331
        %9365 = vmatprep.subr.bf16.mxu0 0
        %9366 = vmatpush1.bf16.msra.mxu0 %v9333
        %9367 = vmatprep.subr.bf16.mxu0 0
        %9368 = vmatpush1.bf16.msra.mxu0 %v9334
        %9369 = vmatprep.subr.bf16.mxu0 0
        %9370 = vmatpush1.bf16.msra.mxu0 %v9335
        %9371 = vmatprep.subr.bf16.mxu0 0
        %9372 = vmatpush1.bf16.msra.mxu0 %v9336
        %9373 = vmatprep.subr.bf16.mxu0 0
        %9374 = vmatpush1.bf16.msra.mxu0 %v9337
        %9375 = vmatprep.subr.bf16.mxu0 0
        %9376 = vmatpush1.bf16.msra.mxu0 %v9338
        %9377 = vmatprep.subr.bf16.mxu0 0
        %9378 = vmatpush1.bf16.msra.mxu0 %v9339
        %9379 = vmatprep.subr.bf16.mxu0 0
        %9380 = vmatpush1.bf16.msra.mxu0 %v9340
        %9381 = vmatprep.subr.bf16.mxu0 0
        %9382 = vmatpush1.bf16.msra.mxu0 %v9341
        %9383 = vmatprep.subr.bf16.mxu0 0
        %9384 = vmatpush1.bf16.msra.mxu0 %v9342
        %9385 = vmatprep.subr.bf16.mxu0 0
        %9386 = vmatpush1.bf16.msra.mxu0 %v9343
        %9387 = vmatprep.subr.bf16.mxu0 0
        %9388 = vmatpush1.bf16.msra.mxu0 %v9344
        %9389 = vmatprep.subr.bf16.mxu0 0
        %9390 = vmatpush1.bf16.msra.mxu0 %v9345
        %9391 = vmatprep.subr.bf16.mxu0 0
        %9392 = vmatpush1.bf16.msra.mxu0 %v9346
        %9393 = vmatprep.subr.bf16.mxu0 0
        %9394 = vmatpush1.bf16.msra.mxu0 %v9347
        %9395 = vmatprep.subr.bf16.mxu0 0
        %9396 = vmatpush1.bf16.msra.mxu0 %v9348
        %9397 = vmatprep.mubr.bf16.mxu0 %v9207
        %9398 = vmatmul.mubr.bf16.gmra.mrb[0].mxu0 %v9206
        %v9399 = vpop.f32.mrb[0].mxu0
        %v9400 = vadd.f32 %v9267, %v9399
        %v9401 = vpop.f32.mrb[0].mxu0
        %v9402 = vpop.f32.mrb[0].mxu0
        %v9403 = vadd.f32 %v9267, %v9402
        %v9404 = vpop.f32.mrb[0].mxu0
        %9405 = vmatprep.mubr.bf16.mxu0 %v9209
        %9406 = vmatmul.mubr.bf16.gmra.mrb[0].mxu0 %v9208
        %v9407 = vpop.f32.mrb[0].mxu0
        %v9408 = vadd.f32 %v9267, %v9407
        %v9409 = vpop.f32.mrb[0].mxu0
        %v9410 = vpop.f32.mrb[0].mxu0
        %v9411 = vadd.f32 %v9267, %v9410
        %v9412 = vpop.f32.mrb[0].mxu0
        %9413 = vmatprep.mubr.bf16.mxu0 %v9211
        %9414 = vmatmul.mubr.bf16.gmra.mrb[0].mxu0 %v9210
        %v9415 = vpop.f32.mrb[0].mxu0
        %v9416 = vadd.f32 %v9267, %v9415
        %v9417 = vpop.f32.mrb[0].mxu0
        %v9418 = vpop.f32.mrb[0].mxu0
        %v9419 = vadd.f32 %v9267, %v9418
        %v9420 = vpop.f32.mrb[0].mxu0
        %9421 = vmatprep.mubr.bf16.mxu0 %v9213
        %9422 = vmatmul.mubr.bf16.gmra.mrb[0].mxu0 %v9212
        %v9423 = vpop.f32.mrb[0].mxu0
        %v9424 = vadd.f32 %v9267, %v9423
        %v9425 = vpop.f32.mrb[0].mxu0
        %v9426 = vpop.f32.mrb[0].mxu0
        %v9427 = vadd.f32 %v9267, %v9426
        %v9428 = vpop.f32.mrb[0].mxu0
        %9429 = vmatprep.mubr.bf16.mxu0 %v9215
        %9430 = vmatmul.mubr.bf16.gmra.mrb[0].mxu0 %v9214
        %v9431 = vpop.f32.mrb[0].mxu0
        %v9432 = vadd.f32 %v9267, %v9431
        %v9433 = vpop.f32.mrb[0].mxu0
        %v9434 = vpop.f32.mrb[0].mxu0
        %v9435 = vadd.f32 %v9267, %v9434
        %v9436 = vpop.f32.mrb[0].mxu0
        %9437 = vmatprep.mubr.bf16.mxu0 %v9217
        %9438 = vmatmul.mubr.bf16.gmra.mrb[0].mxu0 %v9216
        %v9439 = vpop.f32.mrb[0].mxu0
        %v9440 = vadd.f32 %v9267, %v9439
        %v9441 = vpop.f32.mrb[0].mxu0
        %v9442 = vpop.f32.mrb[0].mxu0
        %v9443 = vadd.f32 %v9267, %v9442
        %v9444 = vpop.f32.mrb[0].mxu0
        %9445 = vmatprep.mubr.bf16.mxu0 %v9219
        %9446 = vmatmul.mubr.bf16.gmra.mrb[0].mxu0 %v9218
        %v9447 = vpop.f32.mrb[0].mxu0
        %v9448 = vadd.f32 %v9267, %v9447
        %v9449 = vpop.f32.mrb[0].mxu0
        %v9450 = vpop.f32.mrb[0].mxu0
        %v9451 = vadd.f32 %v9267, %v9450
        %v9452 = vpop.f32.mrb[0].mxu0
        %9453 = vmatprep.mubr.bf16.mxu0 %v9221
        %9454 = vmatmul.mubr.bf16.gmra.mrb[0].mxu0 %v9220
        %v9455 = vpop.f32.mrb[0].mxu0
        %v9456 = vadd.f32 %v9267, %v9455
        %v9457 = vpop.f32.mrb[0].mxu0
        %v9458 = vpop.f32.mrb[0].mxu0
        %v9459 = vadd.f32 %v9267, %v9458
        %v9460 = vpop.f32.mrb[0].mxu0
        %9461 = vmatprep.mubr.bf16.mxu0 %v9223
        %9462 = vmatmul.mubr.bf16.gmra.mrb[0].mxu0 %v9222
        %v9463 = vpop.f32.mrb[0].mxu0
        %v9464 = vadd.f32 %v9267, %v9463
        %v9465 = vpop.f32.mrb[0].mxu0
        %v9466 = vpop.f32.mrb[0].mxu0
        %v9467 = vadd.f32 %v9267, %v9466
        %v9468 = vpop.f32.mrb[0].mxu0
        %9469 = vmatprep.mubr.bf16.mxu0 %v9225
        %9470 = vmatmul.mubr.bf16.gmra.mrb[0].mxu0 %v9224
        %v9471 = vpop.f32.mrb[0].mxu0
        %v9472 = vadd.f32 %v9267, %v9471
        %v9473 = vpop.f32.mrb[0].mxu0
        %v9474 = vpop.f32.mrb[0].mxu0
        %v9475 = vadd.f32 %v9267, %v9474
        %v9476 = vpop.f32.mrb[0].mxu0
        %9477 = vmatprep.mubr.bf16.mxu0 %v9227
        %9478 = vmatmul.mubr.bf16.gmra.mrb[0].mxu0 %v9226
        %v9479 = vpop.f32.mrb[0].mxu0
        %v9480 = vadd.f32 %v9267, %v9479
        %v9481 = vpop.f32.mrb[0].mxu0
        %v9482 = vpop.f32.mrb[0].mxu0
        %v9483 = vadd.f32 %v9267, %v9482
        %v9484 = vpop.f32.mrb[0].mxu0
        %9485 = vmatprep.mubr.bf16.mxu0 %v9229
        %9486 = vmatmul.mubr.bf16.gmra.mrb[0].mxu0 %v9228
        %v9487 = vpop.f32.mrb[0].mxu0
        %v9488 = vadd.f32 %v9267, %v9487
        %v9489 = vpop.f32.mrb[0].mxu0
        %v9490 = vpop.f32.mrb[0].mxu0
        %v9491 = vadd.f32 %v9267, %v9490
        %v9492 = vpop.f32.mrb[0].mxu0
        %9493 = vdwg.mxu0
        %9494 = vst [vmem:[%s570] sm:$0xff] %v9400
        %9495 = vst [vmem:[%s570 + $0x8] sm:$0xff] %v9403
        %9496 = vst [vmem:[%s570 + $0x10] sm:$0xff] %v9408
        %9497 = vst [vmem:[%s570 + $0x18] sm:$0xff] %v9411
        %9498 = vst [vmem:[%s570 + $0x20] sm:$0xff] %v9416
        %9499 = vst [vmem:[%s570 + $0x28] sm:$0xff] %v9419
        %9500 = vst [vmem:[%s570 + $0x30] sm:$0xff] %v9424
        %9501 = vst [vmem:[%s570 + $0x38] sm:$0xff] %v9427
        %9502 = vst [vmem:[%s570 + $0x40] sm:$0xff] %v9432
        %9503 = vst [vmem:[%s570 + $0x48] sm:$0xff] %v9435
        %9504 = vst [vmem:[%s570 + $0x50] sm:$0xff] %v9440
        %9505 = vst [vmem:[%s570 + $0x58] sm:$0xff] %v9443
        %9506 = vst [vmem:[%s570 + $0x60] sm:$0xff] %v9448
        %9507 = vst [vmem:[%s570 + $0x68] sm:$0xff] %v9451
        %9508 = vst [vmem:[%s570 + $0x70] sm:$0xff] %v9456
        %9509 = vst [vmem:[%s570 + $0x78] sm:$0xff] %v9459
        %9510 = vst [vmem:[%s570 + $0x80] sm:$0xff] %v9464
        %9511 = vst [vmem:[%s570 + $0x88] sm:$0xff] %v9467
        %9512 = vst [vmem:[%s570 + $0x90] sm:$0xff] %v9472
        %9513 = vst [vmem:[%s570 + $0x98] sm:$0xff] %v9475
        %9514 = vst [vmem:[%s570 + $0xa0] sm:$0xff] %v9480
        %9515 = vst [vmem:[%s570 + $0xa8] sm:$0xff] %v9483
        %9516 = vst [vmem:[%s570 + $0xb0] sm:$0xff] %v9488
        %9517 = vst [vmem:[%s570 + $0xb8] sm:$0xff] %v9491
        %s9518 = sand.u32 %s320, 1
        %s9519 = scalar_lea.sflag [#allocation4], %s9518
        %s9520 = sand.u32 %s320, 1
        %s9521 = smul.addr %s9520, 192
        %s9522 = scalar_lea.vmem [#allocation17], %s9521
        // Predicated region
        $region109: #{tpu_custom_call.1} parent=71 // pred_check
          %p9523 = pneg %p330
        $region110: #{tpu_custom_call.1} parent=71 // pred_check_branch
          %9525 = sbr.rel (%p9523) target = $region112
        $region111: #{tpu_custom_call.1} parent=71 // pred_region
          %s9526 = smul.u32 24, %s34
          %s9528 = ssub.s32 3072, 3072
          %9529 = vsyncadd %s9519, %s9528
          %s9530 = smul.addr %s9526, 128
          %s9531 = scalar_lea.hbm %s13, %s9530
          %s9532 = sshll.u32 %s9522, 4
          %s9533 = int_to_ptr.vmem [resolvable:$true] %s9532
          %9538 = dma.vmem_to_hbm [thread:$0]  %s9533, 3072, %s9531, %s9519, 128, 128, 8
        $region112: #{tpu_custom_call.1} parent=71 // pred_fallthru
          _
      $region72: #{tpu_custom_call.1} parent=5 // pred_fallthru
        _
      %p9539 = scmp.le.s32.totalorder 2, %s29
      // Predicated region
      $region113: #{tpu_custom_call.1} parent=5 // pred_check
        %p9540 = pneg %p9539
      $region114: #{tpu_custom_call.1} parent=5 // pred_check_branch
        %9542 = sbr.rel (%p9540) target = $region116
      $region115: #{tpu_custom_call.1} parent=5 // pred_region
        %s9543 = ssub.s32 %s29, 2
        // Predicated region
        $region117: #{tpu_custom_call.1} parent=115 // pred_check
          %p9544 = pneg %p336
        $region118: #{tpu_custom_call.1} parent=115 // pred_check_branch
          %9546 = sbr.rel (%p9544) target = $region120
        $region119: #{tpu_custom_call.1} parent=115 // pred_region
          %s9547 = sand.u32 %s321, 1
          %s9548 = scalar_lea.sflag [#allocation4], %s9547
          %s9549 = sand.u32 %s321, 1
          %s9550 = smul.addr %s9549, 192
          %s9551 = scalar_lea.vmem [#allocation17], %s9550
          %9552 = dma.done %s9548, 3072
        $region120: #{tpu_custom_call.1} parent=115 // pred_fallthru
          _
      $region116: #{tpu_custom_call.1} parent=5 // pred_fallthru
        _
    $region6: #{tpu_custom_call.1} parent=1 // loop_footer
      %s33 = sadd.s32 1, %s29
    $region7: #{tpu_custom_call.1} parent=1 // loop_footer_branch
      %28 = sbr.rel target = $region3
    $region8: #{tpu_custom_call.1} parent=1 // loop_exit
      _
    %9553 = vsyncpa [#allocation3], 1
    %s9554 = scalar_lea.sflag [#allocation3], 1
    %9555 = vsyncpa %s9554, 1
    %9556 = vsyncpa [#allocation6], 1
    %9557 = vsyncpa [#allocation9], 1
    %9558 = vsyncpa [#allocation12], 1
    %9559 = vsyncpa [#allocation15], 1
    %9560 = vsyncpa [#allocation4], 1
    %s9561 = scalar_lea.sflag [#allocation4], 1
    %9562 = vsyncpa %s9561, 1

</llo_original>
